<compile_context>
chip_gen: v5e
topology: v5e:2x2
jax: 0.10.0
libtpu: 0.0.40
codegen_flags: <defaults>
</compile_context>

<pallas_src>
import math
import functools

import jax
import jax.numpy as jnp
from jax.experimental import pallas as pl
from jax.experimental.pallas import tpu as pltpu


WEIGHT_DTYPE = jnp.bfloat16      # MXU-input dtype for matmul weights / activations
LN_EPS = 1e-5                    # torch.nn.LayerNorm default
MASK_VALUE = -1e30               # additive key-padding mask value (finite -> no NaN)
ROW_TARGET = 256                 # target matmul rows (Bt * S) per grid step
VMEM_LIMIT = 48 * 1024 * 1024    # safe on v5e/v6e (128 MiB) and v7x (64 MiB physical)


def _cparams(n_axes=1):
    return pltpu.CompilerParams(
        dimension_semantics=("parallel",) * n_axes,
        vmem_limit_bytes=VMEM_LIMIT)


def _rep_spec(arr):
    """Whole-array block, same block for every grid step (weights / biases / LN params)."""
    nd = arr.ndim
    return pl.BlockSpec(arr.shape, lambda *_: (0,) * nd)


def _pick_batch_tile(B, S):
    """Choose how many batches to process per grid step so that Bt*S ~ ROW_TARGET rows."""
    bt = max(1, min(B, ROW_TARGET // max(S, 1)))
    while B % bt:
        bt -= 1
    return bt


# ------------------------------ in-kernel helpers ------------------------------

def _layernorm(x, w, b):
    mean = jnp.mean(x, axis=-1, keepdims=True)
    var = jnp.mean(jnp.square(x - mean), axis=-1, keepdims=True)
    return (x - mean) * jax.lax.rsqrt(var + LN_EPS) * w + b


def _mha(q3, kv3, add_mask, attn_sc, *, n_head, cdt):
    """Multi-head attention.

    q3:       [Bt, Sq, D]   f32 (scale already folded into the Q projection weights)
    kv3:      [Bt, Sk, 2D]  f32 (K | V)
    add_mask: [Bt, 1, Sk]   f32 additive key-padding mask
    attn_sc:  VMEM scratch ref [Bt*Sq, D] f32 — head outputs written at lane offsets.
    Returns the concatenated head outputs as a [Bt*Sq, D] f32 value.
    """
    Bt, Sq, D = q3.shape
    dh = D // n_head
    for h in range(n_head):                                    # static unroll
        qh = q3[:, :, h * dh:(h + 1) * dh]                     # [Bt, Sq, dh]
        kh = kv3[:, :, h * dh:(h + 1) * dh]                    # [Bt, Sk, dh]
        vh = kv3[:, :, D + h * dh:D + (h + 1) * dh]            # [Bt, Sk, dh]
        s = jax.lax.dot_general(                               # q @ k^T, batched over Bt
            qh.astype(cdt), kh.astype(cdt),
            (((2,), (2,)), ((0,), (0,))),
            preferred_element_type=jnp.float32)                # [Bt, Sq, Sk]
        s = s + add_mask                                       # broadcast over query rows
        m = jnp.max(s, axis=-1, keepdims=True)
        p = jnp.exp(s - m)
        p = p * pl.reciprocal(jnp.sum(p, axis=-1, keepdims=True), approx=True)
        oh = jax.lax.dot_general(                              # p @ v, batched over Bt
            p.astype(cdt), vh.astype(cdt),
            (((2,), (1,)), ((0,), (0,))),
            preferred_element_type=jnp.float32)                # [Bt, Sq, dh]
        attn_sc[:, h * dh:(h + 1) * dh] = oh.reshape(Bt * Sq, dh)
    return attn_sc[...]                                        # [Bt*Sq, D] f32


# ------------------------------ Pallas kernels ------------------------------

def _embed_pe_kernel(x_ref, w_ref, pe_ref, o_ref, *, n_feat):
    # o = x @ W_emb + PE.  K = n_feat is tiny (e.g. 2): compute on the VPU with
    # broadcast multiply-adds instead of a near-empty MXU contraction.
    x = x_ref[...]                                   # [Bt, S, F] f32
    w = w_ref[...].astype(jnp.float32)               # [F, D]
    emb = x[:, :, 0:1] * w[0:1, :][None]             # [Bt, S, D]
    for f in range(1, n_feat):
        emb = emb + x[:, :, f:f + 1] * w[f:f + 1, :][None]
    o_ref[...] = emb + pe_ref[...][None]


def _encoder_layer_kernel(x_ref, mask_ref,
                          wqkv_ref, bqkv_ref, wo_ref, bo_ref, ln1w_ref, ln1b_ref,
                          w1_ref, b1_ref, w2_ref, b2_ref, ln2w_ref, ln2b_ref,
                          fnw_ref, fnb_ref,
                          o_ref, attn_sc, *, n_head, final_norm):
    Bt, S, D = x_ref.shape
    cdt = wqkv_ref.dtype
    x = x_ref[...].reshape(Bt * S, D)                # residual stream, f32, flattened rows

    # --- self-attention block: fused QKV, per-head softmax, out-proj, residual + LN ---
    qkv = (jnp.dot(x.astype(cdt), wqkv_ref[...],
                   preferred_element_type=jnp.float32) + bqkv_ref[...])     # [Bt*S, 3D]
    qkv3 = qkv.reshape(Bt, S, 3 * D)
    attn = _mha(qkv3[:, :, :D], qkv3[:, :, D:], mask_ref[...], attn_sc,
                n_head=n_head, cdt=cdt)                                     # [Bt*S, D]
    y = (jnp.dot(attn.astype(cdt), wo_ref[...],
                 preferred_element_type=jnp.float32) + bo_ref[...])
    x = _layernorm(x + y, ln1w_ref[...], ln1b_ref[...])

    # --- FFN block: intermediate never leaves VMEM ---
    h = (jnp.dot(x.astype(cdt), w1_ref[...],
                 preferred_element_type=jnp.float32) + b1_ref[...])
    h = jnp.maximum(h, 0.0)
    y = (jnp.dot(h.astype(cdt), w2_ref[...],
                 preferred_element_type=jnp.float32) + b2_ref[...])
    x = _layernorm(x + y, ln2w_ref[...], ln2b_ref[...])

    if final_norm:                                   # encoder_norm folded into last layer
        x = _layernorm(x, fnw_ref[...], fnb_ref[...])
    o_ref[...] = x.reshape(Bt, S, D)


def _decoder_layer_compute(x_ref, mem_ref, tmask_ref, mmask_ref, prm, attn_sc, n_head):
    (swqkv, sbqkv, swo, sbo, ln1w, ln1b,
     cwq, cbq, cwkv, cbkv, cwo, cbo, ln2w, ln2b,
     w1, b1, w2, b2, ln3w, ln3b) = prm
    Bt, Sd, D = x_ref.shape
    Se = mem_ref.shape[1]
    cdt = swqkv.dtype
    x = x_ref[...].reshape(Bt * Sd, D)

    # --- decoder self-attention ---
    qkv = (jnp.dot(x.astype(cdt), swqkv[...],
                   preferred_element_type=jnp.float32) + sbqkv[...])
    qkv3 = qkv.reshape(Bt, Sd, 3 * D)
    attn = _mha(qkv3[:, :, :D], qkv3[:, :, D:], tmask_ref[...], attn_sc,
                n_head=n_head, cdt=cdt)
    y = (jnp.dot(attn.astype(cdt), swo[...],
                 preferred_element_type=jnp.float32) + sbo[...])
    x = _layernorm(x + y, ln1w[...], ln1b[...])

    # --- cross-attention (queries from x, keys/values from encoder memory) ---
    q = (jnp.dot(x.astype(cdt), cwq[...],
                 preferred_element_type=jnp.float32) + cbq[...])            # [Bt*Sd, D]
    mem = mem_ref[...].reshape(Bt * Se, D)
    kv = (jnp.dot(mem.astype(cdt), cwkv[...],
                  preferred_element_type=jnp.float32) + cbkv[...])          # [Bt*Se, 2D]
    attn = _mha(q.reshape(Bt, Sd, D), kv.reshape(Bt, Se, 2 * D), mmask_ref[...],
                attn_sc, n_head=n_head, cdt=cdt)
    y = (jnp.dot(attn.astype(cdt), cwo[...],
                 preferred_element_type=jnp.float32) + cbo[...])
    x = _layernorm(x + y, ln2w[...], ln2b[...])

    # --- FFN ---
    h = (jnp.dot(x.astype(cdt), w1[...],
                 preferred_element_type=jnp.float32) + b1[...])
    h = jnp.maximum(h, 0.0)
    y = (jnp.dot(h.astype(cdt), w2[...],
                 preferred_element_type=jnp.float32) + b2[...])
    x = _layernorm(x + y, ln3w[...], ln3b[...])
    return x                                          # [Bt*Sd, D] f32


def _decoder_layer_kernel(x_ref, mem_ref, tmask_ref, mmask_ref,
                          swqkv, sbqkv, swo, sbo, ln1w, ln1b,
                          cwq, cbq, cwkv, cbkv, cwo, cbo, ln2w, ln2b,
                          w1, b1, w2, b2, ln3w, ln3b,
                          o_ref, attn_sc, *, n_head):
    prm = (swqkv, sbqkv, swo, sbo, ln1w, ln1b,
           cwq, cbq, cwkv, cbkv, cwo, cbo, ln2w, ln2b,
           w1, b1, w2, b2, ln3w, ln3b)
    x = _decoder_layer_compute(x_ref, mem_ref, tmask_ref, mmask_ref, prm, attn_sc, n_head)
    Bt, Sd, D = x_ref.shape
    o_ref[...] = x.reshape(Bt, Sd, D)


def _decoder_final_layer_kernel(x_ref, mem_ref, tmask_ref, mmask_ref,
                                swqkv, sbqkv, swo, sbo, ln1w, ln1b,
                                cwq, cbq, cwkv, cbkv, cwo, cbo, ln2w, ln2b,
                                w1, b1, w2, b2, ln3w, ln3b,
                                fnw, fnb, projw,
                                o_ref, attn_sc, *, n_head):
    prm = (swqkv, sbqkv, swo, sbo, ln1w, ln1b,
           cwq, cbq, cwkv, cbkv, cwo, cbo, ln2w, ln2b,
           w1, b1, w2, b2, ln3w, ln3b)
    x = _decoder_layer_compute(x_ref, mem_ref, tmask_ref, mmask_ref, prm, attn_sc, n_head)
    # final decoder LayerNorm + output projection fused here (lane-dense padded output)
    y = _layernorm(x, fnw[...], fnb[...])
    out = jnp.dot(y.astype(projw.dtype), projw[...],
                  preferred_element_type=jnp.float32)          # [Bt*Sd, Npad]
    Bt, Sd, _ = x_ref.shape
    o_ref[...] = out.reshape(Bt, Sd, projw.shape[1])


# ------------------------------ kernel wrappers ------------------------------

def embed_with_pe(x, w_emb, pe):
    B, S, F = x.shape
    D = w_emb.shape[1]
    Bt = _pick_batch_tile(B, S)
    kern = functools.partial(_embed_pe_kernel, n_feat=F)
    return pl.pallas_call(
        kern,
        out_shape=jax.ShapeDtypeStruct((B, S, D), jnp.float32),
        grid=(B // Bt,),
        in_specs=[pl.BlockSpec((Bt, S, F), lambda b: (b, 0, 0)),
                  _rep_spec(w_emb), _rep_spec(pe)],
        out_specs=pl.BlockSpec((Bt, S, D), lambda b: (b, 0, 0)),
        compiler_params=_cparams(1),
    )(x, w_emb, pe)


def encoder_layer(x, add_mask, lp, enc_norm_w, enc_norm_b, *, n_head, final_norm):
    B, S, D = x.shape
    Bt = _pick_batch_tile(B, S)
    sa = lp['self_attn']
    prm = [sa['wqkv'], sa['bqkv'], sa['wo'], sa['bo'], lp['ln1_w'], lp['ln1_b'],
           lp['ffn_w1'], lp['ffn_b1'], lp['ffn_w2'], lp['ffn_b2'],
           lp['ln2_w'], lp['ln2_b'], enc_norm_w, enc_norm_b]
    kern = functools.partial(_encoder_layer_kernel, n_head=n_head, final_norm=final_norm)
    return pl.pallas_call(
        kern,
        out_shape=jax.ShapeDtypeStruct((B, S, D), jnp.float32),
        grid=(B // Bt,),
        in_specs=[pl.BlockSpec((Bt, S, D), lambda b: (b, 0, 0)),
                  pl.BlockSpec((Bt, 1, S), lambda b: (b, 0, 0))]
                 + [_rep_spec(p) for p in prm],
        out_specs=pl.BlockSpec((Bt, S, D), lambda b: (b, 0, 0)),
        scratch_shapes=[pltpu.VMEM((Bt * S, D), jnp.float32)],
        compiler_params=_cparams(1),
    )(x, add_mask, *prm)


def _dec_prm_list(lp):
    sa, ca = lp['self_attn'], lp['cross_attn']
    return [sa['wqkv'], sa['bqkv'], sa['wo'], sa['bo'], lp['ln1_w'], lp['ln1_b'],
            ca['wq'], ca['bq'], ca['wkv'], ca['bkv'], ca['wo'], ca['bo'],
            lp['ln2_w'], lp['ln2_b'],
            lp['ffn_w1'], lp['ffn_b1'], lp['ffn_w2'], lp['ffn_b2'],
            lp['ln3_w'], lp['ln3_b']]


def decoder_layer(x, mem, tgt_mask, mem_mask, lp, *, n_head):
    B, Sd, D = x.shape
    Se = mem.shape[1]
    Bt = _pick_batch_tile(B, Sd)
    prm = _dec_prm_list(lp)
    kern = functools.partial(_decoder_layer_kernel, n_head=n_head)
    return pl.pallas_call(
        kern,
        out_shape=jax.ShapeDtypeStruct((B, Sd, D), jnp.float32),
        grid=(B // Bt,),
        in_specs=[pl.BlockSpec((Bt, Sd, D), lambda b: (b, 0, 0)),
                  pl.BlockSpec((Bt, Se, D), lambda b: (b, 0, 0)),
                  pl.BlockSpec((Bt, 1, Sd), lambda b: (b, 0, 0)),
                  pl.BlockSpec((Bt, 1, Se), lambda b: (b, 0, 0))]
                 + [_rep_spec(p) for p in prm],
        out_specs=pl.BlockSpec((Bt, Sd, D), lambda b: (b, 0, 0)),
        scratch_shapes=[pltpu.VMEM((Bt * Sd, D), jnp.float32)],
        compiler_params=_cparams(1),
    )(x, mem, tgt_mask, mem_mask, *prm)


def decoder_final_layer(x, mem, tgt_mask, mem_mask, lp, norm_w, norm_b, proj_w_padded,
                        *, n_head):
    B, Sd, D = x.shape
    Se = mem.shape[1]
    Np = proj_w_padded.shape[1]
    Bt = _pick_batch_tile(B, Sd)
    prm = _dec_prm_list(lp) + [norm_w, norm_b, proj_w_padded]
    kern = functools.partial(_decoder_final_layer_kernel, n_head=n_head)
    return pl.pallas_call(
        kern,
        out_shape=jax.ShapeDtypeStruct((B, Sd, Np), jnp.float32),
        grid=(B // Bt,),
        in_specs=[pl.BlockSpec((Bt, Sd, D), lambda b: (b, 0, 0)),
                  pl.BlockSpec((Bt, Se, D), lambda b: (b, 0, 0)),
                  pl.BlockSpec((Bt, 1, Sd), lambda b: (b, 0, 0)),
                  pl.BlockSpec((Bt, 1, Se), lambda b: (b, 0, 0))]
                 + [_rep_spec(p) for p in prm],
        out_specs=pl.BlockSpec((Bt, Sd, Np), lambda b: (b, 0, 0)),
        scratch_shapes=[pltpu.VMEM((Bt * Sd, D), jnp.float32)],
        compiler_params=_cparams(1),
    )(x, mem, tgt_mask, mem_mask, *prm)


# ------------------------------ forward pass ------------------------------

def positional_encoding(seq_len, d_model):
    pos = jnp.arange(seq_len, dtype=jnp.float32)[:, None]
    div = jnp.exp(jnp.arange(0, d_model, 2, dtype=jnp.float32)
                  * (-math.log(10000.0) / d_model))
    pe = jnp.zeros((seq_len, d_model), dtype=jnp.float32)
    pe = pe.at[:, 0::2].set(jnp.sin(pos * div))
    pe = pe.at[:, 1::2].set(jnp.cos(pos * div))
    return pe          # constant-folded by XLA (depends only on static shapes)


def traj_transformer_forward(params, enc_inputs, enc_pad_mask, dec_inputs, dec_pad_mask,
                             *, n_head):
    # enc_inputs: [B, S_enc, pro_up_dim], enc_pad_mask: [B, S_enc] bool (True = pad)
    # dec_inputs: [B, S_dec, pro_up_dim], dec_pad_mask: [B, S_dec] bool
    B, Se, _ = enc_inputs.shape
    Sd = dec_inputs.shape[1]
    D = params['enc_emb_w'].shape[1]

    # tiny additive masks; expanded to [Sq, Sk] inside the kernels on the VPU
    enc_add_mask = jnp.where(enc_pad_mask, MASK_VALUE, 0.0).astype(jnp.float32).reshape(B, 1, Se)
    dec_add_mask = jnp.where(dec_pad_mask, MASK_VALUE, 0.0).astype(jnp.float32).reshape(B, 1, Sd)

    mem = embed_with_pe(enc_inputs, params['enc_emb_w'], positional_encoding(Se, D))
    x = embed_with_pe(dec_inputs, params['dec_emb_w'], positional_encoding(Sd, D))

    n_enc = len(params['enc_layers'])
    for i, lp in enumerate(params['enc_layers']):
        mem = encoder_layer(mem, enc_add_mask, lp,
                            params['enc_norm_w'], params['enc_norm_b'],
                            n_head=n_head, final_norm=(i == n_enc - 1))

    # pad the projection to a lane-dense width so the final store is unmasked
    Nd = params['proj_w'].shape[1]
    Npad = ((Nd + 127) // 128) * 128
    proj_pad = jnp.pad(params['proj_w'], ((0, 0), (0, Npad - Nd)))

    n_dec = len(params['dec_layers'])
    for i, lp in enumerate(params['dec_layers']):
        if i < n_dec - 1:
            x = decoder_layer(x, mem, dec_add_mask, enc_add_mask, lp, n_head=n_head)
        else:
            x = decoder_final_layer(x, mem, dec_add_mask, enc_add_mask, lp,
                                    params['dec_norm_w'], params['dec_norm_b'], proj_pad,
                                    n_head=n_head)
    return x[:, :, :Nd]


# ------------------------------ parameter init ------------------------------

def _xavier(key, shape, dtype=WEIGHT_DTYPE):
    fan_in, fan_out = shape
    bound = math.sqrt(6.0 / (fan_in + fan_out))
    return jax.random.uniform(key, shape, jnp.float32, -bound, bound).astype(dtype)


def _init_self_attn(key, d_model, n_head):
    ks = jax.random.split(key, 2)
    scale = 1.0 / math.sqrt(d_model // n_head)
    w = _xavier(ks[0], (d_model, 3 * d_model), jnp.float32)
    w = w.at[:, :d_model].multiply(scale)          # fold attention scale into Q columns
    # NOTE: a non-zero Q bias would need the same scaling when converting a checkpoint.
    return {
        'wqkv': w.astype(WEIGHT_DTYPE),            # fused Q|K|V
        'bqkv': jnp.zeros((1, 3 * d_model), jnp.float32),
        'wo': _xavier(ks[1], (d_model, d_model)),
        'bo': jnp.zeros((1, d_model), jnp.float32),
    }


def _init_cross_attn(key, d_model, n_head):
    ks = jax.random.split(key, 3)
    scale = 1.0 / math.sqrt(d_model // n_head)
    wq = _xavier(ks[0], (d_model, d_model), jnp.float32) * scale   # scale folded into Wq
    return {
        'wq': wq.astype(WEIGHT_DTYPE),
        'bq': jnp.zeros((1, d_model), jnp.float32),
        'wkv': _xavier(ks[1], (d_model, 2 * d_model)),             # fused K|V
        'bkv': jnp.zeros((1, 2 * d_model), jnp.float32),
        'wo': _xavier(ks[2], (d_model, d_model)),
        'bo': jnp.zeros((1, d_model), jnp.float32),
    }


def _ln_params(d_model):
    return jnp.ones((1, d_model), jnp.float32), jnp.zeros((1, d_model), jnp.float32)


def _init_enc_layer(key, d_model, dff, n_head):
    ks = jax.random.split(key, 3)
    ln1_w, ln1_b = _ln_params(d_model)
    ln2_w, ln2_b = _ln_params(d_model)
    return {
        'self_attn': _init_self_attn(ks[0], d_model, n_head),
        'ffn_w1': _xavier(ks[1], (d_model, dff)), 'ffn_b1': jnp.zeros((1, dff), jnp.float32),
        'ffn_w2': _xavier(ks[2], (dff, d_model)), 'ffn_b2': jnp.zeros((1, d_model), jnp.float32),
        'ln1_w': ln1_w, 'ln1_b': ln1_b, 'ln2_w': ln2_w, 'ln2_b': ln2_b,
    }


def _init_dec_layer(key, d_model, dff, n_head):
    ks = jax.random.split(key, 4)
    ln1_w, ln1_b = _ln_params(d_model)
    ln2_w, ln2_b = _ln_params(d_model)
    ln3_w, ln3_b = _ln_params(d_model)
    return {
        'self_attn': _init_self_attn(ks[0], d_model, n_head),
        'cross_attn': _init_cross_attn(ks[1], d_model, n_head),
        'ffn_w1': _xavier(ks[2], (d_model, dff)), 'ffn_b1': jnp.zeros((1, dff), jnp.float32),
        'ffn_w2': _xavier(ks[3], (dff, d_model)), 'ffn_b2': jnp.zeros((1, d_model), jnp.float32),
        'ln1_w': ln1_w, 'ln1_b': ln1_b, 'ln2_w': ln2_w, 'ln2_b': ln2_b,
        'ln3_w': ln3_w, 'ln3_b': ln3_b,
    }


def init_params(key, *, pro_up_dim, d_model, pro_down_dim, dff, n_head,
                num_encoder_layers, num_decoder_layers):
    keys = jax.random.split(key, 3 + num_encoder_layers + num_decoder_layers)
    enc_norm_w, enc_norm_b = _ln_params(d_model)
    dec_norm_w, dec_norm_b = _ln_params(d_model)
    return {
        # embedding weights kept f32: their K(=pro_up_dim) contraction runs on the VPU
        'enc_emb_w': _xavier(keys[0], (pro_up_dim, d_model), jnp.float32),
        'dec_emb_w': _xavier(keys[1], (pro_up_dim, d_model), jnp.float32),
        'proj_w':    _xavier(keys[2], (d_model, pro_down_dim)),
        'enc_layers': [_init_enc_layer(keys[3 + i], d_model, dff, n_head)
                       for i in range(num_encoder_layers)],
        'dec_layers': [_init_dec_layer(keys[3 + num_encoder_layers + i], d_model, dff, n_head)
                       for i in range(num_decoder_layers)],
        'enc_norm_w': enc_norm_w, 'enc_norm_b': enc_norm_b,
        'dec_norm_w': dec_norm_w, 'dec_norm_b': dec_norm_b,
    }


# ------------------------------------ main ------------------------------------

if __name__ == "__main__":
    # Small, module-consistent config (down-scaled from defaults 512/2048/8/6 for speed).
    PRO_UP_DIM = 2
    PRO_DOWN_DIM = 2
    D_MODEL = 64
    DFF = 128
    N_HEAD = 4
    NUM_ENC = 2
    NUM_DEC = 2
    B, S_ENC, S_DEC = 2, 8, 8

    root = jax.random.PRNGKey(0)
    k_param, k_enc, k_dec = jax.random.split(root, 3)

    params = init_params(k_param, pro_up_dim=PRO_UP_DIM, d_model=D_MODEL,
                         pro_down_dim=PRO_DOWN_DIM, dff=DFF, n_head=N_HEAD,
                         num_encoder_layers=NUM_ENC, num_decoder_layers=NUM_DEC)

    enc_inputs = jax.random.normal(k_enc, (B, S_ENC, PRO_UP_DIM), jnp.float32)
    dec_inputs = jax.random.normal(k_dec, (B, S_DEC, PRO_UP_DIM), jnp.float32)
    # key-padding masks: True = padded position (never fully masks a row).
    enc_pad_mask = jnp.array([[False] * 6 + [True] * 2,
                              [False] * 8], dtype=bool)
    dec_pad_mask = jnp.array([[False] * 7 + [True] * 1,
                              [False] * 8], dtype=bool)

    fwd = jax.jit(functools.partial(traj_transformer_forward, n_head=N_HEAD))
    out = fwd(params, enc_inputs, enc_pad_mask, dec_inputs, dec_pad_mask)
    out = jax.block_until_ready(out)

    assert out.shape == (B, S_DEC, PRO_DOWN_DIM), out.shape
    assert bool(jnp.all(jnp.isfinite(out)))
    print("KERNEL_OK")
</pallas_src>

<mosaic_0001>
module attributes {stable_mosaic.version = 11 : i64} {
  func.func @_embed_pe_kernel(%arg0: i32, %arg1: memref<2x8x2xf32, #tpu.memory_space<vmem>>, %arg2: memref<2x64xf32, #tpu.memory_space<vmem>>, %arg3: memref<8x64xf32, #tpu.memory_space<vmem>>, %arg4: memref<2x8x64xf32, #tpu.memory_space<vmem>>) attributes {dimension_semantics = [#tpu.dimension_semantics<parallel>], iteration_bounds = array<i64: 1>, scalar_prefetch = 0 : i64, scratch_operands = 0 : i64, tpu.core_type = #tpu.core_type<tc>, window_params = [{transform_indices = @transform_0, window_bounds = array<i64: 2, 8, 2>}, {pipeline_mode = #tpu.pipeline_mode<synchronous>, transform_indices = @transform_1, window_bounds = array<i64: 2, 64>}, {pipeline_mode = #tpu.pipeline_mode<synchronous>, transform_indices = @transform_2, window_bounds = array<i64: 8, 64>}, {transform_indices = @transform_3, window_bounds = array<i64: 2, 8, 64>}]} {
    %c0 = arith.constant 0 : index
    %c0_0 = arith.constant 0 : index
    %c0_1 = arith.constant 0 : index
    %0 = vector.load %arg1[%c0, %c0_0, %c0_1] : memref<2x8x2xf32, #tpu.memory_space<vmem>>, vector<2x8x2xf32>
    %c0_2 = arith.constant 0 : index
    %c0_3 = arith.constant 0 : index
    %1 = vector.load %arg2[%c0_2, %c0_3] : memref<2x64xf32, #tpu.memory_space<vmem>>, vector<2x64xf32>
    %2 = vector.extract_strided_slice %0 {offsets = [0, 0, 0], sizes = [2, 8, 1], strides = [1, 1, 1]} : vector<2x8x2xf32> to vector<2x8x1xf32>
    %3 = vector.extract_strided_slice %1 {offsets = [0, 0], sizes = [1, 64], strides = [1, 1]} : vector<2x64xf32> to vector<1x64xf32>
    %4 = vector.shape_cast %3 : vector<1x64xf32> to vector<1x1x64xf32>
    %5 = vector.broadcast %2 : vector<2x8x1xf32> to vector<2x8x64xf32>
    %6 = vector.broadcast %4 : vector<1x1x64xf32> to vector<2x8x64xf32>
    %7 = arith.mulf %5, %6 : vector<2x8x64xf32>
    %8 = vector.extract_strided_slice %0 {offsets = [0, 0, 1], sizes = [2, 8, 1], strides = [1, 1, 1]} : vector<2x8x2xf32> to vector<2x8x1xf32>
    %9 = vector.extract_strided_slice %1 {offsets = [1, 0], sizes = [1, 64], strides = [1, 1]} : vector<2x64xf32> to vector<1x64xf32>
    %10 = vector.shape_cast %9 : vector<1x64xf32> to vector<1x1x64xf32>
    %11 = vector.broadcast %8 : vector<2x8x1xf32> to vector<2x8x64xf32>
    %12 = vector.broadcast %10 : vector<1x1x64xf32> to vector<2x8x64xf32>
    %13 = arith.mulf %11, %12 : vector<2x8x64xf32>
    %14 = arith.addf %7, %13 : vector<2x8x64xf32>
    %c0_4 = arith.constant 0 : index
    %c0_5 = arith.constant 0 : index
    %15 = vector.load %arg3[%c0_4, %c0_5] : memref<8x64xf32, #tpu.memory_space<vmem>>, vector<8x64xf32>
    %16 = vector.shape_cast %15 : vector<8x64xf32> to vector<1x8x64xf32>
    %17 = vector.broadcast %16 : vector<1x8x64xf32> to vector<2x8x64xf32>
    %18 = arith.addf %14, %17 : vector<2x8x64xf32>
    %c0_6 = arith.constant 0 : index
    %c0_7 = arith.constant 0 : index
    %c0_8 = arith.constant 0 : index
    %19 = vector.load %arg4[%c0_6, %c0_7, %c0_8] : memref<2x8x64xf32, #tpu.memory_space<vmem>>, vector<2x8x64xf32>
    tpu.vector_store %arg4[%c0_6, %c0_7, %c0_8], %18 {strides = array<i32>} : memref<2x8x64xf32, #tpu.memory_space<vmem>>, vector<2x8x64xf32>,
    return
  }
  func.func @transform_0(%arg0: i32) -> (i32, i32, i32) {
    %c0_i32 = arith.constant 0 : i32
    %c0_i32_0 = arith.constant 0 : i32
    %c0_i32_1 = arith.constant 0 : i32
    return %arg0, %c0_i32, %c0_i32_0 : i32, i32, i32
  }
  func.func @transform_1(%arg0: i32) -> (i32, i32) {
    %c0_i32 = arith.constant 0 : i32
    %c0_i32_0 = arith.constant 0 : i32
    %c0_i32_1 = arith.constant 0 : i32
    return %c0_i32, %c0_i32_0 : i32, i32
  }
  func.func @transform_2(%arg0: i32) -> (i32, i32) {
    %c0_i32 = arith.constant 0 : i32
    %c0_i32_0 = arith.constant 0 : i32
    %c0_i32_1 = arith.constant 0 : i32
    return %c0_i32, %c0_i32_0 : i32, i32
  }
  func.func @transform_3(%arg0: i32) -> (i32, i32, i32) {
    %c0_i32 = arith.constant 0 : i32
    %c0_i32_0 = arith.constant 0 : i32
    %c0_i32_1 = arith.constant 0 : i32
    return %arg0, %c0_i32, %c0_i32_0 : i32, i32, i32
  }
}

module attributes {stable_mosaic.version = 11 : i64} {
  func.func @_encoder_layer_kernel(%arg0: i32, %arg1: memref<2x8x64xf32, #tpu.memory_space<vmem>>, %arg2: memref<2x1x8xf32, #tpu.memory_space<vmem>>, %arg3: memref<64x192xbf16, #tpu.memory_space<vmem>>, %arg4: memref<1x192xf32, #tpu.memory_space<vmem>>, %arg5: memref<64x64xbf16, #tpu.memory_space<vmem>>, %arg6: memref<1x64xf32, #tpu.memory_space<vmem>>, %arg7: memref<1x64xf32, #tpu.memory_space<vmem>>, %arg8: memref<1x64xf32, #tpu.memory_space<vmem>>, %arg9: memref<64x128xbf16, #tpu.memory_space<vmem>>, %arg10: memref<1x128xf32, #tpu.memory_space<vmem>>, %arg11: memref<128x64xbf16, #tpu.memory_space<vmem>>, %arg12: memref<1x64xf32, #tpu.memory_space<vmem>>, %arg13: memref<1x64xf32, #tpu.memory_space<vmem>>, %arg14: memref<1x64xf32, #tpu.memory_space<vmem>>, %arg15: memref<1x64xf32, #tpu.memory_space<vmem>>, %arg16: memref<1x64xf32, #tpu.memory_space<vmem>>, %arg17: memref<2x8x64xf32, #tpu.memory_space<vmem>>, %arg18: memref<16x64xf32, #tpu.memory_space<vmem>>) attributes {dimension_semantics = [#tpu.dimension_semantics<parallel>], iteration_bounds = array<i64: 1>, scalar_prefetch = 0 : i64, scratch_operands = 1 : i64, tpu.core_type = #tpu.core_type<tc>, window_params = [{transform_indices = @transform_0, window_bounds = array<i64: 2, 8, 64>}, {transform_indices = @transform_1, window_bounds = array<i64: 2, 1, 8>}, {pipeline_mode = #tpu.pipeline_mode<synchronous>, transform_indices = @transform_2, window_bounds = array<i64: 64, 192>}, {pipeline_mode = #tpu.pipeline_mode<synchronous>, transform_indices = @transform_3, window_bounds = array<i64: 1, 192>}, {pipeline_mode = #tpu.pipeline_mode<synchronous>, transform_indices = @transform_4, window_bounds = array<i64: 64, 64>}, {pipeline_mode = #tpu.pipeline_mode<synchronous>, transform_indices = @transform_5, window_bounds = array<i64: 1, 64>}, {pipeline_mode = #tpu.pipeline_mode<synchronous>, transform_indices = @transform_6, window_bounds = array<i64: 1, 64>}, {pipeline_mode = #tpu.pipeline_mode<synchronous>, transform_indices = @transform_7, window_bounds = array<i64: 1, 64>}, {pipeline_mode = #tpu.pipeline_mode<synchronous>, transform_indices = @transform_8, window_bounds = array<i64: 64, 128>}, {pipeline_mode = #tpu.pipeline_mode<synchronous>, transform_indices = @transform_9, window_bounds = array<i64: 1, 128>}, {pipeline_mode = #tpu.pipeline_mode<synchronous>, transform_indices = @transform_10, window_bounds = array<i64: 128, 64>}, {pipeline_mode = #tpu.pipeline_mode<synchronous>, transform_indices = @transform_11, window_bounds = array<i64: 1, 64>}, {pipeline_mode = #tpu.pipeline_mode<synchronous>, transform_indices = @transform_12, window_bounds = array<i64: 1, 64>}, {pipeline_mode = #tpu.pipeline_mode<synchronous>, transform_indices = @transform_13, window_bounds = array<i64: 1, 64>}, {pipeline_mode = #tpu.pipeline_mode<synchronous>, transform_indices = @transform_14, window_bounds = array<i64: 1, 64>}, {pipeline_mode = #tpu.pipeline_mode<synchronous>, transform_indices = @transform_15, window_bounds = array<i64: 1, 64>}, {transform_indices = @transform_16, window_bounds = array<i64: 2, 8, 64>}]} {
    %c0 = arith.constant 0 : index
    %c0_0 = arith.constant 0 : index
    %c0_1 = arith.constant 0 : index
    %0 = vector.load %arg1[%c0, %c0_0, %c0_1] : memref<2x8x64xf32, #tpu.memory_space<vmem>>, vector<2x8x64xf32>
    %1 = vector.shape_cast %0 : vector<2x8x64xf32> to vector<16x64xf32>
    %2 = arith.truncf %1 : vector<16x64xf32> to vector<16x64xbf16>
    %c0_2 = arith.constant 0 : index
    %c0_3 = arith.constant 0 : index
    %3 = vector.load %arg3[%c0_2, %c0_3] : memref<64x192xbf16, #tpu.memory_space<vmem>>, vector<64x192xbf16>
    %cst = arith.constant dense<0.000000e+00> : vector<16x192xf32>
    %4 = tpu.matmul %2, %3, %cst {dimension_numbers = #tpu.dot_dimension_numbers<[1], [0], [0], [1], [0, 0, 1, 1], [], []>} : vector<16x64xbf16>, vector<64x192xbf16>, vector<16x192xf32> -> vector<16x192xf32>
    %c0_4 = arith.constant 0 : index
    %c0_5 = arith.constant 0 : index
    %5 = vector.load %arg4[%c0_4, %c0_5] : memref<1x192xf32, #tpu.memory_space<vmem>>, vector<1x192xf32>
    %6 = vector.broadcast %5 : vector<1x192xf32> to vector<16x192xf32>
    %7 = arith.addf %4, %6 : vector<16x192xf32>
    %8 = vector.shape_cast %7 : vector<16x192xf32> to vector<2x8x192xf32>
    %9 = vector.extract_strided_slice %8 {offsets = [0, 0, 0], sizes = [2, 8, 64], strides = [1, 1, 1]} : vector<2x8x192xf32> to vector<2x8x64xf32>
    %10 = vector.extract_strided_slice %8 {offsets = [0, 0, 64], sizes = [2, 8, 128], strides = [1, 1, 1]} : vector<2x8x192xf32> to vector<2x8x128xf32>
    %c0_6 = arith.constant 0 : index
    %c0_7 = arith.constant 0 : index
    %c0_8 = arith.constant 0 : index
    %11 = vector.load %arg2[%c0_6, %c0_7, %c0_8] : memref<2x1x8xf32, #tpu.memory_space<vmem>>, vector<2x1x8xf32>
    %12 = vector.extract_strided_slice %9 {offsets = [0, 0, 0], sizes = [2, 8, 16], strides = [1, 1, 1]} : vector<2x8x64xf32> to vector<2x8x16xf32>
    %13 = vector.extract_strided_slice %10 {offsets = [0, 0, 0], sizes = [2, 8, 16], strides = [1, 1, 1]} : vector<2x8x128xf32> to vector<2x8x16xf32>
    %14 = vector.extract_strided_slice %10 {offsets = [0, 0, 64], sizes = [2, 8, 16], strides = [1, 1, 1]} : vector<2x8x128xf32> to vector<2x8x16xf32>
    %15 = arith.truncf %12 : vector<2x8x16xf32> to vector<2x8x16xbf16>
    %16 = arith.truncf %13 : vector<2x8x16xf32> to vector<2x8x16xbf16>
    %cst_9 = arith.constant dense<0.000000e+00> : vector<2x8x8xf32>
    %17 = tpu.matmul %15, %16, %cst_9 {dimension_numbers = #tpu.dot_dimension_numbers<[2], [2], [1], [1], [0, 0, 0, 1, 1, 1], [0], [0]>} : vector<2x8x16xbf16>, vector<2x8x16xbf16>, vector<2x8x8xf32> -> vector<2x8x8xf32>
    %18 = vector.broadcast %11 : vector<2x1x8xf32> to vector<2x8x8xf32>
    %19 = arith.addf %17, %18 : vector<2x8x8xf32>
    %cst_10 = arith.constant dense<0xFF800000> : vector<2x8xf32>
    %20 = vector.multi_reduction <maximumf>, %19, %cst_10 [2] : vector<2x8x8xf32> to vector<2x8xf32>
    %21 = vector.shape_cast %20 : vector<2x8xf32> to vector<2x8x1xf32>
    %22 = vector.broadcast %21 : vector<2x8x1xf32> to vector<2x8x8xf32>
    %23 = arith.subf %19, %22 : vector<2x8x8xf32>
    %24 = math.exp %23 : vector<2x8x8xf32>
    %cst_11 = arith.constant dense<0.000000e+00> : vector<2x8xf32>
    %25 = vector.multi_reduction <add>, %24, %cst_11 [2] : vector<2x8x8xf32> to vector<2x8xf32>
    %26 = vector.shape_cast %25 : vector<2x8xf32> to vector<2x8x1xf32>
    %27 = tpu.reciprocal %26 {approx = true} : vector<2x8x1xf32> -> vector<2x8x1xf32>
    %28 = vector.broadcast %27 : vector<2x8x1xf32> to vector<2x8x8xf32>
    %29 = arith.mulf %24, %28 : vector<2x8x8xf32>
    %30 = arith.truncf %29 : vector<2x8x8xf32> to vector<2x8x8xbf16>
    %31 = arith.truncf %14 : vector<2x8x16xf32> to vector<2x8x16xbf16>
    %cst_12 = arith.constant dense<0.000000e+00> : vector<2x8x16xf32>
    %32 = tpu.matmul %30, %31, %cst_12 {dimension_numbers = #tpu.dot_dimension_numbers<[2], [1], [1], [2], [0, 0, 0, 1, 1, 2], [0], [0]>} : vector<2x8x8xbf16>, vector<2x8x16xbf16>, vector<2x8x16xf32> -> vector<2x8x16xf32>
    %33 = vector.shape_cast %32 : vector<2x8x16xf32> to vector<16x16xf32>
    %c0_13 = arith.constant 0 : index
    %c0_14 = arith.constant 0 : index
    %34 = vector.load %arg18[%c0_13, %c0_14] : memref<16x64xf32, #tpu.memory_space<vmem>>, vector<16x16xf32>
    tpu.vector_store %arg18[%c0_13, %c0_14], %33 {strides = array<i32>} : memref<16x64xf32, #tpu.memory_space<vmem>>, vector<16x16xf32>,
    %35 = vector.extract_strided_slice %9 {offsets = [0, 0, 16], sizes = [2, 8, 16], strides = [1, 1, 1]} : vector<2x8x64xf32> to vector<2x8x16xf32>
    %36 = vector.extract_strided_slice %10 {offsets = [0, 0, 16], sizes = [2, 8, 16], strides = [1, 1, 1]} : vector<2x8x128xf32> to vector<2x8x16xf32>
    %37 = vector.extract_strided_slice %10 {offsets = [0, 0, 80], sizes = [2, 8, 16], strides = [1, 1, 1]} : vector<2x8x128xf32> to vector<2x8x16xf32>
    %38 = arith.truncf %35 : vector<2x8x16xf32> to vector<2x8x16xbf16>
    %39 = arith.truncf %36 : vector<2x8x16xf32> to vector<2x8x16xbf16>
    %cst_15 = arith.constant dense<0.000000e+00> : vector<2x8x8xf32>
    %40 = tpu.matmul %38, %39, %cst_15 {dimension_numbers = #tpu.dot_dimension_numbers<[2], [2], [1], [1], [0, 0, 0, 1, 1, 1], [0], [0]>} : vector<2x8x16xbf16>, vector<2x8x16xbf16>, vector<2x8x8xf32> -> vector<2x8x8xf32>
    %41 = vector.broadcast %11 : vector<2x1x8xf32> to vector<2x8x8xf32>
    %42 = arith.addf %40, %41 : vector<2x8x8xf32>
    %cst_16 = arith.constant dense<0xFF800000> : vector<2x8xf32>
    %43 = vector.multi_reduction <maximumf>, %42, %cst_16 [2] : vector<2x8x8xf32> to vector<2x8xf32>
    %44 = vector.shape_cast %43 : vector<2x8xf32> to vector<2x8x1xf32>
    %45 = vector.broadcast %44 : vector<2x8x1xf32> to vector<2x8x8xf32>
    %46 = arith.subf %42, %45 : vector<2x8x8xf32>
    %47 = math.exp %46 : vector<2x8x8xf32>
    %cst_17 = arith.constant dense<0.000000e+00> : vector<2x8xf32>
    %48 = vector.multi_reduction <add>, %47, %cst_17 [2] : vector<2x8x8xf32> to vector<2x8xf32>
    %49 = vector.shape_cast %48 : vector<2x8xf32> to vector<2x8x1xf32>
    %50 = tpu.reciprocal %49 {approx = true} : vector<2x8x1xf32> -> vector<2x8x1xf32>
    %51 = vector.broadcast %50 : vector<2x8x1xf32> to vector<2x8x8xf32>
    %52 = arith.mulf %47, %51 : vector<2x8x8xf32>
    %53 = arith.truncf %52 : vector<2x8x8xf32> to vector<2x8x8xbf16>
    %54 = arith.truncf %37 : vector<2x8x16xf32> to vector<2x8x16xbf16>
    %cst_18 = arith.constant dense<0.000000e+00> : vector<2x8x16xf32>
    %55 = tpu.matmul %53, %54, %cst_18 {dimension_numbers = #tpu.dot_dimension_numbers<[2], [1], [1], [2], [0, 0, 0, 1, 1, 2], [0], [0]>} : vector<2x8x8xbf16>, vector<2x8x16xbf16>, vector<2x8x16xf32> -> vector<2x8x16xf32>
    %56 = vector.shape_cast %55 : vector<2x8x16xf32> to vector<16x16xf32>
    %c0_19 = arith.constant 0 : index
    %c16 = arith.constant 16 : index
    %57 = vector.load %arg18[%c0_19, %c16] : memref<16x64xf32, #tpu.memory_space<vmem>>, vector<16x16xf32>
    tpu.vector_store %arg18[%c0_19, %c16], %56 {strides = array<i32>} : memref<16x64xf32, #tpu.memory_space<vmem>>, vector<16x16xf32>,
    %58 = vector.extract_strided_slice %9 {offsets = [0, 0, 32], sizes = [2, 8, 16], strides = [1, 1, 1]} : vector<2x8x64xf32> to vector<2x8x16xf32>
    %59 = vector.extract_strided_slice %10 {offsets = [0, 0, 32], sizes = [2, 8, 16], strides = [1, 1, 1]} : vector<2x8x128xf32> to vector<2x8x16xf32>
    %60 = vector.extract_strided_slice %10 {offsets = [0, 0, 96], sizes = [2, 8, 16], strides = [1, 1, 1]} : vector<2x8x128xf32> to vector<2x8x16xf32>
    %61 = arith.truncf %58 : vector<2x8x16xf32> to vector<2x8x16xbf16>
    %62 = arith.truncf %59 : vector<2x8x16xf32> to vector<2x8x16xbf16>
    %cst_20 = arith.constant dense<0.000000e+00> : vector<2x8x8xf32>
    %63 = tpu.matmul %61, %62, %cst_20 {dimension_numbers = #tpu.dot_dimension_numbers<[2], [2], [1], [1], [0, 0, 0, 1, 1, 1], [0], [0]>} : vector<2x8x16xbf16>, vector<2x8x16xbf16>, vector<2x8x8xf32> -> vector<2x8x8xf32>
    %64 = vector.broadcast %11 : vector<2x1x8xf32> to vector<2x8x8xf32>
    %65 = arith.addf %63, %64 : vector<2x8x8xf32>
    %cst_21 = arith.constant dense<0xFF800000> : vector<2x8xf32>
    %66 = vector.multi_reduction <maximumf>, %65, %cst_21 [2] : vector<2x8x8xf32> to vector<2x8xf32>
    %67 = vector.shape_cast %66 : vector<2x8xf32> to vector<2x8x1xf32>
    %68 = vector.broadcast %67 : vector<2x8x1xf32> to vector<2x8x8xf32>
    %69 = arith.subf %65, %68 : vector<2x8x8xf32>
    %70 = math.exp %69 : vector<2x8x8xf32>
    %cst_22 = arith.constant dense<0.000000e+00> : vector<2x8xf32>
    %71 = vector.multi_reduction <add>, %70, %cst_22 [2] : vector<2x8x8xf32> to vector<2x8xf32>
    %72 = vector.shape_cast %71 : vector<2x8xf32> to vector<2x8x1xf32>
    %73 = tpu.reciprocal %72 {approx = true} : vector<2x8x1xf32> -> vector<2x8x1xf32>
    %74 = vector.broadcast %73 : vector<2x8x1xf32> to vector<2x8x8xf32>
    %75 = arith.mulf %70, %74 : vector<2x8x8xf32>
    %76 = arith.truncf %75 : vector<2x8x8xf32> to vector<2x8x8xbf16>
    %77 = arith.truncf %60 : vector<2x8x16xf32> to vector<2x8x16xbf16>
    %cst_23 = arith.constant dense<0.000000e+00> : vector<2x8x16xf32>
    %78 = tpu.matmul %76, %77, %cst_23 {dimension_numbers = #tpu.dot_dimension_numbers<[2], [1], [1], [2], [0, 0, 0, 1, 1, 2], [0], [0]>} : vector<2x8x8xbf16>, vector<2x8x16xbf16>, vector<2x8x16xf32> -> vector<2x8x16xf32>
    %79 = vector.shape_cast %78 : vector<2x8x16xf32> to vector<16x16xf32>
    %c0_24 = arith.constant 0 : index
    %c32 = arith.constant 32 : index
    %80 = vector.load %arg18[%c0_24, %c32] : memref<16x64xf32, #tpu.memory_space<vmem>>, vector<16x16xf32>
    tpu.vector_store %arg18[%c0_24, %c32], %79 {strides = array<i32>} : memref<16x64xf32, #tpu.memory_space<vmem>>, vector<16x16xf32>,
    %81 = vector.extract_strided_slice %9 {offsets = [0, 0, 48], sizes = [2, 8, 16], strides = [1, 1, 1]} : vector<2x8x64xf32> to vector<2x8x16xf32>
    %82 = vector.extract_strided_slice %10 {offsets = [0, 0, 48], sizes = [2, 8, 16], strides = [1, 1, 1]} : vector<2x8x128xf32> to vector<2x8x16xf32>
    %83 = vector.extract_strided_slice %10 {offsets = [0, 0, 112], sizes = [2, 8, 16], strides = [1, 1, 1]} : vector<2x8x128xf32> to vector<2x8x16xf32>
    %84 = arith.truncf %81 : vector<2x8x16xf32> to vector<2x8x16xbf16>
    %85 = arith.truncf %82 : vector<2x8x16xf32> to vector<2x8x16xbf16>
    %cst_25 = arith.constant dense<0.000000e+00> : vector<2x8x8xf32>
    %86 = tpu.matmul %84, %85, %cst_25 {dimension_numbers = #tpu.dot_dimension_numbers<[2], [2], [1], [1], [0, 0, 0, 1, 1, 1], [0], [0]>} : vector<2x8x16xbf16>, vector<2x8x16xbf16>, vector<2x8x8xf32> -> vector<2x8x8xf32>
    %87 = vector.broadcast %11 : vector<2x1x8xf32> to vector<2x8x8xf32>
    %88 = arith.addf %86, %87 : vector<2x8x8xf32>
    %cst_26 = arith.constant dense<0xFF800000> : vector<2x8xf32>
    %89 = vector.multi_reduction <maximumf>, %88, %cst_26 [2] : vector<2x8x8xf32> to vector<2x8xf32>
    %90 = vector.shape_cast %89 : vector<2x8xf32> to vector<2x8x1xf32>
    %91 = vector.broadcast %90 : vector<2x8x1xf32> to vector<2x8x8xf32>
    %92 = arith.subf %88, %91 : vector<2x8x8xf32>
    %93 = math.exp %92 : vector<2x8x8xf32>
    %cst_27 = arith.constant dense<0.000000e+00> : vector<2x8xf32>
    %94 = vector.multi_reduction <add>, %93, %cst_27 [2] : vector<2x8x8xf32> to vector<2x8xf32>
    %95 = vector.shape_cast %94 : vector<2x8xf32> to vector<2x8x1xf32>
    %96 = tpu.reciprocal %95 {approx = true} : vector<2x8x1xf32> -> vector<2x8x1xf32>
    %97 = vector.broadcast %96 : vector<2x8x1xf32> to vector<2x8x8xf32>
    %98 = arith.mulf %93, %97 : vector<2x8x8xf32>
    %99 = arith.truncf %98 : vector<2x8x8xf32> to vector<2x8x8xbf16>
    %100 = arith.truncf %83 : vector<2x8x16xf32> to vector<2x8x16xbf16>
    %cst_28 = arith.constant dense<0.000000e+00> : vector<2x8x16xf32>
    %101 = tpu.matmul %99, %100, %cst_28 {dimension_numbers = #tpu.dot_dimension_numbers<[2], [1], [1], [2], [0, 0, 0, 1, 1, 2], [0], [0]>} : vector<2x8x8xbf16>, vector<2x8x16xbf16>, vector<2x8x16xf32> -> vector<2x8x16xf32>
    %102 = vector.shape_cast %101 : vector<2x8x16xf32> to vector<16x16xf32>
    %c0_29 = arith.constant 0 : index
    %c48 = arith.constant 48 : index
    %103 = vector.load %arg18[%c0_29, %c48] : memref<16x64xf32, #tpu.memory_space<vmem>>, vector<16x16xf32>
    tpu.vector_store %arg18[%c0_29, %c48], %102 {strides = array<i32>} : memref<16x64xf32, #tpu.memory_space<vmem>>, vector<16x16xf32>,
    %c0_30 = arith.constant 0 : index
    %c0_31 = arith.constant 0 : index
    %104 = vector.load %arg18[%c0_30, %c0_31] : memref<16x64xf32, #tpu.memory_space<vmem>>, vector<16x64xf32>
    %105 = arith.truncf %104 : vector<16x64xf32> to vector<16x64xbf16>
    %c0_32 = arith.constant 0 : index
    %c0_33 = arith.constant 0 : index
    %106 = vector.load %arg5[%c0_32, %c0_33] : memref<64x64xbf16, #tpu.memory_space<vmem>>, vector<64x64xbf16>
    %cst_34 = arith.constant dense<0.000000e+00> : vector<16x64xf32>
    %107 = tpu.matmul %105, %106, %cst_34 {dimension_numbers = #tpu.dot_dimension_numbers<[1], [0], [0], [1], [0, 0, 1, 1], [], []>} : vector<16x64xbf16>, vector<64x64xbf16>, vector<16x64xf32> -> vector<16x64xf32>
    %c0_35 = arith.constant 0 : index
    %c0_36 = arith.constant 0 : index
    %108 = vector.load %arg6[%c0_35, %c0_36] : memref<1x64xf32, #tpu.memory_space<vmem>>, vector<1x64xf32>
    %109 = vector.broadcast %108 : vector<1x64xf32> to vector<16x64xf32>
    %110 = arith.addf %107, %109 : vector<16x64xf32>
    %111 = arith.addf %1, %110 : vector<16x64xf32>
    %c0_37 = arith.constant 0 : index
    %c0_38 = arith.constant 0 : index
    %112 = vector.load %arg7[%c0_37, %c0_38] : memref<1x64xf32, #tpu.memory_space<vmem>>, vector<1x64xf32>
    %c0_39 = arith.constant 0 : index
    %c0_40 = arith.constant 0 : index
    %113 = vector.load %arg8[%c0_39, %c0_40] : memref<1x64xf32, #tpu.memory_space<vmem>>, vector<1x64xf32>
    %cst_41 = arith.constant dense<0.000000e+00> : vector<16xf32>
    %114 = vector.multi_reduction <add>, %111, %cst_41 [1] : vector<16x64xf32> to vector<16xf32>
    %115 = vector.shape_cast %114 : vector<16xf32> to vector<16x1xf32>
    %cst_42 = arith.constant 6.400000e+01 : f32
    %116 = vector.broadcast %cst_42 : f32 to vector<16x1xf32>
    %117 = arith.divf %115, %116 : vector<16x1xf32>
    %118 = vector.broadcast %117 : vector<16x1xf32> to vector<16x64xf32>
    %119 = arith.subf %111, %118 : vector<16x64xf32>
    %120 = arith.mulf %119, %119 : vector<16x64xf32>
    %cst_43 = arith.constant dense<0.000000e+00> : vector<16xf32>
    %121 = vector.multi_reduction <add>, %120, %cst_43 [1] : vector<16x64xf32> to vector<16xf32>
    %122 = vector.shape_cast %121 : vector<16xf32> to vector<16x1xf32>
    %cst_44 = arith.constant 6.400000e+01 : f32
    %123 = vector.broadcast %cst_44 : f32 to vector<16x1xf32>
    %124 = arith.divf %122, %123 : vector<16x1xf32>
    %125 = vector.broadcast %117 : vector<16x1xf32> to vector<16x64xf32>
    %126 = arith.subf %111, %125 : vector<16x64xf32>
    %cst_45 = arith.constant 9.99999974E-6 : f32
    %127 = vector.broadcast %cst_45 : f32 to vector<16x1xf32>
    %128 = arith.addf %124, %127 : vector<16x1xf32>
    %129 = math.rsqrt %128 : vector<16x1xf32>
    %130 = vector.broadcast %129 : vector<16x1xf32> to vector<16x64xf32>
    %131 = arith.mulf %126, %130 : vector<16x64xf32>
    %132 = vector.broadcast %112 : vector<1x64xf32> to vector<16x64xf32>
    %133 = arith.mulf %131, %132 : vector<16x64xf32>
    %134 = vector.broadcast %113 : vector<1x64xf32> to vector<16x64xf32>
    %135 = arith.addf %133, %134 : vector<16x64xf32>
    %136 = arith.truncf %135 : vector<16x64xf32> to vector<16x64xbf16>
    %c0_46 = arith.constant 0 : index
    %c0_47 = arith.constant 0 : index
    %137 = vector.load %arg9[%c0_46, %c0_47] : memref<64x128xbf16, #tpu.memory_space<vmem>>, vector<64x128xbf16>
    %cst_48 = arith.constant dense<0.000000e+00> : vector<16x128xf32>
    %138 = tpu.matmul %136, %137, %cst_48 {dimension_numbers = #tpu.dot_dimension_numbers<[1], [0], [0], [1], [0, 0, 1, 1], [], []>} : vector<16x64xbf16>, vector<64x128xbf16>, vector<16x128xf32> -> vector<16x128xf32>
    %c0_49 = arith.constant 0 : index
    %c0_50 = arith.constant 0 : index
    %139 = vector.load %arg10[%c0_49, %c0_50] : memref<1x128xf32, #tpu.memory_space<vmem>>, vector<1x128xf32>
    %140 = vector.broadcast %139 : vector<1x128xf32> to vector<16x128xf32>
    %141 = arith.addf %138, %140 : vector<16x128xf32>
    %cst_51 = arith.constant 0.000000e+00 : f32
    %142 = vector.broadcast %cst_51 : f32 to vector<16x128xf32>
    %143 = arith.maximumf %141, %142 : vector<16x128xf32>
    %144 = arith.truncf %143 : vector<16x128xf32> to vector<16x128xbf16>
    %c0_52 = arith.constant 0 : index
    %c0_53 = arith.constant 0 : index
    %145 = vector.load %arg11[%c0_52, %c0_53] : memref<128x64xbf16, #tpu.memory_space<vmem>>, vector<128x64xbf16>
    %cst_54 = arith.constant dense<0.000000e+00> : vector<16x64xf32>
    %146 = tpu.matmul %144, %145, %cst_54 {dimension_numbers = #tpu.dot_dimension_numbers<[1], [0], [0], [1], [0, 0, 1, 1], [], []>} : vector<16x128xbf16>, vector<128x64xbf16>, vector<16x64xf32> -> vector<16x64xf32>
    %c0_55 = arith.constant 0 : index
    %c0_56 = arith.constant 0 : index
    %147 = vector.load %arg12[%c0_55, %c0_56] : memref<1x64xf32, #tpu.memory_space<vmem>>, vector<1x64xf32>
    %148 = vector.broadcast %147 : vector<1x64xf32> to vector<16x64xf32>
    %149 = arith.addf %146, %148 : vector<16x64xf32>
    %150 = arith.addf %135, %149 : vector<16x64xf32>
    %c0_57 = arith.constant 0 : index
    %c0_58 = arith.constant 0 : index
    %151 = vector.load %arg13[%c0_57, %c0_58] : memref<1x64xf32, #tpu.memory_space<vmem>>, vector<1x64xf32>
    %c0_59 = arith.constant 0 : index
    %c0_60 = arith.constant 0 : index
    %152 = vector.load %arg14[%c0_59, %c0_60] : memref<1x64xf32, #tpu.memory_space<vmem>>, vector<1x64xf32>
    %cst_61 = arith.constant dense<0.000000e+00> : vector<16xf32>
    %153 = vector.multi_reduction <add>, %150, %cst_61 [1] : vector<16x64xf32> to vector<16xf32>
    %154 = vector.shape_cast %153 : vector<16xf32> to vector<16x1xf32>
    %cst_62 = arith.constant 6.400000e+01 : f32
    %155 = vector.broadcast %cst_62 : f32 to vector<16x1xf32>
    %156 = arith.divf %154, %155 : vector<16x1xf32>
    %157 = vector.broadcast %156 : vector<16x1xf32> to vector<16x64xf32>
    %158 = arith.subf %150, %157 : vector<16x64xf32>
    %159 = arith.mulf %158, %158 : vector<16x64xf32>
    %cst_63 = arith.constant dense<0.000000e+00> : vector<16xf32>
    %160 = vector.multi_reduction <add>, %159, %cst_63 [1] : vector<16x64xf32> to vector<16xf32>
    %161 = vector.shape_cast %160 : vector<16xf32> to vector<16x1xf32>
    %cst_64 = arith.constant 6.400000e+01 : f32
    %162 = vector.broadcast %cst_64 : f32 to vector<16x1xf32>
    %163 = arith.divf %161, %162 : vector<16x1xf32>
    %164 = vector.broadcast %156 : vector<16x1xf32> to vector<16x64xf32>
    %165 = arith.subf %150, %164 : vector<16x64xf32>
    %cst_65 = arith.constant 9.99999974E-6 : f32
    %166 = vector.broadcast %cst_65 : f32 to vector<16x1xf32>
    %167 = arith.addf %163, %166 : vector<16x1xf32>
    %168 = math.rsqrt %167 : vector<16x1xf32>
    %169 = vector.broadcast %168 : vector<16x1xf32> to vector<16x64xf32>
    %170 = arith.mulf %165, %169 : vector<16x64xf32>
    %171 = vector.broadcast %151 : vector<1x64xf32> to vector<16x64xf32>
    %172 = arith.mulf %170, %171 : vector<16x64xf32>
    %173 = vector.broadcast %152 : vector<1x64xf32> to vector<16x64xf32>
    %174 = arith.addf %172, %173 : vector<16x64xf32>
    %175 = vector.shape_cast %174 : vector<16x64xf32> to vector<2x8x64xf32>
    %c0_66 = arith.constant 0 : index
    %c0_67 = arith.constant 0 : index
    %c0_68 = arith.constant 0 : index
    %176 = vector.load %arg17[%c0_66, %c0_67, %c0_68] : memref<2x8x64xf32, #tpu.memory_space<vmem>>, vector<2x8x64xf32>
    tpu.vector_store %arg17[%c0_66, %c0_67, %c0_68], %175 {strides = array<i32>} : memref<2x8x64xf32, #tpu.memory_space<vmem>>, vector<2x8x64xf32>,
    return
  }
  func.func @transform_0(%arg0: i32) -> (i32, i32, i32) {
    %c0_i32 = arith.constant 0 : i32
    %c0_i32_0 = arith.constant 0 : i32
    %c0_i32_1 = arith.constant 0 : i32
    return %arg0, %c0_i32, %c0_i32_0 : i32, i32, i32
  }
  func.func @transform_1(%arg0: i32) -> (i32, i32, i32) {
    %c0_i32 = arith.constant 0 : i32
    %c0_i32_0 = arith.constant 0 : i32
    %c0_i32_1 = arith.constant 0 : i32
    return %arg0, %c0_i32, %c0_i32_0 : i32, i32, i32
  }
  func.func @transform_2(%arg0: i32) -> (i32, i32) {
    %c0_i32 = arith.constant 0 : i32
    %c0_i32_0 = arith.constant 0 : i32
    %c0_i32_1 = arith.constant 0 : i32
    return %c0_i32, %c0_i32_0 : i32, i32
  }
  func.func @transform_3(%arg0: i32) -> (i32, i32) {
    %c0_i32 = arith.constant 0 : i32
    %c0_i32_0 = arith.constant 0 : i32
    %c0_i32_1 = arith.constant 0 : i32
    return %c0_i32, %c0_i32_0 : i32, i32
  }
  func.func @transform_4(%arg0: i32) -> (i32, i32) {
    %c0_i32 = arith.constant 0 : i32
    %c0_i32_0 = arith.constant 0 : i32
    %c0_i32_1 = arith.constant 0 : i32
    return %c0_i32, %c0_i32_0 : i32, i32
  }
  func.func @transform_5(%arg0: i32) -> (i32, i32) {
    %c0_i32 = arith.constant 0 : i32
    %c0_i32_0 = arith.constant 0 : i32
    %c0_i32_1 = arith.constant 0 : i32
    return %c0_i32, %c0_i32_0 : i32, i32
  }
  func.func @transform_6(%arg0: i32) -> (i32, i32) {
    %c0_i32 = arith.constant 0 : i32
    %c0_i32_0 = arith.constant 0 : i32
    %c0_i32_1 = arith.constant 0 : i32
    return %c0_i32, %c0_i32_0 : i32, i32
  }
  func.func @transform_7(%arg0: i32) -> (i32, i32) {
    %c0_i32 = arith.constant 0 : i32
    %c0_i32_0 = arith.constant 0 : i32
    %c0_i32_1 = arith.constant 0 : i32
    return %c0_i32, %c0_i32_0 : i32, i32
  }
  func.func @transform_8(%arg0: i32) -> (i32, i32) {
    %c0_i32 = arith.constant 0 : i32
    %c0_i32_0 = arith.constant 0 : i32
    %c0_i32_1 = arith.constant 0 : i32
    return %c0_i32, %c0_i32_0 : i32, i32
  }
  func.func @transform_9(%arg0: i32) -> (i32, i32) {
    %c0_i32 = arith.constant 0 : i32
    %c0_i32_0 = arith.constant 0 : i32
    %c0_i32_1 = arith.constant 0 : i32
    return %c0_i32, %c0_i32_0 : i32, i32
  }
  func.func @transform_10(%arg0: i32) -> (i32, i32) {
    %c0_i32 = arith.constant 0 : i32
    %c0_i32_0 = arith.constant 0 : i32
    %c0_i32_1 = arith.constant 0 : i32
    return %c0_i32, %c0_i32_0 : i32, i32
  }
  func.func @transform_11(%arg0: i32) -> (i32, i32) {
    %c0_i32 = arith.constant 0 : i32
    %c0_i32_0 = arith.constant 0 : i32
    %c0_i32_1 = arith.constant 0 : i32
    return %c0_i32, %c0_i32_0 : i32, i32
  }
  func.func @transform_12(%arg0: i32) -> (i32, i32) {
    %c0_i32 = arith.constant 0 : i32
    %c0_i32_0 = arith.constant 0 : i32
    %c0_i32_1 = arith.constant 0 : i32
    return %c0_i32, %c0_i32_0 : i32, i32
  }
  func.func @transform_13(%arg0: i32) -> (i32, i32) {
    %c0_i32 = arith.constant 0 : i32
    %c0_i32_0 = arith.constant 0 : i32
    %c0_i32_1 = arith.constant 0 : i32
    return %c0_i32, %c0_i32_0 : i32, i32
  }
  func.func @transform_14(%arg0: i32) -> (i32, i32) {
    %c0_i32 = arith.constant 0 : i32
    %c0_i32_0 = arith.constant 0 : i32
    %c0_i32_1 = arith.constant 0 : i32
    return %c0_i32, %c0_i32_0 : i32, i32
  }
  func.func @transform_15(%arg0: i32) -> (i32, i32) {
    %c0_i32 = arith.constant 0 : i32
    %c0_i32_0 = arith.constant 0 : i32
    %c0_i32_1 = arith.constant 0 : i32
    return %c0_i32, %c0_i32_0 : i32, i32
  }
  func.func @transform_16(%arg0: i32) -> (i32, i32, i32) {
    %c0_i32 = arith.constant 0 : i32
    %c0_i32_0 = arith.constant 0 : i32
    %c0_i32_1 = arith.constant 0 : i32
    return %arg0, %c0_i32, %c0_i32_0 : i32, i32, i32
  }
}

module attributes {stable_mosaic.version = 11 : i64} {
  func.func @_decoder_layer_kernel(%arg0: i32, %arg1: memref<2x8x64xf32, #tpu.memory_space<vmem>>, %arg2: memref<2x8x64xf32, #tpu.memory_space<vmem>>, %arg3: memref<2x1x8xf32, #tpu.memory_space<vmem>>, %arg4: memref<2x1x8xf32, #tpu.memory_space<vmem>>, %arg5: memref<64x192xbf16, #tpu.memory_space<vmem>>, %arg6: memref<1x192xf32, #tpu.memory_space<vmem>>, %arg7: memref<64x64xbf16, #tpu.memory_space<vmem>>, %arg8: memref<1x64xf32, #tpu.memory_space<vmem>>, %arg9: memref<1x64xf32, #tpu.memory_space<vmem>>, %arg10: memref<1x64xf32, #tpu.memory_space<vmem>>, %arg11: memref<64x64xbf16, #tpu.memory_space<vmem>>, %arg12: memref<1x64xf32, #tpu.memory_space<vmem>>, %arg13: memref<64x128xbf16, #tpu.memory_space<vmem>>, %arg14: memref<1x128xf32, #tpu.memory_space<vmem>>, %arg15: memref<64x64xbf16, #tpu.memory_space<vmem>>, %arg16: memref<1x64xf32, #tpu.memory_space<vmem>>, %arg17: memref<1x64xf32, #tpu.memory_space<vmem>>, %arg18: memref<1x64xf32, #tpu.memory_space<vmem>>, %arg19: memref<64x128xbf16, #tpu.memory_space<vmem>>, %arg20: memref<1x128xf32, #tpu.memory_space<vmem>>, %arg21: memref<128x64xbf16, #tpu.memory_space<vmem>>, %arg22: memref<1x64xf32, #tpu.memory_space<vmem>>, %arg23: memref<1x64xf32, #tpu.memory_space<vmem>>, %arg24: memref<1x64xf32, #tpu.memory_space<vmem>>, %arg25: memref<2x8x64xf32, #tpu.memory_space<vmem>>, %arg26: memref<16x64xf32, #tpu.memory_space<vmem>>) attributes {dimension_semantics = [#tpu.dimension_semantics<parallel>], iteration_bounds = array<i64: 1>, scalar_prefetch = 0 : i64, scratch_operands = 1 : i64, tpu.core_type = #tpu.core_type<tc>, window_params = [{transform_indices = @transform_0, window_bounds = array<i64: 2, 8, 64>}, {transform_indices = @transform_1, window_bounds = array<i64: 2, 8, 64>}, {transform_indices = @transform_2, window_bounds = array<i64: 2, 1, 8>}, {transform_indices = @transform_3, window_bounds = array<i64: 2, 1, 8>}, {pipeline_mode = #tpu.pipeline_mode<synchronous>, transform_indices = @transform_4, window_bounds = array<i64: 64, 192>}, {pipeline_mode = #tpu.pipeline_mode<synchronous>, transform_indices = @transform_5, window_bounds = array<i64: 1, 192>}, {pipeline_mode = #tpu.pipeline_mode<synchronous>, transform_indices = @transform_6, window_bounds = array<i64: 64, 64>}, {pipeline_mode = #tpu.pipeline_mode<synchronous>, transform_indices = @transform_7, window_bounds = array<i64: 1, 64>}, {pipeline_mode = #tpu.pipeline_mode<synchronous>, transform_indices = @transform_8, window_bounds = array<i64: 1, 64>}, {pipeline_mode = #tpu.pipeline_mode<synchronous>, transform_indices = @transform_9, window_bounds = array<i64: 1, 64>}, {pipeline_mode = #tpu.pipeline_mode<synchronous>, transform_indices = @transform_10, window_bounds = array<i64: 64, 64>}, {pipeline_mode = #tpu.pipeline_mode<synchronous>, transform_indices = @transform_11, window_bounds = array<i64: 1, 64>}, {pipeline_mode = #tpu.pipeline_mode<synchronous>, transform_indices = @transform_12, window_bounds = array<i64: 64, 128>}, {pipeline_mode = #tpu.pipeline_mode<synchronous>, transform_indices = @transform_13, window_bounds = array<i64: 1, 128>}, {pipeline_mode = #tpu.pipeline_mode<synchronous>, transform_indices = @transform_14, window_bounds = array<i64: 64, 64>}, {pipeline_mode = #tpu.pipeline_mode<synchronous>, transform_indices = @transform_15, window_bounds = array<i64: 1, 64>}, {pipeline_mode = #tpu.pipeline_mode<synchronous>, transform_indices = @transform_16, window_bounds = array<i64: 1, 64>}, {pipeline_mode = #tpu.pipeline_mode<synchronous>, transform_indices = @transform_17, window_bounds = array<i64: 1, 64>}, {pipeline_mode = #tpu.pipeline_mode<synchronous>, transform_indices = @transform_18, window_bounds = array<i64: 64, 128>}, {pipeline_mode = #tpu.pipeline_mode<synchronous>, transform_indices = @transform_19, window_bounds = array<i64: 1, 128>}, {pipeline_mode = #tpu.pipeline_mode<synchronous>, transform_indices = @transform_20, window_bounds = array<i64: 128, 64>}, {pipeline_mode = #tpu.pipeline_mode<synchronous>, transform_indices = @transform_21, window_bounds = array<i64: 1, 64>}, {pipeline_mode = #tpu.pipeline_mode<synchronous>, transform_indices = @transform_22, window_bounds = array<i64: 1, 64>}, {pipeline_mode = #tpu.pipeline_mode<synchronous>, transform_indices = @transform_23, window_bounds = array<i64: 1, 64>}, {transform_indices = @transform_24, window_bounds = array<i64: 2, 8, 64>}]} {
    %c0 = arith.constant 0 : index
    %c0_0 = arith.constant 0 : index
    %c0_1 = arith.constant 0 : index
    %0 = vector.load %arg1[%c0, %c0_0, %c0_1] : memref<2x8x64xf32, #tpu.memory_space<vmem>>, vector<2x8x64xf32>
    %1 = vector.shape_cast %0 : vector<2x8x64xf32> to vector<16x64xf32>
    %2 = arith.truncf %1 : vector<16x64xf32> to vector<16x64xbf16>
    %c0_2 = arith.constant 0 : index
    %c0_3 = arith.constant 0 : index
    %3 = vector.load %arg5[%c0_2, %c0_3] : memref<64x192xbf16, #tpu.memory_space<vmem>>, vector<64x192xbf16>
    %cst = arith.constant dense<0.000000e+00> : vector<16x192xf32>
    %4 = tpu.matmul %2, %3, %cst {dimension_numbers = #tpu.dot_dimension_numbers<[1], [0], [0], [1], [0, 0, 1, 1], [], []>} : vector<16x64xbf16>, vector<64x192xbf16>, vector<16x192xf32> -> vector<16x192xf32>
    %c0_4 = arith.constant 0 : index
    %c0_5 = arith.constant 0 : index
    %5 = vector.load %arg6[%c0_4, %c0_5] : memref<1x192xf32, #tpu.memory_space<vmem>>, vector<1x192xf32>
    %6 = vector.broadcast %5 : vector<1x192xf32> to vector<16x192xf32>
    %7 = arith.addf %4, %6 : vector<16x192xf32>
    %8 = vector.shape_cast %7 : vector<16x192xf32> to vector<2x8x192xf32>
    %9 = vector.extract_strided_slice %8 {offsets = [0, 0, 0], sizes = [2, 8, 64], strides = [1, 1, 1]} : vector<2x8x192xf32> to vector<2x8x64xf32>
    %10 = vector.extract_strided_slice %8 {offsets = [0, 0, 64], sizes = [2, 8, 128], strides = [1, 1, 1]} : vector<2x8x192xf32> to vector<2x8x128xf32>
    %c0_6 = arith.constant 0 : index
    %c0_7 = arith.constant 0 : index
    %c0_8 = arith.constant 0 : index
    %11 = vector.load %arg3[%c0_6, %c0_7, %c0_8] : memref<2x1x8xf32, #tpu.memory_space<vmem>>, vector<2x1x8xf32>
    %12 = vector.extract_strided_slice %9 {offsets = [0, 0, 0], sizes = [2, 8, 16], strides = [1, 1, 1]} : vector<2x8x64xf32> to vector<2x8x16xf32>
    %13 = vector.extract_strided_slice %10 {offsets = [0, 0, 0], sizes = [2, 8, 16], strides = [1, 1, 1]} : vector<2x8x128xf32> to vector<2x8x16xf32>
    %14 = vector.extract_strided_slice %10 {offsets = [0, 0, 64], sizes = [2, 8, 16], strides = [1, 1, 1]} : vector<2x8x128xf32> to vector<2x8x16xf32>
    %15 = arith.truncf %12 : vector<2x8x16xf32> to vector<2x8x16xbf16>
    %16 = arith.truncf %13 : vector<2x8x16xf32> to vector<2x8x16xbf16>
    %cst_9 = arith.constant dense<0.000000e+00> : vector<2x8x8xf32>
    %17 = tpu.matmul %15, %16, %cst_9 {dimension_numbers = #tpu.dot_dimension_numbers<[2], [2], [1], [1], [0, 0, 0, 1, 1, 1], [0], [0]>} : vector<2x8x16xbf16>, vector<2x8x16xbf16>, vector<2x8x8xf32> -> vector<2x8x8xf32>
    %18 = vector.broadcast %11 : vector<2x1x8xf32> to vector<2x8x8xf32>
    %19 = arith.addf %17, %18 : vector<2x8x8xf32>
    %cst_10 = arith.constant dense<0xFF800000> : vector<2x8xf32>
    %20 = vector.multi_reduction <maximumf>, %19, %cst_10 [2] : vector<2x8x8xf32> to vector<2x8xf32>
    %21 = vector.shape_cast %20 : vector<2x8xf32> to vector<2x8x1xf32>
    %22 = vector.broadcast %21 : vector<2x8x1xf32> to vector<2x8x8xf32>
    %23 = arith.subf %19, %22 : vector<2x8x8xf32>
    %24 = math.exp %23 : vector<2x8x8xf32>
    %cst_11 = arith.constant dense<0.000000e+00> : vector<2x8xf32>
    %25 = vector.multi_reduction <add>, %24, %cst_11 [2] : vector<2x8x8xf32> to vector<2x8xf32>
    %26 = vector.shape_cast %25 : vector<2x8xf32> to vector<2x8x1xf32>
    %27 = tpu.reciprocal %26 {approx = true} : vector<2x8x1xf32> -> vector<2x8x1xf32>
    %28 = vector.broadcast %27 : vector<2x8x1xf32> to vector<2x8x8xf32>
    %29 = arith.mulf %24, %28 : vector<2x8x8xf32>
    %30 = arith.truncf %29 : vector<2x8x8xf32> to vector<2x8x8xbf16>
    %31 = arith.truncf %14 : vector<2x8x16xf32> to vector<2x8x16xbf16>
    %cst_12 = arith.constant dense<0.000000e+00> : vector<2x8x16xf32>
    %32 = tpu.matmul %30, %31, %cst_12 {dimension_numbers = #tpu.dot_dimension_numbers<[2], [1], [1], [2], [0, 0, 0, 1, 1, 2], [0], [0]>} : vector<2x8x8xbf16>, vector<2x8x16xbf16>, vector<2x8x16xf32> -> vector<2x8x16xf32>
    %33 = vector.shape_cast %32 : vector<2x8x16xf32> to vector<16x16xf32>
    %c0_13 = arith.constant 0 : index
    %c0_14 = arith.constant 0 : index
    %34 = vector.load %arg26[%c0_13, %c0_14] : memref<16x64xf32, #tpu.memory_space<vmem>>, vector<16x16xf32>
    tpu.vector_store %arg26[%c0_13, %c0_14], %33 {strides = array<i32>} : memref<16x64xf32, #tpu.memory_space<vmem>>, vector<16x16xf32>,
    %35 = vector.extract_strided_slice %9 {offsets = [0, 0, 16], sizes = [2, 8, 16], strides = [1, 1, 1]} : vector<2x8x64xf32> to vector<2x8x16xf32>
    %36 = vector.extract_strided_slice %10 {offsets = [0, 0, 16], sizes = [2, 8, 16], strides = [1, 1, 1]} : vector<2x8x128xf32> to vector<2x8x16xf32>
    %37 = vector.extract_strided_slice %10 {offsets = [0, 0, 80], sizes = [2, 8, 16], strides = [1, 1, 1]} : vector<2x8x128xf32> to vector<2x8x16xf32>
    %38 = arith.truncf %35 : vector<2x8x16xf32> to vector<2x8x16xbf16>
    %39 = arith.truncf %36 : vector<2x8x16xf32> to vector<2x8x16xbf16>
    %cst_15 = arith.constant dense<0.000000e+00> : vector<2x8x8xf32>
    %40 = tpu.matmul %38, %39, %cst_15 {dimension_numbers = #tpu.dot_dimension_numbers<[2], [2], [1], [1], [0, 0, 0, 1, 1, 1], [0], [0]>} : vector<2x8x16xbf16>, vector<2x8x16xbf16>, vector<2x8x8xf32> -> vector<2x8x8xf32>
    %41 = vector.broadcast %11 : vector<2x1x8xf32> to vector<2x8x8xf32>
    %42 = arith.addf %40, %41 : vector<2x8x8xf32>
    %cst_16 = arith.constant dense<0xFF800000> : vector<2x8xf32>
    %43 = vector.multi_reduction <maximumf>, %42, %cst_16 [2] : vector<2x8x8xf32> to vector<2x8xf32>
    %44 = vector.shape_cast %43 : vector<2x8xf32> to vector<2x8x1xf32>
    %45 = vector.broadcast %44 : vector<2x8x1xf32> to vector<2x8x8xf32>
    %46 = arith.subf %42, %45 : vector<2x8x8xf32>
    %47 = math.exp %46 : vector<2x8x8xf32>
    %cst_17 = arith.constant dense<0.000000e+00> : vector<2x8xf32>
    %48 = vector.multi_reduction <add>, %47, %cst_17 [2] : vector<2x8x8xf32> to vector<2x8xf32>
    %49 = vector.shape_cast %48 : vector<2x8xf32> to vector<2x8x1xf32>
    %50 = tpu.reciprocal %49 {approx = true} : vector<2x8x1xf32> -> vector<2x8x1xf32>
    %51 = vector.broadcast %50 : vector<2x8x1xf32> to vector<2x8x8xf32>
    %52 = arith.mulf %47, %51 : vector<2x8x8xf32>
    %53 = arith.truncf %52 : vector<2x8x8xf32> to vector<2x8x8xbf16>
    %54 = arith.truncf %37 : vector<2x8x16xf32> to vector<2x8x16xbf16>
    %cst_18 = arith.constant dense<0.000000e+00> : vector<2x8x16xf32>
    %55 = tpu.matmul %53, %54, %cst_18 {dimension_numbers = #tpu.dot_dimension_numbers<[2], [1], [1], [2], [0, 0, 0, 1, 1, 2], [0], [0]>} : vector<2x8x8xbf16>, vector<2x8x16xbf16>, vector<2x8x16xf32> -> vector<2x8x16xf32>
    %56 = vector.shape_cast %55 : vector<2x8x16xf32> to vector<16x16xf32>
    %c0_19 = arith.constant 0 : index
    %c16 = arith.constant 16 : index
    %57 = vector.load %arg26[%c0_19, %c16] : memref<16x64xf32, #tpu.memory_space<vmem>>, vector<16x16xf32>
    tpu.vector_store %arg26[%c0_19, %c16], %56 {strides = array<i32>} : memref<16x64xf32, #tpu.memory_space<vmem>>, vector<16x16xf32>,
    %58 = vector.extract_strided_slice %9 {offsets = [0, 0, 32], sizes = [2, 8, 16], strides = [1, 1, 1]} : vector<2x8x64xf32> to vector<2x8x16xf32>
    %59 = vector.extract_strided_slice %10 {offsets = [0, 0, 32], sizes = [2, 8, 16], strides = [1, 1, 1]} : vector<2x8x128xf32> to vector<2x8x16xf32>
    %60 = vector.extract_strided_slice %10 {offsets = [0, 0, 96], sizes = [2, 8, 16], strides = [1, 1, 1]} : vector<2x8x128xf32> to vector<2x8x16xf32>
    %61 = arith.truncf %58 : vector<2x8x16xf32> to vector<2x8x16xbf16>
    %62 = arith.truncf %59 : vector<2x8x16xf32> to vector<2x8x16xbf16>
    %cst_20 = arith.constant dense<0.000000e+00> : vector<2x8x8xf32>
    %63 = tpu.matmul %61, %62, %cst_20 {dimension_numbers = #tpu.dot_dimension_numbers<[2], [2], [1], [1], [0, 0, 0, 1, 1, 1], [0], [0]>} : vector<2x8x16xbf16>, vector<2x8x16xbf16>, vector<2x8x8xf32> -> vector<2x8x8xf32>
    %64 = vector.broadcast %11 : vector<2x1x8xf32> to vector<2x8x8xf32>
    %65 = arith.addf %63, %64 : vector<2x8x8xf32>
    %cst_21 = arith.constant dense<0xFF800000> : vector<2x8xf32>
    %66 = vector.multi_reduction <maximumf>, %65, %cst_21 [2] : vector<2x8x8xf32> to vector<2x8xf32>
    %67 = vector.shape_cast %66 : vector<2x8xf32> to vector<2x8x1xf32>
    %68 = vector.broadcast %67 : vector<2x8x1xf32> to vector<2x8x8xf32>
    %69 = arith.subf %65, %68 : vector<2x8x8xf32>
    %70 = math.exp %69 : vector<2x8x8xf32>
    %cst_22 = arith.constant dense<0.000000e+00> : vector<2x8xf32>
    %71 = vector.multi_reduction <add>, %70, %cst_22 [2] : vector<2x8x8xf32> to vector<2x8xf32>
    %72 = vector.shape_cast %71 : vector<2x8xf32> to vector<2x8x1xf32>
    %73 = tpu.reciprocal %72 {approx = true} : vector<2x8x1xf32> -> vector<2x8x1xf32>
    %74 = vector.broadcast %73 : vector<2x8x1xf32> to vector<2x8x8xf32>
    %75 = arith.mulf %70, %74 : vector<2x8x8xf32>
    %76 = arith.truncf %75 : vector<2x8x8xf32> to vector<2x8x8xbf16>
    %77 = arith.truncf %60 : vector<2x8x16xf32> to vector<2x8x16xbf16>
    %cst_23 = arith.constant dense<0.000000e+00> : vector<2x8x16xf32>
    %78 = tpu.matmul %76, %77, %cst_23 {dimension_numbers = #tpu.dot_dimension_numbers<[2], [1], [1], [2], [0, 0, 0, 1, 1, 2], [0], [0]>} : vector<2x8x8xbf16>, vector<2x8x16xbf16>, vector<2x8x16xf32> -> vector<2x8x16xf32>
    %79 = vector.shape_cast %78 : vector<2x8x16xf32> to vector<16x16xf32>
    %c0_24 = arith.constant 0 : index
    %c32 = arith.constant 32 : index
    %80 = vector.load %arg26[%c0_24, %c32] : memref<16x64xf32, #tpu.memory_space<vmem>>, vector<16x16xf32>
    tpu.vector_store %arg26[%c0_24, %c32], %79 {strides = array<i32>} : memref<16x64xf32, #tpu.memory_space<vmem>>, vector<16x16xf32>,
    %81 = vector.extract_strided_slice %9 {offsets = [0, 0, 48], sizes = [2, 8, 16], strides = [1, 1, 1]} : vector<2x8x64xf32> to vector<2x8x16xf32>
    %82 = vector.extract_strided_slice %10 {offsets = [0, 0, 48], sizes = [2, 8, 16], strides = [1, 1, 1]} : vector<2x8x128xf32> to vector<2x8x16xf32>
    %83 = vector.extract_strided_slice %10 {offsets = [0, 0, 112], sizes = [2, 8, 16], strides = [1, 1, 1]} : vector<2x8x128xf32> to vector<2x8x16xf32>
    %84 = arith.truncf %81 : vector<2x8x16xf32> to vector<2x8x16xbf16>
    %85 = arith.truncf %82 : vector<2x8x16xf32> to vector<2x8x16xbf16>
    %cst_25 = arith.constant dense<0.000000e+00> : vector<2x8x8xf32>
    %86 = tpu.matmul %84, %85, %cst_25 {dimension_numbers = #tpu.dot_dimension_numbers<[2], [2], [1], [1], [0, 0, 0, 1, 1, 1], [0], [0]>} : vector<2x8x16xbf16>, vector<2x8x16xbf16>, vector<2x8x8xf32> -> vector<2x8x8xf32>
    %87 = vector.broadcast %11 : vector<2x1x8xf32> to vector<2x8x8xf32>
    %88 = arith.addf %86, %87 : vector<2x8x8xf32>
    %cst_26 = arith.constant dense<0xFF800000> : vector<2x8xf32>
    %89 = vector.multi_reduction <maximumf>, %88, %cst_26 [2] : vector<2x8x8xf32> to vector<2x8xf32>
    %90 = vector.shape_cast %89 : vector<2x8xf32> to vector<2x8x1xf32>
    %91 = vector.broadcast %90 : vector<2x8x1xf32> to vector<2x8x8xf32>
    %92 = arith.subf %88, %91 : vector<2x8x8xf32>
    %93 = math.exp %92 : vector<2x8x8xf32>
    %cst_27 = arith.constant dense<0.000000e+00> : vector<2x8xf32>
    %94 = vector.multi_reduction <add>, %93, %cst_27 [2] : vector<2x8x8xf32> to vector<2x8xf32>
    %95 = vector.shape_cast %94 : vector<2x8xf32> to vector<2x8x1xf32>
    %96 = tpu.reciprocal %95 {approx = true} : vector<2x8x1xf32> -> vector<2x8x1xf32>
    %97 = vector.broadcast %96 : vector<2x8x1xf32> to vector<2x8x8xf32>
    %98 = arith.mulf %93, %97 : vector<2x8x8xf32>
    %99 = arith.truncf %98 : vector<2x8x8xf32> to vector<2x8x8xbf16>
    %100 = arith.truncf %83 : vector<2x8x16xf32> to vector<2x8x16xbf16>
    %cst_28 = arith.constant dense<0.000000e+00> : vector<2x8x16xf32>
    %101 = tpu.matmul %99, %100, %cst_28 {dimension_numbers = #tpu.dot_dimension_numbers<[2], [1], [1], [2], [0, 0, 0, 1, 1, 2], [0], [0]>} : vector<2x8x8xbf16>, vector<2x8x16xbf16>, vector<2x8x16xf32> -> vector<2x8x16xf32>
    %102 = vector.shape_cast %101 : vector<2x8x16xf32> to vector<16x16xf32>
    %c0_29 = arith.constant 0 : index
    %c48 = arith.constant 48 : index
    %103 = vector.load %arg26[%c0_29, %c48] : memref<16x64xf32, #tpu.memory_space<vmem>>, vector<16x16xf32>
    tpu.vector_store %arg26[%c0_29, %c48], %102 {strides = array<i32>} : memref<16x64xf32, #tpu.memory_space<vmem>>, vector<16x16xf32>,
    %c0_30 = arith.constant 0 : index
    %c0_31 = arith.constant 0 : index
    %104 = vector.load %arg26[%c0_30, %c0_31] : memref<16x64xf32, #tpu.memory_space<vmem>>, vector<16x64xf32>
    %105 = arith.truncf %104 : vector<16x64xf32> to vector<16x64xbf16>
    %c0_32 = arith.constant 0 : index
    %c0_33 = arith.constant 0 : index
    %106 = vector.load %arg7[%c0_32, %c0_33] : memref<64x64xbf16, #tpu.memory_space<vmem>>, vector<64x64xbf16>
    %cst_34 = arith.constant dense<0.000000e+00> : vector<16x64xf32>
    %107 = tpu.matmul %105, %106, %cst_34 {dimension_numbers = #tpu.dot_dimension_numbers<[1], [0], [0], [1], [0, 0, 1, 1], [], []>} : vector<16x64xbf16>, vector<64x64xbf16>, vector<16x64xf32> -> vector<16x64xf32>
    %c0_35 = arith.constant 0 : index
    %c0_36 = arith.constant 0 : index
    %108 = vector.load %arg8[%c0_35, %c0_36] : memref<1x64xf32, #tpu.memory_space<vmem>>, vector<1x64xf32>
    %109 = vector.broadcast %108 : vector<1x64xf32> to vector<16x64xf32>
    %110 = arith.addf %107, %109 : vector<16x64xf32>
    %111 = arith.addf %1, %110 : vector<16x64xf32>
    %c0_37 = arith.constant 0 : index
    %c0_38 = arith.constant 0 : index
    %112 = vector.load %arg9[%c0_37, %c0_38] : memref<1x64xf32, #tpu.memory_space<vmem>>, vector<1x64xf32>
    %c0_39 = arith.constant 0 : index
    %c0_40 = arith.constant 0 : index
    %113 = vector.load %arg10[%c0_39, %c0_40] : memref<1x64xf32, #tpu.memory_space<vmem>>, vector<1x64xf32>
    %cst_41 = arith.constant dense<0.000000e+00> : vector<16xf32>
    %114 = vector.multi_reduction <add>, %111, %cst_41 [1] : vector<16x64xf32> to vector<16xf32>
    %115 = vector.shape_cast %114 : vector<16xf32> to vector<16x1xf32>
    %cst_42 = arith.constant 6.400000e+01 : f32
    %116 = vector.broadcast %cst_42 : f32 to vector<16x1xf32>
    %117 = arith.divf %115, %116 : vector<16x1xf32>
    %118 = vector.broadcast %117 : vector<16x1xf32> to vector<16x64xf32>
    %119 = arith.subf %111, %118 : vector<16x64xf32>
    %120 = arith.mulf %119, %119 : vector<16x64xf32>
    %cst_43 = arith.constant dense<0.000000e+00> : vector<16xf32>
    %121 = vector.multi_reduction <add>, %120, %cst_43 [1] : vector<16x64xf32> to vector<16xf32>
    %122 = vector.shape_cast %121 : vector<16xf32> to vector<16x1xf32>
    %cst_44 = arith.constant 6.400000e+01 : f32
    %123 = vector.broadcast %cst_44 : f32 to vector<16x1xf32>
    %124 = arith.divf %122, %123 : vector<16x1xf32>
    %125 = vector.broadcast %117 : vector<16x1xf32> to vector<16x64xf32>
    %126 = arith.subf %111, %125 : vector<16x64xf32>
    %cst_45 = arith.constant 9.99999974E-6 : f32
    %127 = vector.broadcast %cst_45 : f32 to vector<16x1xf32>
    %128 = arith.addf %124, %127 : vector<16x1xf32>
    %129 = math.rsqrt %128 : vector<16x1xf32>
    %130 = vector.broadcast %129 : vector<16x1xf32> to vector<16x64xf32>
    %131 = arith.mulf %126, %130 : vector<16x64xf32>
    %132 = vector.broadcast %112 : vector<1x64xf32> to vector<16x64xf32>
    %133 = arith.mulf %131, %132 : vector<16x64xf32>
    %134 = vector.broadcast %113 : vector<1x64xf32> to vector<16x64xf32>
    %135 = arith.addf %133, %134 : vector<16x64xf32>
    %136 = arith.truncf %135 : vector<16x64xf32> to vector<16x64xbf16>
    %c0_46 = arith.constant 0 : index
    %c0_47 = arith.constant 0 : index
    %137 = vector.load %arg11[%c0_46, %c0_47] : memref<64x64xbf16, #tpu.memory_space<vmem>>, vector<64x64xbf16>
    %cst_48 = arith.constant dense<0.000000e+00> : vector<16x64xf32>
    %138 = tpu.matmul %136, %137, %cst_48 {dimension_numbers = #tpu.dot_dimension_numbers<[1], [0], [0], [1], [0, 0, 1, 1], [], []>} : vector<16x64xbf16>, vector<64x64xbf16>, vector<16x64xf32> -> vector<16x64xf32>
    %c0_49 = arith.constant 0 : index
    %c0_50 = arith.constant 0 : index
    %139 = vector.load %arg12[%c0_49, %c0_50] : memref<1x64xf32, #tpu.memory_space<vmem>>, vector<1x64xf32>
    %140 = vector.broadcast %139 : vector<1x64xf32> to vector<16x64xf32>
    %141 = arith.addf %138, %140 : vector<16x64xf32>
    %c0_51 = arith.constant 0 : index
    %c0_52 = arith.constant 0 : index
    %c0_53 = arith.constant 0 : index
    %142 = vector.load %arg2[%c0_51, %c0_52, %c0_53] : memref<2x8x64xf32, #tpu.memory_space<vmem>>, vector<2x8x64xf32>
    %143 = vector.shape_cast %142 : vector<2x8x64xf32> to vector<16x64xf32>
    %144 = arith.truncf %143 : vector<16x64xf32> to vector<16x64xbf16>
    %c0_54 = arith.constant 0 : index
    %c0_55 = arith.constant 0 : index
    %145 = vector.load %arg13[%c0_54, %c0_55] : memref<64x128xbf16, #tpu.memory_space<vmem>>, vector<64x128xbf16>
    %cst_56 = arith.constant dense<0.000000e+00> : vector<16x128xf32>
    %146 = tpu.matmul %144, %145, %cst_56 {dimension_numbers = #tpu.dot_dimension_numbers<[1], [0], [0], [1], [0, 0, 1, 1], [], []>} : vector<16x64xbf16>, vector<64x128xbf16>, vector<16x128xf32> -> vector<16x128xf32>
    %c0_57 = arith.constant 0 : index
    %c0_58 = arith.constant 0 : index
    %147 = vector.load %arg14[%c0_57, %c0_58] : memref<1x128xf32, #tpu.memory_space<vmem>>, vector<1x128xf32>
    %148 = vector.broadcast %147 : vector<1x128xf32> to vector<16x128xf32>
    %149 = arith.addf %146, %148 : vector<16x128xf32>
    %150 = vector.shape_cast %141 : vector<16x64xf32> to vector<2x8x64xf32>
    %151 = vector.shape_cast %149 : vector<16x128xf32> to vector<2x8x128xf32>
    %c0_59 = arith.constant 0 : index
    %c0_60 = arith.constant 0 : index
    %c0_61 = arith.constant 0 : index
    %152 = vector.load %arg4[%c0_59, %c0_60, %c0_61] : memref<2x1x8xf32, #tpu.memory_space<vmem>>, vector<2x1x8xf32>
    %153 = vector.extract_strided_slice %150 {offsets = [0, 0, 0], sizes = [2, 8, 16], strides = [1, 1, 1]} : vector<2x8x64xf32> to vector<2x8x16xf32>
    %154 = vector.extract_strided_slice %151 {offsets = [0, 0, 0], sizes = [2, 8, 16], strides = [1, 1, 1]} : vector<2x8x128xf32> to vector<2x8x16xf32>
    %155 = vector.extract_strided_slice %151 {offsets = [0, 0, 64], sizes = [2, 8, 16], strides = [1, 1, 1]} : vector<2x8x128xf32> to vector<2x8x16xf32>
    %156 = arith.truncf %153 : vector<2x8x16xf32> to vector<2x8x16xbf16>
    %157 = arith.truncf %154 : vector<2x8x16xf32> to vector<2x8x16xbf16>
    %cst_62 = arith.constant dense<0.000000e+00> : vector<2x8x8xf32>
    %158 = tpu.matmul %156, %157, %cst_62 {dimension_numbers = #tpu.dot_dimension_numbers<[2], [2], [1], [1], [0, 0, 0, 1, 1, 1], [0], [0]>} : vector<2x8x16xbf16>, vector<2x8x16xbf16>, vector<2x8x8xf32> -> vector<2x8x8xf32>
    %159 = vector.broadcast %152 : vector<2x1x8xf32> to vector<2x8x8xf32>
    %160 = arith.addf %158, %159 : vector<2x8x8xf32>
    %cst_63 = arith.constant dense<0xFF800000> : vector<2x8xf32>
    %161 = vector.multi_reduction <maximumf>, %160, %cst_63 [2] : vector<2x8x8xf32> to vector<2x8xf32>
    %162 = vector.shape_cast %161 : vector<2x8xf32> to vector<2x8x1xf32>
    %163 = vector.broadcast %162 : vector<2x8x1xf32> to vector<2x8x8xf32>
    %164 = arith.subf %160, %163 : vector<2x8x8xf32>
    %165 = math.exp %164 : vector<2x8x8xf32>
    %cst_64 = arith.constant dense<0.000000e+00> : vector<2x8xf32>
    %166 = vector.multi_reduction <add>, %165, %cst_64 [2] : vector<2x8x8xf32> to vector<2x8xf32>
    %167 = vector.shape_cast %166 : vector<2x8xf32> to vector<2x8x1xf32>
    %168 = tpu.reciprocal %167 {approx = true} : vector<2x8x1xf32> -> vector<2x8x1xf32>
    %169 = vector.broadcast %168 : vector<2x8x1xf32> to vector<2x8x8xf32>
    %170 = arith.mulf %165, %169 : vector<2x8x8xf32>
    %171 = arith.truncf %170 : vector<2x8x8xf32> to vector<2x8x8xbf16>
    %172 = arith.truncf %155 : vector<2x8x16xf32> to vector<2x8x16xbf16>
    %cst_65 = arith.constant dense<0.000000e+00> : vector<2x8x16xf32>
    %173 = tpu.matmul %171, %172, %cst_65 {dimension_numbers = #tpu.dot_dimension_numbers<[2], [1], [1], [2], [0, 0, 0, 1, 1, 2], [0], [0]>} : vector<2x8x8xbf16>, vector<2x8x16xbf16>, vector<2x8x16xf32> -> vector<2x8x16xf32>
    %174 = vector.shape_cast %173 : vector<2x8x16xf32> to vector<16x16xf32>
    %c0_66 = arith.constant 0 : index
    %c0_67 = arith.constant 0 : index
    %175 = vector.load %arg26[%c0_66, %c0_67] : memref<16x64xf32, #tpu.memory_space<vmem>>, vector<16x16xf32>
    tpu.vector_store %arg26[%c0_66, %c0_67], %174 {strides = array<i32>} : memref<16x64xf32, #tpu.memory_space<vmem>>, vector<16x16xf32>,
    %176 = vector.extract_strided_slice %150 {offsets = [0, 0, 16], sizes = [2, 8, 16], strides = [1, 1, 1]} : vector<2x8x64xf32> to vector<2x8x16xf32>
    %177 = vector.extract_strided_slice %151 {offsets = [0, 0, 16], sizes = [2, 8, 16], strides = [1, 1, 1]} : vector<2x8x128xf32> to vector<2x8x16xf32>
    %178 = vector.extract_strided_slice %151 {offsets = [0, 0, 80], sizes = [2, 8, 16], strides = [1, 1, 1]} : vector<2x8x128xf32> to vector<2x8x16xf32>
    %179 = arith.truncf %176 : vector<2x8x16xf32> to vector<2x8x16xbf16>
    %180 = arith.truncf %177 : vector<2x8x16xf32> to vector<2x8x16xbf16>
    %cst_68 = arith.constant dense<0.000000e+00> : vector<2x8x8xf32>
    %181 = tpu.matmul %179, %180, %cst_68 {dimension_numbers = #tpu.dot_dimension_numbers<[2], [2], [1], [1], [0, 0, 0, 1, 1, 1], [0], [0]>} : vector<2x8x16xbf16>, vector<2x8x16xbf16>, vector<2x8x8xf32> -> vector<2x8x8xf32>
    %182 = vector.broadcast %152 : vector<2x1x8xf32> to vector<2x8x8xf32>
    %183 = arith.addf %181, %182 : vector<2x8x8xf32>
    %cst_69 = arith.constant dense<0xFF800000> : vector<2x8xf32>
    %184 = vector.multi_reduction <maximumf>, %183, %cst_69 [2] : vector<2x8x8xf32> to vector<2x8xf32>
    %185 = vector.shape_cast %184 : vector<2x8xf32> to vector<2x8x1xf32>
    %186 = vector.broadcast %185 : vector<2x8x1xf32> to vector<2x8x8xf32>
    %187 = arith.subf %183, %186 : vector<2x8x8xf32>
    %188 = math.exp %187 : vector<2x8x8xf32>
    %cst_70 = arith.constant dense<0.000000e+00> : vector<2x8xf32>
    %189 = vector.multi_reduction <add>, %188, %cst_70 [2] : vector<2x8x8xf32> to vector<2x8xf32>
    %190 = vector.shape_cast %189 : vector<2x8xf32> to vector<2x8x1xf32>
    %191 = tpu.reciprocal %190 {approx = true} : vector<2x8x1xf32> -> vector<2x8x1xf32>
    %192 = vector.broadcast %191 : vector<2x8x1xf32> to vector<2x8x8xf32>
    %193 = arith.mulf %188, %192 : vector<2x8x8xf32>
    %194 = arith.truncf %193 : vector<2x8x8xf32> to vector<2x8x8xbf16>
    %195 = arith.truncf %178 : vector<2x8x16xf32> to vector<2x8x16xbf16>
    %cst_71 = arith.constant dense<0.000000e+00> : vector<2x8x16xf32>
    %196 = tpu.matmul %194, %195, %cst_71 {dimension_numbers = #tpu.dot_dimension_numbers<[2], [1], [1], [2], [0, 0, 0, 1, 1, 2], [0], [0]>} : vector<2x8x8xbf16>, vector<2x8x16xbf16>, vector<2x8x16xf32> -> vector<2x8x16xf32>
    %197 = vector.shape_cast %196 : vector<2x8x16xf32> to vector<16x16xf32>
    %c0_72 = arith.constant 0 : index
    %c16_73 = arith.constant 16 : index
    %198 = vector.load %arg26[%c0_72, %c16_73] : memref<16x64xf32, #tpu.memory_space<vmem>>, vector<16x16xf32>
    tpu.vector_store %arg26[%c0_72, %c16_73], %197 {strides = array<i32>} : memref<16x64xf32, #tpu.memory_space<vmem>>, vector<16x16xf32>,
    %199 = vector.extract_strided_slice %150 {offsets = [0, 0, 32], sizes = [2, 8, 16], strides = [1, 1, 1]} : vector<2x8x64xf32> to vector<2x8x16xf32>
    %200 = vector.extract_strided_slice %151 {offsets = [0, 0, 32], sizes = [2, 8, 16], strides = [1, 1, 1]} : vector<2x8x128xf32> to vector<2x8x16xf32>
    %201 = vector.extract_strided_slice %151 {offsets = [0, 0, 96], sizes = [2, 8, 16], strides = [1, 1, 1]} : vector<2x8x128xf32> to vector<2x8x16xf32>
    %202 = arith.truncf %199 : vector<2x8x16xf32> to vector<2x8x16xbf16>
    %203 = arith.truncf %200 : vector<2x8x16xf32> to vector<2x8x16xbf16>
    %cst_74 = arith.constant dense<0.000000e+00> : vector<2x8x8xf32>
    %204 = tpu.matmul %202, %203, %cst_74 {dimension_numbers = #tpu.dot_dimension_numbers<[2], [2], [1], [1], [0, 0, 0, 1, 1, 1], [0], [0]>} : vector<2x8x16xbf16>, vector<2x8x16xbf16>, vector<2x8x8xf32> -> vector<2x8x8xf32>
    %205 = vector.broadcast %152 : vector<2x1x8xf32> to vector<2x8x8xf32>
    %206 = arith.addf %204, %205 : vector<2x8x8xf32>
    %cst_75 = arith.constant dense<0xFF800000> : vector<2x8xf32>
    %207 = vector.multi_reduction <maximumf>, %206, %cst_75 [2] : vector<2x8x8xf32> to vector<2x8xf32>
    %208 = vector.shape_cast %207 : vector<2x8xf32> to vector<2x8x1xf32>
    %209 = vector.broadcast %208 : vector<2x8x1xf32> to vector<2x8x8xf32>
    %210 = arith.subf %206, %209 : vector<2x8x8xf32>
    %211 = math.exp %210 : vector<2x8x8xf32>
    %cst_76 = arith.constant dense<0.000000e+00> : vector<2x8xf32>
    %212 = vector.multi_reduction <add>, %211, %cst_76 [2] : vector<2x8x8xf32> to vector<2x8xf32>
    %213 = vector.shape_cast %212 : vector<2x8xf32> to vector<2x8x1xf32>
    %214 = tpu.reciprocal %213 {approx = true} : vector<2x8x1xf32> -> vector<2x8x1xf32>
    %215 = vector.broadcast %214 : vector<2x8x1xf32> to vector<2x8x8xf32>
    %216 = arith.mulf %211, %215 : vector<2x8x8xf32>
    %217 = arith.truncf %216 : vector<2x8x8xf32> to vector<2x8x8xbf16>
    %218 = arith.truncf %201 : vector<2x8x16xf32> to vector<2x8x16xbf16>
    %cst_77 = arith.constant dense<0.000000e+00> : vector<2x8x16xf32>
    %219 = tpu.matmul %217, %218, %cst_77 {dimension_numbers = #tpu.dot_dimension_numbers<[2], [1], [1], [2], [0, 0, 0, 1, 1, 2], [0], [0]>} : vector<2x8x8xbf16>, vector<2x8x16xbf16>, vector<2x8x16xf32> -> vector<2x8x16xf32>
    %220 = vector.shape_cast %219 : vector<2x8x16xf32> to vector<16x16xf32>
    %c0_78 = arith.constant 0 : index
    %c32_79 = arith.constant 32 : index
    %221 = vector.load %arg26[%c0_78, %c32_79] : memref<16x64xf32, #tpu.memory_space<vmem>>, vector<16x16xf32>
    tpu.vector_store %arg26[%c0_78, %c32_79], %220 {strides = array<i32>} : memref<16x64xf32, #tpu.memory_space<vmem>>, vector<16x16xf32>,
    %222 = vector.extract_strided_slice %150 {offsets = [0, 0, 48], sizes = [2, 8, 16], strides = [1, 1, 1]} : vector<2x8x64xf32> to vector<2x8x16xf32>
    %223 = vector.extract_strided_slice %151 {offsets = [0, 0, 48], sizes = [2, 8, 16], strides = [1, 1, 1]} : vector<2x8x128xf32> to vector<2x8x16xf32>
    %224 = vector.extract_strided_slice %151 {offsets = [0, 0, 112], sizes = [2, 8, 16], strides = [1, 1, 1]} : vector<2x8x128xf32> to vector<2x8x16xf32>
    %225 = arith.truncf %222 : vector<2x8x16xf32> to vector<2x8x16xbf16>
    %226 = arith.truncf %223 : vector<2x8x16xf32> to vector<2x8x16xbf16>
    %cst_80 = arith.constant dense<0.000000e+00> : vector<2x8x8xf32>
    %227 = tpu.matmul %225, %226, %cst_80 {dimension_numbers = #tpu.dot_dimension_numbers<[2], [2], [1], [1], [0, 0, 0, 1, 1, 1], [0], [0]>} : vector<2x8x16xbf16>, vector<2x8x16xbf16>, vector<2x8x8xf32> -> vector<2x8x8xf32>
    %228 = vector.broadcast %152 : vector<2x1x8xf32> to vector<2x8x8xf32>
    %229 = arith.addf %227, %228 : vector<2x8x8xf32>
    %cst_81 = arith.constant dense<0xFF800000> : vector<2x8xf32>
    %230 = vector.multi_reduction <maximumf>, %229, %cst_81 [2] : vector<2x8x8xf32> to vector<2x8xf32>
    %231 = vector.shape_cast %230 : vector<2x8xf32> to vector<2x8x1xf32>
    %232 = vector.broadcast %231 : vector<2x8x1xf32> to vector<2x8x8xf32>
    %233 = arith.subf %229, %232 : vector<2x8x8xf32>
    %234 = math.exp %233 : vector<2x8x8xf32>
    %cst_82 = arith.constant dense<0.000000e+00> : vector<2x8xf32>
    %235 = vector.multi_reduction <add>, %234, %cst_82 [2] : vector<2x8x8xf32> to vector<2x8xf32>
    %236 = vector.shape_cast %235 : vector<2x8xf32> to vector<2x8x1xf32>
    %237 = tpu.reciprocal %236 {approx = true} : vector<2x8x1xf32> -> vector<2x8x1xf32>
    %238 = vector.broadcast %237 : vector<2x8x1xf32> to vector<2x8x8xf32>
    %239 = arith.mulf %234, %238 : vector<2x8x8xf32>
    %240 = arith.truncf %239 : vector<2x8x8xf32> to vector<2x8x8xbf16>
    %241 = arith.truncf %224 : vector<2x8x16xf32> to vector<2x8x16xbf16>
    %cst_83 = arith.constant dense<0.000000e+00> : vector<2x8x16xf32>
    %242 = tpu.matmul %240, %241, %cst_83 {dimension_numbers = #tpu.dot_dimension_numbers<[2], [1], [1], [2], [0, 0, 0, 1, 1, 2], [0], [0]>} : vector<2x8x8xbf16>, vector<2x8x16xbf16>, vector<2x8x16xf32> -> vector<2x8x16xf32>
    %243 = vector.shape_cast %242 : vector<2x8x16xf32> to vector<16x16xf32>
    %c0_84 = arith.constant 0 : index
    %c48_85 = arith.constant 48 : index
    %244 = vector.load %arg26[%c0_84, %c48_85] : memref<16x64xf32, #tpu.memory_space<vmem>>, vector<16x16xf32>
    tpu.vector_store %arg26[%c0_84, %c48_85], %243 {strides = array<i32>} : memref<16x64xf32, #tpu.memory_space<vmem>>, vector<16x16xf32>,
    %c0_86 = arith.constant 0 : index
    %c0_87 = arith.constant 0 : index
    %245 = vector.load %arg26[%c0_86, %c0_87] : memref<16x64xf32, #tpu.memory_space<vmem>>, vector<16x64xf32>
    %246 = arith.truncf %245 : vector<16x64xf32> to vector<16x64xbf16>
    %c0_88 = arith.constant 0 : index
    %c0_89 = arith.constant 0 : index
    %247 = vector.load %arg15[%c0_88, %c0_89] : memref<64x64xbf16, #tpu.memory_space<vmem>>, vector<64x64xbf16>
    %cst_90 = arith.constant dense<0.000000e+00> : vector<16x64xf32>
    %248 = tpu.matmul %246, %247, %cst_90 {dimension_numbers = #tpu.dot_dimension_numbers<[1], [0], [0], [1], [0, 0, 1, 1], [], []>} : vector<16x64xbf16>, vector<64x64xbf16>, vector<16x64xf32> -> vector<16x64xf32>
    %c0_91 = arith.constant 0 : index
    %c0_92 = arith.constant 0 : index
    %249 = vector.load %arg16[%c0_91, %c0_92] : memref<1x64xf32, #tpu.memory_space<vmem>>, vector<1x64xf32>
    %250 = vector.broadcast %249 : vector<1x64xf32> to vector<16x64xf32>
    %251 = arith.addf %248, %250 : vector<16x64xf32>
    %252 = arith.addf %135, %251 : vector<16x64xf32>
    %c0_93 = arith.constant 0 : index
    %c0_94 = arith.constant 0 : index
    %253 = vector.load %arg17[%c0_93, %c0_94] : memref<1x64xf32, #tpu.memory_space<vmem>>, vector<1x64xf32>
    %c0_95 = arith.constant 0 : index
    %c0_96 = arith.constant 0 : index
    %254 = vector.load %arg18[%c0_95, %c0_96] : memref<1x64xf32, #tpu.memory_space<vmem>>, vector<1x64xf32>
    %cst_97 = arith.constant dense<0.000000e+00> : vector<16xf32>
    %255 = vector.multi_reduction <add>, %252, %cst_97 [1] : vector<16x64xf32> to vector<16xf32>
    %256 = vector.shape_cast %255 : vector<16xf32> to vector<16x1xf32>
    %cst_98 = arith.constant 6.400000e+01 : f32
    %257 = vector.broadcast %cst_98 : f32 to vector<16x1xf32>
    %258 = arith.divf %256, %257 : vector<16x1xf32>
    %259 = vector.broadcast %258 : vector<16x1xf32> to vector<16x64xf32>
    %260 = arith.subf %252, %259 : vector<16x64xf32>
    %261 = arith.mulf %260, %260 : vector<16x64xf32>
    %cst_99 = arith.constant dense<0.000000e+00> : vector<16xf32>
    %262 = vector.multi_reduction <add>, %261, %cst_99 [1] : vector<16x64xf32> to vector<16xf32>
    %263 = vector.shape_cast %262 : vector<16xf32> to vector<16x1xf32>
    %cst_100 = arith.constant 6.400000e+01 : f32
    %264 = vector.broadcast %cst_100 : f32 to vector<16x1xf32>
    %265 = arith.divf %263, %264 : vector<16x1xf32>
    %266 = vector.broadcast %258 : vector<16x1xf32> to vector<16x64xf32>
    %267 = arith.subf %252, %266 : vector<16x64xf32>
    %cst_101 = arith.constant 9.99999974E-6 : f32
    %268 = vector.broadcast %cst_101 : f32 to vector<16x1xf32>
    %269 = arith.addf %265, %268 : vector<16x1xf32>
    %270 = math.rsqrt %269 : vector<16x1xf32>
    %271 = vector.broadcast %270 : vector<16x1xf32> to vector<16x64xf32>
    %272 = arith.mulf %267, %271 : vector<16x64xf32>
    %273 = vector.broadcast %253 : vector<1x64xf32> to vector<16x64xf32>
    %274 = arith.mulf %272, %273 : vector<16x64xf32>
    %275 = vector.broadcast %254 : vector<1x64xf32> to vector<16x64xf32>
    %276 = arith.addf %274, %275 : vector<16x64xf32>
    %277 = arith.truncf %276 : vector<16x64xf32> to vector<16x64xbf16>
    %c0_102 = arith.constant 0 : index
    %c0_103 = arith.constant 0 : index
    %278 = vector.load %arg19[%c0_102, %c0_103] : memref<64x128xbf16, #tpu.memory_space<vmem>>, vector<64x128xbf16>
    %cst_104 = arith.constant dense<0.000000e+00> : vector<16x128xf32>
    %279 = tpu.matmul %277, %278, %cst_104 {dimension_numbers = #tpu.dot_dimension_numbers<[1], [0], [0], [1], [0, 0, 1, 1], [], []>} : vector<16x64xbf16>, vector<64x128xbf16>, vector<16x128xf32> -> vector<16x128xf32>
    %c0_105 = arith.constant 0 : index
    %c0_106 = arith.constant 0 : index
    %280 = vector.load %arg20[%c0_105, %c0_106] : memref<1x128xf32, #tpu.memory_space<vmem>>, vector<1x128xf32>
    %281 = vector.broadcast %280 : vector<1x128xf32> to vector<16x128xf32>
    %282 = arith.addf %279, %281 : vector<16x128xf32>
    %cst_107 = arith.constant 0.000000e+00 : f32
    %283 = vector.broadcast %cst_107 : f32 to vector<16x128xf32>
    %284 = arith.maximumf %282, %283 : vector<16x128xf32>
    %285 = arith.truncf %284 : vector<16x128xf32> to vector<16x128xbf16>
    %c0_108 = arith.constant 0 : index
    %c0_109 = arith.constant 0 : index
    %286 = vector.load %arg21[%c0_108, %c0_109] : memref<128x64xbf16, #tpu.memory_space<vmem>>, vector<128x64xbf16>
    %cst_110 = arith.constant dense<0.000000e+00> : vector<16x64xf32>
    %287 = tpu.matmul %285, %286, %cst_110 {dimension_numbers = #tpu.dot_dimension_numbers<[1], [0], [0], [1], [0, 0, 1, 1], [], []>} : vector<16x128xbf16>, vector<128x64xbf16>, vector<16x64xf32> -> vector<16x64xf32>
    %c0_111 = arith.constant 0 : index
    %c0_112 = arith.constant 0 : index
    %288 = vector.load %arg22[%c0_111, %c0_112] : memref<1x64xf32, #tpu.memory_space<vmem>>, vector<1x64xf32>
    %289 = vector.broadcast %288 : vector<1x64xf32> to vector<16x64xf32>
    %290 = arith.addf %287, %289 : vector<16x64xf32>
    %291 = arith.addf %276, %290 : vector<16x64xf32>
    %c0_113 = arith.constant 0 : index
    %c0_114 = arith.constant 0 : index
    %292 = vector.load %arg23[%c0_113, %c0_114] : memref<1x64xf32, #tpu.memory_space<vmem>>, vector<1x64xf32>
    %c0_115 = arith.constant 0 : index
    %c0_116 = arith.constant 0 : index
    %293 = vector.load %arg24[%c0_115, %c0_116] : memref<1x64xf32, #tpu.memory_space<vmem>>, vector<1x64xf32>
    %cst_117 = arith.constant dense<0.000000e+00> : vector<16xf32>
    %294 = vector.multi_reduction <add>, %291, %cst_117 [1] : vector<16x64xf32> to vector<16xf32>
    %295 = vector.shape_cast %294 : vector<16xf32> to vector<16x1xf32>
    %cst_118 = arith.constant 6.400000e+01 : f32
    %296 = vector.broadcast %cst_118 : f32 to vector<16x1xf32>
    %297 = arith.divf %295, %296 : vector<16x1xf32>
    %298 = vector.broadcast %297 : vector<16x1xf32> to vector<16x64xf32>
    %299 = arith.subf %291, %298 : vector<16x64xf32>
    %300 = arith.mulf %299, %299 : vector<16x64xf32>
    %cst_119 = arith.constant dense<0.000000e+00> : vector<16xf32>
    %301 = vector.multi_reduction <add>, %300, %cst_119 [1] : vector<16x64xf32> to vector<16xf32>
    %302 = vector.shape_cast %301 : vector<16xf32> to vector<16x1xf32>
    %cst_120 = arith.constant 6.400000e+01 : f32
    %303 = vector.broadcast %cst_120 : f32 to vector<16x1xf32>
    %304 = arith.divf %302, %303 : vector<16x1xf32>
    %305 = vector.broadcast %297 : vector<16x1xf32> to vector<16x64xf32>
    %306 = arith.subf %291, %305 : vector<16x64xf32>
    %cst_121 = arith.constant 9.99999974E-6 : f32
    %307 = vector.broadcast %cst_121 : f32 to vector<16x1xf32>
    %308 = arith.addf %304, %307 : vector<16x1xf32>
    %309 = math.rsqrt %308 : vector<16x1xf32>
    %310 = vector.broadcast %309 : vector<16x1xf32> to vector<16x64xf32>
    %311 = arith.mulf %306, %310 : vector<16x64xf32>
    %312 = vector.broadcast %292 : vector<1x64xf32> to vector<16x64xf32>
    %313 = arith.mulf %311, %312 : vector<16x64xf32>
    %314 = vector.broadcast %293 : vector<1x64xf32> to vector<16x64xf32>
    %315 = arith.addf %313, %314 : vector<16x64xf32>
    %316 = vector.shape_cast %315 : vector<16x64xf32> to vector<2x8x64xf32>
    %c0_122 = arith.constant 0 : index
    %c0_123 = arith.constant 0 : index
    %c0_124 = arith.constant 0 : index
    %317 = vector.load %arg25[%c0_122, %c0_123, %c0_124] : memref<2x8x64xf32, #tpu.memory_space<vmem>>, vector<2x8x64xf32>
    tpu.vector_store %arg25[%c0_122, %c0_123, %c0_124], %316 {strides = array<i32>} : memref<2x8x64xf32, #tpu.memory_space<vmem>>, vector<2x8x64xf32>,
    return
  }
  func.func @transform_0(%arg0: i32) -> (i32, i32, i32) {
    %c0_i32 = arith.constant 0 : i32
    %c0_i32_0 = arith.constant 0 : i32
    %c0_i32_1 = arith.constant 0 : i32
    return %arg0, %c0_i32, %c0_i32_0 : i32, i32, i32
  }
  func.func @transform_1(%arg0: i32) -> (i32, i32, i32) {
    %c0_i32 = arith.constant 0 : i32
    %c0_i32_0 = arith.constant 0 : i32
    %c0_i32_1 = arith.constant 0 : i32
    return %arg0, %c0_i32, %c0_i32_0 : i32, i32, i32
  }
  func.func @transform_2(%arg0: i32) -> (i32, i32, i32) {
    %c0_i32 = arith.constant 0 : i32
    %c0_i32_0 = arith.constant 0 : i32
    %c0_i32_1 = arith.constant 0 : i32
    return %arg0, %c0_i32, %c0_i32_0 : i32, i32, i32
  }
  func.func @transform_3(%arg0: i32) -> (i32, i32, i32) {
    %c0_i32 = arith.constant 0 : i32
    %c0_i32_0 = arith.constant 0 : i32
    %c0_i32_1 = arith.constant 0 : i32
    return %arg0, %c0_i32, %c0_i32_0 : i32, i32, i32
  }
  func.func @transform_4(%arg0: i32) -> (i32, i32) {
    %c0_i32 = arith.constant 0 : i32
    %c0_i32_0 = arith.constant 0 : i32
    %c0_i32_1 = arith.constant 0 : i32
    return %c0_i32, %c0_i32_0 : i32, i32
  }
  func.func @transform_5(%arg0: i32) -> (i32, i32) {
    %c0_i32 = arith.constant 0 : i32
    %c0_i32_0 = arith.constant 0 : i32
    %c0_i32_1 = arith.constant 0 : i32
    return %c0_i32, %c0_i32_0 : i32, i32
  }
  func.func @transform_6(%arg0: i32) -> (i32, i32) {
    %c0_i32 = arith.constant 0 : i32
    %c0_i32_0 = arith.constant 0 : i32
    %c0_i32_1 = arith.constant 0 : i32
    return %c0_i32, %c0_i32_0 : i32, i32
  }
  func.func @transform_7(%arg0: i32) -> (i32, i32) {
    %c0_i32 = arith.constant 0 : i32
    %c0_i32_0 = arith.constant 0 : i32
    %c0_i32_1 = arith.constant 0 : i32
    return %c0_i32, %c0_i32_0 : i32, i32
  }
  func.func @transform_8(%arg0: i32) -> (i32, i32) {
    %c0_i32 = arith.constant 0 : i32
    %c0_i32_0 = arith.constant 0 : i32
    %c0_i32_1 = arith.constant 0 : i32
    return %c0_i32, %c0_i32_0 : i32, i32
  }
  func.func @transform_9(%arg0: i32) -> (i32, i32) {
    %c0_i32 = arith.constant 0 : i32
    %c0_i32_0 = arith.constant 0 : i32
    %c0_i32_1 = arith.constant 0 : i32
    return %c0_i32, %c0_i32_0 : i32, i32
  }
  func.func @transform_10(%arg0: i32) -> (i32, i32) {
    %c0_i32 = arith.constant 0 : i32
    %c0_i32_0 = arith.constant 0 : i32
    %c0_i32_1 = arith.constant 0 : i32
    return %c0_i32, %c0_i32_0 : i32, i32
  }
  func.func @transform_11(%arg0: i32) -> (i32, i32) {
    %c0_i32 = arith.constant 0 : i32
    %c0_i32_0 = arith.constant 0 : i32
    %c0_i32_1 = arith.constant 0 : i32
    return %c0_i32, %c0_i32_0 : i32, i32
  }
  func.func @transform_12(%arg0: i32) -> (i32, i32) {
    %c0_i32 = arith.constant 0 : i32
    %c0_i32_0 = arith.constant 0 : i32
    %c0_i32_1 = arith.constant 0 : i32
    return %c0_i32, %c0_i32_0 : i32, i32
  }
  func.func @transform_13(%arg0: i32) -> (i32, i32) {
    %c0_i32 = arith.constant 0 : i32
    %c0_i32_0 = arith.constant 0 : i32
    %c0_i32_1 = arith.constant 0 : i32
    return %c0_i32, %c0_i32_0 : i32, i32
  }
  func.func @transform_14(%arg0: i32) -> (i32, i32) {
    %c0_i32 = arith.constant 0 : i32
    %c0_i32_0 = arith.constant 0 : i32
    %c0_i32_1 = arith.constant 0 : i32
    return %c0_i32, %c0_i32_0 : i32, i32
  }
  func.func @transform_15(%arg0: i32) -> (i32, i32) {
    %c0_i32 = arith.constant 0 : i32
    %c0_i32_0 = arith.constant 0 : i32
    %c0_i32_1 = arith.constant 0 : i32
    return %c0_i32, %c0_i32_0 : i32, i32
  }
  func.func @transform_16(%arg0: i32) -> (i32, i32) {
    %c0_i32 = arith.constant 0 : i32
    %c0_i32_0 = arith.constant 0 : i32
    %c0_i32_1 = arith.constant 0 : i32
    return %c0_i32, %c0_i32_0 : i32, i32
  }
  func.func @transform_17(%arg0: i32) -> (i32, i32) {
    %c0_i32 = arith.constant 0 : i32
    %c0_i32_0 = arith.constant 0 : i32
    %c0_i32_1 = arith.constant 0 : i32
    return %c0_i32, %c0_i32_0 : i32, i32
  }
  func.func @transform_18(%arg0: i32) -> (i32, i32) {
    %c0_i32 = arith.constant 0 : i32
    %c0_i32_0 = arith.constant 0 : i32
    %c0_i32_1 = arith.constant 0 : i32
    return %c0_i32, %c0_i32_0 : i32, i32
  }
  func.func @transform_19(%arg0: i32) -> (i32, i32) {
    %c0_i32 = arith.constant 0 : i32
    %c0_i32_0 = arith.constant 0 : i32
    %c0_i32_1 = arith.constant 0 : i32
    return %c0_i32, %c0_i32_0 : i32, i32
  }
  func.func @transform_20(%arg0: i32) -> (i32, i32) {
    %c0_i32 = arith.constant 0 : i32
    %c0_i32_0 = arith.constant 0 : i32
    %c0_i32_1 = arith.constant 0 : i32
    return %c0_i32, %c0_i32_0 : i32, i32
  }
  func.func @transform_21(%arg0: i32) -> (i32, i32) {
    %c0_i32 = arith.constant 0 : i32
    %c0_i32_0 = arith.constant 0 : i32
    %c0_i32_1 = arith.constant 0 : i32
    return %c0_i32, %c0_i32_0 : i32, i32
  }
  func.func @transform_22(%arg0: i32) -> (i32, i32) {
    %c0_i32 = arith.constant 0 : i32
    %c0_i32_0 = arith.constant 0 : i32
    %c0_i32_1 = arith.constant 0 : i32
    return %c0_i32, %c0_i32_0 : i32, i32
  }
  func.func @transform_23(%arg0: i32) -> (i32, i32) {
    %c0_i32 = arith.constant 0 : i32
    %c0_i32_0 = arith.constant 0 : i32
    %c0_i32_1 = arith.constant 0 : i32
    return %c0_i32, %c0_i32_0 : i32, i32
  }
  func.func @transform_24(%arg0: i32) -> (i32, i32, i32) {
    %c0_i32 = arith.constant 0 : i32
    %c0_i32_0 = arith.constant 0 : i32
    %c0_i32_1 = arith.constant 0 : i32
    return %arg0, %c0_i32, %c0_i32_0 : i32, i32, i32
  }
}

module attributes {stable_mosaic.version = 11 : i64} {
  func.func @_encoder_layer_kernel(%arg0: i32, %arg1: memref<2x8x64xf32, #tpu.memory_space<vmem>>, %arg2: memref<2x1x8xf32, #tpu.memory_space<vmem>>, %arg3: memref<64x192xbf16, #tpu.memory_space<vmem>>, %arg4: memref<1x192xf32, #tpu.memory_space<vmem>>, %arg5: memref<64x64xbf16, #tpu.memory_space<vmem>>, %arg6: memref<1x64xf32, #tpu.memory_space<vmem>>, %arg7: memref<1x64xf32, #tpu.memory_space<vmem>>, %arg8: memref<1x64xf32, #tpu.memory_space<vmem>>, %arg9: memref<64x128xbf16, #tpu.memory_space<vmem>>, %arg10: memref<1x128xf32, #tpu.memory_space<vmem>>, %arg11: memref<128x64xbf16, #tpu.memory_space<vmem>>, %arg12: memref<1x64xf32, #tpu.memory_space<vmem>>, %arg13: memref<1x64xf32, #tpu.memory_space<vmem>>, %arg14: memref<1x64xf32, #tpu.memory_space<vmem>>, %arg15: memref<1x64xf32, #tpu.memory_space<vmem>>, %arg16: memref<1x64xf32, #tpu.memory_space<vmem>>, %arg17: memref<2x8x64xf32, #tpu.memory_space<vmem>>, %arg18: memref<16x64xf32, #tpu.memory_space<vmem>>) attributes {dimension_semantics = [#tpu.dimension_semantics<parallel>], iteration_bounds = array<i64: 1>, scalar_prefetch = 0 : i64, scratch_operands = 1 : i64, tpu.core_type = #tpu.core_type<tc>, window_params = [{transform_indices = @transform_0, window_bounds = array<i64: 2, 8, 64>}, {transform_indices = @transform_1, window_bounds = array<i64: 2, 1, 8>}, {pipeline_mode = #tpu.pipeline_mode<synchronous>, transform_indices = @transform_2, window_bounds = array<i64: 64, 192>}, {pipeline_mode = #tpu.pipeline_mode<synchronous>, transform_indices = @transform_3, window_bounds = array<i64: 1, 192>}, {pipeline_mode = #tpu.pipeline_mode<synchronous>, transform_indices = @transform_4, window_bounds = array<i64: 64, 64>}, {pipeline_mode = #tpu.pipeline_mode<synchronous>, transform_indices = @transform_5, window_bounds = array<i64: 1, 64>}, {pipeline_mode = #tpu.pipeline_mode<synchronous>, transform_indices = @transform_6, window_bounds = array<i64: 1, 64>}, {pipeline_mode = #tpu.pipeline_mode<synchronous>, transform_indices = @transform_7, window_bounds = array<i64: 1, 64>}, {pipeline_mode = #tpu.pipeline_mode<synchronous>, transform_indices = @transform_8, window_bounds = array<i64: 64, 128>}, {pipeline_mode = #tpu.pipeline_mode<synchronous>, transform_indices = @transform_9, window_bounds = array<i64: 1, 128>}, {pipeline_mode = #tpu.pipeline_mode<synchronous>, transform_indices = @transform_10, window_bounds = array<i64: 128, 64>}, {pipeline_mode = #tpu.pipeline_mode<synchronous>, transform_indices = @transform_11, window_bounds = array<i64: 1, 64>}, {pipeline_mode = #tpu.pipeline_mode<synchronous>, transform_indices = @transform_12, window_bounds = array<i64: 1, 64>}, {pipeline_mode = #tpu.pipeline_mode<synchronous>, transform_indices = @transform_13, window_bounds = array<i64: 1, 64>}, {pipeline_mode = #tpu.pipeline_mode<synchronous>, transform_indices = @transform_14, window_bounds = array<i64: 1, 64>}, {pipeline_mode = #tpu.pipeline_mode<synchronous>, transform_indices = @transform_15, window_bounds = array<i64: 1, 64>}, {transform_indices = @transform_16, window_bounds = array<i64: 2, 8, 64>}]} {
    %c0 = arith.constant 0 : index
    %c0_0 = arith.constant 0 : index
    %c0_1 = arith.constant 0 : index
    %0 = vector.load %arg1[%c0, %c0_0, %c0_1] : memref<2x8x64xf32, #tpu.memory_space<vmem>>, vector<2x8x64xf32>
    %1 = vector.shape_cast %0 : vector<2x8x64xf32> to vector<16x64xf32>
    %2 = arith.truncf %1 : vector<16x64xf32> to vector<16x64xbf16>
    %c0_2 = arith.constant 0 : index
    %c0_3 = arith.constant 0 : index
    %3 = vector.load %arg3[%c0_2, %c0_3] : memref<64x192xbf16, #tpu.memory_space<vmem>>, vector<64x192xbf16>
    %cst = arith.constant dense<0.000000e+00> : vector<16x192xf32>
    %4 = tpu.matmul %2, %3, %cst {dimension_numbers = #tpu.dot_dimension_numbers<[1], [0], [0], [1], [0, 0, 1, 1], [], []>} : vector<16x64xbf16>, vector<64x192xbf16>, vector<16x192xf32> -> vector<16x192xf32>
    %c0_4 = arith.constant 0 : index
    %c0_5 = arith.constant 0 : index
    %5 = vector.load %arg4[%c0_4, %c0_5] : memref<1x192xf32, #tpu.memory_space<vmem>>, vector<1x192xf32>
    %6 = vector.broadcast %5 : vector<1x192xf32> to vector<16x192xf32>
    %7 = arith.addf %4, %6 : vector<16x192xf32>
    %8 = vector.shape_cast %7 : vector<16x192xf32> to vector<2x8x192xf32>
    %9 = vector.extract_strided_slice %8 {offsets = [0, 0, 0], sizes = [2, 8, 64], strides = [1, 1, 1]} : vector<2x8x192xf32> to vector<2x8x64xf32>
    %10 = vector.extract_strided_slice %8 {offsets = [0, 0, 64], sizes = [2, 8, 128], strides = [1, 1, 1]} : vector<2x8x192xf32> to vector<2x8x128xf32>
    %c0_6 = arith.constant 0 : index
    %c0_7 = arith.constant 0 : index
    %c0_8 = arith.constant 0 : index
    %11 = vector.load %arg2[%c0_6, %c0_7, %c0_8] : memref<2x1x8xf32, #tpu.memory_space<vmem>>, vector<2x1x8xf32>
    %12 = vector.extract_strided_slice %9 {offsets = [0, 0, 0], sizes = [2, 8, 16], strides = [1, 1, 1]} : vector<2x8x64xf32> to vector<2x8x16xf32>
    %13 = vector.extract_strided_slice %10 {offsets = [0, 0, 0], sizes = [2, 8, 16], strides = [1, 1, 1]} : vector<2x8x128xf32> to vector<2x8x16xf32>
    %14 = vector.extract_strided_slice %10 {offsets = [0, 0, 64], sizes = [2, 8, 16], strides = [1, 1, 1]} : vector<2x8x128xf32> to vector<2x8x16xf32>
    %15 = arith.truncf %12 : vector<2x8x16xf32> to vector<2x8x16xbf16>
    %16 = arith.truncf %13 : vector<2x8x16xf32> to vector<2x8x16xbf16>
    %cst_9 = arith.constant dense<0.000000e+00> : vector<2x8x8xf32>
    %17 = tpu.matmul %15, %16, %cst_9 {dimension_numbers = #tpu.dot_dimension_numbers<[2], [2], [1], [1], [0, 0, 0, 1, 1, 1], [0], [0]>} : vector<2x8x16xbf16>, vector<2x8x16xbf16>, vector<2x8x8xf32> -> vector<2x8x8xf32>
    %18 = vector.broadcast %11 : vector<2x1x8xf32> to vector<2x8x8xf32>
    %19 = arith.addf %17, %18 : vector<2x8x8xf32>
    %cst_10 = arith.constant dense<0xFF800000> : vector<2x8xf32>
    %20 = vector.multi_reduction <maximumf>, %19, %cst_10 [2] : vector<2x8x8xf32> to vector<2x8xf32>
    %21 = vector.shape_cast %20 : vector<2x8xf32> to vector<2x8x1xf32>
    %22 = vector.broadcast %21 : vector<2x8x1xf32> to vector<2x8x8xf32>
    %23 = arith.subf %19, %22 : vector<2x8x8xf32>
    %24 = math.exp %23 : vector<2x8x8xf32>
    %cst_11 = arith.constant dense<0.000000e+00> : vector<2x8xf32>
    %25 = vector.multi_reduction <add>, %24, %cst_11 [2] : vector<2x8x8xf32> to vector<2x8xf32>
    %26 = vector.shape_cast %25 : vector<2x8xf32> to vector<2x8x1xf32>
    %27 = tpu.reciprocal %26 {approx = true} : vector<2x8x1xf32> -> vector<2x8x1xf32>
    %28 = vector.broadcast %27 : vector<2x8x1xf32> to vector<2x8x8xf32>
    %29 = arith.mulf %24, %28 : vector<2x8x8xf32>
    %30 = arith.truncf %29 : vector<2x8x8xf32> to vector<2x8x8xbf16>
    %31 = arith.truncf %14 : vector<2x8x16xf32> to vector<2x8x16xbf16>
    %cst_12 = arith.constant dense<0.000000e+00> : vector<2x8x16xf32>
    %32 = tpu.matmul %30, %31, %cst_12 {dimension_numbers = #tpu.dot_dimension_numbers<[2], [1], [1], [2], [0, 0, 0, 1, 1, 2], [0], [0]>} : vector<2x8x8xbf16>, vector<2x8x16xbf16>, vector<2x8x16xf32> -> vector<2x8x16xf32>
    %33 = vector.shape_cast %32 : vector<2x8x16xf32> to vector<16x16xf32>
    %c0_13 = arith.constant 0 : index
    %c0_14 = arith.constant 0 : index
    %34 = vector.load %arg18[%c0_13, %c0_14] : memref<16x64xf32, #tpu.memory_space<vmem>>, vector<16x16xf32>
    tpu.vector_store %arg18[%c0_13, %c0_14], %33 {strides = array<i32>} : memref<16x64xf32, #tpu.memory_space<vmem>>, vector<16x16xf32>,
    %35 = vector.extract_strided_slice %9 {offsets = [0, 0, 16], sizes = [2, 8, 16], strides = [1, 1, 1]} : vector<2x8x64xf32> to vector<2x8x16xf32>
    %36 = vector.extract_strided_slice %10 {offsets = [0, 0, 16], sizes = [2, 8, 16], strides = [1, 1, 1]} : vector<2x8x128xf32> to vector<2x8x16xf32>
    %37 = vector.extract_strided_slice %10 {offsets = [0, 0, 80], sizes = [2, 8, 16], strides = [1, 1, 1]} : vector<2x8x128xf32> to vector<2x8x16xf32>
    %38 = arith.truncf %35 : vector<2x8x16xf32> to vector<2x8x16xbf16>
    %39 = arith.truncf %36 : vector<2x8x16xf32> to vector<2x8x16xbf16>
    %cst_15 = arith.constant dense<0.000000e+00> : vector<2x8x8xf32>
    %40 = tpu.matmul %38, %39, %cst_15 {dimension_numbers = #tpu.dot_dimension_numbers<[2], [2], [1], [1], [0, 0, 0, 1, 1, 1], [0], [0]>} : vector<2x8x16xbf16>, vector<2x8x16xbf16>, vector<2x8x8xf32> -> vector<2x8x8xf32>
    %41 = vector.broadcast %11 : vector<2x1x8xf32> to vector<2x8x8xf32>
    %42 = arith.addf %40, %41 : vector<2x8x8xf32>
    %cst_16 = arith.constant dense<0xFF800000> : vector<2x8xf32>
    %43 = vector.multi_reduction <maximumf>, %42, %cst_16 [2] : vector<2x8x8xf32> to vector<2x8xf32>
    %44 = vector.shape_cast %43 : vector<2x8xf32> to vector<2x8x1xf32>
    %45 = vector.broadcast %44 : vector<2x8x1xf32> to vector<2x8x8xf32>
    %46 = arith.subf %42, %45 : vector<2x8x8xf32>
    %47 = math.exp %46 : vector<2x8x8xf32>
    %cst_17 = arith.constant dense<0.000000e+00> : vector<2x8xf32>
    %48 = vector.multi_reduction <add>, %47, %cst_17 [2] : vector<2x8x8xf32> to vector<2x8xf32>
    %49 = vector.shape_cast %48 : vector<2x8xf32> to vector<2x8x1xf32>
    %50 = tpu.reciprocal %49 {approx = true} : vector<2x8x1xf32> -> vector<2x8x1xf32>
    %51 = vector.broadcast %50 : vector<2x8x1xf32> to vector<2x8x8xf32>
    %52 = arith.mulf %47, %51 : vector<2x8x8xf32>
    %53 = arith.truncf %52 : vector<2x8x8xf32> to vector<2x8x8xbf16>
    %54 = arith.truncf %37 : vector<2x8x16xf32> to vector<2x8x16xbf16>
    %cst_18 = arith.constant dense<0.000000e+00> : vector<2x8x16xf32>
    %55 = tpu.matmul %53, %54, %cst_18 {dimension_numbers = #tpu.dot_dimension_numbers<[2], [1], [1], [2], [0, 0, 0, 1, 1, 2], [0], [0]>} : vector<2x8x8xbf16>, vector<2x8x16xbf16>, vector<2x8x16xf32> -> vector<2x8x16xf32>
    %56 = vector.shape_cast %55 : vector<2x8x16xf32> to vector<16x16xf32>
    %c0_19 = arith.constant 0 : index
    %c16 = arith.constant 16 : index
    %57 = vector.load %arg18[%c0_19, %c16] : memref<16x64xf32, #tpu.memory_space<vmem>>, vector<16x16xf32>
    tpu.vector_store %arg18[%c0_19, %c16], %56 {strides = array<i32>} : memref<16x64xf32, #tpu.memory_space<vmem>>, vector<16x16xf32>,
    %58 = vector.extract_strided_slice %9 {offsets = [0, 0, 32], sizes = [2, 8, 16], strides = [1, 1, 1]} : vector<2x8x64xf32> to vector<2x8x16xf32>
    %59 = vector.extract_strided_slice %10 {offsets = [0, 0, 32], sizes = [2, 8, 16], strides = [1, 1, 1]} : vector<2x8x128xf32> to vector<2x8x16xf32>
    %60 = vector.extract_strided_slice %10 {offsets = [0, 0, 96], sizes = [2, 8, 16], strides = [1, 1, 1]} : vector<2x8x128xf32> to vector<2x8x16xf32>
    %61 = arith.truncf %58 : vector<2x8x16xf32> to vector<2x8x16xbf16>
    %62 = arith.truncf %59 : vector<2x8x16xf32> to vector<2x8x16xbf16>
    %cst_20 = arith.constant dense<0.000000e+00> : vector<2x8x8xf32>
    %63 = tpu.matmul %61, %62, %cst_20 {dimension_numbers = #tpu.dot_dimension_numbers<[2], [2], [1], [1], [0, 0, 0, 1, 1, 1], [0], [0]>} : vector<2x8x16xbf16>, vector<2x8x16xbf16>, vector<2x8x8xf32> -> vector<2x8x8xf32>
    %64 = vector.broadcast %11 : vector<2x1x8xf32> to vector<2x8x8xf32>
    %65 = arith.addf %63, %64 : vector<2x8x8xf32>
    %cst_21 = arith.constant dense<0xFF800000> : vector<2x8xf32>
    %66 = vector.multi_reduction <maximumf>, %65, %cst_21 [2] : vector<2x8x8xf32> to vector<2x8xf32>
    %67 = vector.shape_cast %66 : vector<2x8xf32> to vector<2x8x1xf32>
    %68 = vector.broadcast %67 : vector<2x8x1xf32> to vector<2x8x8xf32>
    %69 = arith.subf %65, %68 : vector<2x8x8xf32>
    %70 = math.exp %69 : vector<2x8x8xf32>
    %cst_22 = arith.constant dense<0.000000e+00> : vector<2x8xf32>
    %71 = vector.multi_reduction <add>, %70, %cst_22 [2] : vector<2x8x8xf32> to vector<2x8xf32>
    %72 = vector.shape_cast %71 : vector<2x8xf32> to vector<2x8x1xf32>
    %73 = tpu.reciprocal %72 {approx = true} : vector<2x8x1xf32> -> vector<2x8x1xf32>
    %74 = vector.broadcast %73 : vector<2x8x1xf32> to vector<2x8x8xf32>
    %75 = arith.mulf %70, %74 : vector<2x8x8xf32>
    %76 = arith.truncf %75 : vector<2x8x8xf32> to vector<2x8x8xbf16>
    %77 = arith.truncf %60 : vector<2x8x16xf32> to vector<2x8x16xbf16>
    %cst_23 = arith.constant dense<0.000000e+00> : vector<2x8x16xf32>
    %78 = tpu.matmul %76, %77, %cst_23 {dimension_numbers = #tpu.dot_dimension_numbers<[2], [1], [1], [2], [0, 0, 0, 1, 1, 2], [0], [0]>} : vector<2x8x8xbf16>, vector<2x8x16xbf16>, vector<2x8x16xf32> -> vector<2x8x16xf32>
    %79 = vector.shape_cast %78 : vector<2x8x16xf32> to vector<16x16xf32>
    %c0_24 = arith.constant 0 : index
    %c32 = arith.constant 32 : index
    %80 = vector.load %arg18[%c0_24, %c32] : memref<16x64xf32, #tpu.memory_space<vmem>>, vector<16x16xf32>
    tpu.vector_store %arg18[%c0_24, %c32], %79 {strides = array<i32>} : memref<16x64xf32, #tpu.memory_space<vmem>>, vector<16x16xf32>,
    %81 = vector.extract_strided_slice %9 {offsets = [0, 0, 48], sizes = [2, 8, 16], strides = [1, 1, 1]} : vector<2x8x64xf32> to vector<2x8x16xf32>
    %82 = vector.extract_strided_slice %10 {offsets = [0, 0, 48], sizes = [2, 8, 16], strides = [1, 1, 1]} : vector<2x8x128xf32> to vector<2x8x16xf32>
    %83 = vector.extract_strided_slice %10 {offsets = [0, 0, 112], sizes = [2, 8, 16], strides = [1, 1, 1]} : vector<2x8x128xf32> to vector<2x8x16xf32>
    %84 = arith.truncf %81 : vector<2x8x16xf32> to vector<2x8x16xbf16>
    %85 = arith.truncf %82 : vector<2x8x16xf32> to vector<2x8x16xbf16>
    %cst_25 = arith.constant dense<0.000000e+00> : vector<2x8x8xf32>
    %86 = tpu.matmul %84, %85, %cst_25 {dimension_numbers = #tpu.dot_dimension_numbers<[2], [2], [1], [1], [0, 0, 0, 1, 1, 1], [0], [0]>} : vector<2x8x16xbf16>, vector<2x8x16xbf16>, vector<2x8x8xf32> -> vector<2x8x8xf32>
    %87 = vector.broadcast %11 : vector<2x1x8xf32> to vector<2x8x8xf32>
    %88 = arith.addf %86, %87 : vector<2x8x8xf32>
    %cst_26 = arith.constant dense<0xFF800000> : vector<2x8xf32>
    %89 = vector.multi_reduction <maximumf>, %88, %cst_26 [2] : vector<2x8x8xf32> to vector<2x8xf32>
    %90 = vector.shape_cast %89 : vector<2x8xf32> to vector<2x8x1xf32>
    %91 = vector.broadcast %90 : vector<2x8x1xf32> to vector<2x8x8xf32>
    %92 = arith.subf %88, %91 : vector<2x8x8xf32>
    %93 = math.exp %92 : vector<2x8x8xf32>
    %cst_27 = arith.constant dense<0.000000e+00> : vector<2x8xf32>
    %94 = vector.multi_reduction <add>, %93, %cst_27 [2] : vector<2x8x8xf32> to vector<2x8xf32>
    %95 = vector.shape_cast %94 : vector<2x8xf32> to vector<2x8x1xf32>
    %96 = tpu.reciprocal %95 {approx = true} : vector<2x8x1xf32> -> vector<2x8x1xf32>
    %97 = vector.broadcast %96 : vector<2x8x1xf32> to vector<2x8x8xf32>
    %98 = arith.mulf %93, %97 : vector<2x8x8xf32>
    %99 = arith.truncf %98 : vector<2x8x8xf32> to vector<2x8x8xbf16>
    %100 = arith.truncf %83 : vector<2x8x16xf32> to vector<2x8x16xbf16>
    %cst_28 = arith.constant dense<0.000000e+00> : vector<2x8x16xf32>
    %101 = tpu.matmul %99, %100, %cst_28 {dimension_numbers = #tpu.dot_dimension_numbers<[2], [1], [1], [2], [0, 0, 0, 1, 1, 2], [0], [0]>} : vector<2x8x8xbf16>, vector<2x8x16xbf16>, vector<2x8x16xf32> -> vector<2x8x16xf32>
    %102 = vector.shape_cast %101 : vector<2x8x16xf32> to vector<16x16xf32>
    %c0_29 = arith.constant 0 : index
    %c48 = arith.constant 48 : index
    %103 = vector.load %arg18[%c0_29, %c48] : memref<16x64xf32, #tpu.memory_space<vmem>>, vector<16x16xf32>
    tpu.vector_store %arg18[%c0_29, %c48], %102 {strides = array<i32>} : memref<16x64xf32, #tpu.memory_space<vmem>>, vector<16x16xf32>,
    %c0_30 = arith.constant 0 : index
    %c0_31 = arith.constant 0 : index
    %104 = vector.load %arg18[%c0_30, %c0_31] : memref<16x64xf32, #tpu.memory_space<vmem>>, vector<16x64xf32>
    %105 = arith.truncf %104 : vector<16x64xf32> to vector<16x64xbf16>
    %c0_32 = arith.constant 0 : index
    %c0_33 = arith.constant 0 : index
    %106 = vector.load %arg5[%c0_32, %c0_33] : memref<64x64xbf16, #tpu.memory_space<vmem>>, vector<64x64xbf16>
    %cst_34 = arith.constant dense<0.000000e+00> : vector<16x64xf32>
    %107 = tpu.matmul %105, %106, %cst_34 {dimension_numbers = #tpu.dot_dimension_numbers<[1], [0], [0], [1], [0, 0, 1, 1], [], []>} : vector<16x64xbf16>, vector<64x64xbf16>, vector<16x64xf32> -> vector<16x64xf32>
    %c0_35 = arith.constant 0 : index
    %c0_36 = arith.constant 0 : index
    %108 = vector.load %arg6[%c0_35, %c0_36] : memref<1x64xf32, #tpu.memory_space<vmem>>, vector<1x64xf32>
    %109 = vector.broadcast %108 : vector<1x64xf32> to vector<16x64xf32>
    %110 = arith.addf %107, %109 : vector<16x64xf32>
    %111 = arith.addf %1, %110 : vector<16x64xf32>
    %c0_37 = arith.constant 0 : index
    %c0_38 = arith.constant 0 : index
    %112 = vector.load %arg7[%c0_37, %c0_38] : memref<1x64xf32, #tpu.memory_space<vmem>>, vector<1x64xf32>
    %c0_39 = arith.constant 0 : index
    %c0_40 = arith.constant 0 : index
    %113 = vector.load %arg8[%c0_39, %c0_40] : memref<1x64xf32, #tpu.memory_space<vmem>>, vector<1x64xf32>
    %cst_41 = arith.constant dense<0.000000e+00> : vector<16xf32>
    %114 = vector.multi_reduction <add>, %111, %cst_41 [1] : vector<16x64xf32> to vector<16xf32>
    %115 = vector.shape_cast %114 : vector<16xf32> to vector<16x1xf32>
    %cst_42 = arith.constant 6.400000e+01 : f32
    %116 = vector.broadcast %cst_42 : f32 to vector<16x1xf32>
    %117 = arith.divf %115, %116 : vector<16x1xf32>
    %118 = vector.broadcast %117 : vector<16x1xf32> to vector<16x64xf32>
    %119 = arith.subf %111, %118 : vector<16x64xf32>
    %120 = arith.mulf %119, %119 : vector<16x64xf32>
    %cst_43 = arith.constant dense<0.000000e+00> : vector<16xf32>
    %121 = vector.multi_reduction <add>, %120, %cst_43 [1] : vector<16x64xf32> to vector<16xf32>
    %122 = vector.shape_cast %121 : vector<16xf32> to vector<16x1xf32>
    %cst_44 = arith.constant 6.400000e+01 : f32
    %123 = vector.broadcast %cst_44 : f32 to vector<16x1xf32>
    %124 = arith.divf %122, %123 : vector<16x1xf32>
    %125 = vector.broadcast %117 : vector<16x1xf32> to vector<16x64xf32>
    %126 = arith.subf %111, %125 : vector<16x64xf32>
    %cst_45 = arith.constant 9.99999974E-6 : f32
    %127 = vector.broadcast %cst_45 : f32 to vector<16x1xf32>
    %128 = arith.addf %124, %127 : vector<16x1xf32>
    %129 = math.rsqrt %128 : vector<16x1xf32>
    %130 = vector.broadcast %129 : vector<16x1xf32> to vector<16x64xf32>
    %131 = arith.mulf %126, %130 : vector<16x64xf32>
    %132 = vector.broadcast %112 : vector<1x64xf32> to vector<16x64xf32>
    %133 = arith.mulf %131, %132 : vector<16x64xf32>
    %134 = vector.broadcast %113 : vector<1x64xf32> to vector<16x64xf32>
    %135 = arith.addf %133, %134 : vector<16x64xf32>
    %136 = arith.truncf %135 : vector<16x64xf32> to vector<16x64xbf16>
    %c0_46 = arith.constant 0 : index
    %c0_47 = arith.constant 0 : index
    %137 = vector.load %arg9[%c0_46, %c0_47] : memref<64x128xbf16, #tpu.memory_space<vmem>>, vector<64x128xbf16>
    %cst_48 = arith.constant dense<0.000000e+00> : vector<16x128xf32>
    %138 = tpu.matmul %136, %137, %cst_48 {dimension_numbers = #tpu.dot_dimension_numbers<[1], [0], [0], [1], [0, 0, 1, 1], [], []>} : vector<16x64xbf16>, vector<64x128xbf16>, vector<16x128xf32> -> vector<16x128xf32>
    %c0_49 = arith.constant 0 : index
    %c0_50 = arith.constant 0 : index
    %139 = vector.load %arg10[%c0_49, %c0_50] : memref<1x128xf32, #tpu.memory_space<vmem>>, vector<1x128xf32>
    %140 = vector.broadcast %139 : vector<1x128xf32> to vector<16x128xf32>
    %141 = arith.addf %138, %140 : vector<16x128xf32>
    %cst_51 = arith.constant 0.000000e+00 : f32
    %142 = vector.broadcast %cst_51 : f32 to vector<16x128xf32>
    %143 = arith.maximumf %141, %142 : vector<16x128xf32>
    %144 = arith.truncf %143 : vector<16x128xf32> to vector<16x128xbf16>
    %c0_52 = arith.constant 0 : index
    %c0_53 = arith.constant 0 : index
    %145 = vector.load %arg11[%c0_52, %c0_53] : memref<128x64xbf16, #tpu.memory_space<vmem>>, vector<128x64xbf16>
    %cst_54 = arith.constant dense<0.000000e+00> : vector<16x64xf32>
    %146 = tpu.matmul %144, %145, %cst_54 {dimension_numbers = #tpu.dot_dimension_numbers<[1], [0], [0], [1], [0, 0, 1, 1], [], []>} : vector<16x128xbf16>, vector<128x64xbf16>, vector<16x64xf32> -> vector<16x64xf32>
    %c0_55 = arith.constant 0 : index
    %c0_56 = arith.constant 0 : index
    %147 = vector.load %arg12[%c0_55, %c0_56] : memref<1x64xf32, #tpu.memory_space<vmem>>, vector<1x64xf32>
    %148 = vector.broadcast %147 : vector<1x64xf32> to vector<16x64xf32>
    %149 = arith.addf %146, %148 : vector<16x64xf32>
    %150 = arith.addf %135, %149 : vector<16x64xf32>
    %c0_57 = arith.constant 0 : index
    %c0_58 = arith.constant 0 : index
    %151 = vector.load %arg13[%c0_57, %c0_58] : memref<1x64xf32, #tpu.memory_space<vmem>>, vector<1x64xf32>
    %c0_59 = arith.constant 0 : index
    %c0_60 = arith.constant 0 : index
    %152 = vector.load %arg14[%c0_59, %c0_60] : memref<1x64xf32, #tpu.memory_space<vmem>>, vector<1x64xf32>
    %cst_61 = arith.constant dense<0.000000e+00> : vector<16xf32>
    %153 = vector.multi_reduction <add>, %150, %cst_61 [1] : vector<16x64xf32> to vector<16xf32>
    %154 = vector.shape_cast %153 : vector<16xf32> to vector<16x1xf32>
    %cst_62 = arith.constant 6.400000e+01 : f32
    %155 = vector.broadcast %cst_62 : f32 to vector<16x1xf32>
    %156 = arith.divf %154, %155 : vector<16x1xf32>
    %157 = vector.broadcast %156 : vector<16x1xf32> to vector<16x64xf32>
    %158 = arith.subf %150, %157 : vector<16x64xf32>
    %159 = arith.mulf %158, %158 : vector<16x64xf32>
    %cst_63 = arith.constant dense<0.000000e+00> : vector<16xf32>
    %160 = vector.multi_reduction <add>, %159, %cst_63 [1] : vector<16x64xf32> to vector<16xf32>
    %161 = vector.shape_cast %160 : vector<16xf32> to vector<16x1xf32>
    %cst_64 = arith.constant 6.400000e+01 : f32
    %162 = vector.broadcast %cst_64 : f32 to vector<16x1xf32>
    %163 = arith.divf %161, %162 : vector<16x1xf32>
    %164 = vector.broadcast %156 : vector<16x1xf32> to vector<16x64xf32>
    %165 = arith.subf %150, %164 : vector<16x64xf32>
    %cst_65 = arith.constant 9.99999974E-6 : f32
    %166 = vector.broadcast %cst_65 : f32 to vector<16x1xf32>
    %167 = arith.addf %163, %166 : vector<16x1xf32>
    %168 = math.rsqrt %167 : vector<16x1xf32>
    %169 = vector.broadcast %168 : vector<16x1xf32> to vector<16x64xf32>
    %170 = arith.mulf %165, %169 : vector<16x64xf32>
    %171 = vector.broadcast %151 : vector<1x64xf32> to vector<16x64xf32>
    %172 = arith.mulf %170, %171 : vector<16x64xf32>
    %173 = vector.broadcast %152 : vector<1x64xf32> to vector<16x64xf32>
    %174 = arith.addf %172, %173 : vector<16x64xf32>
    %c0_66 = arith.constant 0 : index
    %c0_67 = arith.constant 0 : index
    %175 = vector.load %arg15[%c0_66, %c0_67] : memref<1x64xf32, #tpu.memory_space<vmem>>, vector<1x64xf32>
    %c0_68 = arith.constant 0 : index
    %c0_69 = arith.constant 0 : index
    %176 = vector.load %arg16[%c0_68, %c0_69] : memref<1x64xf32, #tpu.memory_space<vmem>>, vector<1x64xf32>
    %cst_70 = arith.constant dense<0.000000e+00> : vector<16xf32>
    %177 = vector.multi_reduction <add>, %174, %cst_70 [1] : vector<16x64xf32> to vector<16xf32>
    %178 = vector.shape_cast %177 : vector<16xf32> to vector<16x1xf32>
    %cst_71 = arith.constant 6.400000e+01 : f32
    %179 = vector.broadcast %cst_71 : f32 to vector<16x1xf32>
    %180 = arith.divf %178, %179 : vector<16x1xf32>
    %181 = vector.broadcast %180 : vector<16x1xf32> to vector<16x64xf32>
    %182 = arith.subf %174, %181 : vector<16x64xf32>
    %183 = arith.mulf %182, %182 : vector<16x64xf32>
    %cst_72 = arith.constant dense<0.000000e+00> : vector<16xf32>
    %184 = vector.multi_reduction <add>, %183, %cst_72 [1] : vector<16x64xf32> to vector<16xf32>
    %185 = vector.shape_cast %184 : vector<16xf32> to vector<16x1xf32>
    %cst_73 = arith.constant 6.400000e+01 : f32
    %186 = vector.broadcast %cst_73 : f32 to vector<16x1xf32>
    %187 = arith.divf %185, %186 : vector<16x1xf32>
    %188 = vector.broadcast %180 : vector<16x1xf32> to vector<16x64xf32>
    %189 = arith.subf %174, %188 : vector<16x64xf32>
    %cst_74 = arith.constant 9.99999974E-6 : f32
    %190 = vector.broadcast %cst_74 : f32 to vector<16x1xf32>
    %191 = arith.addf %187, %190 : vector<16x1xf32>
    %192 = math.rsqrt %191 : vector<16x1xf32>
    %193 = vector.broadcast %192 : vector<16x1xf32> to vector<16x64xf32>
    %194 = arith.mulf %189, %193 : vector<16x64xf32>
    %195 = vector.broadcast %175 : vector<1x64xf32> to vector<16x64xf32>
    %196 = arith.mulf %194, %195 : vector<16x64xf32>
    %197 = vector.broadcast %176 : vector<1x64xf32> to vector<16x64xf32>
    %198 = arith.addf %196, %197 : vector<16x64xf32>
    %199 = vector.shape_cast %198 : vector<16x64xf32> to vector<2x8x64xf32>
    %c0_75 = arith.constant 0 : index
    %c0_76 = arith.constant 0 : index
    %c0_77 = arith.constant 0 : index
    %200 = vector.load %arg17[%c0_75, %c0_76, %c0_77] : memref<2x8x64xf32, #tpu.memory_space<vmem>>, vector<2x8x64xf32>
    tpu.vector_store %arg17[%c0_75, %c0_76, %c0_77], %199 {strides = array<i32>} : memref<2x8x64xf32, #tpu.memory_space<vmem>>, vector<2x8x64xf32>,
    return
  }
  func.func @transform_0(%arg0: i32) -> (i32, i32, i32) {
    %c0_i32 = arith.constant 0 : i32
    %c0_i32_0 = arith.constant 0 : i32
    %c0_i32_1 = arith.constant 0 : i32
    return %arg0, %c0_i32, %c0_i32_0 : i32, i32, i32
  }
  func.func @transform_1(%arg0: i32) -> (i32, i32, i32) {
    %c0_i32 = arith.constant 0 : i32
    %c0_i32_0 = arith.constant 0 : i32
    %c0_i32_1 = arith.constant 0 : i32
    return %arg0, %c0_i32, %c0_i32_0 : i32, i32, i32
  }
  func.func @transform_2(%arg0: i32) -> (i32, i32) {
    %c0_i32 = arith.constant 0 : i32
    %c0_i32_0 = arith.constant 0 : i32
    %c0_i32_1 = arith.constant 0 : i32
    return %c0_i32, %c0_i32_0 : i32, i32
  }
  func.func @transform_3(%arg0: i32) -> (i32, i32) {
    %c0_i32 = arith.constant 0 : i32
    %c0_i32_0 = arith.constant 0 : i32
    %c0_i32_1 = arith.constant 0 : i32
    return %c0_i32, %c0_i32_0 : i32, i32
  }
  func.func @transform_4(%arg0: i32) -> (i32, i32) {
    %c0_i32 = arith.constant 0 : i32
    %c0_i32_0 = arith.constant 0 : i32
    %c0_i32_1 = arith.constant 0 : i32
    return %c0_i32, %c0_i32_0 : i32, i32
  }
  func.func @transform_5(%arg0: i32) -> (i32, i32) {
    %c0_i32 = arith.constant 0 : i32
    %c0_i32_0 = arith.constant 0 : i32
    %c0_i32_1 = arith.constant 0 : i32
    return %c0_i32, %c0_i32_0 : i32, i32
  }
  func.func @transform_6(%arg0: i32) -> (i32, i32) {
    %c0_i32 = arith.constant 0 : i32
    %c0_i32_0 = arith.constant 0 : i32
    %c0_i32_1 = arith.constant 0 : i32
    return %c0_i32, %c0_i32_0 : i32, i32
  }
  func.func @transform_7(%arg0: i32) -> (i32, i32) {
    %c0_i32 = arith.constant 0 : i32
    %c0_i32_0 = arith.constant 0 : i32
    %c0_i32_1 = arith.constant 0 : i32
    return %c0_i32, %c0_i32_0 : i32, i32
  }
  func.func @transform_8(%arg0: i32) -> (i32, i32) {
    %c0_i32 = arith.constant 0 : i32
    %c0_i32_0 = arith.constant 0 : i32
    %c0_i32_1 = arith.constant 0 : i32
    return %c0_i32, %c0_i32_0 : i32, i32
  }
  func.func @transform_9(%arg0: i32) -> (i32, i32) {
    %c0_i32 = arith.constant 0 : i32
    %c0_i32_0 = arith.constant 0 : i32
    %c0_i32_1 = arith.constant 0 : i32
    return %c0_i32, %c0_i32_0 : i32, i32
  }
  func.func @transform_10(%arg0: i32) -> (i32, i32) {
    %c0_i32 = arith.constant 0 : i32
    %c0_i32_0 = arith.constant 0 : i32
    %c0_i32_1 = arith.constant 0 : i32
    return %c0_i32, %c0_i32_0 : i32, i32
  }
  func.func @transform_11(%arg0: i32) -> (i32, i32) {
    %c0_i32 = arith.constant 0 : i32
    %c0_i32_0 = arith.constant 0 : i32
    %c0_i32_1 = arith.constant 0 : i32
    return %c0_i32, %c0_i32_0 : i32, i32
  }
  func.func @transform_12(%arg0: i32) -> (i32, i32) {
    %c0_i32 = arith.constant 0 : i32
    %c0_i32_0 = arith.constant 0 : i32
    %c0_i32_1 = arith.constant 0 : i32
    return %c0_i32, %c0_i32_0 : i32, i32
  }
  func.func @transform_13(%arg0: i32) -> (i32, i32) {
    %c0_i32 = arith.constant 0 : i32
    %c0_i32_0 = arith.constant 0 : i32
    %c0_i32_1 = arith.constant 0 : i32
    return %c0_i32, %c0_i32_0 : i32, i32
  }
  func.func @transform_14(%arg0: i32) -> (i32, i32) {
    %c0_i32 = arith.constant 0 : i32
    %c0_i32_0 = arith.constant 0 : i32
    %c0_i32_1 = arith.constant 0 : i32
    return %c0_i32, %c0_i32_0 : i32, i32
  }
  func.func @transform_15(%arg0: i32) -> (i32, i32) {
    %c0_i32 = arith.constant 0 : i32
    %c0_i32_0 = arith.constant 0 : i32
    %c0_i32_1 = arith.constant 0 : i32
    return %c0_i32, %c0_i32_0 : i32, i32
  }
  func.func @transform_16(%arg0: i32) -> (i32, i32, i32) {
    %c0_i32 = arith.constant 0 : i32
    %c0_i32_0 = arith.constant 0 : i32
    %c0_i32_1 = arith.constant 0 : i32
    return %arg0, %c0_i32, %c0_i32_0 : i32, i32, i32
  }
}

module attributes {stable_mosaic.version = 11 : i64} {
  func.func @_decoder_final_layer_kernel(%arg0: i32, %arg1: memref<2x8x64xf32, #tpu.memory_space<vmem>>, %arg2: memref<2x8x64xf32, #tpu.memory_space<vmem>>, %arg3: memref<2x1x8xf32, #tpu.memory_space<vmem>>, %arg4: memref<2x1x8xf32, #tpu.memory_space<vmem>>, %arg5: memref<64x192xbf16, #tpu.memory_space<vmem>>, %arg6: memref<1x192xf32, #tpu.memory_space<vmem>>, %arg7: memref<64x64xbf16, #tpu.memory_space<vmem>>, %arg8: memref<1x64xf32, #tpu.memory_space<vmem>>, %arg9: memref<1x64xf32, #tpu.memory_space<vmem>>, %arg10: memref<1x64xf32, #tpu.memory_space<vmem>>, %arg11: memref<64x64xbf16, #tpu.memory_space<vmem>>, %arg12: memref<1x64xf32, #tpu.memory_space<vmem>>, %arg13: memref<64x128xbf16, #tpu.memory_space<vmem>>, %arg14: memref<1x128xf32, #tpu.memory_space<vmem>>, %arg15: memref<64x64xbf16, #tpu.memory_space<vmem>>, %arg16: memref<1x64xf32, #tpu.memory_space<vmem>>, %arg17: memref<1x64xf32, #tpu.memory_space<vmem>>, %arg18: memref<1x64xf32, #tpu.memory_space<vmem>>, %arg19: memref<64x128xbf16, #tpu.memory_space<vmem>>, %arg20: memref<1x128xf32, #tpu.memory_space<vmem>>, %arg21: memref<128x64xbf16, #tpu.memory_space<vmem>>, %arg22: memref<1x64xf32, #tpu.memory_space<vmem>>, %arg23: memref<1x64xf32, #tpu.memory_space<vmem>>, %arg24: memref<1x64xf32, #tpu.memory_space<vmem>>, %arg25: memref<1x64xf32, #tpu.memory_space<vmem>>, %arg26: memref<1x64xf32, #tpu.memory_space<vmem>>, %arg27: memref<64x128xbf16, #tpu.memory_space<vmem>>, %arg28: memref<2x8x128xf32, #tpu.memory_space<vmem>>, %arg29: memref<16x64xf32, #tpu.memory_space<vmem>>) attributes {dimension_semantics = [#tpu.dimension_semantics<parallel>], iteration_bounds = array<i64: 1>, scalar_prefetch = 0 : i64, scratch_operands = 1 : i64, tpu.core_type = #tpu.core_type<tc>, window_params = [{transform_indices = @transform_0, window_bounds = array<i64: 2, 8, 64>}, {transform_indices = @transform_1, window_bounds = array<i64: 2, 8, 64>}, {transform_indices = @transform_2, window_bounds = array<i64: 2, 1, 8>}, {transform_indices = @transform_3, window_bounds = array<i64: 2, 1, 8>}, {pipeline_mode = #tpu.pipeline_mode<synchronous>, transform_indices = @transform_4, window_bounds = array<i64: 64, 192>}, {pipeline_mode = #tpu.pipeline_mode<synchronous>, transform_indices = @transform_5, window_bounds = array<i64: 1, 192>}, {pipeline_mode = #tpu.pipeline_mode<synchronous>, transform_indices = @transform_6, window_bounds = array<i64: 64, 64>}, {pipeline_mode = #tpu.pipeline_mode<synchronous>, transform_indices = @transform_7, window_bounds = array<i64: 1, 64>}, {pipeline_mode = #tpu.pipeline_mode<synchronous>, transform_indices = @transform_8, window_bounds = array<i64: 1, 64>}, {pipeline_mode = #tpu.pipeline_mode<synchronous>, transform_indices = @transform_9, window_bounds = array<i64: 1, 64>}, {pipeline_mode = #tpu.pipeline_mode<synchronous>, transform_indices = @transform_10, window_bounds = array<i64: 64, 64>}, {pipeline_mode = #tpu.pipeline_mode<synchronous>, transform_indices = @transform_11, window_bounds = array<i64: 1, 64>}, {pipeline_mode = #tpu.pipeline_mode<synchronous>, transform_indices = @transform_12, window_bounds = array<i64: 64, 128>}, {pipeline_mode = #tpu.pipeline_mode<synchronous>, transform_indices = @transform_13, window_bounds = array<i64: 1, 128>}, {pipeline_mode = #tpu.pipeline_mode<synchronous>, transform_indices = @transform_14, window_bounds = array<i64: 64, 64>}, {pipeline_mode = #tpu.pipeline_mode<synchronous>, transform_indices = @transform_15, window_bounds = array<i64: 1, 64>}, {pipeline_mode = #tpu.pipeline_mode<synchronous>, transform_indices = @transform_16, window_bounds = array<i64: 1, 64>}, {pipeline_mode = #tpu.pipeline_mode<synchronous>, transform_indices = @transform_17, window_bounds = array<i64: 1, 64>}, {pipeline_mode = #tpu.pipeline_mode<synchronous>, transform_indices = @transform_18, window_bounds = array<i64: 64, 128>}, {pipeline_mode = #tpu.pipeline_mode<synchronous>, transform_indices = @transform_19, window_bounds = array<i64: 1, 128>}, {pipeline_mode = #tpu.pipeline_mode<synchronous>, transform_indices = @transform_20, window_bounds = array<i64: 128, 64>}, {pipeline_mode = #tpu.pipeline_mode<synchronous>, transform_indices = @transform_21, window_bounds = array<i64: 1, 64>}, {pipeline_mode = #tpu.pipeline_mode<synchronous>, transform_indices = @transform_22, window_bounds = array<i64: 1, 64>}, {pipeline_mode = #tpu.pipeline_mode<synchronous>, transform_indices = @transform_23, window_bounds = array<i64: 1, 64>}, {pipeline_mode = #tpu.pipeline_mode<synchronous>, transform_indices = @transform_24, window_bounds = array<i64: 1, 64>}, {pipeline_mode = #tpu.pipeline_mode<synchronous>, transform_indices = @transform_25, window_bounds = array<i64: 1, 64>}, {pipeline_mode = #tpu.pipeline_mode<synchronous>, transform_indices = @transform_26, window_bounds = array<i64: 64, 128>}, {transform_indices = @transform_27, window_bounds = array<i64: 2, 8, 128>}]} {
    %c0 = arith.constant 0 : index
    %c0_0 = arith.constant 0 : index
    %c0_1 = arith.constant 0 : index
    %0 = vector.load %arg1[%c0, %c0_0, %c0_1] : memref<2x8x64xf32, #tpu.memory_space<vmem>>, vector<2x8x64xf32>
    %1 = vector.shape_cast %0 : vector<2x8x64xf32> to vector<16x64xf32>
    %2 = arith.truncf %1 : vector<16x64xf32> to vector<16x64xbf16>
    %c0_2 = arith.constant 0 : index
    %c0_3 = arith.constant 0 : index
    %3 = vector.load %arg5[%c0_2, %c0_3] : memref<64x192xbf16, #tpu.memory_space<vmem>>, vector<64x192xbf16>
    %cst = arith.constant dense<0.000000e+00> : vector<16x192xf32>
    %4 = tpu.matmul %2, %3, %cst {dimension_numbers = #tpu.dot_dimension_numbers<[1], [0], [0], [1], [0, 0, 1, 1], [], []>} : vector<16x64xbf16>, vector<64x192xbf16>, vector<16x192xf32> -> vector<16x192xf32>
    %c0_4 = arith.constant 0 : index
    %c0_5 = arith.constant 0 : index
    %5 = vector.load %arg6[%c0_4, %c0_5] : memref<1x192xf32, #tpu.memory_space<vmem>>, vector<1x192xf32>
    %6 = vector.broadcast %5 : vector<1x192xf32> to vector<16x192xf32>
    %7 = arith.addf %4, %6 : vector<16x192xf32>
    %8 = vector.shape_cast %7 : vector<16x192xf32> to vector<2x8x192xf32>
    %9 = vector.extract_strided_slice %8 {offsets = [0, 0, 0], sizes = [2, 8, 64], strides = [1, 1, 1]} : vector<2x8x192xf32> to vector<2x8x64xf32>
    %10 = vector.extract_strided_slice %8 {offsets = [0, 0, 64], sizes = [2, 8, 128], strides = [1, 1, 1]} : vector<2x8x192xf32> to vector<2x8x128xf32>
    %c0_6 = arith.constant 0 : index
    %c0_7 = arith.constant 0 : index
    %c0_8 = arith.constant 0 : index
    %11 = vector.load %arg3[%c0_6, %c0_7, %c0_8] : memref<2x1x8xf32, #tpu.memory_space<vmem>>, vector<2x1x8xf32>
    %12 = vector.extract_strided_slice %9 {offsets = [0, 0, 0], sizes = [2, 8, 16], strides = [1, 1, 1]} : vector<2x8x64xf32> to vector<2x8x16xf32>
    %13 = vector.extract_strided_slice %10 {offsets = [0, 0, 0], sizes = [2, 8, 16], strides = [1, 1, 1]} : vector<2x8x128xf32> to vector<2x8x16xf32>
    %14 = vector.extract_strided_slice %10 {offsets = [0, 0, 64], sizes = [2, 8, 16], strides = [1, 1, 1]} : vector<2x8x128xf32> to vector<2x8x16xf32>
    %15 = arith.truncf %12 : vector<2x8x16xf32> to vector<2x8x16xbf16>
    %16 = arith.truncf %13 : vector<2x8x16xf32> to vector<2x8x16xbf16>
    %cst_9 = arith.constant dense<0.000000e+00> : vector<2x8x8xf32>
    %17 = tpu.matmul %15, %16, %cst_9 {dimension_numbers = #tpu.dot_dimension_numbers<[2], [2], [1], [1], [0, 0, 0, 1, 1, 1], [0], [0]>} : vector<2x8x16xbf16>, vector<2x8x16xbf16>, vector<2x8x8xf32> -> vector<2x8x8xf32>
    %18 = vector.broadcast %11 : vector<2x1x8xf32> to vector<2x8x8xf32>
    %19 = arith.addf %17, %18 : vector<2x8x8xf32>
    %cst_10 = arith.constant dense<0xFF800000> : vector<2x8xf32>
    %20 = vector.multi_reduction <maximumf>, %19, %cst_10 [2] : vector<2x8x8xf32> to vector<2x8xf32>
    %21 = vector.shape_cast %20 : vector<2x8xf32> to vector<2x8x1xf32>
    %22 = vector.broadcast %21 : vector<2x8x1xf32> to vector<2x8x8xf32>
    %23 = arith.subf %19, %22 : vector<2x8x8xf32>
    %24 = math.exp %23 : vector<2x8x8xf32>
    %cst_11 = arith.constant dense<0.000000e+00> : vector<2x8xf32>
    %25 = vector.multi_reduction <add>, %24, %cst_11 [2] : vector<2x8x8xf32> to vector<2x8xf32>
    %26 = vector.shape_cast %25 : vector<2x8xf32> to vector<2x8x1xf32>
    %27 = tpu.reciprocal %26 {approx = true} : vector<2x8x1xf32> -> vector<2x8x1xf32>
    %28 = vector.broadcast %27 : vector<2x8x1xf32> to vector<2x8x8xf32>
    %29 = arith.mulf %24, %28 : vector<2x8x8xf32>
    %30 = arith.truncf %29 : vector<2x8x8xf32> to vector<2x8x8xbf16>
    %31 = arith.truncf %14 : vector<2x8x16xf32> to vector<2x8x16xbf16>
    %cst_12 = arith.constant dense<0.000000e+00> : vector<2x8x16xf32>
    %32 = tpu.matmul %30, %31, %cst_12 {dimension_numbers = #tpu.dot_dimension_numbers<[2], [1], [1], [2], [0, 0, 0, 1, 1, 2], [0], [0]>} : vector<2x8x8xbf16>, vector<2x8x16xbf16>, vector<2x8x16xf32> -> vector<2x8x16xf32>
    %33 = vector.shape_cast %32 : vector<2x8x16xf32> to vector<16x16xf32>
    %c0_13 = arith.constant 0 : index
    %c0_14 = arith.constant 0 : index
    %34 = vector.load %arg29[%c0_13, %c0_14] : memref<16x64xf32, #tpu.memory_space<vmem>>, vector<16x16xf32>
    tpu.vector_store %arg29[%c0_13, %c0_14], %33 {strides = array<i32>} : memref<16x64xf32, #tpu.memory_space<vmem>>, vector<16x16xf32>,
    %35 = vector.extract_strided_slice %9 {offsets = [0, 0, 16], sizes = [2, 8, 16], strides = [1, 1, 1]} : vector<2x8x64xf32> to vector<2x8x16xf32>
    %36 = vector.extract_strided_slice %10 {offsets = [0, 0, 16], sizes = [2, 8, 16], strides = [1, 1, 1]} : vector<2x8x128xf32> to vector<2x8x16xf32>
    %37 = vector.extract_strided_slice %10 {offsets = [0, 0, 80], sizes = [2, 8, 16], strides = [1, 1, 1]} : vector<2x8x128xf32> to vector<2x8x16xf32>
    %38 = arith.truncf %35 : vector<2x8x16xf32> to vector<2x8x16xbf16>
    %39 = arith.truncf %36 : vector<2x8x16xf32> to vector<2x8x16xbf16>
    %cst_15 = arith.constant dense<0.000000e+00> : vector<2x8x8xf32>
    %40 = tpu.matmul %38, %39, %cst_15 {dimension_numbers = #tpu.dot_dimension_numbers<[2], [2], [1], [1], [0, 0, 0, 1, 1, 1], [0], [0]>} : vector<2x8x16xbf16>, vector<2x8x16xbf16>, vector<2x8x8xf32> -> vector<2x8x8xf32>
    %41 = vector.broadcast %11 : vector<2x1x8xf32> to vector<2x8x8xf32>
    %42 = arith.addf %40, %41 : vector<2x8x8xf32>
    %cst_16 = arith.constant dense<0xFF800000> : vector<2x8xf32>
    %43 = vector.multi_reduction <maximumf>, %42, %cst_16 [2] : vector<2x8x8xf32> to vector<2x8xf32>
    %44 = vector.shape_cast %43 : vector<2x8xf32> to vector<2x8x1xf32>
    %45 = vector.broadcast %44 : vector<2x8x1xf32> to vector<2x8x8xf32>
    %46 = arith.subf %42, %45 : vector<2x8x8xf32>
    %47 = math.exp %46 : vector<2x8x8xf32>
    %cst_17 = arith.constant dense<0.000000e+00> : vector<2x8xf32>
    %48 = vector.multi_reduction <add>, %47, %cst_17 [2] : vector<2x8x8xf32> to vector<2x8xf32>
    %49 = vector.shape_cast %48 : vector<2x8xf32> to vector<2x8x1xf32>
    %50 = tpu.reciprocal %49 {approx = true} : vector<2x8x1xf32> -> vector<2x8x1xf32>
    %51 = vector.broadcast %50 : vector<2x8x1xf32> to vector<2x8x8xf32>
    %52 = arith.mulf %47, %51 : vector<2x8x8xf32>
    %53 = arith.truncf %52 : vector<2x8x8xf32> to vector<2x8x8xbf16>
    %54 = arith.truncf %37 : vector<2x8x16xf32> to vector<2x8x16xbf16>
    %cst_18 = arith.constant dense<0.000000e+00> : vector<2x8x16xf32>
    %55 = tpu.matmul %53, %54, %cst_18 {dimension_numbers = #tpu.dot_dimension_numbers<[2], [1], [1], [2], [0, 0, 0, 1, 1, 2], [0], [0]>} : vector<2x8x8xbf16>, vector<2x8x16xbf16>, vector<2x8x16xf32> -> vector<2x8x16xf32>
    %56 = vector.shape_cast %55 : vector<2x8x16xf32> to vector<16x16xf32>
    %c0_19 = arith.constant 0 : index
    %c16 = arith.constant 16 : index
    %57 = vector.load %arg29[%c0_19, %c16] : memref<16x64xf32, #tpu.memory_space<vmem>>, vector<16x16xf32>
    tpu.vector_store %arg29[%c0_19, %c16], %56 {strides = array<i32>} : memref<16x64xf32, #tpu.memory_space<vmem>>, vector<16x16xf32>,
    %58 = vector.extract_strided_slice %9 {offsets = [0, 0, 32], sizes = [2, 8, 16], strides = [1, 1, 1]} : vector<2x8x64xf32> to vector<2x8x16xf32>
    %59 = vector.extract_strided_slice %10 {offsets = [0, 0, 32], sizes = [2, 8, 16], strides = [1, 1, 1]} : vector<2x8x128xf32> to vector<2x8x16xf32>
    %60 = vector.extract_strided_slice %10 {offsets = [0, 0, 96], sizes = [2, 8, 16], strides = [1, 1, 1]} : vector<2x8x128xf32> to vector<2x8x16xf32>
    %61 = arith.truncf %58 : vector<2x8x16xf32> to vector<2x8x16xbf16>
    %62 = arith.truncf %59 : vector<2x8x16xf32> to vector<2x8x16xbf16>
    %cst_20 = arith.constant dense<0.000000e+00> : vector<2x8x8xf32>
    %63 = tpu.matmul %61, %62, %cst_20 {dimension_numbers = #tpu.dot_dimension_numbers<[2], [2], [1], [1], [0, 0, 0, 1, 1, 1], [0], [0]>} : vector<2x8x16xbf16>, vector<2x8x16xbf16>, vector<2x8x8xf32> -> vector<2x8x8xf32>
    %64 = vector.broadcast %11 : vector<2x1x8xf32> to vector<2x8x8xf32>
    %65 = arith.addf %63, %64 : vector<2x8x8xf32>
    %cst_21 = arith.constant dense<0xFF800000> : vector<2x8xf32>
    %66 = vector.multi_reduction <maximumf>, %65, %cst_21 [2] : vector<2x8x8xf32> to vector<2x8xf32>
    %67 = vector.shape_cast %66 : vector<2x8xf32> to vector<2x8x1xf32>
    %68 = vector.broadcast %67 : vector<2x8x1xf32> to vector<2x8x8xf32>
    %69 = arith.subf %65, %68 : vector<2x8x8xf32>
    %70 = math.exp %69 : vector<2x8x8xf32>
    %cst_22 = arith.constant dense<0.000000e+00> : vector<2x8xf32>
    %71 = vector.multi_reduction <add>, %70, %cst_22 [2] : vector<2x8x8xf32> to vector<2x8xf32>
    %72 = vector.shape_cast %71 : vector<2x8xf32> to vector<2x8x1xf32>
    %73 = tpu.reciprocal %72 {approx = true} : vector<2x8x1xf32> -> vector<2x8x1xf32>
    %74 = vector.broadcast %73 : vector<2x8x1xf32> to vector<2x8x8xf32>
    %75 = arith.mulf %70, %74 : vector<2x8x8xf32>
    %76 = arith.truncf %75 : vector<2x8x8xf32> to vector<2x8x8xbf16>
    %77 = arith.truncf %60 : vector<2x8x16xf32> to vector<2x8x16xbf16>
    %cst_23 = arith.constant dense<0.000000e+00> : vector<2x8x16xf32>
    %78 = tpu.matmul %76, %77, %cst_23 {dimension_numbers = #tpu.dot_dimension_numbers<[2], [1], [1], [2], [0, 0, 0, 1, 1, 2], [0], [0]>} : vector<2x8x8xbf16>, vector<2x8x16xbf16>, vector<2x8x16xf32> -> vector<2x8x16xf32>
    %79 = vector.shape_cast %78 : vector<2x8x16xf32> to vector<16x16xf32>
    %c0_24 = arith.constant 0 : index
    %c32 = arith.constant 32 : index
    %80 = vector.load %arg29[%c0_24, %c32] : memref<16x64xf32, #tpu.memory_space<vmem>>, vector<16x16xf32>
    tpu.vector_store %arg29[%c0_24, %c32], %79 {strides = array<i32>} : memref<16x64xf32, #tpu.memory_space<vmem>>, vector<16x16xf32>,
    %81 = vector.extract_strided_slice %9 {offsets = [0, 0, 48], sizes = [2, 8, 16], strides = [1, 1, 1]} : vector<2x8x64xf32> to vector<2x8x16xf32>
    %82 = vector.extract_strided_slice %10 {offsets = [0, 0, 48], sizes = [2, 8, 16], strides = [1, 1, 1]} : vector<2x8x128xf32> to vector<2x8x16xf32>
    %83 = vector.extract_strided_slice %10 {offsets = [0, 0, 112], sizes = [2, 8, 16], strides = [1, 1, 1]} : vector<2x8x128xf32> to vector<2x8x16xf32>
    %84 = arith.truncf %81 : vector<2x8x16xf32> to vector<2x8x16xbf16>
    %85 = arith.truncf %82 : vector<2x8x16xf32> to vector<2x8x16xbf16>
    %cst_25 = arith.constant dense<0.000000e+00> : vector<2x8x8xf32>
    %86 = tpu.matmul %84, %85, %cst_25 {dimension_numbers = #tpu.dot_dimension_numbers<[2], [2], [1], [1], [0, 0, 0, 1, 1, 1], [0], [0]>} : vector<2x8x16xbf16>, vector<2x8x16xbf16>, vector<2x8x8xf32> -> vector<2x8x8xf32>
    %87 = vector.broadcast %11 : vector<2x1x8xf32> to vector<2x8x8xf32>
    %88 = arith.addf %86, %87 : vector<2x8x8xf32>
    %cst_26 = arith.constant dense<0xFF800000> : vector<2x8xf32>
    %89 = vector.multi_reduction <maximumf>, %88, %cst_26 [2] : vector<2x8x8xf32> to vector<2x8xf32>
    %90 = vector.shape_cast %89 : vector<2x8xf32> to vector<2x8x1xf32>
    %91 = vector.broadcast %90 : vector<2x8x1xf32> to vector<2x8x8xf32>
    %92 = arith.subf %88, %91 : vector<2x8x8xf32>
    %93 = math.exp %92 : vector<2x8x8xf32>
    %cst_27 = arith.constant dense<0.000000e+00> : vector<2x8xf32>
    %94 = vector.multi_reduction <add>, %93, %cst_27 [2] : vector<2x8x8xf32> to vector<2x8xf32>
    %95 = vector.shape_cast %94 : vector<2x8xf32> to vector<2x8x1xf32>
    %96 = tpu.reciprocal %95 {approx = true} : vector<2x8x1xf32> -> vector<2x8x1xf32>
    %97 = vector.broadcast %96 : vector<2x8x1xf32> to vector<2x8x8xf32>
    %98 = arith.mulf %93, %97 : vector<2x8x8xf32>
    %99 = arith.truncf %98 : vector<2x8x8xf32> to vector<2x8x8xbf16>
    %100 = arith.truncf %83 : vector<2x8x16xf32> to vector<2x8x16xbf16>
    %cst_28 = arith.constant dense<0.000000e+00> : vector<2x8x16xf32>
    %101 = tpu.matmul %99, %100, %cst_28 {dimension_numbers = #tpu.dot_dimension_numbers<[2], [1], [1], [2], [0, 0, 0, 1, 1, 2], [0], [0]>} : vector<2x8x8xbf16>, vector<2x8x16xbf16>, vector<2x8x16xf32> -> vector<2x8x16xf32>
    %102 = vector.shape_cast %101 : vector<2x8x16xf32> to vector<16x16xf32>
    %c0_29 = arith.constant 0 : index
    %c48 = arith.constant 48 : index
    %103 = vector.load %arg29[%c0_29, %c48] : memref<16x64xf32, #tpu.memory_space<vmem>>, vector<16x16xf32>
    tpu.vector_store %arg29[%c0_29, %c48], %102 {strides = array<i32>} : memref<16x64xf32, #tpu.memory_space<vmem>>, vector<16x16xf32>,
    %c0_30 = arith.constant 0 : index
    %c0_31 = arith.constant 0 : index
    %104 = vector.load %arg29[%c0_30, %c0_31] : memref<16x64xf32, #tpu.memory_space<vmem>>, vector<16x64xf32>
    %105 = arith.truncf %104 : vector<16x64xf32> to vector<16x64xbf16>
    %c0_32 = arith.constant 0 : index
    %c0_33 = arith.constant 0 : index
    %106 = vector.load %arg7[%c0_32, %c0_33] : memref<64x64xbf16, #tpu.memory_space<vmem>>, vector<64x64xbf16>
    %cst_34 = arith.constant dense<0.000000e+00> : vector<16x64xf32>
    %107 = tpu.matmul %105, %106, %cst_34 {dimension_numbers = #tpu.dot_dimension_numbers<[1], [0], [0], [1], [0, 0, 1, 1], [], []>} : vector<16x64xbf16>, vector<64x64xbf16>, vector<16x64xf32> -> vector<16x64xf32>
    %c0_35 = arith.constant 0 : index
    %c0_36 = arith.constant 0 : index
    %108 = vector.load %arg8[%c0_35, %c0_36] : memref<1x64xf32, #tpu.memory_space<vmem>>, vector<1x64xf32>
    %109 = vector.broadcast %108 : vector<1x64xf32> to vector<16x64xf32>
    %110 = arith.addf %107, %109 : vector<16x64xf32>
    %111 = arith.addf %1, %110 : vector<16x64xf32>
    %c0_37 = arith.constant 0 : index
    %c0_38 = arith.constant 0 : index
    %112 = vector.load %arg9[%c0_37, %c0_38] : memref<1x64xf32, #tpu.memory_space<vmem>>, vector<1x64xf32>
    %c0_39 = arith.constant 0 : index
    %c0_40 = arith.constant 0 : index
    %113 = vector.load %arg10[%c0_39, %c0_40] : memref<1x64xf32, #tpu.memory_space<vmem>>, vector<1x64xf32>
    %cst_41 = arith.constant dense<0.000000e+00> : vector<16xf32>
    %114 = vector.multi_reduction <add>, %111, %cst_41 [1] : vector<16x64xf32> to vector<16xf32>
    %115 = vector.shape_cast %114 : vector<16xf32> to vector<16x1xf32>
    %cst_42 = arith.constant 6.400000e+01 : f32
    %116 = vector.broadcast %cst_42 : f32 to vector<16x1xf32>
    %117 = arith.divf %115, %116 : vector<16x1xf32>
    %118 = vector.broadcast %117 : vector<16x1xf32> to vector<16x64xf32>
    %119 = arith.subf %111, %118 : vector<16x64xf32>
    %120 = arith.mulf %119, %119 : vector<16x64xf32>
    %cst_43 = arith.constant dense<0.000000e+00> : vector<16xf32>
    %121 = vector.multi_reduction <add>, %120, %cst_43 [1] : vector<16x64xf32> to vector<16xf32>
    %122 = vector.shape_cast %121 : vector<16xf32> to vector<16x1xf32>
    %cst_44 = arith.constant 6.400000e+01 : f32
    %123 = vector.broadcast %cst_44 : f32 to vector<16x1xf32>
    %124 = arith.divf %122, %123 : vector<16x1xf32>
    %125 = vector.broadcast %117 : vector<16x1xf32> to vector<16x64xf32>
    %126 = arith.subf %111, %125 : vector<16x64xf32>
    %cst_45 = arith.constant 9.99999974E-6 : f32
    %127 = vector.broadcast %cst_45 : f32 to vector<16x1xf32>
    %128 = arith.addf %124, %127 : vector<16x1xf32>
    %129 = math.rsqrt %128 : vector<16x1xf32>
    %130 = vector.broadcast %129 : vector<16x1xf32> to vector<16x64xf32>
    %131 = arith.mulf %126, %130 : vector<16x64xf32>
    %132 = vector.broadcast %112 : vector<1x64xf32> to vector<16x64xf32>
    %133 = arith.mulf %131, %132 : vector<16x64xf32>
    %134 = vector.broadcast %113 : vector<1x64xf32> to vector<16x64xf32>
    %135 = arith.addf %133, %134 : vector<16x64xf32>
    %136 = arith.truncf %135 : vector<16x64xf32> to vector<16x64xbf16>
    %c0_46 = arith.constant 0 : index
    %c0_47 = arith.constant 0 : index
    %137 = vector.load %arg11[%c0_46, %c0_47] : memref<64x64xbf16, #tpu.memory_space<vmem>>, vector<64x64xbf16>
    %cst_48 = arith.constant dense<0.000000e+00> : vector<16x64xf32>
    %138 = tpu.matmul %136, %137, %cst_48 {dimension_numbers = #tpu.dot_dimension_numbers<[1], [0], [0], [1], [0, 0, 1, 1], [], []>} : vector<16x64xbf16>, vector<64x64xbf16>, vector<16x64xf32> -> vector<16x64xf32>
    %c0_49 = arith.constant 0 : index
    %c0_50 = arith.constant 0 : index
    %139 = vector.load %arg12[%c0_49, %c0_50] : memref<1x64xf32, #tpu.memory_space<vmem>>, vector<1x64xf32>
    %140 = vector.broadcast %139 : vector<1x64xf32> to vector<16x64xf32>
    %141 = arith.addf %138, %140 : vector<16x64xf32>
    %c0_51 = arith.constant 0 : index
    %c0_52 = arith.constant 0 : index
    %c0_53 = arith.constant 0 : index
    %142 = vector.load %arg2[%c0_51, %c0_52, %c0_53] : memref<2x8x64xf32, #tpu.memory_space<vmem>>, vector<2x8x64xf32>
    %143 = vector.shape_cast %142 : vector<2x8x64xf32> to vector<16x64xf32>
    %144 = arith.truncf %143 : vector<16x64xf32> to vector<16x64xbf16>
    %c0_54 = arith.constant 0 : index
    %c0_55 = arith.constant 0 : index
    %145 = vector.load %arg13[%c0_54, %c0_55] : memref<64x128xbf16, #tpu.memory_space<vmem>>, vector<64x128xbf16>
    %cst_56 = arith.constant dense<0.000000e+00> : vector<16x128xf32>
    %146 = tpu.matmul %144, %145, %cst_56 {dimension_numbers = #tpu.dot_dimension_numbers<[1], [0], [0], [1], [0, 0, 1, 1], [], []>} : vector<16x64xbf16>, vector<64x128xbf16>, vector<16x128xf32> -> vector<16x128xf32>
    %c0_57 = arith.constant 0 : index
    %c0_58 = arith.constant 0 : index
    %147 = vector.load %arg14[%c0_57, %c0_58] : memref<1x128xf32, #tpu.memory_space<vmem>>, vector<1x128xf32>
    %148 = vector.broadcast %147 : vector<1x128xf32> to vector<16x128xf32>
    %149 = arith.addf %146, %148 : vector<16x128xf32>
    %150 = vector.shape_cast %141 : vector<16x64xf32> to vector<2x8x64xf32>
    %151 = vector.shape_cast %149 : vector<16x128xf32> to vector<2x8x128xf32>
    %c0_59 = arith.constant 0 : index
    %c0_60 = arith.constant 0 : index
    %c0_61 = arith.constant 0 : index
    %152 = vector.load %arg4[%c0_59, %c0_60, %c0_61] : memref<2x1x8xf32, #tpu.memory_space<vmem>>, vector<2x1x8xf32>
    %153 = vector.extract_strided_slice %150 {offsets = [0, 0, 0], sizes = [2, 8, 16], strides = [1, 1, 1]} : vector<2x8x64xf32> to vector<2x8x16xf32>
    %154 = vector.extract_strided_slice %151 {offsets = [0, 0, 0], sizes = [2, 8, 16], strides = [1, 1, 1]} : vector<2x8x128xf32> to vector<2x8x16xf32>
    %155 = vector.extract_strided_slice %151 {offsets = [0, 0, 64], sizes = [2, 8, 16], strides = [1, 1, 1]} : vector<2x8x128xf32> to vector<2x8x16xf32>
    %156 = arith.truncf %153 : vector<2x8x16xf32> to vector<2x8x16xbf16>
    %157 = arith.truncf %154 : vector<2x8x16xf32> to vector<2x8x16xbf16>
    %cst_62 = arith.constant dense<0.000000e+00> : vector<2x8x8xf32>
    %158 = tpu.matmul %156, %157, %cst_62 {dimension_numbers = #tpu.dot_dimension_numbers<[2], [2], [1], [1], [0, 0, 0, 1, 1, 1], [0], [0]>} : vector<2x8x16xbf16>, vector<2x8x16xbf16>, vector<2x8x8xf32> -> vector<2x8x8xf32>
    %159 = vector.broadcast %152 : vector<2x1x8xf32> to vector<2x8x8xf32>
    %160 = arith.addf %158, %159 : vector<2x8x8xf32>
    %cst_63 = arith.constant dense<0xFF800000> : vector<2x8xf32>
    %161 = vector.multi_reduction <maximumf>, %160, %cst_63 [2] : vector<2x8x8xf32> to vector<2x8xf32>
    %162 = vector.shape_cast %161 : vector<2x8xf32> to vector<2x8x1xf32>
    %163 = vector.broadcast %162 : vector<2x8x1xf32> to vector<2x8x8xf32>
    %164 = arith.subf %160, %163 : vector<2x8x8xf32>
    %165 = math.exp %164 : vector<2x8x8xf32>
    %cst_64 = arith.constant dense<0.000000e+00> : vector<2x8xf32>
    %166 = vector.multi_reduction <add>, %165, %cst_64 [2] : vector<2x8x8xf32> to vector<2x8xf32>
    %167 = vector.shape_cast %166 : vector<2x8xf32> to vector<2x8x1xf32>
    %168 = tpu.reciprocal %167 {approx = true} : vector<2x8x1xf32> -> vector<2x8x1xf32>
    %169 = vector.broadcast %168 : vector<2x8x1xf32> to vector<2x8x8xf32>
    %170 = arith.mulf %165, %169 : vector<2x8x8xf32>
    %171 = arith.truncf %170 : vector<2x8x8xf32> to vector<2x8x8xbf16>
    %172 = arith.truncf %155 : vector<2x8x16xf32> to vector<2x8x16xbf16>
    %cst_65 = arith.constant dense<0.000000e+00> : vector<2x8x16xf32>
    %173 = tpu.matmul %171, %172, %cst_65 {dimension_numbers = #tpu.dot_dimension_numbers<[2], [1], [1], [2], [0, 0, 0, 1, 1, 2], [0], [0]>} : vector<2x8x8xbf16>, vector<2x8x16xbf16>, vector<2x8x16xf32> -> vector<2x8x16xf32>
    %174 = vector.shape_cast %173 : vector<2x8x16xf32> to vector<16x16xf32>
    %c0_66 = arith.constant 0 : index
    %c0_67 = arith.constant 0 : index
    %175 = vector.load %arg29[%c0_66, %c0_67] : memref<16x64xf32, #tpu.memory_space<vmem>>, vector<16x16xf32>
    tpu.vector_store %arg29[%c0_66, %c0_67], %174 {strides = array<i32>} : memref<16x64xf32, #tpu.memory_space<vmem>>, vector<16x16xf32>,
    %176 = vector.extract_strided_slice %150 {offsets = [0, 0, 16], sizes = [2, 8, 16], strides = [1, 1, 1]} : vector<2x8x64xf32> to vector<2x8x16xf32>
    %177 = vector.extract_strided_slice %151 {offsets = [0, 0, 16], sizes = [2, 8, 16], strides = [1, 1, 1]} : vector<2x8x128xf32> to vector<2x8x16xf32>
    %178 = vector.extract_strided_slice %151 {offsets = [0, 0, 80], sizes = [2, 8, 16], strides = [1, 1, 1]} : vector<2x8x128xf32> to vector<2x8x16xf32>
    %179 = arith.truncf %176 : vector<2x8x16xf32> to vector<2x8x16xbf16>
    %180 = arith.truncf %177 : vector<2x8x16xf32> to vector<2x8x16xbf16>
    %cst_68 = arith.constant dense<0.000000e+00> : vector<2x8x8xf32>
    %181 = tpu.matmul %179, %180, %cst_68 {dimension_numbers = #tpu.dot_dimension_numbers<[2], [2], [1], [1], [0, 0, 0, 1, 1, 1], [0], [0]>} : vector<2x8x16xbf16>, vector<2x8x16xbf16>, vector<2x8x8xf32> -> vector<2x8x8xf32>
    %182 = vector.broadcast %152 : vector<2x1x8xf32> to vector<2x8x8xf32>
    %183 = arith.addf %181, %182 : vector<2x8x8xf32>
    %cst_69 = arith.constant dense<0xFF800000> : vector<2x8xf32>
    %184 = vector.multi_reduction <maximumf>, %183, %cst_69 [2] : vector<2x8x8xf32> to vector<2x8xf32>
    %185 = vector.shape_cast %184 : vector<2x8xf32> to vector<2x8x1xf32>
    %186 = vector.broadcast %185 : vector<2x8x1xf32> to vector<2x8x8xf32>
    %187 = arith.subf %183, %186 : vector<2x8x8xf32>
    %188 = math.exp %187 : vector<2x8x8xf32>
    %cst_70 = arith.constant dense<0.000000e+00> : vector<2x8xf32>
    %189 = vector.multi_reduction <add>, %188, %cst_70 [2] : vector<2x8x8xf32> to vector<2x8xf32>
    %190 = vector.shape_cast %189 : vector<2x8xf32> to vector<2x8x1xf32>
    %191 = tpu.reciprocal %190 {approx = true} : vector<2x8x1xf32> -> vector<2x8x1xf32>
    %192 = vector.broadcast %191 : vector<2x8x1xf32> to vector<2x8x8xf32>
    %193 = arith.mulf %188, %192 : vector<2x8x8xf32>
    %194 = arith.truncf %193 : vector<2x8x8xf32> to vector<2x8x8xbf16>
    %195 = arith.truncf %178 : vector<2x8x16xf32> to vector<2x8x16xbf16>
    %cst_71 = arith.constant dense<0.000000e+00> : vector<2x8x16xf32>
    %196 = tpu.matmul %194, %195, %cst_71 {dimension_numbers = #tpu.dot_dimension_numbers<[2], [1], [1], [2], [0, 0, 0, 1, 1, 2], [0], [0]>} : vector<2x8x8xbf16>, vector<2x8x16xbf16>, vector<2x8x16xf32> -> vector<2x8x16xf32>
    %197 = vector.shape_cast %196 : vector<2x8x16xf32> to vector<16x16xf32>
    %c0_72 = arith.constant 0 : index
    %c16_73 = arith.constant 16 : index
    %198 = vector.load %arg29[%c0_72, %c16_73] : memref<16x64xf32, #tpu.memory_space<vmem>>, vector<16x16xf32>
    tpu.vector_store %arg29[%c0_72, %c16_73], %197 {strides = array<i32>} : memref<16x64xf32, #tpu.memory_space<vmem>>, vector<16x16xf32>,
    %199 = vector.extract_strided_slice %150 {offsets = [0, 0, 32], sizes = [2, 8, 16], strides = [1, 1, 1]} : vector<2x8x64xf32> to vector<2x8x16xf32>
    %200 = vector.extract_strided_slice %151 {offsets = [0, 0, 32], sizes = [2, 8, 16], strides = [1, 1, 1]} : vector<2x8x128xf32> to vector<2x8x16xf32>
    %201 = vector.extract_strided_slice %151 {offsets = [0, 0, 96], sizes = [2, 8, 16], strides = [1, 1, 1]} : vector<2x8x128xf32> to vector<2x8x16xf32>
    %202 = arith.truncf %199 : vector<2x8x16xf32> to vector<2x8x16xbf16>
    %203 = arith.truncf %200 : vector<2x8x16xf32> to vector<2x8x16xbf16>
    %cst_74 = arith.constant dense<0.000000e+00> : vector<2x8x8xf32>
    %204 = tpu.matmul %202, %203, %cst_74 {dimension_numbers = #tpu.dot_dimension_numbers<[2], [2], [1], [1], [0, 0, 0, 1, 1, 1], [0], [0]>} : vector<2x8x16xbf16>, vector<2x8x16xbf16>, vector<2x8x8xf32> -> vector<2x8x8xf32>
    %205 = vector.broadcast %152 : vector<2x1x8xf32> to vector<2x8x8xf32>
    %206 = arith.addf %204, %205 : vector<2x8x8xf32>
    %cst_75 = arith.constant dense<0xFF800000> : vector<2x8xf32>
    %207 = vector.multi_reduction <maximumf>, %206, %cst_75 [2] : vector<2x8x8xf32> to vector<2x8xf32>
    %208 = vector.shape_cast %207 : vector<2x8xf32> to vector<2x8x1xf32>
    %209 = vector.broadcast %208 : vector<2x8x1xf32> to vector<2x8x8xf32>
    %210 = arith.subf %206, %209 : vector<2x8x8xf32>
    %211 = math.exp %210 : vector<2x8x8xf32>
    %cst_76 = arith.constant dense<0.000000e+00> : vector<2x8xf32>
    %212 = vector.multi_reduction <add>, %211, %cst_76 [2] : vector<2x8x8xf32> to vector<2x8xf32>
    %213 = vector.shape_cast %212 : vector<2x8xf32> to vector<2x8x1xf32>
    %214 = tpu.reciprocal %213 {approx = true} : vector<2x8x1xf32> -> vector<2x8x1xf32>
    %215 = vector.broadcast %214 : vector<2x8x1xf32> to vector<2x8x8xf32>
    %216 = arith.mulf %211, %215 : vector<2x8x8xf32>
    %217 = arith.truncf %216 : vector<2x8x8xf32> to vector<2x8x8xbf16>
    %218 = arith.truncf %201 : vector<2x8x16xf32> to vector<2x8x16xbf16>
    %cst_77 = arith.constant dense<0.000000e+00> : vector<2x8x16xf32>
    %219 = tpu.matmul %217, %218, %cst_77 {dimension_numbers = #tpu.dot_dimension_numbers<[2], [1], [1], [2], [0, 0, 0, 1, 1, 2], [0], [0]>} : vector<2x8x8xbf16>, vector<2x8x16xbf16>, vector<2x8x16xf32> -> vector<2x8x16xf32>
    %220 = vector.shape_cast %219 : vector<2x8x16xf32> to vector<16x16xf32>
    %c0_78 = arith.constant 0 : index
    %c32_79 = arith.constant 32 : index
    %221 = vector.load %arg29[%c0_78, %c32_79] : memref<16x64xf32, #tpu.memory_space<vmem>>, vector<16x16xf32>
    tpu.vector_store %arg29[%c0_78, %c32_79], %220 {strides = array<i32>} : memref<16x64xf32, #tpu.memory_space<vmem>>, vector<16x16xf32>,
    %222 = vector.extract_strided_slice %150 {offsets = [0, 0, 48], sizes = [2, 8, 16], strides = [1, 1, 1]} : vector<2x8x64xf32> to vector<2x8x16xf32>
    %223 = vector.extract_strided_slice %151 {offsets = [0, 0, 48], sizes = [2, 8, 16], strides = [1, 1, 1]} : vector<2x8x128xf32> to vector<2x8x16xf32>
    %224 = vector.extract_strided_slice %151 {offsets = [0, 0, 112], sizes = [2, 8, 16], strides = [1, 1, 1]} : vector<2x8x128xf32> to vector<2x8x16xf32>
    %225 = arith.truncf %222 : vector<2x8x16xf32> to vector<2x8x16xbf16>
    %226 = arith.truncf %223 : vector<2x8x16xf32> to vector<2x8x16xbf16>
    %cst_80 = arith.constant dense<0.000000e+00> : vector<2x8x8xf32>
    %227 = tpu.matmul %225, %226, %cst_80 {dimension_numbers = #tpu.dot_dimension_numbers<[2], [2], [1], [1], [0, 0, 0, 1, 1, 1], [0], [0]>} : vector<2x8x16xbf16>, vector<2x8x16xbf16>, vector<2x8x8xf32> -> vector<2x8x8xf32>
    %228 = vector.broadcast %152 : vector<2x1x8xf32> to vector<2x8x8xf32>
    %229 = arith.addf %227, %228 : vector<2x8x8xf32>
    %cst_81 = arith.constant dense<0xFF800000> : vector<2x8xf32>
    %230 = vector.multi_reduction <maximumf>, %229, %cst_81 [2] : vector<2x8x8xf32> to vector<2x8xf32>
    %231 = vector.shape_cast %230 : vector<2x8xf32> to vector<2x8x1xf32>
    %232 = vector.broadcast %231 : vector<2x8x1xf32> to vector<2x8x8xf32>
    %233 = arith.subf %229, %232 : vector<2x8x8xf32>
    %234 = math.exp %233 : vector<2x8x8xf32>
    %cst_82 = arith.constant dense<0.000000e+00> : vector<2x8xf32>
    %235 = vector.multi_reduction <add>, %234, %cst_82 [2] : vector<2x8x8xf32> to vector<2x8xf32>
    %236 = vector.shape_cast %235 : vector<2x8xf32> to vector<2x8x1xf32>
    %237 = tpu.reciprocal %236 {approx = true} : vector<2x8x1xf32> -> vector<2x8x1xf32>
    %238 = vector.broadcast %237 : vector<2x8x1xf32> to vector<2x8x8xf32>
    %239 = arith.mulf %234, %238 : vector<2x8x8xf32>
    %240 = arith.truncf %239 : vector<2x8x8xf32> to vector<2x8x8xbf16>
    %241 = arith.truncf %224 : vector<2x8x16xf32> to vector<2x8x16xbf16>
    %cst_83 = arith.constant dense<0.000000e+00> : vector<2x8x16xf32>
    %242 = tpu.matmul %240, %241, %cst_83 {dimension_numbers = #tpu.dot_dimension_numbers<[2], [1], [1], [2], [0, 0, 0, 1, 1, 2], [0], [0]>} : vector<2x8x8xbf16>, vector<2x8x16xbf16>, vector<2x8x16xf32> -> vector<2x8x16xf32>
    %243 = vector.shape_cast %242 : vector<2x8x16xf32> to vector<16x16xf32>
    %c0_84 = arith.constant 0 : index
    %c48_85 = arith.constant 48 : index
    %244 = vector.load %arg29[%c0_84, %c48_85] : memref<16x64xf32, #tpu.memory_space<vmem>>, vector<16x16xf32>
    tpu.vector_store %arg29[%c0_84, %c48_85], %243 {strides = array<i32>} : memref<16x64xf32, #tpu.memory_space<vmem>>, vector<16x16xf32>,
    %c0_86 = arith.constant 0 : index
    %c0_87 = arith.constant 0 : index
    %245 = vector.load %arg29[%c0_86, %c0_87] : memref<16x64xf32, #tpu.memory_space<vmem>>, vector<16x64xf32>
    %246 = arith.truncf %245 : vector<16x64xf32> to vector<16x64xbf16>
    %c0_88 = arith.constant 0 : index
    %c0_89 = arith.constant 0 : index
    %247 = vector.load %arg15[%c0_88, %c0_89] : memref<64x64xbf16, #tpu.memory_space<vmem>>, vector<64x64xbf16>
    %cst_90 = arith.constant dense<0.000000e+00> : vector<16x64xf32>
    %248 = tpu.matmul %246, %247, %cst_90 {dimension_numbers = #tpu.dot_dimension_numbers<[1], [0], [0], [1], [0, 0, 1, 1], [], []>} : vector<16x64xbf16>, vector<64x64xbf16>, vector<16x64xf32> -> vector<16x64xf32>
    %c0_91 = arith.constant 0 : index
    %c0_92 = arith.constant 0 : index
    %249 = vector.load %arg16[%c0_91, %c0_92] : memref<1x64xf32, #tpu.memory_space<vmem>>, vector<1x64xf32>
    %250 = vector.broadcast %249 : vector<1x64xf32> to vector<16x64xf32>
    %251 = arith.addf %248, %250 : vector<16x64xf32>
    %252 = arith.addf %135, %251 : vector<16x64xf32>
    %c0_93 = arith.constant 0 : index
    %c0_94 = arith.constant 0 : index
    %253 = vector.load %arg17[%c0_93, %c0_94] : memref<1x64xf32, #tpu.memory_space<vmem>>, vector<1x64xf32>
    %c0_95 = arith.constant 0 : index
    %c0_96 = arith.constant 0 : index
    %254 = vector.load %arg18[%c0_95, %c0_96] : memref<1x64xf32, #tpu.memory_space<vmem>>, vector<1x64xf32>
    %cst_97 = arith.constant dense<0.000000e+00> : vector<16xf32>
    %255 = vector.multi_reduction <add>, %252, %cst_97 [1] : vector<16x64xf32> to vector<16xf32>
    %256 = vector.shape_cast %255 : vector<16xf32> to vector<16x1xf32>
    %cst_98 = arith.constant 6.400000e+01 : f32
    %257 = vector.broadcast %cst_98 : f32 to vector<16x1xf32>
    %258 = arith.divf %256, %257 : vector<16x1xf32>
    %259 = vector.broadcast %258 : vector<16x1xf32> to vector<16x64xf32>
    %260 = arith.subf %252, %259 : vector<16x64xf32>
    %261 = arith.mulf %260, %260 : vector<16x64xf32>
    %cst_99 = arith.constant dense<0.000000e+00> : vector<16xf32>
    %262 = vector.multi_reduction <add>, %261, %cst_99 [1] : vector<16x64xf32> to vector<16xf32>
    %263 = vector.shape_cast %262 : vector<16xf32> to vector<16x1xf32>
    %cst_100 = arith.constant 6.400000e+01 : f32
    %264 = vector.broadcast %cst_100 : f32 to vector<16x1xf32>
    %265 = arith.divf %263, %264 : vector<16x1xf32>
    %266 = vector.broadcast %258 : vector<16x1xf32> to vector<16x64xf32>
    %267 = arith.subf %252, %266 : vector<16x64xf32>
    %cst_101 = arith.constant 9.99999974E-6 : f32
    %268 = vector.broadcast %cst_101 : f32 to vector<16x1xf32>
    %269 = arith.addf %265, %268 : vector<16x1xf32>
    %270 = math.rsqrt %269 : vector<16x1xf32>
    %271 = vector.broadcast %270 : vector<16x1xf32> to vector<16x64xf32>
    %272 = arith.mulf %267, %271 : vector<16x64xf32>
    %273 = vector.broadcast %253 : vector<1x64xf32> to vector<16x64xf32>
    %274 = arith.mulf %272, %273 : vector<16x64xf32>
    %275 = vector.broadcast %254 : vector<1x64xf32> to vector<16x64xf32>
    %276 = arith.addf %274, %275 : vector<16x64xf32>
    %277 = arith.truncf %276 : vector<16x64xf32> to vector<16x64xbf16>
    %c0_102 = arith.constant 0 : index
    %c0_103 = arith.constant 0 : index
    %278 = vector.load %arg19[%c0_102, %c0_103] : memref<64x128xbf16, #tpu.memory_space<vmem>>, vector<64x128xbf16>
    %cst_104 = arith.constant dense<0.000000e+00> : vector<16x128xf32>
    %279 = tpu.matmul %277, %278, %cst_104 {dimension_numbers = #tpu.dot_dimension_numbers<[1], [0], [0], [1], [0, 0, 1, 1], [], []>} : vector<16x64xbf16>, vector<64x128xbf16>, vector<16x128xf32> -> vector<16x128xf32>
    %c0_105 = arith.constant 0 : index
    %c0_106 = arith.constant 0 : index
    %280 = vector.load %arg20[%c0_105, %c0_106] : memref<1x128xf32, #tpu.memory_space<vmem>>, vector<1x128xf32>
    %281 = vector.broadcast %280 : vector<1x128xf32> to vector<16x128xf32>
    %282 = arith.addf %279, %281 : vector<16x128xf32>
    %cst_107 = arith.constant 0.000000e+00 : f32
    %283 = vector.broadcast %cst_107 : f32 to vector<16x128xf32>
    %284 = arith.maximumf %282, %283 : vector<16x128xf32>
    %285 = arith.truncf %284 : vector<16x128xf32> to vector<16x128xbf16>
    %c0_108 = arith.constant 0 : index
    %c0_109 = arith.constant 0 : index
    %286 = vector.load %arg21[%c0_108, %c0_109] : memref<128x64xbf16, #tpu.memory_space<vmem>>, vector<128x64xbf16>
    %cst_110 = arith.constant dense<0.000000e+00> : vector<16x64xf32>
    %287 = tpu.matmul %285, %286, %cst_110 {dimension_numbers = #tpu.dot_dimension_numbers<[1], [0], [0], [1], [0, 0, 1, 1], [], []>} : vector<16x128xbf16>, vector<128x64xbf16>, vector<16x64xf32> -> vector<16x64xf32>
    %c0_111 = arith.constant 0 : index
    %c0_112 = arith.constant 0 : index
    %288 = vector.load %arg22[%c0_111, %c0_112] : memref<1x64xf32, #tpu.memory_space<vmem>>, vector<1x64xf32>
    %289 = vector.broadcast %288 : vector<1x64xf32> to vector<16x64xf32>
    %290 = arith.addf %287, %289 : vector<16x64xf32>
    %291 = arith.addf %276, %290 : vector<16x64xf32>
    %c0_113 = arith.constant 0 : index
    %c0_114 = arith.constant 0 : index
    %292 = vector.load %arg23[%c0_113, %c0_114] : memref<1x64xf32, #tpu.memory_space<vmem>>, vector<1x64xf32>
    %c0_115 = arith.constant 0 : index
    %c0_116 = arith.constant 0 : index
    %293 = vector.load %arg24[%c0_115, %c0_116] : memref<1x64xf32, #tpu.memory_space<vmem>>, vector<1x64xf32>
    %cst_117 = arith.constant dense<0.000000e+00> : vector<16xf32>
    %294 = vector.multi_reduction <add>, %291, %cst_117 [1] : vector<16x64xf32> to vector<16xf32>
    %295 = vector.shape_cast %294 : vector<16xf32> to vector<16x1xf32>
    %cst_118 = arith.constant 6.400000e+01 : f32
    %296 = vector.broadcast %cst_118 : f32 to vector<16x1xf32>
    %297 = arith.divf %295, %296 : vector<16x1xf32>
    %298 = vector.broadcast %297 : vector<16x1xf32> to vector<16x64xf32>
    %299 = arith.subf %291, %298 : vector<16x64xf32>
    %300 = arith.mulf %299, %299 : vector<16x64xf32>
    %cst_119 = arith.constant dense<0.000000e+00> : vector<16xf32>
    %301 = vector.multi_reduction <add>, %300, %cst_119 [1] : vector<16x64xf32> to vector<16xf32>
    %302 = vector.shape_cast %301 : vector<16xf32> to vector<16x1xf32>
    %cst_120 = arith.constant 6.400000e+01 : f32
    %303 = vector.broadcast %cst_120 : f32 to vector<16x1xf32>
    %304 = arith.divf %302, %303 : vector<16x1xf32>
    %305 = vector.broadcast %297 : vector<16x1xf32> to vector<16x64xf32>
    %306 = arith.subf %291, %305 : vector<16x64xf32>
    %cst_121 = arith.constant 9.99999974E-6 : f32
    %307 = vector.broadcast %cst_121 : f32 to vector<16x1xf32>
    %308 = arith.addf %304, %307 : vector<16x1xf32>
    %309 = math.rsqrt %308 : vector<16x1xf32>
    %310 = vector.broadcast %309 : vector<16x1xf32> to vector<16x64xf32>
    %311 = arith.mulf %306, %310 : vector<16x64xf32>
    %312 = vector.broadcast %292 : vector<1x64xf32> to vector<16x64xf32>
    %313 = arith.mulf %311, %312 : vector<16x64xf32>
    %314 = vector.broadcast %293 : vector<1x64xf32> to vector<16x64xf32>
    %315 = arith.addf %313, %314 : vector<16x64xf32>
    %c0_122 = arith.constant 0 : index
    %c0_123 = arith.constant 0 : index
    %316 = vector.load %arg25[%c0_122, %c0_123] : memref<1x64xf32, #tpu.memory_space<vmem>>, vector<1x64xf32>
    %c0_124 = arith.constant 0 : index
    %c0_125 = arith.constant 0 : index
    %317 = vector.load %arg26[%c0_124, %c0_125] : memref<1x64xf32, #tpu.memory_space<vmem>>, vector<1x64xf32>
    %cst_126 = arith.constant dense<0.000000e+00> : vector<16xf32>
    %318 = vector.multi_reduction <add>, %315, %cst_126 [1] : vector<16x64xf32> to vector<16xf32>
    %319 = vector.shape_cast %318 : vector<16xf32> to vector<16x1xf32>
    %cst_127 = arith.constant 6.400000e+01 : f32
    %320 = vector.broadcast %cst_127 : f32 to vector<16x1xf32>
    %321 = arith.divf %319, %320 : vector<16x1xf32>
    %322 = vector.broadcast %321 : vector<16x1xf32> to vector<16x64xf32>
    %323 = arith.subf %315, %322 : vector<16x64xf32>
    %324 = arith.mulf %323, %323 : vector<16x64xf32>
    %cst_128 = arith.constant dense<0.000000e+00> : vector<16xf32>
    %325 = vector.multi_reduction <add>, %324, %cst_128 [1] : vector<16x64xf32> to vector<16xf32>
    %326 = vector.shape_cast %325 : vector<16xf32> to vector<16x1xf32>
    %cst_129 = arith.constant 6.400000e+01 : f32
    %327 = vector.broadcast %cst_129 : f32 to vector<16x1xf32>
    %328 = arith.divf %326, %327 : vector<16x1xf32>
    %329 = vector.broadcast %321 : vector<16x1xf32> to vector<16x64xf32>
    %330 = arith.subf %315, %329 : vector<16x64xf32>
    %cst_130 = arith.constant 9.99999974E-6 : f32
    %331 = vector.broadcast %cst_130 : f32 to vector<16x1xf32>
    %332 = arith.addf %328, %331 : vector<16x1xf32>
    %333 = math.rsqrt %332 : vector<16x1xf32>
    %334 = vector.broadcast %333 : vector<16x1xf32> to vector<16x64xf32>
    %335 = arith.mulf %330, %334 : vector<16x64xf32>
    %336 = vector.broadcast %316 : vector<1x64xf32> to vector<16x64xf32>
    %337 = arith.mulf %335, %336 : vector<16x64xf32>
    %338 = vector.broadcast %317 : vector<1x64xf32> to vector<16x64xf32>
    %339 = arith.addf %337, %338 : vector<16x64xf32>
    %340 = arith.truncf %339 : vector<16x64xf32> to vector<16x64xbf16>
    %c0_131 = arith.constant 0 : index
    %c0_132 = arith.constant 0 : index
    %341 = vector.load %arg27[%c0_131, %c0_132] : memref<64x128xbf16, #tpu.memory_space<vmem>>, vector<64x128xbf16>
    %cst_133 = arith.constant dense<0.000000e+00> : vector<16x128xf32>
    %342 = tpu.matmul %340, %341, %cst_133 {dimension_numbers = #tpu.dot_dimension_numbers<[1], [0], [0], [1], [0, 0, 1, 1], [], []>} : vector<16x64xbf16>, vector<64x128xbf16>, vector<16x128xf32> -> vector<16x128xf32>
    %343 = vector.shape_cast %342 : vector<16x128xf32> to vector<2x8x128xf32>
    %c0_134 = arith.constant 0 : index
    %c0_135 = arith.constant 0 : index
    %c0_136 = arith.constant 0 : index
    %344 = vector.load %arg28[%c0_134, %c0_135, %c0_136] : memref<2x8x128xf32, #tpu.memory_space<vmem>>, vector<2x8x128xf32>
    tpu.vector_store %arg28[%c0_134, %c0_135, %c0_136], %343 {strides = array<i32>} : memref<2x8x128xf32, #tpu.memory_space<vmem>>, vector<2x8x128xf32>,
    return
  }
  func.func @transform_0(%arg0: i32) -> (i32, i32, i32) {
    %c0_i32 = arith.constant 0 : i32
    %c0_i32_0 = arith.constant 0 : i32
    %c0_i32_1 = arith.constant 0 : i32
    return %arg0, %c0_i32, %c0_i32_0 : i32, i32, i32
  }
  func.func @transform_1(%arg0: i32) -> (i32, i32, i32) {
    %c0_i32 = arith.constant 0 : i32
    %c0_i32_0 = arith.constant 0 : i32
    %c0_i32_1 = arith.constant 0 : i32
    return %arg0, %c0_i32, %c0_i32_0 : i32, i32, i32
  }
  func.func @transform_2(%arg0: i32) -> (i32, i32, i32) {
    %c0_i32 = arith.constant 0 : i32
    %c0_i32_0 = arith.constant 0 : i32
    %c0_i32_1 = arith.constant 0 : i32
    return %arg0, %c0_i32, %c0_i32_0 : i32, i32, i32
  }
  func.func @transform_3(%arg0: i32) -> (i32, i32, i32) {
    %c0_i32 = arith.constant 0 : i32
    %c0_i32_0 = arith.constant 0 : i32
    %c0_i32_1 = arith.constant 0 : i32
    return %arg0, %c0_i32, %c0_i32_0 : i32, i32, i32
  }
  func.func @transform_4(%arg0: i32) -> (i32, i32) {
    %c0_i32 = arith.constant 0 : i32
    %c0_i32_0 = arith.constant 0 : i32
    %c0_i32_1 = arith.constant 0 : i32
    return %c0_i32, %c0_i32_0 : i32, i32
  }
  func.func @transform_5(%arg0: i32) -> (i32, i32) {
    %c0_i32 = arith.constant 0 : i32
    %c0_i32_0 = arith.constant 0 : i32
    %c0_i32_1 = arith.constant 0 : i32
    return %c0_i32, %c0_i32_0 : i32, i32
  }
  func.func @transform_6(%arg0: i32) -> (i32, i32) {
    %c0_i32 = arith.constant 0 : i32
    %c0_i32_0 = arith.constant 0 : i32
    %c0_i32_1 = arith.constant 0 : i32
    return %c0_i32, %c0_i32_0 : i32, i32
  }
  func.func @transform_7(%arg0: i32) -> (i32, i32) {
    %c0_i32 = arith.constant 0 : i32
    %c0_i32_0 = arith.constant 0 : i32
    %c0_i32_1 = arith.constant 0 : i32
    return %c0_i32, %c0_i32_0 : i32, i32
  }
  func.func @transform_8(%arg0: i32) -> (i32, i32) {
    %c0_i32 = arith.constant 0 : i32
    %c0_i32_0 = arith.constant 0 : i32
    %c0_i32_1 = arith.constant 0 : i32
    return %c0_i32, %c0_i32_0 : i32, i32
  }
  func.func @transform_9(%arg0: i32) -> (i32, i32) {
    %c0_i32 = arith.constant 0 : i32
    %c0_i32_0 = arith.constant 0 : i32
    %c0_i32_1 = arith.constant 0 : i32
    return %c0_i32, %c0_i32_0 : i32, i32
  }
  func.func @transform_10(%arg0: i32) -> (i32, i32) {
    %c0_i32 = arith.constant 0 : i32
    %c0_i32_0 = arith.constant 0 : i32
    %c0_i32_1 = arith.constant 0 : i32
    return %c0_i32, %c0_i32_0 : i32, i32
  }
  func.func @transform_11(%arg0: i32) -> (i32, i32) {
    %c0_i32 = arith.constant 0 : i32
    %c0_i32_0 = arith.constant 0 : i32
    %c0_i32_1 = arith.constant 0 : i32
    return %c0_i32, %c0_i32_0 : i32, i32
  }
  func.func @transform_12(%arg0: i32) -> (i32, i32) {
    %c0_i32 = arith.constant 0 : i32
    %c0_i32_0 = arith.constant 0 : i32
    %c0_i32_1 = arith.constant 0 : i32
    return %c0_i32, %c0_i32_0 : i32, i32
  }
  func.func @transform_13(%arg0: i32) -> (i32, i32) {
    %c0_i32 = arith.constant 0 : i32
    %c0_i32_0 = arith.constant 0 : i32
    %c0_i32_1 = arith.constant 0 : i32
    return %c0_i32, %c0_i32_0 : i32, i32
  }
  func.func @transform_14(%arg0: i32) -> (i32, i32) {
    %c0_i32 = arith.constant 0 : i32
    %c0_i32_0 = arith.constant 0 : i32
    %c0_i32_1 = arith.constant 0 : i32
    return %c0_i32, %c0_i32_0 : i32, i32
  }
  func.func @transform_15(%arg0: i32) -> (i32, i32) {
    %c0_i32 = arith.constant 0 : i32
    %c0_i32_0 = arith.constant 0 : i32
    %c0_i32_1 = arith.constant 0 : i32
    return %c0_i32, %c0_i32_0 : i32, i32
  }
  func.func @transform_16(%arg0: i32) -> (i32, i32) {
    %c0_i32 = arith.constant 0 : i32
    %c0_i32_0 = arith.constant 0 : i32
    %c0_i32_1 = arith.constant 0 : i32
    return %c0_i32, %c0_i32_0 : i32, i32
  }
  func.func @transform_17(%arg0: i32) -> (i32, i32) {
    %c0_i32 = arith.constant 0 : i32
    %c0_i32_0 = arith.constant 0 : i32
    %c0_i32_1 = arith.constant 0 : i32
    return %c0_i32, %c0_i32_0 : i32, i32
  }
  func.func @transform_18(%arg0: i32) -> (i32, i32) {
    %c0_i32 = arith.constant 0 : i32
    %c0_i32_0 = arith.constant 0 : i32
    %c0_i32_1 = arith.constant 0 : i32
    return %c0_i32, %c0_i32_0 : i32, i32
  }
  func.func @transform_19(%arg0: i32) -> (i32, i32) {
    %c0_i32 = arith.constant 0 : i32
    %c0_i32_0 = arith.constant 0 : i32
    %c0_i32_1 = arith.constant 0 : i32
    return %c0_i32, %c0_i32_0 : i32, i32
  }
  func.func @transform_20(%arg0: i32) -> (i32, i32) {
    %c0_i32 = arith.constant 0 : i32
    %c0_i32_0 = arith.constant 0 : i32
    %c0_i32_1 = arith.constant 0 : i32
    return %c0_i32, %c0_i32_0 : i32, i32
  }
  func.func @transform_21(%arg0: i32) -> (i32, i32) {
    %c0_i32 = arith.constant 0 : i32
    %c0_i32_0 = arith.constant 0 : i32
    %c0_i32_1 = arith.constant 0 : i32
    return %c0_i32, %c0_i32_0 : i32, i32
  }
  func.func @transform_22(%arg0: i32) -> (i32, i32) {
    %c0_i32 = arith.constant 0 : i32
    %c0_i32_0 = arith.constant 0 : i32
    %c0_i32_1 = arith.constant 0 : i32
    return %c0_i32, %c0_i32_0 : i32, i32
  }
  func.func @transform_23(%arg0: i32) -> (i32, i32) {
    %c0_i32 = arith.constant 0 : i32
    %c0_i32_0 = arith.constant 0 : i32
    %c0_i32_1 = arith.constant 0 : i32
    return %c0_i32, %c0_i32_0 : i32, i32
  }
  func.func @transform_24(%arg0: i32) -> (i32, i32) {
    %c0_i32 = arith.constant 0 : i32
    %c0_i32_0 = arith.constant 0 : i32
    %c0_i32_1 = arith.constant 0 : i32
    return %c0_i32, %c0_i32_0 : i32, i32
  }
  func.func @transform_25(%arg0: i32) -> (i32, i32) {
    %c0_i32 = arith.constant 0 : i32
    %c0_i32_0 = arith.constant 0 : i32
    %c0_i32_1 = arith.constant 0 : i32
    return %c0_i32, %c0_i32_0 : i32, i32
  }
  func.func @transform_26(%arg0: i32) -> (i32, i32) {
    %c0_i32 = arith.constant 0 : i32
    %c0_i32_0 = arith.constant 0 : i32
    %c0_i32_1 = arith.constant 0 : i32
    return %c0_i32, %c0_i32_0 : i32, i32
  }
  func.func @transform_27(%arg0: i32) -> (i32, i32, i32) {
    %c0_i32 = arith.constant 0 : i32
    %c0_i32_0 = arith.constant 0 : i32
    %c0_i32_1 = arith.constant 0 : i32
    return %arg0, %c0_i32, %c0_i32_0 : i32, i32, i32
  }
}

</mosaic_0001>

<llo_original>
// kernel: traj_transformer_forward.6
$region0: #{traj_transformer_forward.6}
  #allocation0 [shape = 'u32[]', space=smem, size = 0x4, offset = 0x4, fixed_abs, tag = 'smem constant byte address 0x4 - core index']
  #allocation1 [shape = 'u32[72,128]{1,0:T(1,128)}', space=vmem, size = 0x9000, scoped, tag = 'internal scratch']
  %s0 = inlined_call_operand.vmem [shape: f32[2,8,2], index: 0, kind: input, shape index: {}]
  %s1 = inlined_call_operand.vmem [shape: f32[2,64], index: 1, kind: input, shape index: {}]
  %s2 = inlined_call_operand.vmem [shape: f32[8,64], index: 2, kind: input, shape index: {}]
  %s3 = inlined_call_operand.vmem [shape: f32[2,8,64], index: 3, kind: output, shape index: {}]
  %s4 = sld [smem:[#allocation0]]
  $region22: #{traj_transformer_forward.6} parent=0
    _
  %s6 = ssub.s32 1, %s4
  %s7 = scalar_select 0, %s6, %s4
  // Predicated region
  $region2: #{traj_transformer_forward.6} parent=0 // pred_check
    _
  $region3: #{traj_transformer_forward.6} parent=0 // pred_check_branch
    %9 = sbr.rel (0) target = $region5
  $region4: #{traj_transformer_forward.6} parent=0 // pred_region
    _
  $region5: #{traj_transformer_forward.6} parent=0 // pred_fallthru
    _
  // Predicated region
  $region6: #{traj_transformer_forward.6} parent=0 // pred_check
    _
  $region7: #{traj_transformer_forward.6} parent=0 // pred_check_branch
    %11 = sbr.rel (0) target = $region9
  $region8: #{traj_transformer_forward.6} parent=0 // pred_region
    _
  $region9: #{traj_transformer_forward.6} parent=0 // pred_fallthru
    _
  // Predicated region
  $region10: #{traj_transformer_forward.6} parent=0 // pred_check
    _
  $region11: #{traj_transformer_forward.6} parent=0 // pred_check_branch
    %13 = sbr.rel (0) target = $region13
  $region12: #{traj_transformer_forward.6} parent=0 // pred_region
    _
  $region13: #{traj_transformer_forward.6} parent=0 // pred_fallthru
    _
  %v14 = vld [vmem:[%s0] sm:$0xff]
  %v15 = vld [vmem:[%s0 + $0x8] sm:$0xff]
  %v16 = vld [vmem:[%s1] sm:$0x3]
  %18 = vset.pattern.permute.xlu0 0
  %19 = vperm.xlu0 %18, %v14
  %v20 = vpop.permute.xlu0 %19
  %23 = vset.pattern.permute.xlu0 0
  %24 = vperm.xlu0 %23, %v15
  %v25 = vpop.permute.xlu0 %24
  %v27 = vperm.slane %v16, 0
  %v28 = vmul.f32 %v20, %v27
  %v29 = vmul.f32 %v25, %v27
  %30 = vset.pattern.permute.xlu0 1
  %31 = vperm.xlu0 %30, %v14
  %v32 = vpop.permute.xlu0 %31
  %34 = vset.pattern.permute.xlu0 1
  %35 = vperm.xlu0 %34, %v15
  %v36 = vpop.permute.xlu0 %35
  %v38 = vperm.slane %v16, 1
  %v39 = vmul.f32 %v32, %v38
  %v40 = vmul.f32 %v36, %v38
  %v41 = vadd.f32 %v28, %v39
  %v42 = vadd.f32 %v29, %v40
  %v43 = vld [vmem:[%s2] sm:$0xff]
  %v44 = vadd.f32 %v41, %v43
  %v45 = vadd.f32 %v42, %v43
  %vm46 = vcmask 523264
  %47 = vst.msk [vmem:[%s3] sm:$0xff] %vm46, %v44
  %48 = vst.msk [vmem:[%s3 + $0x8] sm:$0xff] %vm46, %v45
  // Predicated region
  $region14: #{traj_transformer_forward.6} parent=0 // pred_check
    _
  $region15: #{traj_transformer_forward.6} parent=0 // pred_check_branch
    %50 = sbr.rel (0) target = $region17
  $region16: #{traj_transformer_forward.6} parent=0 // pred_region
    _
  $region17: #{traj_transformer_forward.6} parent=0 // pred_fallthru
    _
  // Predicated region
  $region18: #{traj_transformer_forward.6} parent=0 // pred_check
    _
  $region19: #{traj_transformer_forward.6} parent=0 // pred_check_branch
    %52 = sbr.rel (0) target = $region21
  $region20: #{traj_transformer_forward.6} parent=0 // pred_region
    _
  $region21: #{traj_transformer_forward.6} parent=0 // pred_fallthru
    _

// kernel: traj_transformer_forward.8
$region0: #{traj_transformer_forward.8}
  #allocation0 [shape = 'u32[]', space=smem, size = 0x4, offset = 0x4, fixed_abs, tag = 'smem constant byte address 0x4 - core index']
  #allocation1 [shape = 'u32[72,128]{1,0:T(1,128)}', space=vmem, size = 0x9000, scoped, tag = 'internal scratch']
  #allocation2 [shape = 'f32[16,64]{1,0:T(8,128)}', space=vmem, size = 0x2000, scoped, tag = 'scratch operand']
  %s0 = inlined_call_operand.vmem [shape: f32[2,8,64], index: 0, kind: input, shape index: {}]
  %s1 = inlined_call_operand.vmem [shape: f32[2,1,8], index: 1, kind: input, shape index: {}]
  %s2 = inlined_call_operand.vmem [shape: bf16[64,192], index: 2, kind: input, shape index: {}]
  %s3 = inlined_call_operand.vmem [shape: f32[1,192], index: 3, kind: input, shape index: {}]
  %s4 = inlined_call_operand.vmem [shape: bf16[64,64], index: 4, kind: input, shape index: {}]
  %s5 = inlined_call_operand.vmem [shape: f32[1,64], index: 5, kind: input, shape index: {}]
  %s6 = inlined_call_operand.vmem [shape: f32[1,64], index: 6, kind: input, shape index: {}]
  %s7 = inlined_call_operand.vmem [shape: f32[1,64], index: 7, kind: input, shape index: {}]
  %s8 = inlined_call_operand.vmem [shape: bf16[64,128], index: 8, kind: input, shape index: {}]
  %s9 = inlined_call_operand.vmem [shape: f32[1,128], index: 9, kind: input, shape index: {}]
  %s10 = inlined_call_operand.vmem [shape: bf16[128,64], index: 10, kind: input, shape index: {}]
  %s11 = inlined_call_operand.vmem [shape: f32[1,64], index: 11, kind: input, shape index: {}]
  %s12 = inlined_call_operand.vmem [shape: f32[1,64], index: 12, kind: input, shape index: {}]
  %s13 = inlined_call_operand.vmem [shape: f32[1,64], index: 13, kind: input, shape index: {}]
  %s14 = inlined_call_operand.vmem [shape: f32[1,64], index: 14, kind: input, shape index: {}]
  %s15 = inlined_call_operand.vmem [shape: f32[1,64], index: 15, kind: input, shape index: {}]
  %s16 = inlined_call_operand.vmem [shape: f32[2,8,64], index: 16, kind: output, shape index: {}]
  %s17 = sld [smem:[#allocation0]]
  $region74: #{traj_transformer_forward.8} parent=0
    _
  %s19 = ssub.s32 1, %s17
  %s20 = scalar_select 0, %s19, %s17
  // Predicated region
  $region2: #{traj_transformer_forward.8} parent=0 // pred_check
    _
  $region3: #{traj_transformer_forward.8} parent=0 // pred_check_branch
    %22 = sbr.rel (0) target = $region5
  $region4: #{traj_transformer_forward.8} parent=0 // pred_region
    _
  $region5: #{traj_transformer_forward.8} parent=0 // pred_fallthru
    _
  // Predicated region
  $region6: #{traj_transformer_forward.8} parent=0 // pred_check
    _
  $region7: #{traj_transformer_forward.8} parent=0 // pred_check_branch
    %24 = sbr.rel (0) target = $region9
  $region8: #{traj_transformer_forward.8} parent=0 // pred_region
    _
  $region9: #{traj_transformer_forward.8} parent=0 // pred_fallthru
    _
  // Predicated region
  $region10: #{traj_transformer_forward.8} parent=0 // pred_check
    _
  $region11: #{traj_transformer_forward.8} parent=0 // pred_check_branch
    %26 = sbr.rel (0) target = $region13
  $region12: #{traj_transformer_forward.8} parent=0 // pred_region
    _
  $region13: #{traj_transformer_forward.8} parent=0 // pred_fallthru
    _
  // Predicated region
  $region14: #{traj_transformer_forward.8} parent=0 // pred_check
    _
  $region15: #{traj_transformer_forward.8} parent=0 // pred_check_branch
    %28 = sbr.rel (0) target = $region17
  $region16: #{traj_transformer_forward.8} parent=0 // pred_region
    _
  $region17: #{traj_transformer_forward.8} parent=0 // pred_fallthru
    _
  // Predicated region
  $region18: #{traj_transformer_forward.8} parent=0 // pred_check
    _
  $region19: #{traj_transformer_forward.8} parent=0 // pred_check_branch
    %30 = sbr.rel (0) target = $region21
  $region20: #{traj_transformer_forward.8} parent=0 // pred_region
    _
  $region21: #{traj_transformer_forward.8} parent=0 // pred_fallthru
    _
  // Predicated region
  $region22: #{traj_transformer_forward.8} parent=0 // pred_check
    _
  $region23: #{traj_transformer_forward.8} parent=0 // pred_check_branch
    %32 = sbr.rel (0) target = $region25
  $region24: #{traj_transformer_forward.8} parent=0 // pred_region
    _
  $region25: #{traj_transformer_forward.8} parent=0 // pred_fallthru
    _
  // Predicated region
  $region26: #{traj_transformer_forward.8} parent=0 // pred_check
    _
  $region27: #{traj_transformer_forward.8} parent=0 // pred_check_branch
    %34 = sbr.rel (0) target = $region29
  $region28: #{traj_transformer_forward.8} parent=0 // pred_region
    _
  $region29: #{traj_transformer_forward.8} parent=0 // pred_fallthru
    _
  // Predicated region
  $region30: #{traj_transformer_forward.8} parent=0 // pred_check
    _
  $region31: #{traj_transformer_forward.8} parent=0 // pred_check_branch
    %36 = sbr.rel (0) target = $region33
  $region32: #{traj_transformer_forward.8} parent=0 // pred_region
    _
  $region33: #{traj_transformer_forward.8} parent=0 // pred_fallthru
    _
  // Predicated region
  $region34: #{traj_transformer_forward.8} parent=0 // pred_check
    _
  $region35: #{traj_transformer_forward.8} parent=0 // pred_check_branch
    %38 = sbr.rel (0) target = $region37
  $region36: #{traj_transformer_forward.8} parent=0 // pred_region
    _
  $region37: #{traj_transformer_forward.8} parent=0 // pred_fallthru
    _
  // Predicated region
  $region38: #{traj_transformer_forward.8} parent=0 // pred_check
    _
  $region39: #{traj_transformer_forward.8} parent=0 // pred_check_branch
    %40 = sbr.rel (0) target = $region41
  $region40: #{traj_transformer_forward.8} parent=0 // pred_region
    _
  $region41: #{traj_transformer_forward.8} parent=0 // pred_fallthru
    _
  // Predicated region
  $region42: #{traj_transformer_forward.8} parent=0 // pred_check
    _
  $region43: #{traj_transformer_forward.8} parent=0 // pred_check_branch
    %42 = sbr.rel (0) target = $region45
  $region44: #{traj_transformer_forward.8} parent=0 // pred_region
    _
  $region45: #{traj_transformer_forward.8} parent=0 // pred_fallthru
    _
  // Predicated region
  $region46: #{traj_transformer_forward.8} parent=0 // pred_check
    _
  $region47: #{traj_transformer_forward.8} parent=0 // pred_check_branch
    %44 = sbr.rel (0) target = $region49
  $region48: #{traj_transformer_forward.8} parent=0 // pred_region
    _
  $region49: #{traj_transformer_forward.8} parent=0 // pred_fallthru
    _
  // Predicated region
  $region50: #{traj_transformer_forward.8} parent=0 // pred_check
    _
  $region51: #{traj_transformer_forward.8} parent=0 // pred_check_branch
    %46 = sbr.rel (0) target = $region53
  $region52: #{traj_transformer_forward.8} parent=0 // pred_region
    _
  $region53: #{traj_transformer_forward.8} parent=0 // pred_fallthru
    _
  // Predicated region
  $region54: #{traj_transformer_forward.8} parent=0 // pred_check
    _
  $region55: #{traj_transformer_forward.8} parent=0 // pred_check_branch
    %48 = sbr.rel (0) target = $region57
  $region56: #{traj_transformer_forward.8} parent=0 // pred_region
    _
  $region57: #{traj_transformer_forward.8} parent=0 // pred_fallthru
    _
  // Predicated region
  $region58: #{traj_transformer_forward.8} parent=0 // pred_check
    _
  $region59: #{traj_transformer_forward.8} parent=0 // pred_check_branch
    %50 = sbr.rel (0) target = $region61
  $region60: #{traj_transformer_forward.8} parent=0 // pred_region
    _
  $region61: #{traj_transformer_forward.8} parent=0 // pred_fallthru
    _
  // Predicated region
  $region62: #{traj_transformer_forward.8} parent=0 // pred_check
    _
  $region63: #{traj_transformer_forward.8} parent=0 // pred_check_branch
    %52 = sbr.rel (0) target = $region65
  $region64: #{traj_transformer_forward.8} parent=0 // pred_region
    _
  $region65: #{traj_transformer_forward.8} parent=0 // pred_fallthru
    _
  %v54 = vld [vmem:[%s0] sm:$0xff]
  %v55 = vld [vmem:[%s0 + $0x8] sm:$0xff]
  %v56 = vpack.c.bf16 %v55, %v54
  %v57 = vld [vmem:[%s2] sm:$0xff]
  %v58 = vld [vmem:[%s2 + $0x8] sm:$0xff]
  %v59 = vld [vmem:[%s2 + $0x10] sm:$0xff]
  %v60 = vld [vmem:[%s2 + $0x18] sm:$0xff]
  %v61 = vld [vmem:[%s2 + $0x20] sm:$0xff]
  %v62 = vld [vmem:[%s2 + $0x28] sm:$0xff]
  %v63 = vld [vmem:[%s2 + $0x30] sm:$0xff]
  %v64 = vld [vmem:[%s2 + $0x38] sm:$0xff]
  %v65 = vld [vmem:[%s3] sm:$0x3]
  %v67 = vperm.slane %v65, 0
  %v68 = vperm.slane %v65, 1
  %v79 = vunpack.c.l.b16 %v57
  %v80 = vunpack.c.h.b16 %v57
  %v81 = vunpack.c.l.b16 %v58
  %v82 = vunpack.c.h.b16 %v58
  %v83 = vunpack.c.l.b16 %v59
  %v84 = vunpack.c.h.b16 %v59
  %v85 = vunpack.c.l.b16 %v60
  %v86 = vunpack.c.h.b16 %v60
  %v87 = vunpack.c.l.b16 %v61
  %v88 = vunpack.c.h.b16 %v61
  %v89 = vunpack.c.l.b16 %v62
  %v90 = vunpack.c.h.b16 %v62
  %v91 = vunpack.c.l.b16 %v63
  %v92 = vunpack.c.h.b16 %v63
  %v93 = vunpack.c.l.b16 %v64
  %v94 = vunpack.c.h.b16 %v64
  %v95 = vpack.c.b16 %v81, %v79
  %v96 = vpack.c.b16 %v82, %v80
  %v97 = vpack.c.b16 %v85, %v83
  %v98 = vpack.c.b16 %v86, %v84
  %v99 = vpack.c.b16 %v89, %v87
  %v100 = vpack.c.b16 %v90, %v88
  %v101 = vpack.c.b16 %v93, %v91
  %v102 = vpack.c.b16 %v94, %v92
  %vm111 = vcmask 523264
  %v113 = vsel %vm111, %v56, 0
  %115 = vmatpush.bf16.msra.mxu0 0
  %116 = vmatpush.bf16.msra.mxu0 0
  %117 = vmatpush.bf16.msra.mxu0 0
  %118 = vmatpush.bf16.msra.mxu0 0
  %119 = vmatpush.bf16.msra.mxu0 %v101
  %120 = vmatpush.bf16.msra.mxu0 %v99
  %121 = vmatpush.bf16.msra.mxu0 %v97
  %122 = vmatpush.bf16.msra.mxu0 %v95
  %123 = vmatmul.bf16.gmra.mxu0 %v113
  %v124 = vpop.f32.mrf.mxu0
  %v125 = vadd.f32 %v67, %v124
  %v126 = vpop.f32.mrf.mxu0
  %v127 = vadd.f32 %v67, %v126
  %128 = vdwg.mxu0
  %129 = vmatpush.bf16.msra.mxu0 0
  %130 = vmatpush.bf16.msra.mxu0 0
  %131 = vmatpush.bf16.msra.mxu0 0
  %132 = vmatpush.bf16.msra.mxu0 0
  %133 = vmatpush.bf16.msra.mxu0 %v102
  %134 = vmatpush.bf16.msra.mxu0 %v100
  %135 = vmatpush.bf16.msra.mxu0 %v98
  %136 = vmatpush.bf16.msra.mxu0 %v96
  %137 = vmatmul.bf16.gmra.mxu0 %v113
  %v138 = vpop.f32.mrf.mxu0
  %v139 = vadd.f32 %v68, %v138
  %v140 = vpop.f32.mrf.mxu0
  %v141 = vadd.f32 %v68, %v140
  %142 = vdwg.mxu0
  %v143 = vld [vmem:[%s1] sm:$0x1]
  %v144 = vld [vmem:[%s1 + $0x1] sm:$0x1]
  %v145 = vpack.c.bf16 %v125, %v125
  %v146 = vpack.c.bf16 %v127, %v127
  %v149 = vperm.slane %v143, 0
  %v150 = vperm.slane %v144, 0
  %v154 = vunpack.c.l.b16 %v145
  %v155 = vpack.c.b16 %v154, %v154
  %156 = vrot.lane.b32.xlu0 %v155, 64
  %v157 = vpop.permute.xlu0 %156
  %vm158 = vcmask 130048
  %v160 = vsel %vm158, %v145, 0
  %v163 = vsel %vm158, %v157, 0
  %165 = vmatpush.bf16.xpose.msra.mxu0 0
  %166 = vmatpush.bf16.xpose.msra.mxu0 0
  %167 = vmatpush.bf16.xpose.msra.mxu0 0
  %168 = vmatpush.bf16.xpose.msra.mxu0 0
  %169 = vmatpush.bf16.xpose.msra.mxu0 0
  %170 = vmatpush.bf16.xpose.msra.mxu0 0
  %171 = vmatpush.bf16.xpose.msra.mxu0 0
  %172 = vmatpush.bf16.xpose.msra.mxu0 %v163
  %173 = vmatmul.bf16.gmra.mxu0 %v160
  %v174 = vpop.f32.mrf.mxu0
  %v175 = vadd.f32 %v149, %v174
  %v176 = vpop.f32.mrf.mxu0
  %177 = vdwg.mxu0
  %v179 = vunpack.c.l.b16 %v146
  %v180 = vpack.c.b16 %v179, %v179
  %181 = vrot.lane.b32.xlu0 %v180, 64
  %v182 = vpop.permute.xlu0 %181
  %v184 = vsel %vm158, %v146, 0
  %v187 = vsel %vm158, %v182, 0
  %189 = vmatpush.bf16.xpose.msra.mxu0 0
  %190 = vmatpush.bf16.xpose.msra.mxu0 0
  %191 = vmatpush.bf16.xpose.msra.mxu0 0
  %192 = vmatpush.bf16.xpose.msra.mxu0 0
  %193 = vmatpush.bf16.xpose.msra.mxu0 0
  %194 = vmatpush.bf16.xpose.msra.mxu0 0
  %195 = vmatpush.bf16.xpose.msra.mxu0 0
  %196 = vmatpush.bf16.xpose.msra.mxu0 %v187
  %197 = vmatmul.bf16.gmra.mxu0 %v184
  %v198 = vpop.f32.mrf.mxu0
  %v199 = vadd.f32 %v150, %v198
  %v200 = vpop.f32.mrf.mxu0
  %201 = vdwg.mxu0
  %vm202 = vcmask 64512
  %v203 = vsel %vm202, %v175, -inf
  %204 = vmax.xlane.f32.xlu0 %v203
  %v205 = vpop.xlane.xlu0 %204
  %v206 = vsel %vm202, %v199, -inf
  %207 = vmax.xlane.f32.xlu0 %v206
  %v208 = vpop.xlane.xlu0 %207
  %v209 = vsub.f32 %v175, %v205
  %v210 = vsub.f32 %v199, %v208
  %v211 = vmul.f32 %v209, 1.442695
  %v212 = vpow.pop %v211
  %v213 = vmul.f32 %v210, 1.442695
  %v214 = vpow.pop %v213
  %v215 = vsel %vm202, %v212, 0.0
  %216 = vadd.xlane.f32.xlu0 %v215
  %v217 = vpop.xlane.xlu0 %216
  %v218 = vsel %vm202, %v214, 0.0
  %219 = vadd.xlane.f32.xlu0 %v218
  %v220 = vpop.xlane.xlu0 %219
  %v221 = vrcp.pop %v217
  %v222 = vrcp.pop %v220
  %v223 = vmul.f32 %v212, %v221
  %v224 = vmul.f32 %v214, %v222
  %v225 = vpack.c.bf16 %v223, %v223
  %v226 = vpack.c.bf16 %v224, %v224
  %v227 = vpack.c.bf16 %v139, %v139
  %v228 = vpack.c.bf16 %v141, %v141
  %v230 = vsel %vm202, %v225, 0
  %vm232 = vcmask 1043456
  %v234 = vsel %vm232, %v227, 0
  %236 = vmatpush.bf16.msra.mxu0 0
  %237 = vmatpush.bf16.msra.mxu0 0
  %238 = vmatpush.bf16.msra.mxu0 0
  %239 = vmatpush.bf16.msra.mxu0 0
  %240 = vmatpush.bf16.msra.mxu0 0
  %241 = vmatpush.bf16.msra.mxu0 0
  %242 = vmatpush.bf16.msra.mxu0 0
  %243 = vmatpush.bf16.msra.mxu0 %v234
  %244 = vmatmul.bf16.gmra.mxu0 %v230
  %v245 = vpop.f32.mrf.mxu0
  %v246 = vadd.f32 0.0, %v245
  %v247 = vpop.f32.mrf.mxu0
  %248 = vdwg.mxu0
  %v250 = vsel %vm202, %v226, 0
  %v253 = vsel %vm232, %v228, 0
  %255 = vmatpush.bf16.msra.mxu0 0
  %256 = vmatpush.bf16.msra.mxu0 0
  %257 = vmatpush.bf16.msra.mxu0 0
  %258 = vmatpush.bf16.msra.mxu0 0
  %259 = vmatpush.bf16.msra.mxu0 0
  %260 = vmatpush.bf16.msra.mxu0 0
  %261 = vmatpush.bf16.msra.mxu0 0
  %262 = vmatpush.bf16.msra.mxu0 %v253
  %263 = vmatmul.bf16.gmra.mxu0 %v250
  %v264 = vpop.f32.mrf.mxu0
  %v265 = vadd.f32 0.0, %v264
  %v266 = vpop.f32.mrf.mxu0
  %267 = vdwg.mxu0
  %268 = vst.msk [vmem:[#allocation2] sm:$0xff] %vm158, %v246
  %269 = vst.msk [vmem:[#allocation2 + $0x8] sm:$0xff] %vm158, %v265
  %270 = vrot.lane.b32.xlu0 %v155, 112
  %v271 = vpop.permute.xlu0 %270
  %272 = vrot.lane.b32.xlu0 %v155, 48
  %v273 = vpop.permute.xlu0 %272
  %v275 = vsel %vm158, %v271, 0
  %v278 = vsel %vm158, %v273, 0
  %280 = vmatpush.bf16.xpose.msra.mxu0 0
  %281 = vmatpush.bf16.xpose.msra.mxu0 0
  %282 = vmatpush.bf16.xpose.msra.mxu0 0
  %283 = vmatpush.bf16.xpose.msra.mxu0 0
  %284 = vmatpush.bf16.xpose.msra.mxu0 0
  %285 = vmatpush.bf16.xpose.msra.mxu0 0
  %286 = vmatpush.bf16.xpose.msra.mxu0 0
  %287 = vmatpush.bf16.xpose.msra.mxu0 %v278
  %288 = vmatmul.bf16.gmra.mxu0 %v275
  %v289 = vpop.f32.mrf.mxu0
  %v290 = vadd.f32 %v149, %v289
  %v291 = vpop.f32.mrf.mxu0
  %292 = vdwg.mxu0
  %293 = vrot.lane.b32.xlu0 %v180, 112
  %v294 = vpop.permute.xlu0 %293
  %295 = vrot.lane.b32.xlu0 %v180, 48
  %v296 = vpop.permute.xlu0 %295
  %v298 = vsel %vm158, %v294, 0
  %v301 = vsel %vm158, %v296, 0
  %303 = vmatpush.bf16.xpose.msra.mxu0 0
  %304 = vmatpush.bf16.xpose.msra.mxu0 0
  %305 = vmatpush.bf16.xpose.msra.mxu0 0
  %306 = vmatpush.bf16.xpose.msra.mxu0 0
  %307 = vmatpush.bf16.xpose.msra.mxu0 0
  %308 = vmatpush.bf16.xpose.msra.mxu0 0
  %309 = vmatpush.bf16.xpose.msra.mxu0 0
  %310 = vmatpush.bf16.xpose.msra.mxu0 %v301
  %311 = vmatmul.bf16.gmra.mxu0 %v298
  %v312 = vpop.f32.mrf.mxu0
  %v313 = vadd.f32 %v150, %v312
  %v314 = vpop.f32.mrf.mxu0
  %315 = vdwg.mxu0
  %v316 = vsel %vm202, %v290, -inf
  %317 = vmax.xlane.f32.xlu0 %v316
  %v318 = vpop.xlane.xlu0 %317
  %v319 = vsel %vm202, %v313, -inf
  %320 = vmax.xlane.f32.xlu0 %v319
  %v321 = vpop.xlane.xlu0 %320
  %v322 = vsub.f32 %v290, %v318
  %v323 = vsub.f32 %v313, %v321
  %v324 = vmul.f32 %v322, 1.442695
  %v325 = vpow.pop %v324
  %v326 = vmul.f32 %v323, 1.442695
  %v327 = vpow.pop %v326
  %v328 = vsel %vm202, %v325, 0.0
  %329 = vadd.xlane.f32.xlu0 %v328
  %v330 = vpop.xlane.xlu0 %329
  %v331 = vsel %vm202, %v327, 0.0
  %332 = vadd.xlane.f32.xlu0 %v331
  %v333 = vpop.xlane.xlu0 %332
  %v334 = vrcp.pop %v330
  %v335 = vrcp.pop %v333
  %v336 = vmul.f32 %v325, %v334
  %v337 = vmul.f32 %v327, %v335
  %v338 = vpack.c.bf16 %v336, %v336
  %v339 = vpack.c.bf16 %v337, %v337
  %v341 = vunpack.c.l.b16 %v227
  %v342 = vpack.c.b16 %v341, %v341
  %343 = vrot.lane.b32.xlu0 %v342, 112
  %v344 = vpop.permute.xlu0 %343
  %v346 = vsel %vm202, %v338, 0
  %v349 = vsel %vm232, %v344, 0
  %351 = vmatpush.bf16.msra.mxu0 0
  %352 = vmatpush.bf16.msra.mxu0 0
  %353 = vmatpush.bf16.msra.mxu0 0
  %354 = vmatpush.bf16.msra.mxu0 0
  %355 = vmatpush.bf16.msra.mxu0 0
  %356 = vmatpush.bf16.msra.mxu0 0
  %357 = vmatpush.bf16.msra.mxu0 0
  %358 = vmatpush.bf16.msra.mxu0 %v349
  %359 = vmatmul.bf16.gmra.mxu0 %v346
  %v360 = vpop.f32.mrf.mxu0
  %v361 = vadd.f32 0.0, %v360
  %v362 = vpop.f32.mrf.mxu0
  %363 = vdwg.mxu0
  %v365 = vunpack.c.l.b16 %v228
  %v366 = vpack.c.b16 %v365, %v365
  %367 = vrot.lane.b32.xlu0 %v366, 112
  %v368 = vpop.permute.xlu0 %367
  %v370 = vsel %vm202, %v339, 0
  %v373 = vsel %vm232, %v368, 0
  %375 = vmatpush.bf16.msra.mxu0 0
  %376 = vmatpush.bf16.msra.mxu0 0
  %377 = vmatpush.bf16.msra.mxu0 0
  %378 = vmatpush.bf16.msra.mxu0 0
  %379 = vmatpush.bf16.msra.mxu0 0
  %380 = vmatpush.bf16.msra.mxu0 0
  %381 = vmatpush.bf16.msra.mxu0 0
  %382 = vmatpush.bf16.msra.mxu0 %v373
  %383 = vmatmul.bf16.gmra.mxu0 %v370
  %v384 = vpop.f32.mrf.mxu0
  %v385 = vadd.f32 0.0, %v384
  %v386 = vpop.f32.mrf.mxu0
  %387 = vdwg.mxu0
  %390 = vrot.lane.b32.xlu0 %v361, 16
  %v391 = vpop.permute.xlu0 %390
  %392 = vrot.lane.b32.xlu0 %v385, 16
  %v393 = vpop.permute.xlu0 %392
  %vm396 = vcmask 261248
  %397 = vst.msk [vmem:[#allocation2] sm:$0xff] %vm396, %v391
  %398 = vst.msk [vmem:[#allocation2 + $0x8] sm:$0xff] %vm396, %v393
  %399 = vrot.lane.b32.xlu0 %v155, 96
  %v400 = vpop.permute.xlu0 %399
  %401 = vrot.lane.b32.xlu0 %v155, 32
  %v402 = vpop.permute.xlu0 %401
  %v404 = vsel %vm158, %v400, 0
  %v407 = vsel %vm158, %v402, 0
  %409 = vmatpush.bf16.xpose.msra.mxu0 0
  %410 = vmatpush.bf16.xpose.msra.mxu0 0
  %411 = vmatpush.bf16.xpose.msra.mxu0 0
  %412 = vmatpush.bf16.xpose.msra.mxu0 0
  %413 = vmatpush.bf16.xpose.msra.mxu0 0
  %414 = vmatpush.bf16.xpose.msra.mxu0 0
  %415 = vmatpush.bf16.xpose.msra.mxu0 0
  %416 = vmatpush.bf16.xpose.msra.mxu0 %v407
  %417 = vmatmul.bf16.gmra.mxu0 %v404
  %v418 = vpop.f32.mrf.mxu0
  %v419 = vadd.f32 %v149, %v418
  %v420 = vpop.f32.mrf.mxu0
  %421 = vdwg.mxu0
  %422 = vrot.lane.b32.xlu0 %v180, 96
  %v423 = vpop.permute.xlu0 %422
  %424 = vrot.lane.b32.xlu0 %v180, 32
  %v425 = vpop.permute.xlu0 %424
  %v427 = vsel %vm158, %v423, 0
  %v430 = vsel %vm158, %v425, 0
  %432 = vmatpush.bf16.xpose.msra.mxu0 0
  %433 = vmatpush.bf16.xpose.msra.mxu0 0
  %434 = vmatpush.bf16.xpose.msra.mxu0 0
  %435 = vmatpush.bf16.xpose.msra.mxu0 0
  %436 = vmatpush.bf16.xpose.msra.mxu0 0
  %437 = vmatpush.bf16.xpose.msra.mxu0 0
  %438 = vmatpush.bf16.xpose.msra.mxu0 0
  %439 = vmatpush.bf16.xpose.msra.mxu0 %v430
  %440 = vmatmul.bf16.gmra.mxu0 %v427
  %v441 = vpop.f32.mrf.mxu0
  %v442 = vadd.f32 %v150, %v441
  %v443 = vpop.f32.mrf.mxu0
  %444 = vdwg.mxu0
  %v445 = vsel %vm202, %v419, -inf
  %446 = vmax.xlane.f32.xlu0 %v445
  %v447 = vpop.xlane.xlu0 %446
  %v448 = vsel %vm202, %v442, -inf
  %449 = vmax.xlane.f32.xlu0 %v448
  %v450 = vpop.xlane.xlu0 %449
  %v451 = vsub.f32 %v419, %v447
  %v452 = vsub.f32 %v442, %v450
  %v453 = vmul.f32 %v451, 1.442695
  %v454 = vpow.pop %v453
  %v455 = vmul.f32 %v452, 1.442695
  %v456 = vpow.pop %v455
  %v457 = vsel %vm202, %v454, 0.0
  %458 = vadd.xlane.f32.xlu0 %v457
  %v459 = vpop.xlane.xlu0 %458
  %v460 = vsel %vm202, %v456, 0.0
  %461 = vadd.xlane.f32.xlu0 %v460
  %v462 = vpop.xlane.xlu0 %461
  %v463 = vrcp.pop %v459
  %v464 = vrcp.pop %v462
  %v465 = vmul.f32 %v454, %v463
  %v466 = vmul.f32 %v456, %v464
  %v467 = vpack.c.bf16 %v465, %v465
  %v468 = vpack.c.bf16 %v466, %v466
  %469 = vrot.lane.b32.xlu0 %v342, 96
  %v470 = vpop.permute.xlu0 %469
  %v472 = vsel %vm202, %v467, 0
  %v475 = vsel %vm232, %v470, 0
  %477 = vmatpush.bf16.msra.mxu0 0
  %478 = vmatpush.bf16.msra.mxu0 0
  %479 = vmatpush.bf16.msra.mxu0 0
  %480 = vmatpush.bf16.msra.mxu0 0
  %481 = vmatpush.bf16.msra.mxu0 0
  %482 = vmatpush.bf16.msra.mxu0 0
  %483 = vmatpush.bf16.msra.mxu0 0
  %484 = vmatpush.bf16.msra.mxu0 %v475
  %485 = vmatmul.bf16.gmra.mxu0 %v472
  %v486 = vpop.f32.mrf.mxu0
  %v487 = vadd.f32 0.0, %v486
  %v488 = vpop.f32.mrf.mxu0
  %489 = vdwg.mxu0
  %490 = vrot.lane.b32.xlu0 %v366, 96
  %v491 = vpop.permute.xlu0 %490
  %v493 = vsel %vm202, %v468, 0
  %v496 = vsel %vm232, %v491, 0
  %498 = vmatpush.bf16.msra.mxu0 0
  %499 = vmatpush.bf16.msra.mxu0 0
  %500 = vmatpush.bf16.msra.mxu0 0
  %501 = vmatpush.bf16.msra.mxu0 0
  %502 = vmatpush.bf16.msra.mxu0 0
  %503 = vmatpush.bf16.msra.mxu0 0
  %504 = vmatpush.bf16.msra.mxu0 0
  %505 = vmatpush.bf16.msra.mxu0 %v496
  %506 = vmatmul.bf16.gmra.mxu0 %v493
  %v507 = vpop.f32.mrf.mxu0
  %v508 = vadd.f32 0.0, %v507
  %v509 = vpop.f32.mrf.mxu0
  %510 = vdwg.mxu0
  %513 = vrot.lane.b32.xlu0 %v487, 32
  %v514 = vpop.permute.xlu0 %513
  %515 = vrot.lane.b32.xlu0 %v508, 32
  %v516 = vpop.permute.xlu0 %515
  %vm519 = vcmask 392448
  %520 = vst.msk [vmem:[#allocation2] sm:$0xff] %vm519, %v514
  %521 = vst.msk [vmem:[#allocation2 + $0x8] sm:$0xff] %vm519, %v516
  %522 = vrot.lane.b32.xlu0 %v155, 80
  %v523 = vpop.permute.xlu0 %522
  %524 = vrot.lane.b32.xlu0 %v155, 16
  %v525 = vpop.permute.xlu0 %524
  %v527 = vsel %vm158, %v523, 0
  %v530 = vsel %vm158, %v525, 0
  %532 = vmatpush.bf16.xpose.msra.mxu0 0
  %533 = vmatpush.bf16.xpose.msra.mxu0 0
  %534 = vmatpush.bf16.xpose.msra.mxu0 0
  %535 = vmatpush.bf16.xpose.msra.mxu0 0
  %536 = vmatpush.bf16.xpose.msra.mxu0 0
  %537 = vmatpush.bf16.xpose.msra.mxu0 0
  %538 = vmatpush.bf16.xpose.msra.mxu0 0
  %539 = vmatpush.bf16.xpose.msra.mxu0 %v530
  %540 = vmatmul.bf16.gmra.mxu0 %v527
  %v541 = vpop.f32.mrf.mxu0
  %v542 = vadd.f32 %v149, %v541
  %v543 = vpop.f32.mrf.mxu0
  %544 = vdwg.mxu0
  %545 = vrot.lane.b32.xlu0 %v180, 80
  %v546 = vpop.permute.xlu0 %545
  %547 = vrot.lane.b32.xlu0 %v180, 16
  %v548 = vpop.permute.xlu0 %547
  %v550 = vsel %vm158, %v546, 0
  %v553 = vsel %vm158, %v548, 0
  %555 = vmatpush.bf16.xpose.msra.mxu0 0
  %556 = vmatpush.bf16.xpose.msra.mxu0 0
  %557 = vmatpush.bf16.xpose.msra.mxu0 0
  %558 = vmatpush.bf16.xpose.msra.mxu0 0
  %559 = vmatpush.bf16.xpose.msra.mxu0 0
  %560 = vmatpush.bf16.xpose.msra.mxu0 0
  %561 = vmatpush.bf16.xpose.msra.mxu0 0
  %562 = vmatpush.bf16.xpose.msra.mxu0 %v553
  %563 = vmatmul.bf16.gmra.mxu0 %v550
  %v564 = vpop.f32.mrf.mxu0
  %v565 = vadd.f32 %v150, %v564
  %v566 = vpop.f32.mrf.mxu0
  %567 = vdwg.mxu0
  %v568 = vsel %vm202, %v542, -inf
  %569 = vmax.xlane.f32.xlu0 %v568
  %v570 = vpop.xlane.xlu0 %569
  %v571 = vsel %vm202, %v565, -inf
  %572 = vmax.xlane.f32.xlu0 %v571
  %v573 = vpop.xlane.xlu0 %572
  %v574 = vsub.f32 %v542, %v570
  %v575 = vsub.f32 %v565, %v573
  %v576 = vmul.f32 %v574, 1.442695
  %v577 = vpow.pop %v576
  %v578 = vmul.f32 %v575, 1.442695
  %v579 = vpow.pop %v578
  %v580 = vsel %vm202, %v577, 0.0
  %581 = vadd.xlane.f32.xlu0 %v580
  %v582 = vpop.xlane.xlu0 %581
  %v583 = vsel %vm202, %v579, 0.0
  %584 = vadd.xlane.f32.xlu0 %v583
  %v585 = vpop.xlane.xlu0 %584
  %v586 = vrcp.pop %v582
  %v587 = vrcp.pop %v585
  %v588 = vmul.f32 %v577, %v586
  %v589 = vmul.f32 %v579, %v587
  %v590 = vpack.c.bf16 %v588, %v588
  %v591 = vpack.c.bf16 %v589, %v589
  %592 = vrot.lane.b32.xlu0 %v342, 80
  %v593 = vpop.permute.xlu0 %592
  %v595 = vsel %vm202, %v590, 0
  %v598 = vsel %vm232, %v593, 0
  %600 = vmatpush.bf16.msra.mxu0 0
  %601 = vmatpush.bf16.msra.mxu0 0
  %602 = vmatpush.bf16.msra.mxu0 0
  %603 = vmatpush.bf16.msra.mxu0 0
  %604 = vmatpush.bf16.msra.mxu0 0
  %605 = vmatpush.bf16.msra.mxu0 0
  %606 = vmatpush.bf16.msra.mxu0 0
  %607 = vmatpush.bf16.msra.mxu0 %v598
  %608 = vmatmul.bf16.gmra.mxu0 %v595
  %v609 = vpop.f32.mrf.mxu0
  %v610 = vadd.f32 0.0, %v609
  %v611 = vpop.f32.mrf.mxu0
  %612 = vdwg.mxu0
  %613 = vrot.lane.b32.xlu0 %v366, 80
  %v614 = vpop.permute.xlu0 %613
  %v616 = vsel %vm202, %v591, 0
  %v619 = vsel %vm232, %v614, 0
  %621 = vmatpush.bf16.msra.mxu0 0
  %622 = vmatpush.bf16.msra.mxu0 0
  %623 = vmatpush.bf16.msra.mxu0 0
  %624 = vmatpush.bf16.msra.mxu0 0
  %625 = vmatpush.bf16.msra.mxu0 0
  %626 = vmatpush.bf16.msra.mxu0 0
  %627 = vmatpush.bf16.msra.mxu0 0
  %628 = vmatpush.bf16.msra.mxu0 %v619
  %629 = vmatmul.bf16.gmra.mxu0 %v616
  %v630 = vpop.f32.mrf.mxu0
  %v631 = vadd.f32 0.0, %v630
  %v632 = vpop.f32.mrf.mxu0
  %633 = vdwg.mxu0
  %636 = vrot.lane.b32.xlu0 %v610, 48
  %v637 = vpop.permute.xlu0 %636
  %638 = vrot.lane.b32.xlu0 %v631, 48
  %v639 = vpop.permute.xlu0 %638
  %vm642 = vcmask 523648
  %643 = vst.msk [vmem:[#allocation2] sm:$0xff] %vm642, %v637
  %644 = vst.msk [vmem:[#allocation2 + $0x8] sm:$0xff] %vm642, %v639
  %v645 = vld [vmem:[#allocation2] sm:$0xff]
  %v646 = vld [vmem:[#allocation2 + $0x8] sm:$0xff]
  %v647 = vpack.c.bf16 %v646, %v645
  %v648 = vld [vmem:[%s4] sm:$0xf]
  %v649 = vld [vmem:[%s4 + $0x4] sm:$0xf]
  %v650 = vld [vmem:[%s4 + $0x8] sm:$0xf]
  %v651 = vld [vmem:[%s4 + $0xc] sm:$0xf]
  %v652 = vld [vmem:[%s4 + $0x10] sm:$0xf]
  %v653 = vld [vmem:[%s4 + $0x14] sm:$0xf]
  %v654 = vld [vmem:[%s4 + $0x18] sm:$0xf]
  %v655 = vld [vmem:[%s4 + $0x1c] sm:$0xf]
  %v656 = vld [vmem:[%s5] sm:$0x1]
  %v658 = vperm.slane %v656, 0
  %v668 = vunpack.c.l.b16 %v648
  %v669 = vunpack.c.l.b16 %v649
  %v670 = vunpack.c.l.b16 %v650
  %v671 = vunpack.c.l.b16 %v651
  %v672 = vunpack.c.l.b16 %v652
  %v673 = vunpack.c.l.b16 %v653
  %v674 = vunpack.c.l.b16 %v654
  %v675 = vunpack.c.l.b16 %v655
  %v676 = vpack.c.b16 %v669, %v668
  %v677 = vpack.c.b16 %v671, %v670
  %v678 = vpack.c.b16 %v673, %v672
  %v679 = vpack.c.b16 %v675, %v674
  %v685 = vsel %vm111, %v647, 0
  %687 = vmatpush.bf16.msra.mxu0 0
  %688 = vmatpush.bf16.msra.mxu0 0
  %689 = vmatpush.bf16.msra.mxu0 0
  %690 = vmatpush.bf16.msra.mxu0 0
  %691 = vmatpush.bf16.msra.mxu0 %v679
  %692 = vmatpush.bf16.msra.mxu0 %v678
  %693 = vmatpush.bf16.msra.mxu0 %v677
  %694 = vmatpush.bf16.msra.mxu0 %v676
  %695 = vmatmul.bf16.gmra.mxu0 %v685
  %v696 = vpop.f32.mrf.mxu0
  %v697 = vadd.f32 %v658, %v696
  %v698 = vpop.f32.mrf.mxu0
  %v699 = vadd.f32 %v658, %v698
  %700 = vdwg.mxu0
  %v701 = vadd.f32 %v54, %v697
  %v702 = vadd.f32 %v55, %v699
  %v703 = vld [vmem:[%s6] sm:$0x1]
  %v704 = vld [vmem:[%s7] sm:$0x1]
  %v705 = vsel %vm111, %v701, 0.0
  %706 = vadd.xlane.f32.xlu0 %v705
  %v707 = vpop.xlane.xlu0 %706
  %v708 = vsel %vm111, %v702, 0.0
  %709 = vadd.xlane.f32.xlu0 %v708
  %v710 = vpop.xlane.xlu0 %709
  %v711 = vrcp.pop 64.0
  %v712 = vmul.f32 64.0, %v711
  %v713 = vsub.f32 1.0, %v712
  %v714 = vmul.f32 %v711, %v713
  %v715 = vadd.f32 %v711, %v714
  %vm716 = vweird.f32 %v711
  %v717 = vsel %vm716, %v711, %v715
  %v718 = vmul.f32 %v707, %v717
  %v719 = vmul.f32 %v710, %v717
  %v720 = vsub.f32 %v701, %v718
  %v721 = vsub.f32 %v702, %v719
  %v722 = vmul.f32 %v720, %v720
  %v723 = vmul.f32 %v721, %v721
  %v724 = vsel %vm111, %v722, 0.0
  %725 = vadd.xlane.f32.xlu0 %v724
  %v726 = vpop.xlane.xlu0 %725
  %v727 = vsel %vm111, %v723, 0.0
  %728 = vadd.xlane.f32.xlu0 %v727
  %v729 = vpop.xlane.xlu0 %728
  %v730 = vmul.f32 %v726, %v717
  %v731 = vmul.f32 %v729, %v717
  %v732 = vadd.f32 %v730, 1e-05
  %v733 = vadd.f32 %v731, 1e-05
  %v734 = vrsqrt.pop %v732
  %v735 = vmul.f32 %v734, %v732
  %v736 = vmul.f32 %v735, %v734
  %v737 = vmul.f32 0.5, %v736
  %v738 = vsub.f32 1.5, %v737
  %v739 = vmul.f32 %v734, %v738
  %vm740 = vweird.f32 %v732
  %vm741 = vweird.f32 %v734
  %vm742 = vmor %vm740, %vm741
  %v743 = vsel %vm742, %v734, %v739
  %v744 = vrsqrt.pop %v733
  %v745 = vmul.f32 %v744, %v733
  %v746 = vmul.f32 %v745, %v744
  %v747 = vmul.f32 0.5, %v746
  %v748 = vsub.f32 1.5, %v747
  %v749 = vmul.f32 %v744, %v748
  %vm750 = vweird.f32 %v733
  %vm751 = vweird.f32 %v744
  %vm752 = vmor %vm750, %vm751
  %v753 = vsel %vm752, %v744, %v749
  %v754 = vmul.f32 %v720, %v743
  %v755 = vmul.f32 %v721, %v753
  %v757 = vperm.slane %v703, 0
  %v759 = vmul.f32 %v754, %v757
  %v760 = vmul.f32 %v755, %v757
  %v762 = vperm.slane %v704, 0
  %v764 = vadd.f32 %v759, %v762
  %v765 = vadd.f32 %v760, %v762
  %v766 = vpack.c.bf16 %v765, %v764
  %v767 = vld [vmem:[%s8] sm:$0xf]
  %v768 = vld [vmem:[%s8 + $0x4] sm:$0xf]
  %v769 = vld [vmem:[%s8 + $0x8] sm:$0xf]
  %v770 = vld [vmem:[%s8 + $0xc] sm:$0xf]
  %v771 = vld [vmem:[%s8 + $0x10] sm:$0xf]
  %v772 = vld [vmem:[%s8 + $0x14] sm:$0xf]
  %v773 = vld [vmem:[%s8 + $0x18] sm:$0xf]
  %v774 = vld [vmem:[%s8 + $0x1c] sm:$0xf]
  %v775 = vld [vmem:[%s9] sm:$0x1]
  %v777 = vperm.slane %v775, 0
  %v787 = vunpack.c.l.b16 %v767
  %v788 = vunpack.c.l.b16 %v768
  %v789 = vunpack.c.l.b16 %v769
  %v790 = vunpack.c.l.b16 %v770
  %v791 = vunpack.c.l.b16 %v771
  %v792 = vunpack.c.l.b16 %v772
  %v793 = vunpack.c.l.b16 %v773
  %v794 = vunpack.c.l.b16 %v774
  %v795 = vpack.c.b16 %v788, %v787
  %v796 = vpack.c.b16 %v790, %v789
  %v797 = vpack.c.b16 %v792, %v791
  %v798 = vpack.c.b16 %v794, %v793
  %v804 = vsel %vm111, %v766, 0
  %806 = vmatpush.bf16.msra.mxu0 0
  %807 = vmatpush.bf16.msra.mxu0 0
  %808 = vmatpush.bf16.msra.mxu0 0
  %809 = vmatpush.bf16.msra.mxu0 0
  %810 = vmatpush.bf16.msra.mxu0 %v798
  %811 = vmatpush.bf16.msra.mxu0 %v797
  %812 = vmatpush.bf16.msra.mxu0 %v796
  %813 = vmatpush.bf16.msra.mxu0 %v795
  %814 = vmatmul.bf16.gmra.mxu0 %v804
  %v815 = vpop.f32.mrf.mxu0
  %v816 = vadd.f32 %v777, %v815
  %v817 = vpop.f32.mrf.mxu0
  %v818 = vadd.f32 %v777, %v817
  %819 = vdwg.mxu0
  %v820 = vmax.f32 %v816, 0.0
  %v821 = vmax.f32 %v818, 0.0
  %v822 = vpack.c.bf16 %v821, %v820
  %v823 = vld [vmem:[%s10] sm:$0xf]
  %v824 = vld [vmem:[%s10 + $0x4] sm:$0xf]
  %v825 = vld [vmem:[%s10 + $0x8] sm:$0xf]
  %v826 = vld [vmem:[%s10 + $0xc] sm:$0xf]
  %v827 = vld [vmem:[%s10 + $0x10] sm:$0xf]
  %v828 = vld [vmem:[%s10 + $0x14] sm:$0xf]
  %v829 = vld [vmem:[%s10 + $0x18] sm:$0xf]
  %v830 = vld [vmem:[%s10 + $0x1c] sm:$0xf]
  %v831 = vld [vmem:[%s10 + $0x20] sm:$0xf]
  %v832 = vld [vmem:[%s10 + $0x24] sm:$0xf]
  %v833 = vld [vmem:[%s10 + $0x28] sm:$0xf]
  %v834 = vld [vmem:[%s10 + $0x2c] sm:$0xf]
  %v835 = vld [vmem:[%s10 + $0x30] sm:$0xf]
  %v836 = vld [vmem:[%s10 + $0x34] sm:$0xf]
  %v837 = vld [vmem:[%s10 + $0x38] sm:$0xf]
  %v838 = vld [vmem:[%s10 + $0x3c] sm:$0xf]
  %v839 = vld [vmem:[%s11] sm:$0x1]
  %v841 = vperm.slane %v839, 0
  %v859 = vunpack.c.l.b16 %v823
  %v860 = vunpack.c.l.b16 %v824
  %v861 = vunpack.c.l.b16 %v825
  %v862 = vunpack.c.l.b16 %v826
  %v863 = vunpack.c.l.b16 %v827
  %v864 = vunpack.c.l.b16 %v828
  %v865 = vunpack.c.l.b16 %v829
  %v866 = vunpack.c.l.b16 %v830
  %v867 = vunpack.c.l.b16 %v831
  %v868 = vunpack.c.l.b16 %v832
  %v869 = vunpack.c.l.b16 %v833
  %v870 = vunpack.c.l.b16 %v834
  %v871 = vunpack.c.l.b16 %v835
  %v872 = vunpack.c.l.b16 %v836
  %v873 = vunpack.c.l.b16 %v837
  %v874 = vunpack.c.l.b16 %v838
  %v875 = vpack.c.b16 %v860, %v859
  %v876 = vpack.c.b16 %v862, %v861
  %v877 = vpack.c.b16 %v864, %v863
  %v878 = vpack.c.b16 %v866, %v865
  %v879 = vpack.c.b16 %v868, %v867
  %v880 = vpack.c.b16 %v870, %v869
  %v881 = vpack.c.b16 %v872, %v871
  %v882 = vpack.c.b16 %v874, %v873
  %891 = vmatpush.bf16.msra.mxu0 %v882
  %892 = vmatpush.bf16.msra.mxu0 %v881
  %893 = vmatpush.bf16.msra.mxu0 %v880
  %894 = vmatpush.bf16.msra.mxu0 %v879
  %895 = vmatpush.bf16.msra.mxu0 %v878
  %896 = vmatpush.bf16.msra.mxu0 %v877
  %897 = vmatpush.bf16.msra.mxu0 %v876
  %898 = vmatpush.bf16.msra.mxu0 %v875
  %899 = vmatmul.bf16.gmra.mxu0 %v822
  %v900 = vpop.f32.mrf.mxu0
  %v901 = vadd.f32 %v841, %v900
  %v902 = vpop.f32.mrf.mxu0
  %v903 = vadd.f32 %v841, %v902
  %904 = vdwg.mxu0
  %v905 = vadd.f32 %v764, %v901
  %v906 = vadd.f32 %v765, %v903
  %v907 = vld [vmem:[%s12] sm:$0x1]
  %v908 = vld [vmem:[%s13] sm:$0x1]
  %v909 = vsel %vm111, %v905, 0.0
  %910 = vadd.xlane.f32.xlu0 %v909
  %v911 = vpop.xlane.xlu0 %910
  %v912 = vsel %vm111, %v906, 0.0
  %913 = vadd.xlane.f32.xlu0 %v912
  %v914 = vpop.xlane.xlu0 %913
  %v915 = vmul.f32 %v911, %v717
  %v916 = vmul.f32 %v914, %v717
  %v917 = vsub.f32 %v905, %v915
  %v918 = vsub.f32 %v906, %v916
  %v919 = vmul.f32 %v917, %v917
  %v920 = vmul.f32 %v918, %v918
  %v921 = vsel %vm111, %v919, 0.0
  %922 = vadd.xlane.f32.xlu0 %v921
  %v923 = vpop.xlane.xlu0 %922
  %v924 = vsel %vm111, %v920, 0.0
  %925 = vadd.xlane.f32.xlu0 %v924
  %v926 = vpop.xlane.xlu0 %925
  %v927 = vmul.f32 %v923, %v717
  %v928 = vmul.f32 %v926, %v717
  %v929 = vadd.f32 %v927, 1e-05
  %v930 = vadd.f32 %v928, 1e-05
  %v931 = vrsqrt.pop %v929
  %v932 = vmul.f32 %v931, %v929
  %v933 = vmul.f32 %v932, %v931
  %v934 = vmul.f32 0.5, %v933
  %v935 = vsub.f32 1.5, %v934
  %v936 = vmul.f32 %v931, %v935
  %vm937 = vweird.f32 %v929
  %vm938 = vweird.f32 %v931
  %vm939 = vmor %vm937, %vm938
  %v940 = vsel %vm939, %v931, %v936
  %v941 = vrsqrt.pop %v930
  %v942 = vmul.f32 %v941, %v930
  %v943 = vmul.f32 %v942, %v941
  %v944 = vmul.f32 0.5, %v943
  %v945 = vsub.f32 1.5, %v944
  %v946 = vmul.f32 %v941, %v945
  %vm947 = vweird.f32 %v930
  %vm948 = vweird.f32 %v941
  %vm949 = vmor %vm947, %vm948
  %v950 = vsel %vm949, %v941, %v946
  %v951 = vmul.f32 %v917, %v940
  %v952 = vmul.f32 %v918, %v950
  %v954 = vperm.slane %v907, 0
  %v956 = vmul.f32 %v951, %v954
  %v957 = vmul.f32 %v952, %v954
  %v959 = vperm.slane %v908, 0
  %v961 = vadd.f32 %v956, %v959
  %v962 = vadd.f32 %v957, %v959
  %963 = vst.msk [vmem:[%s16] sm:$0xff] %vm111, %v961
  %964 = vst.msk [vmem:[%s16 + $0x8] sm:$0xff] %vm111, %v962
  // Predicated region
  $region66: #{traj_transformer_forward.8} parent=0 // pred_check
    _
  $region67: #{traj_transformer_forward.8} parent=0 // pred_check_branch
    %966 = sbr.rel (0) target = $region69
  $region68: #{traj_transformer_forward.8} parent=0 // pred_region
    _
  $region69: #{traj_transformer_forward.8} parent=0 // pred_fallthru
    _
  // Predicated region
  $region70: #{traj_transformer_forward.8} parent=0 // pred_check
    _
  $region71: #{traj_transformer_forward.8} parent=0 // pred_check_branch
    %968 = sbr.rel (0) target = $region73
  $region72: #{traj_transformer_forward.8} parent=0 // pred_region
    _
  $region73: #{traj_transformer_forward.8} parent=0 // pred_fallthru
    _

// kernel: traj_transformer_forward.9
$region0: #{traj_transformer_forward.9}
  #allocation0 [shape = 'u32[]', space=smem, size = 0x4, offset = 0x4, fixed_abs, tag = 'smem constant byte address 0x4 - core index']
  #allocation1 [shape = 'u32[72,128]{1,0:T(1,128)}', space=vmem, size = 0x9000, scoped, tag = 'internal scratch']
  #allocation2 [shape = 'f32[16,64]{1,0:T(8,128)}', space=vmem, size = 0x2000, scoped, tag = 'scratch operand']
  %s0 = inlined_call_operand.vmem [shape: f32[2,8,64], index: 0, kind: input, shape index: {}]
  %s1 = inlined_call_operand.vmem [shape: f32[2,1,8], index: 1, kind: input, shape index: {}]
  %s2 = inlined_call_operand.vmem [shape: bf16[64,192], index: 2, kind: input, shape index: {}]
  %s3 = inlined_call_operand.vmem [shape: f32[1,192], index: 3, kind: input, shape index: {}]
  %s4 = inlined_call_operand.vmem [shape: bf16[64,64], index: 4, kind: input, shape index: {}]
  %s5 = inlined_call_operand.vmem [shape: f32[1,64], index: 5, kind: input, shape index: {}]
  %s6 = inlined_call_operand.vmem [shape: f32[1,64], index: 6, kind: input, shape index: {}]
  %s7 = inlined_call_operand.vmem [shape: f32[1,64], index: 7, kind: input, shape index: {}]
  %s8 = inlined_call_operand.vmem [shape: bf16[64,128], index: 8, kind: input, shape index: {}]
  %s9 = inlined_call_operand.vmem [shape: f32[1,128], index: 9, kind: input, shape index: {}]
  %s10 = inlined_call_operand.vmem [shape: bf16[128,64], index: 10, kind: input, shape index: {}]
  %s11 = inlined_call_operand.vmem [shape: f32[1,64], index: 11, kind: input, shape index: {}]
  %s12 = inlined_call_operand.vmem [shape: f32[1,64], index: 12, kind: input, shape index: {}]
  %s13 = inlined_call_operand.vmem [shape: f32[1,64], index: 13, kind: input, shape index: {}]
  %s14 = inlined_call_operand.vmem [shape: f32[1,64], index: 14, kind: input, shape index: {}]
  %s15 = inlined_call_operand.vmem [shape: f32[1,64], index: 15, kind: input, shape index: {}]
  %s16 = inlined_call_operand.vmem [shape: f32[2,8,64], index: 16, kind: output, shape index: {}]
  %s17 = sld [smem:[#allocation0]]
  $region74: #{traj_transformer_forward.9} parent=0
    _
  %s19 = ssub.s32 1, %s17
  %s20 = scalar_select 0, %s19, %s17
  // Predicated region
  $region2: #{traj_transformer_forward.9} parent=0 // pred_check
    _
  $region3: #{traj_transformer_forward.9} parent=0 // pred_check_branch
    %22 = sbr.rel (0) target = $region5
  $region4: #{traj_transformer_forward.9} parent=0 // pred_region
    _
  $region5: #{traj_transformer_forward.9} parent=0 // pred_fallthru
    _
  // Predicated region
  $region6: #{traj_transformer_forward.9} parent=0 // pred_check
    _
  $region7: #{traj_transformer_forward.9} parent=0 // pred_check_branch
    %24 = sbr.rel (0) target = $region9
  $region8: #{traj_transformer_forward.9} parent=0 // pred_region
    _
  $region9: #{traj_transformer_forward.9} parent=0 // pred_fallthru
    _
  // Predicated region
  $region10: #{traj_transformer_forward.9} parent=0 // pred_check
    _
  $region11: #{traj_transformer_forward.9} parent=0 // pred_check_branch
    %26 = sbr.rel (0) target = $region13
  $region12: #{traj_transformer_forward.9} parent=0 // pred_region
    _
  $region13: #{traj_transformer_forward.9} parent=0 // pred_fallthru
    _
  // Predicated region
  $region14: #{traj_transformer_forward.9} parent=0 // pred_check
    _
  $region15: #{traj_transformer_forward.9} parent=0 // pred_check_branch
    %28 = sbr.rel (0) target = $region17
  $region16: #{traj_transformer_forward.9} parent=0 // pred_region
    _
  $region17: #{traj_transformer_forward.9} parent=0 // pred_fallthru
    _
  // Predicated region
  $region18: #{traj_transformer_forward.9} parent=0 // pred_check
    _
  $region19: #{traj_transformer_forward.9} parent=0 // pred_check_branch
    %30 = sbr.rel (0) target = $region21
  $region20: #{traj_transformer_forward.9} parent=0 // pred_region
    _
  $region21: #{traj_transformer_forward.9} parent=0 // pred_fallthru
    _
  // Predicated region
  $region22: #{traj_transformer_forward.9} parent=0 // pred_check
    _
  $region23: #{traj_transformer_forward.9} parent=0 // pred_check_branch
    %32 = sbr.rel (0) target = $region25
  $region24: #{traj_transformer_forward.9} parent=0 // pred_region
    _
  $region25: #{traj_transformer_forward.9} parent=0 // pred_fallthru
    _
  // Predicated region
  $region26: #{traj_transformer_forward.9} parent=0 // pred_check
    _
  $region27: #{traj_transformer_forward.9} parent=0 // pred_check_branch
    %34 = sbr.rel (0) target = $region29
  $region28: #{traj_transformer_forward.9} parent=0 // pred_region
    _
  $region29: #{traj_transformer_forward.9} parent=0 // pred_fallthru
    _
  // Predicated region
  $region30: #{traj_transformer_forward.9} parent=0 // pred_check
    _
  $region31: #{traj_transformer_forward.9} parent=0 // pred_check_branch
    %36 = sbr.rel (0) target = $region33
  $region32: #{traj_transformer_forward.9} parent=0 // pred_region
    _
  $region33: #{traj_transformer_forward.9} parent=0 // pred_fallthru
    _
  // Predicated region
  $region34: #{traj_transformer_forward.9} parent=0 // pred_check
    _
  $region35: #{traj_transformer_forward.9} parent=0 // pred_check_branch
    %38 = sbr.rel (0) target = $region37
  $region36: #{traj_transformer_forward.9} parent=0 // pred_region
    _
  $region37: #{traj_transformer_forward.9} parent=0 // pred_fallthru
    _
  // Predicated region
  $region38: #{traj_transformer_forward.9} parent=0 // pred_check
    _
  $region39: #{traj_transformer_forward.9} parent=0 // pred_check_branch
    %40 = sbr.rel (0) target = $region41
  $region40: #{traj_transformer_forward.9} parent=0 // pred_region
    _
  $region41: #{traj_transformer_forward.9} parent=0 // pred_fallthru
    _
  // Predicated region
  $region42: #{traj_transformer_forward.9} parent=0 // pred_check
    _
  $region43: #{traj_transformer_forward.9} parent=0 // pred_check_branch
    %42 = sbr.rel (0) target = $region45
  $region44: #{traj_transformer_forward.9} parent=0 // pred_region
    _
  $region45: #{traj_transformer_forward.9} parent=0 // pred_fallthru
    _
  // Predicated region
  $region46: #{traj_transformer_forward.9} parent=0 // pred_check
    _
  $region47: #{traj_transformer_forward.9} parent=0 // pred_check_branch
    %44 = sbr.rel (0) target = $region49
  $region48: #{traj_transformer_forward.9} parent=0 // pred_region
    _
  $region49: #{traj_transformer_forward.9} parent=0 // pred_fallthru
    _
  // Predicated region
  $region50: #{traj_transformer_forward.9} parent=0 // pred_check
    _
  $region51: #{traj_transformer_forward.9} parent=0 // pred_check_branch
    %46 = sbr.rel (0) target = $region53
  $region52: #{traj_transformer_forward.9} parent=0 // pred_region
    _
  $region53: #{traj_transformer_forward.9} parent=0 // pred_fallthru
    _
  // Predicated region
  $region54: #{traj_transformer_forward.9} parent=0 // pred_check
    _
  $region55: #{traj_transformer_forward.9} parent=0 // pred_check_branch
    %48 = sbr.rel (0) target = $region57
  $region56: #{traj_transformer_forward.9} parent=0 // pred_region
    _
  $region57: #{traj_transformer_forward.9} parent=0 // pred_fallthru
    _
  // Predicated region
  $region58: #{traj_transformer_forward.9} parent=0 // pred_check
    _
  $region59: #{traj_transformer_forward.9} parent=0 // pred_check_branch
    %50 = sbr.rel (0) target = $region61
  $region60: #{traj_transformer_forward.9} parent=0 // pred_region
    _
  $region61: #{traj_transformer_forward.9} parent=0 // pred_fallthru
    _
  // Predicated region
  $region62: #{traj_transformer_forward.9} parent=0 // pred_check
    _
  $region63: #{traj_transformer_forward.9} parent=0 // pred_check_branch
    %52 = sbr.rel (0) target = $region65
  $region64: #{traj_transformer_forward.9} parent=0 // pred_region
    _
  $region65: #{traj_transformer_forward.9} parent=0 // pred_fallthru
    _
  %v54 = vld [vmem:[%s0] sm:$0xff]
  %v55 = vld [vmem:[%s0 + $0x8] sm:$0xff]
  %v56 = vpack.c.bf16 %v55, %v54
  %v57 = vld [vmem:[%s2] sm:$0xff]
  %v58 = vld [vmem:[%s2 + $0x8] sm:$0xff]
  %v59 = vld [vmem:[%s2 + $0x10] sm:$0xff]
  %v60 = vld [vmem:[%s2 + $0x18] sm:$0xff]
  %v61 = vld [vmem:[%s2 + $0x20] sm:$0xff]
  %v62 = vld [vmem:[%s2 + $0x28] sm:$0xff]
  %v63 = vld [vmem:[%s2 + $0x30] sm:$0xff]
  %v64 = vld [vmem:[%s2 + $0x38] sm:$0xff]
  %v65 = vld [vmem:[%s3] sm:$0x3]
  %v67 = vperm.slane %v65, 0
  %v68 = vperm.slane %v65, 1
  %v79 = vunpack.c.l.b16 %v57
  %v80 = vunpack.c.h.b16 %v57
  %v81 = vunpack.c.l.b16 %v58
  %v82 = vunpack.c.h.b16 %v58
  %v83 = vunpack.c.l.b16 %v59
  %v84 = vunpack.c.h.b16 %v59
  %v85 = vunpack.c.l.b16 %v60
  %v86 = vunpack.c.h.b16 %v60
  %v87 = vunpack.c.l.b16 %v61
  %v88 = vunpack.c.h.b16 %v61
  %v89 = vunpack.c.l.b16 %v62
  %v90 = vunpack.c.h.b16 %v62
  %v91 = vunpack.c.l.b16 %v63
  %v92 = vunpack.c.h.b16 %v63
  %v93 = vunpack.c.l.b16 %v64
  %v94 = vunpack.c.h.b16 %v64
  %v95 = vpack.c.b16 %v81, %v79
  %v96 = vpack.c.b16 %v82, %v80
  %v97 = vpack.c.b16 %v85, %v83
  %v98 = vpack.c.b16 %v86, %v84
  %v99 = vpack.c.b16 %v89, %v87
  %v100 = vpack.c.b16 %v90, %v88
  %v101 = vpack.c.b16 %v93, %v91
  %v102 = vpack.c.b16 %v94, %v92
  %vm111 = vcmask 523264
  %v113 = vsel %vm111, %v56, 0
  %115 = vmatpush.bf16.msra.mxu0 0
  %116 = vmatpush.bf16.msra.mxu0 0
  %117 = vmatpush.bf16.msra.mxu0 0
  %118 = vmatpush.bf16.msra.mxu0 0
  %119 = vmatpush.bf16.msra.mxu0 %v101
  %120 = vmatpush.bf16.msra.mxu0 %v99
  %121 = vmatpush.bf16.msra.mxu0 %v97
  %122 = vmatpush.bf16.msra.mxu0 %v95
  %123 = vmatmul.bf16.gmra.mxu0 %v113
  %v124 = vpop.f32.mrf.mxu0
  %v125 = vadd.f32 %v67, %v124
  %v126 = vpop.f32.mrf.mxu0
  %v127 = vadd.f32 %v67, %v126
  %128 = vdwg.mxu0
  %129 = vmatpush.bf16.msra.mxu0 0
  %130 = vmatpush.bf16.msra.mxu0 0
  %131 = vmatpush.bf16.msra.mxu0 0
  %132 = vmatpush.bf16.msra.mxu0 0
  %133 = vmatpush.bf16.msra.mxu0 %v102
  %134 = vmatpush.bf16.msra.mxu0 %v100
  %135 = vmatpush.bf16.msra.mxu0 %v98
  %136 = vmatpush.bf16.msra.mxu0 %v96
  %137 = vmatmul.bf16.gmra.mxu0 %v113
  %v138 = vpop.f32.mrf.mxu0
  %v139 = vadd.f32 %v68, %v138
  %v140 = vpop.f32.mrf.mxu0
  %v141 = vadd.f32 %v68, %v140
  %142 = vdwg.mxu0
  %v143 = vld [vmem:[%s1] sm:$0x1]
  %v144 = vld [vmem:[%s1 + $0x1] sm:$0x1]
  %v145 = vpack.c.bf16 %v125, %v125
  %v146 = vpack.c.bf16 %v127, %v127
  %v149 = vperm.slane %v143, 0
  %v150 = vperm.slane %v144, 0
  %v154 = vunpack.c.l.b16 %v145
  %v155 = vpack.c.b16 %v154, %v154
  %156 = vrot.lane.b32.xlu0 %v155, 64
  %v157 = vpop.permute.xlu0 %156
  %vm158 = vcmask 130048
  %v160 = vsel %vm158, %v145, 0
  %v163 = vsel %vm158, %v157, 0
  %165 = vmatpush.bf16.xpose.msra.mxu0 0
  %166 = vmatpush.bf16.xpose.msra.mxu0 0
  %167 = vmatpush.bf16.xpose.msra.mxu0 0
  %168 = vmatpush.bf16.xpose.msra.mxu0 0
  %169 = vmatpush.bf16.xpose.msra.mxu0 0
  %170 = vmatpush.bf16.xpose.msra.mxu0 0
  %171 = vmatpush.bf16.xpose.msra.mxu0 0
  %172 = vmatpush.bf16.xpose.msra.mxu0 %v163
  %173 = vmatmul.bf16.gmra.mxu0 %v160
  %v174 = vpop.f32.mrf.mxu0
  %v175 = vadd.f32 %v149, %v174
  %v176 = vpop.f32.mrf.mxu0
  %177 = vdwg.mxu0
  %v179 = vunpack.c.l.b16 %v146
  %v180 = vpack.c.b16 %v179, %v179
  %181 = vrot.lane.b32.xlu0 %v180, 64
  %v182 = vpop.permute.xlu0 %181
  %v184 = vsel %vm158, %v146, 0
  %v187 = vsel %vm158, %v182, 0
  %189 = vmatpush.bf16.xpose.msra.mxu0 0
  %190 = vmatpush.bf16.xpose.msra.mxu0 0
  %191 = vmatpush.bf16.xpose.msra.mxu0 0
  %192 = vmatpush.bf16.xpose.msra.mxu0 0
  %193 = vmatpush.bf16.xpose.msra.mxu0 0
  %194 = vmatpush.bf16.xpose.msra.mxu0 0
  %195 = vmatpush.bf16.xpose.msra.mxu0 0
  %196 = vmatpush.bf16.xpose.msra.mxu0 %v187
  %197 = vmatmul.bf16.gmra.mxu0 %v184
  %v198 = vpop.f32.mrf.mxu0
  %v199 = vadd.f32 %v150, %v198
  %v200 = vpop.f32.mrf.mxu0
  %201 = vdwg.mxu0
  %vm202 = vcmask 64512
  %v203 = vsel %vm202, %v175, -inf
  %204 = vmax.xlane.f32.xlu0 %v203
  %v205 = vpop.xlane.xlu0 %204
  %v206 = vsel %vm202, %v199, -inf
  %207 = vmax.xlane.f32.xlu0 %v206
  %v208 = vpop.xlane.xlu0 %207
  %v209 = vsub.f32 %v175, %v205
  %v210 = vsub.f32 %v199, %v208
  %v211 = vmul.f32 %v209, 1.442695
  %v212 = vpow.pop %v211
  %v213 = vmul.f32 %v210, 1.442695
  %v214 = vpow.pop %v213
  %v215 = vsel %vm202, %v212, 0.0
  %216 = vadd.xlane.f32.xlu0 %v215
  %v217 = vpop.xlane.xlu0 %216
  %v218 = vsel %vm202, %v214, 0.0
  %219 = vadd.xlane.f32.xlu0 %v218
  %v220 = vpop.xlane.xlu0 %219
  %v221 = vrcp.pop %v217
  %v222 = vrcp.pop %v220
  %v223 = vmul.f32 %v212, %v221
  %v224 = vmul.f32 %v214, %v222
  %v225 = vpack.c.bf16 %v223, %v223
  %v226 = vpack.c.bf16 %v224, %v224
  %v227 = vpack.c.bf16 %v139, %v139
  %v228 = vpack.c.bf16 %v141, %v141
  %v230 = vsel %vm202, %v225, 0
  %vm232 = vcmask 1043456
  %v234 = vsel %vm232, %v227, 0
  %236 = vmatpush.bf16.msra.mxu0 0
  %237 = vmatpush.bf16.msra.mxu0 0
  %238 = vmatpush.bf16.msra.mxu0 0
  %239 = vmatpush.bf16.msra.mxu0 0
  %240 = vmatpush.bf16.msra.mxu0 0
  %241 = vmatpush.bf16.msra.mxu0 0
  %242 = vmatpush.bf16.msra.mxu0 0
  %243 = vmatpush.bf16.msra.mxu0 %v234
  %244 = vmatmul.bf16.gmra.mxu0 %v230
  %v245 = vpop.f32.mrf.mxu0
  %v246 = vadd.f32 0.0, %v245
  %v247 = vpop.f32.mrf.mxu0
  %248 = vdwg.mxu0
  %v250 = vsel %vm202, %v226, 0
  %v253 = vsel %vm232, %v228, 0
  %255 = vmatpush.bf16.msra.mxu0 0
  %256 = vmatpush.bf16.msra.mxu0 0
  %257 = vmatpush.bf16.msra.mxu0 0
  %258 = vmatpush.bf16.msra.mxu0 0
  %259 = vmatpush.bf16.msra.mxu0 0
  %260 = vmatpush.bf16.msra.mxu0 0
  %261 = vmatpush.bf16.msra.mxu0 0
  %262 = vmatpush.bf16.msra.mxu0 %v253
  %263 = vmatmul.bf16.gmra.mxu0 %v250
  %v264 = vpop.f32.mrf.mxu0
  %v265 = vadd.f32 0.0, %v264
  %v266 = vpop.f32.mrf.mxu0
  %267 = vdwg.mxu0
  %268 = vst.msk [vmem:[#allocation2] sm:$0xff] %vm158, %v246
  %269 = vst.msk [vmem:[#allocation2 + $0x8] sm:$0xff] %vm158, %v265
  %270 = vrot.lane.b32.xlu0 %v155, 112
  %v271 = vpop.permute.xlu0 %270
  %272 = vrot.lane.b32.xlu0 %v155, 48
  %v273 = vpop.permute.xlu0 %272
  %v275 = vsel %vm158, %v271, 0
  %v278 = vsel %vm158, %v273, 0
  %280 = vmatpush.bf16.xpose.msra.mxu0 0
  %281 = vmatpush.bf16.xpose.msra.mxu0 0
  %282 = vmatpush.bf16.xpose.msra.mxu0 0
  %283 = vmatpush.bf16.xpose.msra.mxu0 0
  %284 = vmatpush.bf16.xpose.msra.mxu0 0
  %285 = vmatpush.bf16.xpose.msra.mxu0 0
  %286 = vmatpush.bf16.xpose.msra.mxu0 0
  %287 = vmatpush.bf16.xpose.msra.mxu0 %v278
  %288 = vmatmul.bf16.gmra.mxu0 %v275
  %v289 = vpop.f32.mrf.mxu0
  %v290 = vadd.f32 %v149, %v289
  %v291 = vpop.f32.mrf.mxu0
  %292 = vdwg.mxu0
  %293 = vrot.lane.b32.xlu0 %v180, 112
  %v294 = vpop.permute.xlu0 %293
  %295 = vrot.lane.b32.xlu0 %v180, 48
  %v296 = vpop.permute.xlu0 %295
  %v298 = vsel %vm158, %v294, 0
  %v301 = vsel %vm158, %v296, 0
  %303 = vmatpush.bf16.xpose.msra.mxu0 0
  %304 = vmatpush.bf16.xpose.msra.mxu0 0
  %305 = vmatpush.bf16.xpose.msra.mxu0 0
  %306 = vmatpush.bf16.xpose.msra.mxu0 0
  %307 = vmatpush.bf16.xpose.msra.mxu0 0
  %308 = vmatpush.bf16.xpose.msra.mxu0 0
  %309 = vmatpush.bf16.xpose.msra.mxu0 0
  %310 = vmatpush.bf16.xpose.msra.mxu0 %v301
  %311 = vmatmul.bf16.gmra.mxu0 %v298
  %v312 = vpop.f32.mrf.mxu0
  %v313 = vadd.f32 %v150, %v312
  %v314 = vpop.f32.mrf.mxu0
  %315 = vdwg.mxu0
  %v316 = vsel %vm202, %v290, -inf
  %317 = vmax.xlane.f32.xlu0 %v316
  %v318 = vpop.xlane.xlu0 %317
  %v319 = vsel %vm202, %v313, -inf
  %320 = vmax.xlane.f32.xlu0 %v319
  %v321 = vpop.xlane.xlu0 %320
  %v322 = vsub.f32 %v290, %v318
  %v323 = vsub.f32 %v313, %v321
  %v324 = vmul.f32 %v322, 1.442695
  %v325 = vpow.pop %v324
  %v326 = vmul.f32 %v323, 1.442695
  %v327 = vpow.pop %v326
  %v328 = vsel %vm202, %v325, 0.0
  %329 = vadd.xlane.f32.xlu0 %v328
  %v330 = vpop.xlane.xlu0 %329
  %v331 = vsel %vm202, %v327, 0.0
  %332 = vadd.xlane.f32.xlu0 %v331
  %v333 = vpop.xlane.xlu0 %332
  %v334 = vrcp.pop %v330
  %v335 = vrcp.pop %v333
  %v336 = vmul.f32 %v325, %v334
  %v337 = vmul.f32 %v327, %v335
  %v338 = vpack.c.bf16 %v336, %v336
  %v339 = vpack.c.bf16 %v337, %v337
  %v341 = vunpack.c.l.b16 %v227
  %v342 = vpack.c.b16 %v341, %v341
  %343 = vrot.lane.b32.xlu0 %v342, 112
  %v344 = vpop.permute.xlu0 %343
  %v346 = vsel %vm202, %v338, 0
  %v349 = vsel %vm232, %v344, 0
  %351 = vmatpush.bf16.msra.mxu0 0
  %352 = vmatpush.bf16.msra.mxu0 0
  %353 = vmatpush.bf16.msra.mxu0 0
  %354 = vmatpush.bf16.msra.mxu0 0
  %355 = vmatpush.bf16.msra.mxu0 0
  %356 = vmatpush.bf16.msra.mxu0 0
  %357 = vmatpush.bf16.msra.mxu0 0
  %358 = vmatpush.bf16.msra.mxu0 %v349
  %359 = vmatmul.bf16.gmra.mxu0 %v346
  %v360 = vpop.f32.mrf.mxu0
  %v361 = vadd.f32 0.0, %v360
  %v362 = vpop.f32.mrf.mxu0
  %363 = vdwg.mxu0
  %v365 = vunpack.c.l.b16 %v228
  %v366 = vpack.c.b16 %v365, %v365
  %367 = vrot.lane.b32.xlu0 %v366, 112
  %v368 = vpop.permute.xlu0 %367
  %v370 = vsel %vm202, %v339, 0
  %v373 = vsel %vm232, %v368, 0
  %375 = vmatpush.bf16.msra.mxu0 0
  %376 = vmatpush.bf16.msra.mxu0 0
  %377 = vmatpush.bf16.msra.mxu0 0
  %378 = vmatpush.bf16.msra.mxu0 0
  %379 = vmatpush.bf16.msra.mxu0 0
  %380 = vmatpush.bf16.msra.mxu0 0
  %381 = vmatpush.bf16.msra.mxu0 0
  %382 = vmatpush.bf16.msra.mxu0 %v373
  %383 = vmatmul.bf16.gmra.mxu0 %v370
  %v384 = vpop.f32.mrf.mxu0
  %v385 = vadd.f32 0.0, %v384
  %v386 = vpop.f32.mrf.mxu0
  %387 = vdwg.mxu0
  %390 = vrot.lane.b32.xlu0 %v361, 16
  %v391 = vpop.permute.xlu0 %390
  %392 = vrot.lane.b32.xlu0 %v385, 16
  %v393 = vpop.permute.xlu0 %392
  %vm396 = vcmask 261248
  %397 = vst.msk [vmem:[#allocation2] sm:$0xff] %vm396, %v391
  %398 = vst.msk [vmem:[#allocation2 + $0x8] sm:$0xff] %vm396, %v393
  %399 = vrot.lane.b32.xlu0 %v155, 96
  %v400 = vpop.permute.xlu0 %399
  %401 = vrot.lane.b32.xlu0 %v155, 32
  %v402 = vpop.permute.xlu0 %401
  %v404 = vsel %vm158, %v400, 0
  %v407 = vsel %vm158, %v402, 0
  %409 = vmatpush.bf16.xpose.msra.mxu0 0
  %410 = vmatpush.bf16.xpose.msra.mxu0 0
  %411 = vmatpush.bf16.xpose.msra.mxu0 0
  %412 = vmatpush.bf16.xpose.msra.mxu0 0
  %413 = vmatpush.bf16.xpose.msra.mxu0 0
  %414 = vmatpush.bf16.xpose.msra.mxu0 0
  %415 = vmatpush.bf16.xpose.msra.mxu0 0
  %416 = vmatpush.bf16.xpose.msra.mxu0 %v407
  %417 = vmatmul.bf16.gmra.mxu0 %v404
  %v418 = vpop.f32.mrf.mxu0
  %v419 = vadd.f32 %v149, %v418
  %v420 = vpop.f32.mrf.mxu0
  %421 = vdwg.mxu0
  %422 = vrot.lane.b32.xlu0 %v180, 96
  %v423 = vpop.permute.xlu0 %422
  %424 = vrot.lane.b32.xlu0 %v180, 32
  %v425 = vpop.permute.xlu0 %424
  %v427 = vsel %vm158, %v423, 0
  %v430 = vsel %vm158, %v425, 0
  %432 = vmatpush.bf16.xpose.msra.mxu0 0
  %433 = vmatpush.bf16.xpose.msra.mxu0 0
  %434 = vmatpush.bf16.xpose.msra.mxu0 0
  %435 = vmatpush.bf16.xpose.msra.mxu0 0
  %436 = vmatpush.bf16.xpose.msra.mxu0 0
  %437 = vmatpush.bf16.xpose.msra.mxu0 0
  %438 = vmatpush.bf16.xpose.msra.mxu0 0
  %439 = vmatpush.bf16.xpose.msra.mxu0 %v430
  %440 = vmatmul.bf16.gmra.mxu0 %v427
  %v441 = vpop.f32.mrf.mxu0
  %v442 = vadd.f32 %v150, %v441
  %v443 = vpop.f32.mrf.mxu0
  %444 = vdwg.mxu0
  %v445 = vsel %vm202, %v419, -inf
  %446 = vmax.xlane.f32.xlu0 %v445
  %v447 = vpop.xlane.xlu0 %446
  %v448 = vsel %vm202, %v442, -inf
  %449 = vmax.xlane.f32.xlu0 %v448
  %v450 = vpop.xlane.xlu0 %449
  %v451 = vsub.f32 %v419, %v447
  %v452 = vsub.f32 %v442, %v450
  %v453 = vmul.f32 %v451, 1.442695
  %v454 = vpow.pop %v453
  %v455 = vmul.f32 %v452, 1.442695
  %v456 = vpow.pop %v455
  %v457 = vsel %vm202, %v454, 0.0
  %458 = vadd.xlane.f32.xlu0 %v457
  %v459 = vpop.xlane.xlu0 %458
  %v460 = vsel %vm202, %v456, 0.0
  %461 = vadd.xlane.f32.xlu0 %v460
  %v462 = vpop.xlane.xlu0 %461
  %v463 = vrcp.pop %v459
  %v464 = vrcp.pop %v462
  %v465 = vmul.f32 %v454, %v463
  %v466 = vmul.f32 %v456, %v464
  %v467 = vpack.c.bf16 %v465, %v465
  %v468 = vpack.c.bf16 %v466, %v466
  %469 = vrot.lane.b32.xlu0 %v342, 96
  %v470 = vpop.permute.xlu0 %469
  %v472 = vsel %vm202, %v467, 0
  %v475 = vsel %vm232, %v470, 0
  %477 = vmatpush.bf16.msra.mxu0 0
  %478 = vmatpush.bf16.msra.mxu0 0
  %479 = vmatpush.bf16.msra.mxu0 0
  %480 = vmatpush.bf16.msra.mxu0 0
  %481 = vmatpush.bf16.msra.mxu0 0
  %482 = vmatpush.bf16.msra.mxu0 0
  %483 = vmatpush.bf16.msra.mxu0 0
  %484 = vmatpush.bf16.msra.mxu0 %v475
  %485 = vmatmul.bf16.gmra.mxu0 %v472
  %v486 = vpop.f32.mrf.mxu0
  %v487 = vadd.f32 0.0, %v486
  %v488 = vpop.f32.mrf.mxu0
  %489 = vdwg.mxu0
  %490 = vrot.lane.b32.xlu0 %v366, 96
  %v491 = vpop.permute.xlu0 %490
  %v493 = vsel %vm202, %v468, 0
  %v496 = vsel %vm232, %v491, 0
  %498 = vmatpush.bf16.msra.mxu0 0
  %499 = vmatpush.bf16.msra.mxu0 0
  %500 = vmatpush.bf16.msra.mxu0 0
  %501 = vmatpush.bf16.msra.mxu0 0
  %502 = vmatpush.bf16.msra.mxu0 0
  %503 = vmatpush.bf16.msra.mxu0 0
  %504 = vmatpush.bf16.msra.mxu0 0
  %505 = vmatpush.bf16.msra.mxu0 %v496
  %506 = vmatmul.bf16.gmra.mxu0 %v493
  %v507 = vpop.f32.mrf.mxu0
  %v508 = vadd.f32 0.0, %v507
  %v509 = vpop.f32.mrf.mxu0
  %510 = vdwg.mxu0
  %513 = vrot.lane.b32.xlu0 %v487, 32
  %v514 = vpop.permute.xlu0 %513
  %515 = vrot.lane.b32.xlu0 %v508, 32
  %v516 = vpop.permute.xlu0 %515
  %vm519 = vcmask 392448
  %520 = vst.msk [vmem:[#allocation2] sm:$0xff] %vm519, %v514
  %521 = vst.msk [vmem:[#allocation2 + $0x8] sm:$0xff] %vm519, %v516
  %522 = vrot.lane.b32.xlu0 %v155, 80
  %v523 = vpop.permute.xlu0 %522
  %524 = vrot.lane.b32.xlu0 %v155, 16
  %v525 = vpop.permute.xlu0 %524
  %v527 = vsel %vm158, %v523, 0
  %v530 = vsel %vm158, %v525, 0
  %532 = vmatpush.bf16.xpose.msra.mxu0 0
  %533 = vmatpush.bf16.xpose.msra.mxu0 0
  %534 = vmatpush.bf16.xpose.msra.mxu0 0
  %535 = vmatpush.bf16.xpose.msra.mxu0 0
  %536 = vmatpush.bf16.xpose.msra.mxu0 0
  %537 = vmatpush.bf16.xpose.msra.mxu0 0
  %538 = vmatpush.bf16.xpose.msra.mxu0 0
  %539 = vmatpush.bf16.xpose.msra.mxu0 %v530
  %540 = vmatmul.bf16.gmra.mxu0 %v527
  %v541 = vpop.f32.mrf.mxu0
  %v542 = vadd.f32 %v149, %v541
  %v543 = vpop.f32.mrf.mxu0
  %544 = vdwg.mxu0
  %545 = vrot.lane.b32.xlu0 %v180, 80
  %v546 = vpop.permute.xlu0 %545
  %547 = vrot.lane.b32.xlu0 %v180, 16
  %v548 = vpop.permute.xlu0 %547
  %v550 = vsel %vm158, %v546, 0
  %v553 = vsel %vm158, %v548, 0
  %555 = vmatpush.bf16.xpose.msra.mxu0 0
  %556 = vmatpush.bf16.xpose.msra.mxu0 0
  %557 = vmatpush.bf16.xpose.msra.mxu0 0
  %558 = vmatpush.bf16.xpose.msra.mxu0 0
  %559 = vmatpush.bf16.xpose.msra.mxu0 0
  %560 = vmatpush.bf16.xpose.msra.mxu0 0
  %561 = vmatpush.bf16.xpose.msra.mxu0 0
  %562 = vmatpush.bf16.xpose.msra.mxu0 %v553
  %563 = vmatmul.bf16.gmra.mxu0 %v550
  %v564 = vpop.f32.mrf.mxu0
  %v565 = vadd.f32 %v150, %v564
  %v566 = vpop.f32.mrf.mxu0
  %567 = vdwg.mxu0
  %v568 = vsel %vm202, %v542, -inf
  %569 = vmax.xlane.f32.xlu0 %v568
  %v570 = vpop.xlane.xlu0 %569
  %v571 = vsel %vm202, %v565, -inf
  %572 = vmax.xlane.f32.xlu0 %v571
  %v573 = vpop.xlane.xlu0 %572
  %v574 = vsub.f32 %v542, %v570
  %v575 = vsub.f32 %v565, %v573
  %v576 = vmul.f32 %v574, 1.442695
  %v577 = vpow.pop %v576
  %v578 = vmul.f32 %v575, 1.442695
  %v579 = vpow.pop %v578
  %v580 = vsel %vm202, %v577, 0.0
  %581 = vadd.xlane.f32.xlu0 %v580
  %v582 = vpop.xlane.xlu0 %581
  %v583 = vsel %vm202, %v579, 0.0
  %584 = vadd.xlane.f32.xlu0 %v583
  %v585 = vpop.xlane.xlu0 %584
  %v586 = vrcp.pop %v582
  %v587 = vrcp.pop %v585
  %v588 = vmul.f32 %v577, %v586
  %v589 = vmul.f32 %v579, %v587
  %v590 = vpack.c.bf16 %v588, %v588
  %v591 = vpack.c.bf16 %v589, %v589
  %592 = vrot.lane.b32.xlu0 %v342, 80
  %v593 = vpop.permute.xlu0 %592
  %v595 = vsel %vm202, %v590, 0
  %v598 = vsel %vm232, %v593, 0
  %600 = vmatpush.bf16.msra.mxu0 0
  %601 = vmatpush.bf16.msra.mxu0 0
  %602 = vmatpush.bf16.msra.mxu0 0
  %603 = vmatpush.bf16.msra.mxu0 0
  %604 = vmatpush.bf16.msra.mxu0 0
  %605 = vmatpush.bf16.msra.mxu0 0
  %606 = vmatpush.bf16.msra.mxu0 0
  %607 = vmatpush.bf16.msra.mxu0 %v598
  %608 = vmatmul.bf16.gmra.mxu0 %v595
  %v609 = vpop.f32.mrf.mxu0
  %v610 = vadd.f32 0.0, %v609
  %v611 = vpop.f32.mrf.mxu0
  %612 = vdwg.mxu0
  %613 = vrot.lane.b32.xlu0 %v366, 80
  %v614 = vpop.permute.xlu0 %613
  %v616 = vsel %vm202, %v591, 0
  %v619 = vsel %vm232, %v614, 0
  %621 = vmatpush.bf16.msra.mxu0 0
  %622 = vmatpush.bf16.msra.mxu0 0
  %623 = vmatpush.bf16.msra.mxu0 0
  %624 = vmatpush.bf16.msra.mxu0 0
  %625 = vmatpush.bf16.msra.mxu0 0
  %626 = vmatpush.bf16.msra.mxu0 0
  %627 = vmatpush.bf16.msra.mxu0 0
  %628 = vmatpush.bf16.msra.mxu0 %v619
  %629 = vmatmul.bf16.gmra.mxu0 %v616
  %v630 = vpop.f32.mrf.mxu0
  %v631 = vadd.f32 0.0, %v630
  %v632 = vpop.f32.mrf.mxu0
  %633 = vdwg.mxu0
  %636 = vrot.lane.b32.xlu0 %v610, 48
  %v637 = vpop.permute.xlu0 %636
  %638 = vrot.lane.b32.xlu0 %v631, 48
  %v639 = vpop.permute.xlu0 %638
  %vm642 = vcmask 523648
  %643 = vst.msk [vmem:[#allocation2] sm:$0xff] %vm642, %v637
  %644 = vst.msk [vmem:[#allocation2 + $0x8] sm:$0xff] %vm642, %v639
  %v645 = vld [vmem:[#allocation2] sm:$0xff]
  %v646 = vld [vmem:[#allocation2 + $0x8] sm:$0xff]
  %v647 = vpack.c.bf16 %v646, %v645
  %v648 = vld [vmem:[%s4] sm:$0xf]
  %v649 = vld [vmem:[%s4 + $0x4] sm:$0xf]
  %v650 = vld [vmem:[%s4 + $0x8] sm:$0xf]
  %v651 = vld [vmem:[%s4 + $0xc] sm:$0xf]
  %v652 = vld [vmem:[%s4 + $0x10] sm:$0xf]
  %v653 = vld [vmem:[%s4 + $0x14] sm:$0xf]
  %v654 = vld [vmem:[%s4 + $0x18] sm:$0xf]
  %v655 = vld [vmem:[%s4 + $0x1c] sm:$0xf]
  %v656 = vld [vmem:[%s5] sm:$0x1]
  %v658 = vperm.slane %v656, 0
  %v668 = vunpack.c.l.b16 %v648
  %v669 = vunpack.c.l.b16 %v649
  %v670 = vunpack.c.l.b16 %v650
  %v671 = vunpack.c.l.b16 %v651
  %v672 = vunpack.c.l.b16 %v652
  %v673 = vunpack.c.l.b16 %v653
  %v674 = vunpack.c.l.b16 %v654
  %v675 = vunpack.c.l.b16 %v655
  %v676 = vpack.c.b16 %v669, %v668
  %v677 = vpack.c.b16 %v671, %v670
  %v678 = vpack.c.b16 %v673, %v672
  %v679 = vpack.c.b16 %v675, %v674
  %v685 = vsel %vm111, %v647, 0
  %687 = vmatpush.bf16.msra.mxu0 0
  %688 = vmatpush.bf16.msra.mxu0 0
  %689 = vmatpush.bf16.msra.mxu0 0
  %690 = vmatpush.bf16.msra.mxu0 0
  %691 = vmatpush.bf16.msra.mxu0 %v679
  %692 = vmatpush.bf16.msra.mxu0 %v678
  %693 = vmatpush.bf16.msra.mxu0 %v677
  %694 = vmatpush.bf16.msra.mxu0 %v676
  %695 = vmatmul.bf16.gmra.mxu0 %v685
  %v696 = vpop.f32.mrf.mxu0
  %v697 = vadd.f32 %v658, %v696
  %v698 = vpop.f32.mrf.mxu0
  %v699 = vadd.f32 %v658, %v698
  %700 = vdwg.mxu0
  %v701 = vadd.f32 %v54, %v697
  %v702 = vadd.f32 %v55, %v699
  %v703 = vld [vmem:[%s6] sm:$0x1]
  %v704 = vld [vmem:[%s7] sm:$0x1]
  %v705 = vsel %vm111, %v701, 0.0
  %706 = vadd.xlane.f32.xlu0 %v705
  %v707 = vpop.xlane.xlu0 %706
  %v708 = vsel %vm111, %v702, 0.0
  %709 = vadd.xlane.f32.xlu0 %v708
  %v710 = vpop.xlane.xlu0 %709
  %v711 = vrcp.pop 64.0
  %v712 = vmul.f32 64.0, %v711
  %v713 = vsub.f32 1.0, %v712
  %v714 = vmul.f32 %v711, %v713
  %v715 = vadd.f32 %v711, %v714
  %vm716 = vweird.f32 %v711
  %v717 = vsel %vm716, %v711, %v715
  %v718 = vmul.f32 %v707, %v717
  %v719 = vmul.f32 %v710, %v717
  %v720 = vsub.f32 %v701, %v718
  %v721 = vsub.f32 %v702, %v719
  %v722 = vmul.f32 %v720, %v720
  %v723 = vmul.f32 %v721, %v721
  %v724 = vsel %vm111, %v722, 0.0
  %725 = vadd.xlane.f32.xlu0 %v724
  %v726 = vpop.xlane.xlu0 %725
  %v727 = vsel %vm111, %v723, 0.0
  %728 = vadd.xlane.f32.xlu0 %v727
  %v729 = vpop.xlane.xlu0 %728
  %v730 = vmul.f32 %v726, %v717
  %v731 = vmul.f32 %v729, %v717
  %v732 = vadd.f32 %v730, 1e-05
  %v733 = vadd.f32 %v731, 1e-05
  %v734 = vrsqrt.pop %v732
  %v735 = vmul.f32 %v734, %v732
  %v736 = vmul.f32 %v735, %v734
  %v737 = vmul.f32 0.5, %v736
  %v738 = vsub.f32 1.5, %v737
  %v739 = vmul.f32 %v734, %v738
  %vm740 = vweird.f32 %v732
  %vm741 = vweird.f32 %v734
  %vm742 = vmor %vm740, %vm741
  %v743 = vsel %vm742, %v734, %v739
  %v744 = vrsqrt.pop %v733
  %v745 = vmul.f32 %v744, %v733
  %v746 = vmul.f32 %v745, %v744
  %v747 = vmul.f32 0.5, %v746
  %v748 = vsub.f32 1.5, %v747
  %v749 = vmul.f32 %v744, %v748
  %vm750 = vweird.f32 %v733
  %vm751 = vweird.f32 %v744
  %vm752 = vmor %vm750, %vm751
  %v753 = vsel %vm752, %v744, %v749
  %v754 = vmul.f32 %v720, %v743
  %v755 = vmul.f32 %v721, %v753
  %v757 = vperm.slane %v703, 0
  %v759 = vmul.f32 %v754, %v757
  %v760 = vmul.f32 %v755, %v757
  %v762 = vperm.slane %v704, 0
  %v764 = vadd.f32 %v759, %v762
  %v765 = vadd.f32 %v760, %v762
  %v766 = vpack.c.bf16 %v765, %v764
  %v767 = vld [vmem:[%s8] sm:$0xf]
  %v768 = vld [vmem:[%s8 + $0x4] sm:$0xf]
  %v769 = vld [vmem:[%s8 + $0x8] sm:$0xf]
  %v770 = vld [vmem:[%s8 + $0xc] sm:$0xf]
  %v771 = vld [vmem:[%s8 + $0x10] sm:$0xf]
  %v772 = vld [vmem:[%s8 + $0x14] sm:$0xf]
  %v773 = vld [vmem:[%s8 + $0x18] sm:$0xf]
  %v774 = vld [vmem:[%s8 + $0x1c] sm:$0xf]
  %v775 = vld [vmem:[%s9] sm:$0x1]
  %v777 = vperm.slane %v775, 0
  %v787 = vunpack.c.l.b16 %v767
  %v788 = vunpack.c.l.b16 %v768
  %v789 = vunpack.c.l.b16 %v769
  %v790 = vunpack.c.l.b16 %v770
  %v791 = vunpack.c.l.b16 %v771
  %v792 = vunpack.c.l.b16 %v772
  %v793 = vunpack.c.l.b16 %v773
  %v794 = vunpack.c.l.b16 %v774
  %v795 = vpack.c.b16 %v788, %v787
  %v796 = vpack.c.b16 %v790, %v789
  %v797 = vpack.c.b16 %v792, %v791
  %v798 = vpack.c.b16 %v794, %v793
  %v804 = vsel %vm111, %v766, 0
  %806 = vmatpush.bf16.msra.mxu0 0
  %807 = vmatpush.bf16.msra.mxu0 0
  %808 = vmatpush.bf16.msra.mxu0 0
  %809 = vmatpush.bf16.msra.mxu0 0
  %810 = vmatpush.bf16.msra.mxu0 %v798
  %811 = vmatpush.bf16.msra.mxu0 %v797
  %812 = vmatpush.bf16.msra.mxu0 %v796
  %813 = vmatpush.bf16.msra.mxu0 %v795
  %814 = vmatmul.bf16.gmra.mxu0 %v804
  %v815 = vpop.f32.mrf.mxu0
  %v816 = vadd.f32 %v777, %v815
  %v817 = vpop.f32.mrf.mxu0
  %v818 = vadd.f32 %v777, %v817
  %819 = vdwg.mxu0
  %v820 = vmax.f32 %v816, 0.0
  %v821 = vmax.f32 %v818, 0.0
  %v822 = vpack.c.bf16 %v821, %v820
  %v823 = vld [vmem:[%s10] sm:$0xf]
  %v824 = vld [vmem:[%s10 + $0x4] sm:$0xf]
  %v825 = vld [vmem:[%s10 + $0x8] sm:$0xf]
  %v826 = vld [vmem:[%s10 + $0xc] sm:$0xf]
  %v827 = vld [vmem:[%s10 + $0x10] sm:$0xf]
  %v828 = vld [vmem:[%s10 + $0x14] sm:$0xf]
  %v829 = vld [vmem:[%s10 + $0x18] sm:$0xf]
  %v830 = vld [vmem:[%s10 + $0x1c] sm:$0xf]
  %v831 = vld [vmem:[%s10 + $0x20] sm:$0xf]
  %v832 = vld [vmem:[%s10 + $0x24] sm:$0xf]
  %v833 = vld [vmem:[%s10 + $0x28] sm:$0xf]
  %v834 = vld [vmem:[%s10 + $0x2c] sm:$0xf]
  %v835 = vld [vmem:[%s10 + $0x30] sm:$0xf]
  %v836 = vld [vmem:[%s10 + $0x34] sm:$0xf]
  %v837 = vld [vmem:[%s10 + $0x38] sm:$0xf]
  %v838 = vld [vmem:[%s10 + $0x3c] sm:$0xf]
  %v839 = vld [vmem:[%s11] sm:$0x1]
  %v841 = vperm.slane %v839, 0
  %v859 = vunpack.c.l.b16 %v823
  %v860 = vunpack.c.l.b16 %v824
  %v861 = vunpack.c.l.b16 %v825
  %v862 = vunpack.c.l.b16 %v826
  %v863 = vunpack.c.l.b16 %v827
  %v864 = vunpack.c.l.b16 %v828
  %v865 = vunpack.c.l.b16 %v829
  %v866 = vunpack.c.l.b16 %v830
  %v867 = vunpack.c.l.b16 %v831
  %v868 = vunpack.c.l.b16 %v832
  %v869 = vunpack.c.l.b16 %v833
  %v870 = vunpack.c.l.b16 %v834
  %v871 = vunpack.c.l.b16 %v835
  %v872 = vunpack.c.l.b16 %v836
  %v873 = vunpack.c.l.b16 %v837
  %v874 = vunpack.c.l.b16 %v838
  %v875 = vpack.c.b16 %v860, %v859
  %v876 = vpack.c.b16 %v862, %v861
  %v877 = vpack.c.b16 %v864, %v863
  %v878 = vpack.c.b16 %v866, %v865
  %v879 = vpack.c.b16 %v868, %v867
  %v880 = vpack.c.b16 %v870, %v869
  %v881 = vpack.c.b16 %v872, %v871
  %v882 = vpack.c.b16 %v874, %v873
  %891 = vmatpush.bf16.msra.mxu0 %v882
  %892 = vmatpush.bf16.msra.mxu0 %v881
  %893 = vmatpush.bf16.msra.mxu0 %v880
  %894 = vmatpush.bf16.msra.mxu0 %v879
  %895 = vmatpush.bf16.msra.mxu0 %v878
  %896 = vmatpush.bf16.msra.mxu0 %v877
  %897 = vmatpush.bf16.msra.mxu0 %v876
  %898 = vmatpush.bf16.msra.mxu0 %v875
  %899 = vmatmul.bf16.gmra.mxu0 %v822
  %v900 = vpop.f32.mrf.mxu0
  %v901 = vadd.f32 %v841, %v900
  %v902 = vpop.f32.mrf.mxu0
  %v903 = vadd.f32 %v841, %v902
  %904 = vdwg.mxu0
  %v905 = vadd.f32 %v764, %v901
  %v906 = vadd.f32 %v765, %v903
  %v907 = vld [vmem:[%s12] sm:$0x1]
  %v908 = vld [vmem:[%s13] sm:$0x1]
  %v909 = vsel %vm111, %v905, 0.0
  %910 = vadd.xlane.f32.xlu0 %v909
  %v911 = vpop.xlane.xlu0 %910
  %v912 = vsel %vm111, %v906, 0.0
  %913 = vadd.xlane.f32.xlu0 %v912
  %v914 = vpop.xlane.xlu0 %913
  %v915 = vmul.f32 %v911, %v717
  %v916 = vmul.f32 %v914, %v717
  %v917 = vsub.f32 %v905, %v915
  %v918 = vsub.f32 %v906, %v916
  %v919 = vmul.f32 %v917, %v917
  %v920 = vmul.f32 %v918, %v918
  %v921 = vsel %vm111, %v919, 0.0
  %922 = vadd.xlane.f32.xlu0 %v921
  %v923 = vpop.xlane.xlu0 %922
  %v924 = vsel %vm111, %v920, 0.0
  %925 = vadd.xlane.f32.xlu0 %v924
  %v926 = vpop.xlane.xlu0 %925
  %v927 = vmul.f32 %v923, %v717
  %v928 = vmul.f32 %v926, %v717
  %v929 = vadd.f32 %v927, 1e-05
  %v930 = vadd.f32 %v928, 1e-05
  %v931 = vrsqrt.pop %v929
  %v932 = vmul.f32 %v931, %v929
  %v933 = vmul.f32 %v932, %v931
  %v934 = vmul.f32 0.5, %v933
  %v935 = vsub.f32 1.5, %v934
  %v936 = vmul.f32 %v931, %v935
  %vm937 = vweird.f32 %v929
  %vm938 = vweird.f32 %v931
  %vm939 = vmor %vm937, %vm938
  %v940 = vsel %vm939, %v931, %v936
  %v941 = vrsqrt.pop %v930
  %v942 = vmul.f32 %v941, %v930
  %v943 = vmul.f32 %v942, %v941
  %v944 = vmul.f32 0.5, %v943
  %v945 = vsub.f32 1.5, %v944
  %v946 = vmul.f32 %v941, %v945
  %vm947 = vweird.f32 %v930
  %vm948 = vweird.f32 %v941
  %vm949 = vmor %vm947, %vm948
  %v950 = vsel %vm949, %v941, %v946
  %v951 = vmul.f32 %v917, %v940
  %v952 = vmul.f32 %v918, %v950
  %v954 = vperm.slane %v907, 0
  %v956 = vmul.f32 %v951, %v954
  %v957 = vmul.f32 %v952, %v954
  %v959 = vperm.slane %v908, 0
  %v961 = vadd.f32 %v956, %v959
  %v962 = vadd.f32 %v957, %v959
  %v963 = vld [vmem:[%s14] sm:$0x1]
  %v964 = vld [vmem:[%s15] sm:$0x1]
  %v965 = vsel %vm111, %v961, 0.0
  %966 = vadd.xlane.f32.xlu0 %v965
  %v967 = vpop.xlane.xlu0 %966
  %v968 = vsel %vm111, %v962, 0.0
  %969 = vadd.xlane.f32.xlu0 %v968
  %v970 = vpop.xlane.xlu0 %969
  %v971 = vmul.f32 %v967, %v717
  %v972 = vmul.f32 %v970, %v717
  %v973 = vsub.f32 %v961, %v971
  %v974 = vsub.f32 %v962, %v972
  %v975 = vmul.f32 %v973, %v973
  %v976 = vmul.f32 %v974, %v974
  %v977 = vsel %vm111, %v975, 0.0
  %978 = vadd.xlane.f32.xlu0 %v977
  %v979 = vpop.xlane.xlu0 %978
  %v980 = vsel %vm111, %v976, 0.0
  %981 = vadd.xlane.f32.xlu0 %v980
  %v982 = vpop.xlane.xlu0 %981
  %v983 = vmul.f32 %v979, %v717
  %v984 = vmul.f32 %v982, %v717
  %v985 = vadd.f32 %v983, 1e-05
  %v986 = vadd.f32 %v984, 1e-05
  %v987 = vrsqrt.pop %v985
  %v988 = vmul.f32 %v987, %v985
  %v989 = vmul.f32 %v988, %v987
  %v990 = vmul.f32 0.5, %v989
  %v991 = vsub.f32 1.5, %v990
  %v992 = vmul.f32 %v987, %v991
  %vm993 = vweird.f32 %v985
  %vm994 = vweird.f32 %v987
  %vm995 = vmor %vm993, %vm994
  %v996 = vsel %vm995, %v987, %v992
  %v997 = vrsqrt.pop %v986
  %v998 = vmul.f32 %v997, %v986
  %v999 = vmul.f32 %v998, %v997
  %v1000 = vmul.f32 0.5, %v999
  %v1001 = vsub.f32 1.5, %v1000
  %v1002 = vmul.f32 %v997, %v1001
  %vm1003 = vweird.f32 %v986
  %vm1004 = vweird.f32 %v997
  %vm1005 = vmor %vm1003, %vm1004
  %v1006 = vsel %vm1005, %v997, %v1002
  %v1007 = vmul.f32 %v973, %v996
  %v1008 = vmul.f32 %v974, %v1006
  %v1010 = vperm.slane %v963, 0
  %v1012 = vmul.f32 %v1007, %v1010
  %v1013 = vmul.f32 %v1008, %v1010
  %v1015 = vperm.slane %v964, 0
  %v1017 = vadd.f32 %v1012, %v1015
  %v1018 = vadd.f32 %v1013, %v1015
  %1019 = vst.msk [vmem:[%s16] sm:$0xff] %vm111, %v1017
  %1020 = vst.msk [vmem:[%s16 + $0x8] sm:$0xff] %vm111, %v1018
  // Predicated region
  $region66: #{traj_transformer_forward.9} parent=0 // pred_check
    _
  $region67: #{traj_transformer_forward.9} parent=0 // pred_check_branch
    %1022 = sbr.rel (0) target = $region69
  $region68: #{traj_transformer_forward.9} parent=0 // pred_region
    _
  $region69: #{traj_transformer_forward.9} parent=0 // pred_fallthru
    _
  // Predicated region
  $region70: #{traj_transformer_forward.9} parent=0 // pred_check
    _
  $region71: #{traj_transformer_forward.9} parent=0 // pred_check_branch
    %1024 = sbr.rel (0) target = $region73
  $region72: #{traj_transformer_forward.9} parent=0 // pred_region
    _
  $region73: #{traj_transformer_forward.9} parent=0 // pred_fallthru
    _

// kernel: traj_transformer_forward.10
$region0: #{traj_transformer_forward.10}
  #allocation0 [shape = 'u32[]', space=smem, size = 0x4, offset = 0x4, fixed_abs, tag = 'smem constant byte address 0x4 - core index']
  #allocation1 [shape = 'u32[72,128]{1,0:T(1,128)}', space=vmem, size = 0x9000, scoped, tag = 'internal scratch']
  #allocation2 [shape = 'f32[16,64]{1,0:T(8,128)}', space=vmem, size = 0x2000, scoped, tag = 'scratch operand']
  %s0 = inlined_call_operand.vmem [shape: f32[2,8,64], index: 0, kind: input, shape index: {}]
  %s1 = inlined_call_operand.vmem [shape: f32[2,8,64], index: 1, kind: input, shape index: {}]
  %s2 = inlined_call_operand.vmem [shape: f32[2,1,8], index: 2, kind: input, shape index: {}]
  %s3 = inlined_call_operand.vmem [shape: f32[2,1,8], index: 3, kind: input, shape index: {}]
  %s4 = inlined_call_operand.vmem [shape: bf16[64,192], index: 4, kind: input, shape index: {}]
  %s5 = inlined_call_operand.vmem [shape: f32[1,192], index: 5, kind: input, shape index: {}]
  %s6 = inlined_call_operand.vmem [shape: bf16[64,64], index: 6, kind: input, shape index: {}]
  %s7 = inlined_call_operand.vmem [shape: f32[1,64], index: 7, kind: input, shape index: {}]
  %s8 = inlined_call_operand.vmem [shape: f32[1,64], index: 8, kind: input, shape index: {}]
  %s9 = inlined_call_operand.hbm [shape: f32[1,64], index: 9, kind: input, shape index: {}]
  %s10 = inlined_call_operand.vmem [shape: bf16[64,64], index: 10, kind: input, shape index: {}]
  %s11 = inlined_call_operand.hbm [shape: f32[1,64], index: 11, kind: input, shape index: {}]
  %s12 = inlined_call_operand.vmem [shape: bf16[64,128], index: 12, kind: input, shape index: {}]
  %s13 = inlined_call_operand.hbm [shape: f32[1,128], index: 13, kind: input, shape index: {}]
  %s14 = inlined_call_operand.hbm [shape: bf16[64,64], index: 14, kind: input, shape index: {}]
  %s15 = inlined_call_operand.hbm [shape: f32[1,64], index: 15, kind: input, shape index: {}]
  %s16 = inlined_call_operand.hbm [shape: f32[1,64], index: 16, kind: input, shape index: {}]
  %s17 = inlined_call_operand.hbm [shape: f32[1,64], index: 17, kind: input, shape index: {}]
  %s18 = inlined_call_operand.hbm [shape: bf16[64,128], index: 18, kind: input, shape index: {}]
  %s19 = inlined_call_operand.hbm [shape: f32[1,128], index: 19, kind: input, shape index: {}]
  %s20 = inlined_call_operand.vmem [shape: bf16[128,64], index: 20, kind: input, shape index: {}]
  %s21 = inlined_call_operand.hbm [shape: f32[1,64], index: 21, kind: input, shape index: {}]
  %s22 = inlined_call_operand.hbm [shape: f32[1,64], index: 22, kind: input, shape index: {}]
  %s23 = inlined_call_operand.hbm [shape: f32[1,64], index: 23, kind: input, shape index: {}]
  %s24 = inlined_call_operand.vmem [shape: f32[2,8,64], index: 24, kind: output, shape index: {}]
  %s25 = sld [smem:[#allocation0]]
  $region154: #{traj_transformer_forward.10} parent=0
    _
  %s27 = ssub.s32 1, %s25
  %s28 = scalar_select 0, %s27, %s25
  $region1: #{traj_transformer_forward.10} parent=0
    #allocation3 [shape = 'u8[512]{0}', space=vmem, size = 0x400, scoped, tag = 'input window, operand 9, single buffered']
    #allocation4 [shape = 's32[1]{0}', space=sflag, size = 0x4, scoped, tag = 'scoped memory for traj_transformer_forward.10']
    #allocation5 [shape = 'u8[512]{0}', space=vmem, size = 0x400, scoped, tag = 'input window, operand 11, single buffered']
    #allocation6 [shape = 's32[1]{0}', space=sflag, size = 0x4, scoped, tag = 'scoped memory for traj_transformer_forward.10']
    #allocation7 [shape = 'u8[512]{0}', space=vmem, size = 0x400, scoped, tag = 'input window, operand 13, single buffered']
    #allocation8 [shape = 'u8[16384]{0}', space=vmem, size = 0x4000, scoped, tag = 'input window, operand 14, single buffered']
    #allocation9 [shape = 's32[1]{0}', space=sflag, size = 0x4, scoped, tag = 'scoped memory for traj_transformer_forward.10']
    #allocation10 [shape = 'u8[512]{0}', space=vmem, size = 0x400, scoped, tag = 'input window, operand 15, single buffered']
    #allocation11 [shape = 'u8[512]{0}', space=vmem, size = 0x400, scoped, tag = 'input window, operand 16, single buffered']
    #allocation12 [shape = 's32[1]{0}', space=sflag, size = 0x4, scoped, tag = 'scoped memory for traj_transformer_forward.10']
    #allocation13 [shape = 'u8[512]{0}', space=vmem, size = 0x400, scoped, tag = 'input window, operand 17, single buffered']
    #allocation14 [shape = 'u8[16384]{0}', space=vmem, size = 0x4000, scoped, tag = 'input window, operand 18, single buffered']
    #allocation15 [shape = 's32[1]{0}', space=sflag, size = 0x4, scoped, tag = 'scoped memory for traj_transformer_forward.10']
    #allocation16 [shape = 'u8[512]{0}', space=vmem, size = 0x400, scoped, tag = 'input window, operand 19, single buffered']
    #allocation17 [shape = 'u8[512]{0}', space=vmem, size = 0x400, scoped, tag = 'input window, operand 21, single buffered']
    #allocation18 [shape = 's32[1]{0}', space=sflag, size = 0x4, scoped, tag = 'scoped memory for traj_transformer_forward.10']
    #allocation19 [shape = 'u8[512]{0}', space=vmem, size = 0x400, scoped, tag = 'input window, operand 22, single buffered']
    #allocation20 [shape = 'u8[512]{0}', space=vmem, size = 0x400, scoped, tag = 'input window, operand 23, single buffered']
    #allocation21 [shape = 's32[1]{0}', space=sflag, size = 0x4, scoped, tag = 'scoped memory for traj_transformer_forward.10']
    %29 = vsyncpa [#allocation4], 0
    %30 = vsyncpa [#allocation6], 0
    %31 = vsyncpa [#allocation9], 0
    %32 = vsyncpa [#allocation12], 0
    %33 = vsyncpa [#allocation15], 0
    %34 = vsyncpa [#allocation18], 0
    %35 = vsyncpa [#allocation21], 0
    // Predicated region
    $region2: #{traj_transformer_forward.10} parent=1 // pred_check
      _
    $region3: #{traj_transformer_forward.10} parent=1 // pred_check_branch
      %37 = sbr.rel (0) target = $region5
    $region4: #{traj_transformer_forward.10} parent=1 // pred_region
      _
    $region5: #{traj_transformer_forward.10} parent=1 // pred_fallthru
      _
    // Predicated region
    $region6: #{traj_transformer_forward.10} parent=1 // pred_check
      _
    $region7: #{traj_transformer_forward.10} parent=1 // pred_check_branch
      %39 = sbr.rel (0) target = $region9
    $region8: #{traj_transformer_forward.10} parent=1 // pred_region
      _
    $region9: #{traj_transformer_forward.10} parent=1 // pred_fallthru
      _
    // Predicated region
    $region10: #{traj_transformer_forward.10} parent=1 // pred_check
      _
    $region11: #{traj_transformer_forward.10} parent=1 // pred_check_branch
      %41 = sbr.rel (0) target = $region13
    $region12: #{traj_transformer_forward.10} parent=1 // pred_region
      _
    $region13: #{traj_transformer_forward.10} parent=1 // pred_fallthru
      _
    // Predicated region
    $region14: #{traj_transformer_forward.10} parent=1 // pred_check
      _
    $region15: #{traj_transformer_forward.10} parent=1 // pred_check_branch
      %43 = sbr.rel (0) target = $region17
    $region16: #{traj_transformer_forward.10} parent=1 // pred_region
      _
    $region17: #{traj_transformer_forward.10} parent=1 // pred_fallthru
      _
    // Predicated region
    $region18: #{traj_transformer_forward.10} parent=1 // pred_check
      _
    $region19: #{traj_transformer_forward.10} parent=1 // pred_check_branch
      %45 = sbr.rel (0) target = $region21
    $region20: #{traj_transformer_forward.10} parent=1 // pred_region
      _
    $region21: #{traj_transformer_forward.10} parent=1 // pred_fallthru
      _
    // Predicated region
    $region22: #{traj_transformer_forward.10} parent=1 // pred_check
      _
    $region23: #{traj_transformer_forward.10} parent=1 // pred_check_branch
      %47 = sbr.rel (0) target = $region25
    $region24: #{traj_transformer_forward.10} parent=1 // pred_region
      _
    $region25: #{traj_transformer_forward.10} parent=1 // pred_fallthru
      _
    // Predicated region
    $region26: #{traj_transformer_forward.10} parent=1 // pred_check
      _
    $region27: #{traj_transformer_forward.10} parent=1 // pred_check_branch
      %49 = sbr.rel (0) target = $region29
    $region28: #{traj_transformer_forward.10} parent=1 // pred_region
      _
    $region29: #{traj_transformer_forward.10} parent=1 // pred_fallthru
      _
    // Predicated region
    $region30: #{traj_transformer_forward.10} parent=1 // pred_check
      _
    $region31: #{traj_transformer_forward.10} parent=1 // pred_check_branch
      %51 = sbr.rel (0) target = $region33
    $region32: #{traj_transformer_forward.10} parent=1 // pred_region
      _
    $region33: #{traj_transformer_forward.10} parent=1 // pred_fallthru
      _
    // Predicated region
    $region34: #{traj_transformer_forward.10} parent=1 // pred_check
      _
    $region35: #{traj_transformer_forward.10} parent=1 // pred_check_branch
      %53 = sbr.rel (0) target = $region37
    $region36: #{traj_transformer_forward.10} parent=1 // pred_region
      _
    $region37: #{traj_transformer_forward.10} parent=1 // pred_fallthru
      _
    // Predicated region
    $region38: #{traj_transformer_forward.10} parent=1 // pred_check
      _
    $region39: #{traj_transformer_forward.10} parent=1 // pred_check_branch
      %55 = sbr.rel (0) target = $region41
    $region40: #{traj_transformer_forward.10} parent=1 // pred_region
      %57 = vsyncadd [#allocation4], 0
      %s59 = sshll.u32 %s9, 4
      %s60 = int_to_ptr.hbm [resolvable:$true] %s59
      %s61 = sshll.u32 [#allocation3], 4
      %s62 = int_to_ptr.vmem [resolvable:$true] %s61
      %64 = dma.hbm_to_vmem [thread:$0]  %s60, 16, %s62, [#allocation4]
    $region41: #{traj_transformer_forward.10} parent=1 // pred_fallthru
      _
    // Predicated region
    $region42: #{traj_transformer_forward.10} parent=1 // pred_check
      _
    $region43: #{traj_transformer_forward.10} parent=1 // pred_check_branch
      %66 = sbr.rel (0) target = $region45
    $region44: #{traj_transformer_forward.10} parent=1 // pred_region
      _
    $region45: #{traj_transformer_forward.10} parent=1 // pred_fallthru
      _
    // Predicated region
    $region46: #{traj_transformer_forward.10} parent=1 // pred_check
      _
    $region47: #{traj_transformer_forward.10} parent=1 // pred_check_branch
      %68 = sbr.rel (0) target = $region49
    $region48: #{traj_transformer_forward.10} parent=1 // pred_region
      %70 = vsyncadd [#allocation6], 0
      %s72 = sshll.u32 %s11, 4
      %s73 = int_to_ptr.hbm [resolvable:$true] %s72
      %s74 = sshll.u32 [#allocation5], 4
      %s75 = int_to_ptr.vmem [resolvable:$true] %s74
      %77 = dma.hbm_to_vmem [thread:$0]  %s73, 16, %s75, [#allocation6]
    $region49: #{traj_transformer_forward.10} parent=1 // pred_fallthru
      _
    // Predicated region
    $region50: #{traj_transformer_forward.10} parent=1 // pred_check
      _
    $region51: #{traj_transformer_forward.10} parent=1 // pred_check_branch
      %79 = sbr.rel (0) target = $region53
    $region52: #{traj_transformer_forward.10} parent=1 // pred_region
      _
    $region53: #{traj_transformer_forward.10} parent=1 // pred_fallthru
      _
    // Predicated region
    $region54: #{traj_transformer_forward.10} parent=1 // pred_check
      _
    $region55: #{traj_transformer_forward.10} parent=1 // pred_check_branch
      %81 = sbr.rel (0) target = $region57
    $region56: #{traj_transformer_forward.10} parent=1 // pred_region
      %83 = vsyncadd [#allocation6], 0
      %s85 = sshll.u32 %s13, 4
      %s86 = int_to_ptr.hbm [resolvable:$true] %s85
      %s87 = sshll.u32 [#allocation7], 4
      %s88 = int_to_ptr.vmem [resolvable:$true] %s87
      %90 = dma.hbm_to_vmem [thread:$0]  %s86, 16, %s88, [#allocation6]
    $region57: #{traj_transformer_forward.10} parent=1 // pred_fallthru
      _
    // Predicated region
    $region58: #{traj_transformer_forward.10} parent=1 // pred_check
      _
    $region59: #{traj_transformer_forward.10} parent=1 // pred_check_branch
      %92 = sbr.rel (0) target = $region61
    $region60: #{traj_transformer_forward.10} parent=1 // pred_region
      %94 = vsyncadd [#allocation9], 0
      %s95 = sshll.u32 %s14, 4
      %s96 = int_to_ptr.hbm [resolvable:$true] %s95
      %s97 = sshll.u32 [#allocation8], 4
      %s98 = int_to_ptr.vmem [resolvable:$true] %s97
      %103 = dma.hbm_to_vmem [thread:$0]  %s96, 512, %s98, [#allocation9], 64, 64, 4
    $region61: #{traj_transformer_forward.10} parent=1 // pred_fallthru
      _
    // Predicated region
    $region62: #{traj_transformer_forward.10} parent=1 // pred_check
      _
    $region63: #{traj_transformer_forward.10} parent=1 // pred_check_branch
      %105 = sbr.rel (0) target = $region65
    $region64: #{traj_transformer_forward.10} parent=1 // pred_region
      %107 = vsyncadd [#allocation9], 0
      %s109 = sshll.u32 %s15, 4
      %s110 = int_to_ptr.hbm [resolvable:$true] %s109
      %s111 = sshll.u32 [#allocation10], 4
      %s112 = int_to_ptr.vmem [resolvable:$true] %s111
      %114 = dma.hbm_to_vmem [thread:$0]  %s110, 16, %s112, [#allocation9]
    $region65: #{traj_transformer_forward.10} parent=1 // pred_fallthru
      _
    // Predicated region
    $region66: #{traj_transformer_forward.10} parent=1 // pred_check
      _
    $region67: #{traj_transformer_forward.10} parent=1 // pred_check_branch
      %116 = sbr.rel (0) target = $region69
    $region68: #{traj_transformer_forward.10} parent=1 // pred_region
      %118 = vsyncadd [#allocation12], 0
      %s120 = sshll.u32 %s16, 4
      %s121 = int_to_ptr.hbm [resolvable:$true] %s120
      %s122 = sshll.u32 [#allocation11], 4
      %s123 = int_to_ptr.vmem [resolvable:$true] %s122
      %125 = dma.hbm_to_vmem [thread:$0]  %s121, 16, %s123, [#allocation12]
    $region69: #{traj_transformer_forward.10} parent=1 // pred_fallthru
      _
    // Predicated region
    $region70: #{traj_transformer_forward.10} parent=1 // pred_check
      _
    $region71: #{traj_transformer_forward.10} parent=1 // pred_check_branch
      %127 = sbr.rel (0) target = $region73
    $region72: #{traj_transformer_forward.10} parent=1 // pred_region
      %129 = vsyncadd [#allocation12], 0
      %s131 = sshll.u32 %s17, 4
      %s132 = int_to_ptr.hbm [resolvable:$true] %s131
      %s133 = sshll.u32 [#allocation13], 4
      %s134 = int_to_ptr.vmem [resolvable:$true] %s133
      %136 = dma.hbm_to_vmem [thread:$0]  %s132, 16, %s134, [#allocation12]
    $region73: #{traj_transformer_forward.10} parent=1 // pred_fallthru
      _
    // Predicated region
    $region74: #{traj_transformer_forward.10} parent=1 // pred_check
      _
    $region75: #{traj_transformer_forward.10} parent=1 // pred_check_branch
      %138 = sbr.rel (0) target = $region77
    $region76: #{traj_transformer_forward.10} parent=1 // pred_region
      %140 = vsyncadd [#allocation15], 0
      %s141 = sshll.u32 %s18, 4
      %s142 = int_to_ptr.hbm [resolvable:$true] %s141
      %s143 = sshll.u32 [#allocation14], 4
      %s144 = int_to_ptr.vmem [resolvable:$true] %s143
      %149 = dma.hbm_to_vmem [thread:$0]  %s142, 512, %s144, [#allocation15], 64, 64, 4
    $region77: #{traj_transformer_forward.10} parent=1 // pred_fallthru
      _
    // Predicated region
    $region78: #{traj_transformer_forward.10} parent=1 // pred_check
      _
    $region79: #{traj_transformer_forward.10} parent=1 // pred_check_branch
      %151 = sbr.rel (0) target = $region81
    $region80: #{traj_transformer_forward.10} parent=1 // pred_region
      %153 = vsyncadd [#allocation15], 0
      %s155 = sshll.u32 %s19, 4
      %s156 = int_to_ptr.hbm [resolvable:$true] %s155
      %s157 = sshll.u32 [#allocation16], 4
      %s158 = int_to_ptr.vmem [resolvable:$true] %s157
      %160 = dma.hbm_to_vmem [thread:$0]  %s156, 16, %s158, [#allocation15]
    $region81: #{traj_transformer_forward.10} parent=1 // pred_fallthru
      _
    // Predicated region
    $region82: #{traj_transformer_forward.10} parent=1 // pred_check
      _
    $region83: #{traj_transformer_forward.10} parent=1 // pred_check_branch
      %162 = sbr.rel (0) target = $region85
    $region84: #{traj_transformer_forward.10} parent=1 // pred_region
      _
    $region85: #{traj_transformer_forward.10} parent=1 // pred_fallthru
      _
    // Predicated region
    $region86: #{traj_transformer_forward.10} parent=1 // pred_check
      _
    $region87: #{traj_transformer_forward.10} parent=1 // pred_check_branch
      %164 = sbr.rel (0) target = $region89
    $region88: #{traj_transformer_forward.10} parent=1 // pred_region
      %166 = vsyncadd [#allocation18], 0
      %s168 = sshll.u32 %s21, 4
      %s169 = int_to_ptr.hbm [resolvable:$true] %s168
      %s170 = sshll.u32 [#allocation17], 4
      %s171 = int_to_ptr.vmem [resolvable:$true] %s170
      %173 = dma.hbm_to_vmem [thread:$0]  %s169, 16, %s171, [#allocation18]
    $region89: #{traj_transformer_forward.10} parent=1 // pred_fallthru
      _
    // Predicated region
    $region90: #{traj_transformer_forward.10} parent=1 // pred_check
      _
    $region91: #{traj_transformer_forward.10} parent=1 // pred_check_branch
      %175 = sbr.rel (0) target = $region93
    $region92: #{traj_transformer_forward.10} parent=1 // pred_region
      %177 = vsyncadd [#allocation18], 0
      %s179 = sshll.u32 %s22, 4
      %s180 = int_to_ptr.hbm [resolvable:$true] %s179
      %s181 = sshll.u32 [#allocation19], 4
      %s182 = int_to_ptr.vmem [resolvable:$true] %s181
      %184 = dma.hbm_to_vmem [thread:$0]  %s180, 16, %s182, [#allocation18]
    $region93: #{traj_transformer_forward.10} parent=1 // pred_fallthru
      _
    // Predicated region
    $region94: #{traj_transformer_forward.10} parent=1 // pred_check
      _
    $region95: #{traj_transformer_forward.10} parent=1 // pred_check_branch
      %186 = sbr.rel (0) target = $region97
    $region96: #{traj_transformer_forward.10} parent=1 // pred_region
      %188 = vsyncadd [#allocation21], 0
      %s190 = sshll.u32 %s23, 4
      %s191 = int_to_ptr.hbm [resolvable:$true] %s190
      %s192 = sshll.u32 [#allocation20], 4
      %s193 = int_to_ptr.vmem [resolvable:$true] %s192
      %195 = dma.hbm_to_vmem [thread:$0]  %s191, 16, %s193, [#allocation21]
    $region97: #{traj_transformer_forward.10} parent=1 // pred_fallthru
      _
    // Predicated region
    $region98: #{traj_transformer_forward.10} parent=1 // pred_check
      _
    $region99: #{traj_transformer_forward.10} parent=1 // pred_check_branch
      %197 = sbr.rel (0) target = $region101
    $region100: #{traj_transformer_forward.10} parent=1 // pred_region
      %199 = dma.done [#allocation4], 16
    $region101: #{traj_transformer_forward.10} parent=1 // pred_fallthru
      _
    // Predicated region
    $region102: #{traj_transformer_forward.10} parent=1 // pred_check
      _
    $region103: #{traj_transformer_forward.10} parent=1 // pred_check_branch
      %201 = sbr.rel (0) target = $region105
    $region104: #{traj_transformer_forward.10} parent=1 // pred_region
      %203 = dma.done [#allocation6], 16
    $region105: #{traj_transformer_forward.10} parent=1 // pred_fallthru
      _
    // Predicated region
    $region106: #{traj_transformer_forward.10} parent=1 // pred_check
      _
    $region107: #{traj_transformer_forward.10} parent=1 // pred_check_branch
      %205 = sbr.rel (0) target = $region109
    $region108: #{traj_transformer_forward.10} parent=1 // pred_region
      %207 = dma.done [#allocation6], 16
    $region109: #{traj_transformer_forward.10} parent=1 // pred_fallthru
      _
    // Predicated region
    $region110: #{traj_transformer_forward.10} parent=1 // pred_check
      _
    $region111: #{traj_transformer_forward.10} parent=1 // pred_check_branch
      %209 = sbr.rel (0) target = $region113
    $region112: #{traj_transformer_forward.10} parent=1 // pred_region
      %211 = dma.done [#allocation9], 512
    $region113: #{traj_transformer_forward.10} parent=1 // pred_fallthru
      _
    // Predicated region
    $region114: #{traj_transformer_forward.10} parent=1 // pred_check
      _
    $region115: #{traj_transformer_forward.10} parent=1 // pred_check_branch
      %213 = sbr.rel (0) target = $region117
    $region116: #{traj_transformer_forward.10} parent=1 // pred_region
      %215 = dma.done [#allocation9], 16
    $region117: #{traj_transformer_forward.10} parent=1 // pred_fallthru
      _
    // Predicated region
    $region118: #{traj_transformer_forward.10} parent=1 // pred_check
      _
    $region119: #{traj_transformer_forward.10} parent=1 // pred_check_branch
      %217 = sbr.rel (0) target = $region121
    $region120: #{traj_transformer_forward.10} parent=1 // pred_region
      %219 = dma.done [#allocation12], 16
    $region121: #{traj_transformer_forward.10} parent=1 // pred_fallthru
      _
    // Predicated region
    $region122: #{traj_transformer_forward.10} parent=1 // pred_check
      _
    $region123: #{traj_transformer_forward.10} parent=1 // pred_check_branch
      %221 = sbr.rel (0) target = $region125
    $region124: #{traj_transformer_forward.10} parent=1 // pred_region
      %223 = dma.done [#allocation12], 16
    $region125: #{traj_transformer_forward.10} parent=1 // pred_fallthru
      _
    // Predicated region
    $region126: #{traj_transformer_forward.10} parent=1 // pred_check
      _
    $region127: #{traj_transformer_forward.10} parent=1 // pred_check_branch
      %225 = sbr.rel (0) target = $region129
    $region128: #{traj_transformer_forward.10} parent=1 // pred_region
      %227 = dma.done [#allocation15], 512
    $region129: #{traj_transformer_forward.10} parent=1 // pred_fallthru
      _
    // Predicated region
    $region130: #{traj_transformer_forward.10} parent=1 // pred_check
      _
    $region131: #{traj_transformer_forward.10} parent=1 // pred_check_branch
      %229 = sbr.rel (0) target = $region133
    $region132: #{traj_transformer_forward.10} parent=1 // pred_region
      %231 = dma.done [#allocation15], 16
    $region133: #{traj_transformer_forward.10} parent=1 // pred_fallthru
      _
    // Predicated region
    $region134: #{traj_transformer_forward.10} parent=1 // pred_check
      _
    $region135: #{traj_transformer_forward.10} parent=1 // pred_check_branch
      %233 = sbr.rel (0) target = $region137
    $region136: #{traj_transformer_forward.10} parent=1 // pred_region
      %235 = dma.done [#allocation18], 16
    $region137: #{traj_transformer_forward.10} parent=1 // pred_fallthru
      _
    // Predicated region
    $region138: #{traj_transformer_forward.10} parent=1 // pred_check
      _
    $region139: #{traj_transformer_forward.10} parent=1 // pred_check_branch
      %237 = sbr.rel (0) target = $region141
    $region140: #{traj_transformer_forward.10} parent=1 // pred_region
      %239 = dma.done [#allocation18], 16
    $region141: #{traj_transformer_forward.10} parent=1 // pred_fallthru
      _
    // Predicated region
    $region142: #{traj_transformer_forward.10} parent=1 // pred_check
      _
    $region143: #{traj_transformer_forward.10} parent=1 // pred_check_branch
      %241 = sbr.rel (0) target = $region145
    $region144: #{traj_transformer_forward.10} parent=1 // pred_region
      %243 = dma.done [#allocation21], 16
    $region145: #{traj_transformer_forward.10} parent=1 // pred_fallthru
      _
    %v245 = vld [vmem:[%s0] sm:$0xff]
    %v246 = vld [vmem:[%s0 + $0x8] sm:$0xff]
    %v247 = vpack.c.bf16 %v246, %v245
    %v248 = vld [vmem:[%s4] sm:$0xff]
    %v249 = vld [vmem:[%s4 + $0x8] sm:$0xff]
    %v250 = vld [vmem:[%s4 + $0x10] sm:$0xff]
    %v251 = vld [vmem:[%s4 + $0x18] sm:$0xff]
    %v252 = vld [vmem:[%s4 + $0x20] sm:$0xff]
    %v253 = vld [vmem:[%s4 + $0x28] sm:$0xff]
    %v254 = vld [vmem:[%s4 + $0x30] sm:$0xff]
    %v255 = vld [vmem:[%s4 + $0x38] sm:$0xff]
    %v256 = vld [vmem:[%s5] sm:$0x3]
    %v258 = vperm.slane %v256, 0
    %v259 = vperm.slane %v256, 1
    %v270 = vunpack.c.l.b16 %v248
    %v271 = vunpack.c.h.b16 %v248
    %v272 = vunpack.c.l.b16 %v249
    %v273 = vunpack.c.h.b16 %v249
    %v274 = vunpack.c.l.b16 %v250
    %v275 = vunpack.c.h.b16 %v250
    %v276 = vunpack.c.l.b16 %v251
    %v277 = vunpack.c.h.b16 %v251
    %v278 = vunpack.c.l.b16 %v252
    %v279 = vunpack.c.h.b16 %v252
    %v280 = vunpack.c.l.b16 %v253
    %v281 = vunpack.c.h.b16 %v253
    %v282 = vunpack.c.l.b16 %v254
    %v283 = vunpack.c.h.b16 %v254
    %v284 = vunpack.c.l.b16 %v255
    %v285 = vunpack.c.h.b16 %v255
    %v286 = vpack.c.b16 %v272, %v270
    %v287 = vpack.c.b16 %v273, %v271
    %v288 = vpack.c.b16 %v276, %v274
    %v289 = vpack.c.b16 %v277, %v275
    %v290 = vpack.c.b16 %v280, %v278
    %v291 = vpack.c.b16 %v281, %v279
    %v292 = vpack.c.b16 %v284, %v282
    %v293 = vpack.c.b16 %v285, %v283
    %vm302 = vcmask 523264
    %v304 = vsel %vm302, %v247, 0
    %306 = vmatpush.bf16.msra.mxu0 0
    %307 = vmatpush.bf16.msra.mxu0 0
    %308 = vmatpush.bf16.msra.mxu0 0
    %309 = vmatpush.bf16.msra.mxu0 0
    %310 = vmatpush.bf16.msra.mxu0 %v292
    %311 = vmatpush.bf16.msra.mxu0 %v290
    %312 = vmatpush.bf16.msra.mxu0 %v288
    %313 = vmatpush.bf16.msra.mxu0 %v286
    %314 = vmatmul.bf16.gmra.mxu0 %v304
    %v315 = vpop.f32.mrf.mxu0
    %v316 = vadd.f32 %v258, %v315
    %v317 = vpop.f32.mrf.mxu0
    %v318 = vadd.f32 %v258, %v317
    %319 = vdwg.mxu0
    %320 = vmatpush.bf16.msra.mxu0 0
    %321 = vmatpush.bf16.msra.mxu0 0
    %322 = vmatpush.bf16.msra.mxu0 0
    %323 = vmatpush.bf16.msra.mxu0 0
    %324 = vmatpush.bf16.msra.mxu0 %v293
    %325 = vmatpush.bf16.msra.mxu0 %v291
    %326 = vmatpush.bf16.msra.mxu0 %v289
    %327 = vmatpush.bf16.msra.mxu0 %v287
    %328 = vmatmul.bf16.gmra.mxu0 %v304
    %v329 = vpop.f32.mrf.mxu0
    %v330 = vadd.f32 %v259, %v329
    %v331 = vpop.f32.mrf.mxu0
    %v332 = vadd.f32 %v259, %v331
    %333 = vdwg.mxu0
    %v334 = vld [vmem:[%s2] sm:$0x1]
    %v335 = vld [vmem:[%s2 + $0x1] sm:$0x1]
    %v336 = vpack.c.bf16 %v316, %v316
    %v337 = vpack.c.bf16 %v318, %v318
    %v340 = vperm.slane %v334, 0
    %v341 = vperm.slane %v335, 0
    %v345 = vunpack.c.l.b16 %v336
    %v346 = vpack.c.b16 %v345, %v345
    %347 = vrot.lane.b32.xlu0 %v346, 64
    %v348 = vpop.permute.xlu0 %347
    %vm349 = vcmask 130048
    %v351 = vsel %vm349, %v336, 0
    %v354 = vsel %vm349, %v348, 0
    %356 = vmatpush.bf16.xpose.msra.mxu0 0
    %357 = vmatpush.bf16.xpose.msra.mxu0 0
    %358 = vmatpush.bf16.xpose.msra.mxu0 0
    %359 = vmatpush.bf16.xpose.msra.mxu0 0
    %360 = vmatpush.bf16.xpose.msra.mxu0 0
    %361 = vmatpush.bf16.xpose.msra.mxu0 0
    %362 = vmatpush.bf16.xpose.msra.mxu0 0
    %363 = vmatpush.bf16.xpose.msra.mxu0 %v354
    %364 = vmatmul.bf16.gmra.mxu0 %v351
    %v365 = vpop.f32.mrf.mxu0
    %v366 = vadd.f32 %v340, %v365
    %v367 = vpop.f32.mrf.mxu0
    %368 = vdwg.mxu0
    %v370 = vunpack.c.l.b16 %v337
    %v371 = vpack.c.b16 %v370, %v370
    %372 = vrot.lane.b32.xlu0 %v371, 64
    %v373 = vpop.permute.xlu0 %372
    %v375 = vsel %vm349, %v337, 0
    %v378 = vsel %vm349, %v373, 0
    %380 = vmatpush.bf16.xpose.msra.mxu0 0
    %381 = vmatpush.bf16.xpose.msra.mxu0 0
    %382 = vmatpush.bf16.xpose.msra.mxu0 0
    %383 = vmatpush.bf16.xpose.msra.mxu0 0
    %384 = vmatpush.bf16.xpose.msra.mxu0 0
    %385 = vmatpush.bf16.xpose.msra.mxu0 0
    %386 = vmatpush.bf16.xpose.msra.mxu0 0
    %387 = vmatpush.bf16.xpose.msra.mxu0 %v378
    %388 = vmatmul.bf16.gmra.mxu0 %v375
    %v389 = vpop.f32.mrf.mxu0
    %v390 = vadd.f32 %v341, %v389
    %v391 = vpop.f32.mrf.mxu0
    %392 = vdwg.mxu0
    %vm393 = vcmask 64512
    %v394 = vsel %vm393, %v366, -inf
    %395 = vmax.xlane.f32.xlu0 %v394
    %v396 = vpop.xlane.xlu0 %395
    %v397 = vsel %vm393, %v390, -inf
    %398 = vmax.xlane.f32.xlu0 %v397
    %v399 = vpop.xlane.xlu0 %398
    %v400 = vsub.f32 %v366, %v396
    %v401 = vsub.f32 %v390, %v399
    %v402 = vmul.f32 %v400, 1.442695
    %v403 = vpow.pop %v402
    %v404 = vmul.f32 %v401, 1.442695
    %v405 = vpow.pop %v404
    %v406 = vsel %vm393, %v403, 0.0
    %407 = vadd.xlane.f32.xlu0 %v406
    %v408 = vpop.xlane.xlu0 %407
    %v409 = vsel %vm393, %v405, 0.0
    %410 = vadd.xlane.f32.xlu0 %v409
    %v411 = vpop.xlane.xlu0 %410
    %v412 = vrcp.pop %v408
    %v413 = vrcp.pop %v411
    %v414 = vmul.f32 %v403, %v412
    %v415 = vmul.f32 %v405, %v413
    %v416 = vpack.c.bf16 %v414, %v414
    %v417 = vpack.c.bf16 %v415, %v415
    %v418 = vpack.c.bf16 %v330, %v330
    %v419 = vpack.c.bf16 %v332, %v332
    %v421 = vsel %vm393, %v416, 0
    %vm423 = vcmask 1043456
    %v425 = vsel %vm423, %v418, 0
    %427 = vmatpush.bf16.msra.mxu0 0
    %428 = vmatpush.bf16.msra.mxu0 0
    %429 = vmatpush.bf16.msra.mxu0 0
    %430 = vmatpush.bf16.msra.mxu0 0
    %431 = vmatpush.bf16.msra.mxu0 0
    %432 = vmatpush.bf16.msra.mxu0 0
    %433 = vmatpush.bf16.msra.mxu0 0
    %434 = vmatpush.bf16.msra.mxu0 %v425
    %435 = vmatmul.bf16.gmra.mxu0 %v421
    %v436 = vpop.f32.mrf.mxu0
    %v437 = vadd.f32 0.0, %v436
    %v438 = vpop.f32.mrf.mxu0
    %439 = vdwg.mxu0
    %v441 = vsel %vm393, %v417, 0
    %v444 = vsel %vm423, %v419, 0
    %446 = vmatpush.bf16.msra.mxu0 0
    %447 = vmatpush.bf16.msra.mxu0 0
    %448 = vmatpush.bf16.msra.mxu0 0
    %449 = vmatpush.bf16.msra.mxu0 0
    %450 = vmatpush.bf16.msra.mxu0 0
    %451 = vmatpush.bf16.msra.mxu0 0
    %452 = vmatpush.bf16.msra.mxu0 0
    %453 = vmatpush.bf16.msra.mxu0 %v444
    %454 = vmatmul.bf16.gmra.mxu0 %v441
    %v455 = vpop.f32.mrf.mxu0
    %v456 = vadd.f32 0.0, %v455
    %v457 = vpop.f32.mrf.mxu0
    %458 = vdwg.mxu0
    %459 = vst.msk [vmem:[#allocation2] sm:$0xff] %vm349, %v437
    %460 = vst.msk [vmem:[#allocation2 + $0x8] sm:$0xff] %vm349, %v456
    %461 = vrot.lane.b32.xlu0 %v346, 112
    %v462 = vpop.permute.xlu0 %461
    %463 = vrot.lane.b32.xlu0 %v346, 48
    %v464 = vpop.permute.xlu0 %463
    %v466 = vsel %vm349, %v462, 0
    %v469 = vsel %vm349, %v464, 0
    %471 = vmatpush.bf16.xpose.msra.mxu0 0
    %472 = vmatpush.bf16.xpose.msra.mxu0 0
    %473 = vmatpush.bf16.xpose.msra.mxu0 0
    %474 = vmatpush.bf16.xpose.msra.mxu0 0
    %475 = vmatpush.bf16.xpose.msra.mxu0 0
    %476 = vmatpush.bf16.xpose.msra.mxu0 0
    %477 = vmatpush.bf16.xpose.msra.mxu0 0
    %478 = vmatpush.bf16.xpose.msra.mxu0 %v469
    %479 = vmatmul.bf16.gmra.mxu0 %v466
    %v480 = vpop.f32.mrf.mxu0
    %v481 = vadd.f32 %v340, %v480
    %v482 = vpop.f32.mrf.mxu0
    %483 = vdwg.mxu0
    %484 = vrot.lane.b32.xlu0 %v371, 112
    %v485 = vpop.permute.xlu0 %484
    %486 = vrot.lane.b32.xlu0 %v371, 48
    %v487 = vpop.permute.xlu0 %486
    %v489 = vsel %vm349, %v485, 0
    %v492 = vsel %vm349, %v487, 0
    %494 = vmatpush.bf16.xpose.msra.mxu0 0
    %495 = vmatpush.bf16.xpose.msra.mxu0 0
    %496 = vmatpush.bf16.xpose.msra.mxu0 0
    %497 = vmatpush.bf16.xpose.msra.mxu0 0
    %498 = vmatpush.bf16.xpose.msra.mxu0 0
    %499 = vmatpush.bf16.xpose.msra.mxu0 0
    %500 = vmatpush.bf16.xpose.msra.mxu0 0
    %501 = vmatpush.bf16.xpose.msra.mxu0 %v492
    %502 = vmatmul.bf16.gmra.mxu0 %v489
    %v503 = vpop.f32.mrf.mxu0
    %v504 = vadd.f32 %v341, %v503
    %v505 = vpop.f32.mrf.mxu0
    %506 = vdwg.mxu0
    %v507 = vsel %vm393, %v481, -inf
    %508 = vmax.xlane.f32.xlu0 %v507
    %v509 = vpop.xlane.xlu0 %508
    %v510 = vsel %vm393, %v504, -inf
    %511 = vmax.xlane.f32.xlu0 %v510
    %v512 = vpop.xlane.xlu0 %511
    %v513 = vsub.f32 %v481, %v509
    %v514 = vsub.f32 %v504, %v512
    %v515 = vmul.f32 %v513, 1.442695
    %v516 = vpow.pop %v515
    %v517 = vmul.f32 %v514, 1.442695
    %v518 = vpow.pop %v517
    %v519 = vsel %vm393, %v516, 0.0
    %520 = vadd.xlane.f32.xlu0 %v519
    %v521 = vpop.xlane.xlu0 %520
    %v522 = vsel %vm393, %v518, 0.0
    %523 = vadd.xlane.f32.xlu0 %v522
    %v524 = vpop.xlane.xlu0 %523
    %v525 = vrcp.pop %v521
    %v526 = vrcp.pop %v524
    %v527 = vmul.f32 %v516, %v525
    %v528 = vmul.f32 %v518, %v526
    %v529 = vpack.c.bf16 %v527, %v527
    %v530 = vpack.c.bf16 %v528, %v528
    %v532 = vunpack.c.l.b16 %v418
    %v533 = vpack.c.b16 %v532, %v532
    %534 = vrot.lane.b32.xlu0 %v533, 112
    %v535 = vpop.permute.xlu0 %534
    %v537 = vsel %vm393, %v529, 0
    %v540 = vsel %vm423, %v535, 0
    %542 = vmatpush.bf16.msra.mxu0 0
    %543 = vmatpush.bf16.msra.mxu0 0
    %544 = vmatpush.bf16.msra.mxu0 0
    %545 = vmatpush.bf16.msra.mxu0 0
    %546 = vmatpush.bf16.msra.mxu0 0
    %547 = vmatpush.bf16.msra.mxu0 0
    %548 = vmatpush.bf16.msra.mxu0 0
    %549 = vmatpush.bf16.msra.mxu0 %v540
    %550 = vmatmul.bf16.gmra.mxu0 %v537
    %v551 = vpop.f32.mrf.mxu0
    %v552 = vadd.f32 0.0, %v551
    %v553 = vpop.f32.mrf.mxu0
    %554 = vdwg.mxu0
    %v556 = vunpack.c.l.b16 %v419
    %v557 = vpack.c.b16 %v556, %v556
    %558 = vrot.lane.b32.xlu0 %v557, 112
    %v559 = vpop.permute.xlu0 %558
    %v561 = vsel %vm393, %v530, 0
    %v564 = vsel %vm423, %v559, 0
    %566 = vmatpush.bf16.msra.mxu0 0
    %567 = vmatpush.bf16.msra.mxu0 0
    %568 = vmatpush.bf16.msra.mxu0 0
    %569 = vmatpush.bf16.msra.mxu0 0
    %570 = vmatpush.bf16.msra.mxu0 0
    %571 = vmatpush.bf16.msra.mxu0 0
    %572 = vmatpush.bf16.msra.mxu0 0
    %573 = vmatpush.bf16.msra.mxu0 %v564
    %574 = vmatmul.bf16.gmra.mxu0 %v561
    %v575 = vpop.f32.mrf.mxu0
    %v576 = vadd.f32 0.0, %v575
    %v577 = vpop.f32.mrf.mxu0
    %578 = vdwg.mxu0
    %581 = vrot.lane.b32.xlu0 %v552, 16
    %v582 = vpop.permute.xlu0 %581
    %583 = vrot.lane.b32.xlu0 %v576, 16
    %v584 = vpop.permute.xlu0 %583
    %vm587 = vcmask 261248
    %588 = vst.msk [vmem:[#allocation2] sm:$0xff] %vm587, %v582
    %589 = vst.msk [vmem:[#allocation2 + $0x8] sm:$0xff] %vm587, %v584
    %590 = vrot.lane.b32.xlu0 %v346, 96
    %v591 = vpop.permute.xlu0 %590
    %592 = vrot.lane.b32.xlu0 %v346, 32
    %v593 = vpop.permute.xlu0 %592
    %v595 = vsel %vm349, %v591, 0
    %v598 = vsel %vm349, %v593, 0
    %600 = vmatpush.bf16.xpose.msra.mxu0 0
    %601 = vmatpush.bf16.xpose.msra.mxu0 0
    %602 = vmatpush.bf16.xpose.msra.mxu0 0
    %603 = vmatpush.bf16.xpose.msra.mxu0 0
    %604 = vmatpush.bf16.xpose.msra.mxu0 0
    %605 = vmatpush.bf16.xpose.msra.mxu0 0
    %606 = vmatpush.bf16.xpose.msra.mxu0 0
    %607 = vmatpush.bf16.xpose.msra.mxu0 %v598
    %608 = vmatmul.bf16.gmra.mxu0 %v595
    %v609 = vpop.f32.mrf.mxu0
    %v610 = vadd.f32 %v340, %v609
    %v611 = vpop.f32.mrf.mxu0
    %612 = vdwg.mxu0
    %613 = vrot.lane.b32.xlu0 %v371, 96
    %v614 = vpop.permute.xlu0 %613
    %615 = vrot.lane.b32.xlu0 %v371, 32
    %v616 = vpop.permute.xlu0 %615
    %v618 = vsel %vm349, %v614, 0
    %v621 = vsel %vm349, %v616, 0
    %623 = vmatpush.bf16.xpose.msra.mxu0 0
    %624 = vmatpush.bf16.xpose.msra.mxu0 0
    %625 = vmatpush.bf16.xpose.msra.mxu0 0
    %626 = vmatpush.bf16.xpose.msra.mxu0 0
    %627 = vmatpush.bf16.xpose.msra.mxu0 0
    %628 = vmatpush.bf16.xpose.msra.mxu0 0
    %629 = vmatpush.bf16.xpose.msra.mxu0 0
    %630 = vmatpush.bf16.xpose.msra.mxu0 %v621
    %631 = vmatmul.bf16.gmra.mxu0 %v618
    %v632 = vpop.f32.mrf.mxu0
    %v633 = vadd.f32 %v341, %v632
    %v634 = vpop.f32.mrf.mxu0
    %635 = vdwg.mxu0
    %v636 = vsel %vm393, %v610, -inf
    %637 = vmax.xlane.f32.xlu0 %v636
    %v638 = vpop.xlane.xlu0 %637
    %v639 = vsel %vm393, %v633, -inf
    %640 = vmax.xlane.f32.xlu0 %v639
    %v641 = vpop.xlane.xlu0 %640
    %v642 = vsub.f32 %v610, %v638
    %v643 = vsub.f32 %v633, %v641
    %v644 = vmul.f32 %v642, 1.442695
    %v645 = vpow.pop %v644
    %v646 = vmul.f32 %v643, 1.442695
    %v647 = vpow.pop %v646
    %v648 = vsel %vm393, %v645, 0.0
    %649 = vadd.xlane.f32.xlu0 %v648
    %v650 = vpop.xlane.xlu0 %649
    %v651 = vsel %vm393, %v647, 0.0
    %652 = vadd.xlane.f32.xlu0 %v651
    %v653 = vpop.xlane.xlu0 %652
    %v654 = vrcp.pop %v650
    %v655 = vrcp.pop %v653
    %v656 = vmul.f32 %v645, %v654
    %v657 = vmul.f32 %v647, %v655
    %v658 = vpack.c.bf16 %v656, %v656
    %v659 = vpack.c.bf16 %v657, %v657
    %660 = vrot.lane.b32.xlu0 %v533, 96
    %v661 = vpop.permute.xlu0 %660
    %v663 = vsel %vm393, %v658, 0
    %v666 = vsel %vm423, %v661, 0
    %668 = vmatpush.bf16.msra.mxu0 0
    %669 = vmatpush.bf16.msra.mxu0 0
    %670 = vmatpush.bf16.msra.mxu0 0
    %671 = vmatpush.bf16.msra.mxu0 0
    %672 = vmatpush.bf16.msra.mxu0 0
    %673 = vmatpush.bf16.msra.mxu0 0
    %674 = vmatpush.bf16.msra.mxu0 0
    %675 = vmatpush.bf16.msra.mxu0 %v666
    %676 = vmatmul.bf16.gmra.mxu0 %v663
    %v677 = vpop.f32.mrf.mxu0
    %v678 = vadd.f32 0.0, %v677
    %v679 = vpop.f32.mrf.mxu0
    %680 = vdwg.mxu0
    %681 = vrot.lane.b32.xlu0 %v557, 96
    %v682 = vpop.permute.xlu0 %681
    %v684 = vsel %vm393, %v659, 0
    %v687 = vsel %vm423, %v682, 0
    %689 = vmatpush.bf16.msra.mxu0 0
    %690 = vmatpush.bf16.msra.mxu0 0
    %691 = vmatpush.bf16.msra.mxu0 0
    %692 = vmatpush.bf16.msra.mxu0 0
    %693 = vmatpush.bf16.msra.mxu0 0
    %694 = vmatpush.bf16.msra.mxu0 0
    %695 = vmatpush.bf16.msra.mxu0 0
    %696 = vmatpush.bf16.msra.mxu0 %v687
    %697 = vmatmul.bf16.gmra.mxu0 %v684
    %v698 = vpop.f32.mrf.mxu0
    %v699 = vadd.f32 0.0, %v698
    %v700 = vpop.f32.mrf.mxu0
    %701 = vdwg.mxu0
    %704 = vrot.lane.b32.xlu0 %v678, 32
    %v705 = vpop.permute.xlu0 %704
    %706 = vrot.lane.b32.xlu0 %v699, 32
    %v707 = vpop.permute.xlu0 %706
    %vm710 = vcmask 392448
    %711 = vst.msk [vmem:[#allocation2] sm:$0xff] %vm710, %v705
    %712 = vst.msk [vmem:[#allocation2 + $0x8] sm:$0xff] %vm710, %v707
    %713 = vrot.lane.b32.xlu0 %v346, 80
    %v714 = vpop.permute.xlu0 %713
    %715 = vrot.lane.b32.xlu0 %v346, 16
    %v716 = vpop.permute.xlu0 %715
    %v718 = vsel %vm349, %v714, 0
    %v721 = vsel %vm349, %v716, 0
    %723 = vmatpush.bf16.xpose.msra.mxu0 0
    %724 = vmatpush.bf16.xpose.msra.mxu0 0
    %725 = vmatpush.bf16.xpose.msra.mxu0 0
    %726 = vmatpush.bf16.xpose.msra.mxu0 0
    %727 = vmatpush.bf16.xpose.msra.mxu0 0
    %728 = vmatpush.bf16.xpose.msra.mxu0 0
    %729 = vmatpush.bf16.xpose.msra.mxu0 0
    %730 = vmatpush.bf16.xpose.msra.mxu0 %v721
    %731 = vmatmul.bf16.gmra.mxu0 %v718
    %v732 = vpop.f32.mrf.mxu0
    %v733 = vadd.f32 %v340, %v732
    %v734 = vpop.f32.mrf.mxu0
    %735 = vdwg.mxu0
    %736 = vrot.lane.b32.xlu0 %v371, 80
    %v737 = vpop.permute.xlu0 %736
    %738 = vrot.lane.b32.xlu0 %v371, 16
    %v739 = vpop.permute.xlu0 %738
    %v741 = vsel %vm349, %v737, 0
    %v744 = vsel %vm349, %v739, 0
    %746 = vmatpush.bf16.xpose.msra.mxu0 0
    %747 = vmatpush.bf16.xpose.msra.mxu0 0
    %748 = vmatpush.bf16.xpose.msra.mxu0 0
    %749 = vmatpush.bf16.xpose.msra.mxu0 0
    %750 = vmatpush.bf16.xpose.msra.mxu0 0
    %751 = vmatpush.bf16.xpose.msra.mxu0 0
    %752 = vmatpush.bf16.xpose.msra.mxu0 0
    %753 = vmatpush.bf16.xpose.msra.mxu0 %v744
    %754 = vmatmul.bf16.gmra.mxu0 %v741
    %v755 = vpop.f32.mrf.mxu0
    %v756 = vadd.f32 %v341, %v755
    %v757 = vpop.f32.mrf.mxu0
    %758 = vdwg.mxu0
    %v759 = vsel %vm393, %v733, -inf
    %760 = vmax.xlane.f32.xlu0 %v759
    %v761 = vpop.xlane.xlu0 %760
    %v762 = vsel %vm393, %v756, -inf
    %763 = vmax.xlane.f32.xlu0 %v762
    %v764 = vpop.xlane.xlu0 %763
    %v765 = vsub.f32 %v733, %v761
    %v766 = vsub.f32 %v756, %v764
    %v767 = vmul.f32 %v765, 1.442695
    %v768 = vpow.pop %v767
    %v769 = vmul.f32 %v766, 1.442695
    %v770 = vpow.pop %v769
    %v771 = vsel %vm393, %v768, 0.0
    %772 = vadd.xlane.f32.xlu0 %v771
    %v773 = vpop.xlane.xlu0 %772
    %v774 = vsel %vm393, %v770, 0.0
    %775 = vadd.xlane.f32.xlu0 %v774
    %v776 = vpop.xlane.xlu0 %775
    %v777 = vrcp.pop %v773
    %v778 = vrcp.pop %v776
    %v779 = vmul.f32 %v768, %v777
    %v780 = vmul.f32 %v770, %v778
    %v781 = vpack.c.bf16 %v779, %v779
    %v782 = vpack.c.bf16 %v780, %v780
    %783 = vrot.lane.b32.xlu0 %v533, 80
    %v784 = vpop.permute.xlu0 %783
    %v786 = vsel %vm393, %v781, 0
    %v789 = vsel %vm423, %v784, 0
    %791 = vmatpush.bf16.msra.mxu0 0
    %792 = vmatpush.bf16.msra.mxu0 0
    %793 = vmatpush.bf16.msra.mxu0 0
    %794 = vmatpush.bf16.msra.mxu0 0
    %795 = vmatpush.bf16.msra.mxu0 0
    %796 = vmatpush.bf16.msra.mxu0 0
    %797 = vmatpush.bf16.msra.mxu0 0
    %798 = vmatpush.bf16.msra.mxu0 %v789
    %799 = vmatmul.bf16.gmra.mxu0 %v786
    %v800 = vpop.f32.mrf.mxu0
    %v801 = vadd.f32 0.0, %v800
    %v802 = vpop.f32.mrf.mxu0
    %803 = vdwg.mxu0
    %804 = vrot.lane.b32.xlu0 %v557, 80
    %v805 = vpop.permute.xlu0 %804
    %v807 = vsel %vm393, %v782, 0
    %v810 = vsel %vm423, %v805, 0
    %812 = vmatpush.bf16.msra.mxu0 0
    %813 = vmatpush.bf16.msra.mxu0 0
    %814 = vmatpush.bf16.msra.mxu0 0
    %815 = vmatpush.bf16.msra.mxu0 0
    %816 = vmatpush.bf16.msra.mxu0 0
    %817 = vmatpush.bf16.msra.mxu0 0
    %818 = vmatpush.bf16.msra.mxu0 0
    %819 = vmatpush.bf16.msra.mxu0 %v810
    %820 = vmatmul.bf16.gmra.mxu0 %v807
    %v821 = vpop.f32.mrf.mxu0
    %v822 = vadd.f32 0.0, %v821
    %v823 = vpop.f32.mrf.mxu0
    %824 = vdwg.mxu0
    %827 = vrot.lane.b32.xlu0 %v801, 48
    %v828 = vpop.permute.xlu0 %827
    %829 = vrot.lane.b32.xlu0 %v822, 48
    %v830 = vpop.permute.xlu0 %829
    %vm833 = vcmask 523648
    %834 = vst.msk [vmem:[#allocation2] sm:$0xff] %vm833, %v828
    %835 = vst.msk [vmem:[#allocation2 + $0x8] sm:$0xff] %vm833, %v830
    %v836 = vld [vmem:[#allocation2] sm:$0xff]
    %v837 = vld [vmem:[#allocation2 + $0x8] sm:$0xff]
    %v838 = vpack.c.bf16 %v837, %v836
    %v839 = vld [vmem:[%s6] sm:$0xf]
    %v840 = vld [vmem:[%s6 + $0x4] sm:$0xf]
    %v841 = vld [vmem:[%s6 + $0x8] sm:$0xf]
    %v842 = vld [vmem:[%s6 + $0xc] sm:$0xf]
    %v843 = vld [vmem:[%s6 + $0x10] sm:$0xf]
    %v844 = vld [vmem:[%s6 + $0x14] sm:$0xf]
    %v845 = vld [vmem:[%s6 + $0x18] sm:$0xf]
    %v846 = vld [vmem:[%s6 + $0x1c] sm:$0xf]
    %v847 = vld [vmem:[%s7] sm:$0x1]
    %v849 = vperm.slane %v847, 0
    %v859 = vunpack.c.l.b16 %v839
    %v860 = vunpack.c.l.b16 %v840
    %v861 = vunpack.c.l.b16 %v841
    %v862 = vunpack.c.l.b16 %v842
    %v863 = vunpack.c.l.b16 %v843
    %v864 = vunpack.c.l.b16 %v844
    %v865 = vunpack.c.l.b16 %v845
    %v866 = vunpack.c.l.b16 %v846
    %v867 = vpack.c.b16 %v860, %v859
    %v868 = vpack.c.b16 %v862, %v861
    %v869 = vpack.c.b16 %v864, %v863
    %v870 = vpack.c.b16 %v866, %v865
    %v876 = vsel %vm302, %v838, 0
    %878 = vmatpush.bf16.msra.mxu0 0
    %879 = vmatpush.bf16.msra.mxu0 0
    %880 = vmatpush.bf16.msra.mxu0 0
    %881 = vmatpush.bf16.msra.mxu0 0
    %882 = vmatpush.bf16.msra.mxu0 %v870
    %883 = vmatpush.bf16.msra.mxu0 %v869
    %884 = vmatpush.bf16.msra.mxu0 %v868
    %885 = vmatpush.bf16.msra.mxu0 %v867
    %886 = vmatmul.bf16.gmra.mxu0 %v876
    %v887 = vpop.f32.mrf.mxu0
    %v888 = vadd.f32 %v849, %v887
    %v889 = vpop.f32.mrf.mxu0
    %v890 = vadd.f32 %v849, %v889
    %891 = vdwg.mxu0
    %v892 = vadd.f32 %v245, %v888
    %v893 = vadd.f32 %v246, %v890
    %v894 = vld [vmem:[%s8] sm:$0x1]
    %v895 = vld [vmem:[#allocation3] sm:$0x1]
    %v896 = vsel %vm302, %v892, 0.0
    %897 = vadd.xlane.f32.xlu0 %v896
    %v898 = vpop.xlane.xlu0 %897
    %v899 = vsel %vm302, %v893, 0.0
    %900 = vadd.xlane.f32.xlu0 %v899
    %v901 = vpop.xlane.xlu0 %900
    %v902 = vrcp.pop 64.0
    %v903 = vmul.f32 64.0, %v902
    %v904 = vsub.f32 1.0, %v903
    %v905 = vmul.f32 %v902, %v904
    %v906 = vadd.f32 %v902, %v905
    %vm907 = vweird.f32 %v902
    %v908 = vsel %vm907, %v902, %v906
    %v909 = vmul.f32 %v898, %v908
    %v910 = vmul.f32 %v901, %v908
    %v911 = vsub.f32 %v892, %v909
    %v912 = vsub.f32 %v893, %v910
    %v913 = vmul.f32 %v911, %v911
    %v914 = vmul.f32 %v912, %v912
    %v915 = vsel %vm302, %v913, 0.0
    %916 = vadd.xlane.f32.xlu0 %v915
    %v917 = vpop.xlane.xlu0 %916
    %v918 = vsel %vm302, %v914, 0.0
    %919 = vadd.xlane.f32.xlu0 %v918
    %v920 = vpop.xlane.xlu0 %919
    %v921 = vmul.f32 %v917, %v908
    %v922 = vmul.f32 %v920, %v908
    %v923 = vadd.f32 %v921, 1e-05
    %v924 = vadd.f32 %v922, 1e-05
    %v925 = vrsqrt.pop %v923
    %v926 = vmul.f32 %v925, %v923
    %v927 = vmul.f32 %v926, %v925
    %v928 = vmul.f32 0.5, %v927
    %v929 = vsub.f32 1.5, %v928
    %v930 = vmul.f32 %v925, %v929
    %vm931 = vweird.f32 %v923
    %vm932 = vweird.f32 %v925
    %vm933 = vmor %vm931, %vm932
    %v934 = vsel %vm933, %v925, %v930
    %v935 = vrsqrt.pop %v924
    %v936 = vmul.f32 %v935, %v924
    %v937 = vmul.f32 %v936, %v935
    %v938 = vmul.f32 0.5, %v937
    %v939 = vsub.f32 1.5, %v938
    %v940 = vmul.f32 %v935, %v939
    %vm941 = vweird.f32 %v924
    %vm942 = vweird.f32 %v935
    %vm943 = vmor %vm941, %vm942
    %v944 = vsel %vm943, %v935, %v940
    %v945 = vmul.f32 %v911, %v934
    %v946 = vmul.f32 %v912, %v944
    %v948 = vperm.slane %v894, 0
    %v950 = vmul.f32 %v945, %v948
    %v951 = vmul.f32 %v946, %v948
    %v953 = vperm.slane %v895, 0
    %v955 = vadd.f32 %v950, %v953
    %v956 = vadd.f32 %v951, %v953
    %v957 = vpack.c.bf16 %v956, %v955
    %v958 = vld [vmem:[%s10] sm:$0xf]
    %v959 = vld [vmem:[%s10 + $0x4] sm:$0xf]
    %v960 = vld [vmem:[%s10 + $0x8] sm:$0xf]
    %v961 = vld [vmem:[%s10 + $0xc] sm:$0xf]
    %v962 = vld [vmem:[%s10 + $0x10] sm:$0xf]
    %v963 = vld [vmem:[%s10 + $0x14] sm:$0xf]
    %v964 = vld [vmem:[%s10 + $0x18] sm:$0xf]
    %v965 = vld [vmem:[%s10 + $0x1c] sm:$0xf]
    %v966 = vld [vmem:[#allocation5] sm:$0x1]
    %v968 = vperm.slane %v966, 0
    %v978 = vunpack.c.l.b16 %v958
    %v979 = vunpack.c.l.b16 %v959
    %v980 = vunpack.c.l.b16 %v960
    %v981 = vunpack.c.l.b16 %v961
    %v982 = vunpack.c.l.b16 %v962
    %v983 = vunpack.c.l.b16 %v963
    %v984 = vunpack.c.l.b16 %v964
    %v985 = vunpack.c.l.b16 %v965
    %v986 = vpack.c.b16 %v979, %v978
    %v987 = vpack.c.b16 %v981, %v980
    %v988 = vpack.c.b16 %v983, %v982
    %v989 = vpack.c.b16 %v985, %v984
    %v995 = vsel %vm302, %v957, 0
    %997 = vmatpush.bf16.msra.mxu0 0
    %998 = vmatpush.bf16.msra.mxu0 0
    %999 = vmatpush.bf16.msra.mxu0 0
    %1000 = vmatpush.bf16.msra.mxu0 0
    %1001 = vmatpush.bf16.msra.mxu0 %v989
    %1002 = vmatpush.bf16.msra.mxu0 %v988
    %1003 = vmatpush.bf16.msra.mxu0 %v987
    %1004 = vmatpush.bf16.msra.mxu0 %v986
    %1005 = vmatmul.bf16.gmra.mxu0 %v995
    %v1006 = vpop.f32.mrf.mxu0
    %v1007 = vadd.f32 %v968, %v1006
    %v1008 = vpop.f32.mrf.mxu0
    %v1009 = vadd.f32 %v968, %v1008
    %1010 = vdwg.mxu0
    %v1011 = vld [vmem:[%s1] sm:$0xff]
    %v1012 = vld [vmem:[%s1 + $0x8] sm:$0xff]
    %v1013 = vpack.c.bf16 %v1012, %v1011
    %v1014 = vld [vmem:[%s12] sm:$0xf]
    %v1015 = vld [vmem:[%s12 + $0x4] sm:$0xf]
    %v1016 = vld [vmem:[%s12 + $0x8] sm:$0xf]
    %v1017 = vld [vmem:[%s12 + $0xc] sm:$0xf]
    %v1018 = vld [vmem:[%s12 + $0x10] sm:$0xf]
    %v1019 = vld [vmem:[%s12 + $0x14] sm:$0xf]
    %v1020 = vld [vmem:[%s12 + $0x18] sm:$0xf]
    %v1021 = vld [vmem:[%s12 + $0x1c] sm:$0xf]
    %v1022 = vld [vmem:[#allocation7] sm:$0x1]
    %v1024 = vperm.slane %v1022, 0
    %v1034 = vunpack.c.l.b16 %v1014
    %v1035 = vunpack.c.l.b16 %v1015
    %v1036 = vunpack.c.l.b16 %v1016
    %v1037 = vunpack.c.l.b16 %v1017
    %v1038 = vunpack.c.l.b16 %v1018
    %v1039 = vunpack.c.l.b16 %v1019
    %v1040 = vunpack.c.l.b16 %v1020
    %v1041 = vunpack.c.l.b16 %v1021
    %v1042 = vpack.c.b16 %v1035, %v1034
    %v1043 = vpack.c.b16 %v1037, %v1036
    %v1044 = vpack.c.b16 %v1039, %v1038
    %v1045 = vpack.c.b16 %v1041, %v1040
    %v1051 = vsel %vm302, %v1013, 0
    %1053 = vmatpush.bf16.msra.mxu0 0
    %1054 = vmatpush.bf16.msra.mxu0 0
    %1055 = vmatpush.bf16.msra.mxu0 0
    %1056 = vmatpush.bf16.msra.mxu0 0
    %1057 = vmatpush.bf16.msra.mxu0 %v1045
    %1058 = vmatpush.bf16.msra.mxu0 %v1044
    %1059 = vmatpush.bf16.msra.mxu0 %v1043
    %1060 = vmatpush.bf16.msra.mxu0 %v1042
    %1061 = vmatmul.bf16.gmra.mxu0 %v1051
    %v1062 = vpop.f32.mrf.mxu0
    %v1063 = vadd.f32 %v1024, %v1062
    %v1064 = vpop.f32.mrf.mxu0
    %v1065 = vadd.f32 %v1024, %v1064
    %1066 = vdwg.mxu0
    %v1067 = vld [vmem:[%s3] sm:$0x1]
    %v1068 = vld [vmem:[%s3 + $0x1] sm:$0x1]
    %v1069 = vpack.c.bf16 %v1007, %v1007
    %v1070 = vpack.c.bf16 %v1009, %v1009
    %v1071 = vpack.c.bf16 %v1063, %v1063
    %v1072 = vpack.c.bf16 %v1065, %v1065
    %v1075 = vperm.slane %v1067, 0
    %v1076 = vperm.slane %v1068, 0
    %v1080 = vsel %vm349, %v1069, 0
    %v1083 = vsel %vm349, %v1071, 0
    %1085 = vmatpush.bf16.xpose.msra.mxu0 0
    %1086 = vmatpush.bf16.xpose.msra.mxu0 0
    %1087 = vmatpush.bf16.xpose.msra.mxu0 0
    %1088 = vmatpush.bf16.xpose.msra.mxu0 0
    %1089 = vmatpush.bf16.xpose.msra.mxu0 0
    %1090 = vmatpush.bf16.xpose.msra.mxu0 0
    %1091 = vmatpush.bf16.xpose.msra.mxu0 0
    %1092 = vmatpush.bf16.xpose.msra.mxu0 %v1083
    %1093 = vmatmul.bf16.gmra.mxu0 %v1080
    %v1094 = vpop.f32.mrf.mxu0
    %v1095 = vadd.f32 %v1075, %v1094
    %v1096 = vpop.f32.mrf.mxu0
    %1097 = vdwg.mxu0
    %v1099 = vsel %vm349, %v1070, 0
    %v1102 = vsel %vm349, %v1072, 0
    %1104 = vmatpush.bf16.xpose.msra.mxu0 0
    %1105 = vmatpush.bf16.xpose.msra.mxu0 0
    %1106 = vmatpush.bf16.xpose.msra.mxu0 0
    %1107 = vmatpush.bf16.xpose.msra.mxu0 0
    %1108 = vmatpush.bf16.xpose.msra.mxu0 0
    %1109 = vmatpush.bf16.xpose.msra.mxu0 0
    %1110 = vmatpush.bf16.xpose.msra.mxu0 0
    %1111 = vmatpush.bf16.xpose.msra.mxu0 %v1102
    %1112 = vmatmul.bf16.gmra.mxu0 %v1099
    %v1113 = vpop.f32.mrf.mxu0
    %v1114 = vadd.f32 %v1076, %v1113
    %v1115 = vpop.f32.mrf.mxu0
    %1116 = vdwg.mxu0
    %v1117 = vsel %vm393, %v1095, -inf
    %1118 = vmax.xlane.f32.xlu0 %v1117
    %v1119 = vpop.xlane.xlu0 %1118
    %v1120 = vsel %vm393, %v1114, -inf
    %1121 = vmax.xlane.f32.xlu0 %v1120
    %v1122 = vpop.xlane.xlu0 %1121
    %v1123 = vsub.f32 %v1095, %v1119
    %v1124 = vsub.f32 %v1114, %v1122
    %v1125 = vmul.f32 %v1123, 1.442695
    %v1126 = vpow.pop %v1125
    %v1127 = vmul.f32 %v1124, 1.442695
    %v1128 = vpow.pop %v1127
    %v1129 = vsel %vm393, %v1126, 0.0
    %1130 = vadd.xlane.f32.xlu0 %v1129
    %v1131 = vpop.xlane.xlu0 %1130
    %v1132 = vsel %vm393, %v1128, 0.0
    %1133 = vadd.xlane.f32.xlu0 %v1132
    %v1134 = vpop.xlane.xlu0 %1133
    %v1135 = vrcp.pop %v1131
    %v1136 = vrcp.pop %v1134
    %v1137 = vmul.f32 %v1126, %v1135
    %v1138 = vmul.f32 %v1128, %v1136
    %v1139 = vpack.c.bf16 %v1137, %v1137
    %v1140 = vpack.c.bf16 %v1138, %v1138
    %v1142 = vunpack.c.l.b16 %v1071
    %v1143 = vpack.c.b16 %v1142, %v1142
    %1144 = vrot.lane.b32.xlu0 %v1143, 64
    %v1145 = vpop.permute.xlu0 %1144
    %v1147 = vsel %vm393, %v1139, 0
    %v1150 = vsel %vm423, %v1145, 0
    %1152 = vmatpush.bf16.msra.mxu0 0
    %1153 = vmatpush.bf16.msra.mxu0 0
    %1154 = vmatpush.bf16.msra.mxu0 0
    %1155 = vmatpush.bf16.msra.mxu0 0
    %1156 = vmatpush.bf16.msra.mxu0 0
    %1157 = vmatpush.bf16.msra.mxu0 0
    %1158 = vmatpush.bf16.msra.mxu0 0
    %1159 = vmatpush.bf16.msra.mxu0 %v1150
    %1160 = vmatmul.bf16.gmra.mxu0 %v1147
    %v1161 = vpop.f32.mrf.mxu0
    %v1162 = vadd.f32 0.0, %v1161
    %v1163 = vpop.f32.mrf.mxu0
    %1164 = vdwg.mxu0
    %v1166 = vunpack.c.l.b16 %v1072
    %v1167 = vpack.c.b16 %v1166, %v1166
    %1168 = vrot.lane.b32.xlu0 %v1167, 64
    %v1169 = vpop.permute.xlu0 %1168
    %v1171 = vsel %vm393, %v1140, 0
    %v1174 = vsel %vm423, %v1169, 0
    %1176 = vmatpush.bf16.msra.mxu0 0
    %1177 = vmatpush.bf16.msra.mxu0 0
    %1178 = vmatpush.bf16.msra.mxu0 0
    %1179 = vmatpush.bf16.msra.mxu0 0
    %1180 = vmatpush.bf16.msra.mxu0 0
    %1181 = vmatpush.bf16.msra.mxu0 0
    %1182 = vmatpush.bf16.msra.mxu0 0
    %1183 = vmatpush.bf16.msra.mxu0 %v1174
    %1184 = vmatmul.bf16.gmra.mxu0 %v1171
    %v1185 = vpop.f32.mrf.mxu0
    %v1186 = vadd.f32 0.0, %v1185
    %v1187 = vpop.f32.mrf.mxu0
    %1188 = vdwg.mxu0
    %1189 = vst.msk [vmem:[#allocation2] sm:$0xff] %vm349, %v1162
    %1190 = vst.msk [vmem:[#allocation2 + $0x8] sm:$0xff] %vm349, %v1186
    %v1192 = vunpack.c.l.b16 %v1069
    %v1193 = vpack.c.b16 %v1192, %v1192
    %1194 = vrot.lane.b32.xlu0 %v1193, 112
    %v1195 = vpop.permute.xlu0 %1194
    %1196 = vrot.lane.b32.xlu0 %v1143, 112
    %v1197 = vpop.permute.xlu0 %1196
    %v1199 = vsel %vm349, %v1195, 0
    %v1202 = vsel %vm349, %v1197, 0
    %1204 = vmatpush.bf16.xpose.msra.mxu0 0
    %1205 = vmatpush.bf16.xpose.msra.mxu0 0
    %1206 = vmatpush.bf16.xpose.msra.mxu0 0
    %1207 = vmatpush.bf16.xpose.msra.mxu0 0
    %1208 = vmatpush.bf16.xpose.msra.mxu0 0
    %1209 = vmatpush.bf16.xpose.msra.mxu0 0
    %1210 = vmatpush.bf16.xpose.msra.mxu0 0
    %1211 = vmatpush.bf16.xpose.msra.mxu0 %v1202
    %1212 = vmatmul.bf16.gmra.mxu0 %v1199
    %v1213 = vpop.f32.mrf.mxu0
    %v1214 = vadd.f32 %v1075, %v1213
    %v1215 = vpop.f32.mrf.mxu0
    %1216 = vdwg.mxu0
    %v1218 = vunpack.c.l.b16 %v1070
    %v1219 = vpack.c.b16 %v1218, %v1218
    %1220 = vrot.lane.b32.xlu0 %v1219, 112
    %v1221 = vpop.permute.xlu0 %1220
    %1222 = vrot.lane.b32.xlu0 %v1167, 112
    %v1223 = vpop.permute.xlu0 %1222
    %v1225 = vsel %vm349, %v1221, 0
    %v1228 = vsel %vm349, %v1223, 0
    %1230 = vmatpush.bf16.xpose.msra.mxu0 0
    %1231 = vmatpush.bf16.xpose.msra.mxu0 0
    %1232 = vmatpush.bf16.xpose.msra.mxu0 0
    %1233 = vmatpush.bf16.xpose.msra.mxu0 0
    %1234 = vmatpush.bf16.xpose.msra.mxu0 0
    %1235 = vmatpush.bf16.xpose.msra.mxu0 0
    %1236 = vmatpush.bf16.xpose.msra.mxu0 0
    %1237 = vmatpush.bf16.xpose.msra.mxu0 %v1228
    %1238 = vmatmul.bf16.gmra.mxu0 %v1225
    %v1239 = vpop.f32.mrf.mxu0
    %v1240 = vadd.f32 %v1076, %v1239
    %v1241 = vpop.f32.mrf.mxu0
    %1242 = vdwg.mxu0
    %v1243 = vsel %vm393, %v1214, -inf
    %1244 = vmax.xlane.f32.xlu0 %v1243
    %v1245 = vpop.xlane.xlu0 %1244
    %v1246 = vsel %vm393, %v1240, -inf
    %1247 = vmax.xlane.f32.xlu0 %v1246
    %v1248 = vpop.xlane.xlu0 %1247
    %v1249 = vsub.f32 %v1214, %v1245
    %v1250 = vsub.f32 %v1240, %v1248
    %v1251 = vmul.f32 %v1249, 1.442695
    %v1252 = vpow.pop %v1251
    %v1253 = vmul.f32 %v1250, 1.442695
    %v1254 = vpow.pop %v1253
    %v1255 = vsel %vm393, %v1252, 0.0
    %1256 = vadd.xlane.f32.xlu0 %v1255
    %v1257 = vpop.xlane.xlu0 %1256
    %v1258 = vsel %vm393, %v1254, 0.0
    %1259 = vadd.xlane.f32.xlu0 %v1258
    %v1260 = vpop.xlane.xlu0 %1259
    %v1261 = vrcp.pop %v1257
    %v1262 = vrcp.pop %v1260
    %v1263 = vmul.f32 %v1252, %v1261
    %v1264 = vmul.f32 %v1254, %v1262
    %v1265 = vpack.c.bf16 %v1263, %v1263
    %v1266 = vpack.c.bf16 %v1264, %v1264
    %1267 = vrot.lane.b32.xlu0 %v1143, 48
    %v1268 = vpop.permute.xlu0 %1267
    %v1270 = vsel %vm393, %v1265, 0
    %v1273 = vsel %vm423, %v1268, 0
    %1275 = vmatpush.bf16.msra.mxu0 0
    %1276 = vmatpush.bf16.msra.mxu0 0
    %1277 = vmatpush.bf16.msra.mxu0 0
    %1278 = vmatpush.bf16.msra.mxu0 0
    %1279 = vmatpush.bf16.msra.mxu0 0
    %1280 = vmatpush.bf16.msra.mxu0 0
    %1281 = vmatpush.bf16.msra.mxu0 0
    %1282 = vmatpush.bf16.msra.mxu0 %v1273
    %1283 = vmatmul.bf16.gmra.mxu0 %v1270
    %v1284 = vpop.f32.mrf.mxu0
    %v1285 = vadd.f32 0.0, %v1284
    %v1286 = vpop.f32.mrf.mxu0
    %1287 = vdwg.mxu0
    %1288 = vrot.lane.b32.xlu0 %v1167, 48
    %v1289 = vpop.permute.xlu0 %1288
    %v1291 = vsel %vm393, %v1266, 0
    %v1294 = vsel %vm423, %v1289, 0
    %1296 = vmatpush.bf16.msra.mxu0 0
    %1297 = vmatpush.bf16.msra.mxu0 0
    %1298 = vmatpush.bf16.msra.mxu0 0
    %1299 = vmatpush.bf16.msra.mxu0 0
    %1300 = vmatpush.bf16.msra.mxu0 0
    %1301 = vmatpush.bf16.msra.mxu0 0
    %1302 = vmatpush.bf16.msra.mxu0 0
    %1303 = vmatpush.bf16.msra.mxu0 %v1294
    %1304 = vmatmul.bf16.gmra.mxu0 %v1291
    %v1305 = vpop.f32.mrf.mxu0
    %v1306 = vadd.f32 0.0, %v1305
    %v1307 = vpop.f32.mrf.mxu0
    %1308 = vdwg.mxu0
    %1311 = vrot.lane.b32.xlu0 %v1285, 16
    %v1312 = vpop.permute.xlu0 %1311
    %1313 = vrot.lane.b32.xlu0 %v1306, 16
    %v1314 = vpop.permute.xlu0 %1313
    %1317 = vst.msk [vmem:[#allocation2] sm:$0xff] %vm587, %v1312
    %1318 = vst.msk [vmem:[#allocation2 + $0x8] sm:$0xff] %vm587, %v1314
    %1319 = vrot.lane.b32.xlu0 %v1193, 96
    %v1320 = vpop.permute.xlu0 %1319
    %1321 = vrot.lane.b32.xlu0 %v1143, 96
    %v1322 = vpop.permute.xlu0 %1321
    %v1324 = vsel %vm349, %v1320, 0
    %v1327 = vsel %vm349, %v1322, 0
    %1329 = vmatpush.bf16.xpose.msra.mxu0 0
    %1330 = vmatpush.bf16.xpose.msra.mxu0 0
    %1331 = vmatpush.bf16.xpose.msra.mxu0 0
    %1332 = vmatpush.bf16.xpose.msra.mxu0 0
    %1333 = vmatpush.bf16.xpose.msra.mxu0 0
    %1334 = vmatpush.bf16.xpose.msra.mxu0 0
    %1335 = vmatpush.bf16.xpose.msra.mxu0 0
    %1336 = vmatpush.bf16.xpose.msra.mxu0 %v1327
    %1337 = vmatmul.bf16.gmra.mxu0 %v1324
    %v1338 = vpop.f32.mrf.mxu0
    %v1339 = vadd.f32 %v1075, %v1338
    %v1340 = vpop.f32.mrf.mxu0
    %1341 = vdwg.mxu0
    %1342 = vrot.lane.b32.xlu0 %v1219, 96
    %v1343 = vpop.permute.xlu0 %1342
    %1344 = vrot.lane.b32.xlu0 %v1167, 96
    %v1345 = vpop.permute.xlu0 %1344
    %v1347 = vsel %vm349, %v1343, 0
    %v1350 = vsel %vm349, %v1345, 0
    %1352 = vmatpush.bf16.xpose.msra.mxu0 0
    %1353 = vmatpush.bf16.xpose.msra.mxu0 0
    %1354 = vmatpush.bf16.xpose.msra.mxu0 0
    %1355 = vmatpush.bf16.xpose.msra.mxu0 0
    %1356 = vmatpush.bf16.xpose.msra.mxu0 0
    %1357 = vmatpush.bf16.xpose.msra.mxu0 0
    %1358 = vmatpush.bf16.xpose.msra.mxu0 0
    %1359 = vmatpush.bf16.xpose.msra.mxu0 %v1350
    %1360 = vmatmul.bf16.gmra.mxu0 %v1347
    %v1361 = vpop.f32.mrf.mxu0
    %v1362 = vadd.f32 %v1076, %v1361
    %v1363 = vpop.f32.mrf.mxu0
    %1364 = vdwg.mxu0
    %v1365 = vsel %vm393, %v1339, -inf
    %1366 = vmax.xlane.f32.xlu0 %v1365
    %v1367 = vpop.xlane.xlu0 %1366
    %v1368 = vsel %vm393, %v1362, -inf
    %1369 = vmax.xlane.f32.xlu0 %v1368
    %v1370 = vpop.xlane.xlu0 %1369
    %v1371 = vsub.f32 %v1339, %v1367
    %v1372 = vsub.f32 %v1362, %v1370
    %v1373 = vmul.f32 %v1371, 1.442695
    %v1374 = vpow.pop %v1373
    %v1375 = vmul.f32 %v1372, 1.442695
    %v1376 = vpow.pop %v1375
    %v1377 = vsel %vm393, %v1374, 0.0
    %1378 = vadd.xlane.f32.xlu0 %v1377
    %v1379 = vpop.xlane.xlu0 %1378
    %v1380 = vsel %vm393, %v1376, 0.0
    %1381 = vadd.xlane.f32.xlu0 %v1380
    %v1382 = vpop.xlane.xlu0 %1381
    %v1383 = vrcp.pop %v1379
    %v1384 = vrcp.pop %v1382
    %v1385 = vmul.f32 %v1374, %v1383
    %v1386 = vmul.f32 %v1376, %v1384
    %v1387 = vpack.c.bf16 %v1385, %v1385
    %v1388 = vpack.c.bf16 %v1386, %v1386
    %1389 = vrot.lane.b32.xlu0 %v1143, 32
    %v1390 = vpop.permute.xlu0 %1389
    %v1392 = vsel %vm393, %v1387, 0
    %v1395 = vsel %vm423, %v1390, 0
    %1397 = vmatpush.bf16.msra.mxu0 0
    %1398 = vmatpush.bf16.msra.mxu0 0
    %1399 = vmatpush.bf16.msra.mxu0 0
    %1400 = vmatpush.bf16.msra.mxu0 0
    %1401 = vmatpush.bf16.msra.mxu0 0
    %1402 = vmatpush.bf16.msra.mxu0 0
    %1403 = vmatpush.bf16.msra.mxu0 0
    %1404 = vmatpush.bf16.msra.mxu0 %v1395
    %1405 = vmatmul.bf16.gmra.mxu0 %v1392
    %v1406 = vpop.f32.mrf.mxu0
    %v1407 = vadd.f32 0.0, %v1406
    %v1408 = vpop.f32.mrf.mxu0
    %1409 = vdwg.mxu0
    %1410 = vrot.lane.b32.xlu0 %v1167, 32
    %v1411 = vpop.permute.xlu0 %1410
    %v1413 = vsel %vm393, %v1388, 0
    %v1416 = vsel %vm423, %v1411, 0
    %1418 = vmatpush.bf16.msra.mxu0 0
    %1419 = vmatpush.bf16.msra.mxu0 0
    %1420 = vmatpush.bf16.msra.mxu0 0
    %1421 = vmatpush.bf16.msra.mxu0 0
    %1422 = vmatpush.bf16.msra.mxu0 0
    %1423 = vmatpush.bf16.msra.mxu0 0
    %1424 = vmatpush.bf16.msra.mxu0 0
    %1425 = vmatpush.bf16.msra.mxu0 %v1416
    %1426 = vmatmul.bf16.gmra.mxu0 %v1413
    %v1427 = vpop.f32.mrf.mxu0
    %v1428 = vadd.f32 0.0, %v1427
    %v1429 = vpop.f32.mrf.mxu0
    %1430 = vdwg.mxu0
    %1433 = vrot.lane.b32.xlu0 %v1407, 32
    %v1434 = vpop.permute.xlu0 %1433
    %1435 = vrot.lane.b32.xlu0 %v1428, 32
    %v1436 = vpop.permute.xlu0 %1435
    %1439 = vst.msk [vmem:[#allocation2] sm:$0xff] %vm710, %v1434
    %1440 = vst.msk [vmem:[#allocation2 + $0x8] sm:$0xff] %vm710, %v1436
    %1441 = vrot.lane.b32.xlu0 %v1193, 80
    %v1442 = vpop.permute.xlu0 %1441
    %1443 = vrot.lane.b32.xlu0 %v1143, 80
    %v1444 = vpop.permute.xlu0 %1443
    %v1446 = vsel %vm349, %v1442, 0
    %v1449 = vsel %vm349, %v1444, 0
    %1451 = vmatpush.bf16.xpose.msra.mxu0 0
    %1452 = vmatpush.bf16.xpose.msra.mxu0 0
    %1453 = vmatpush.bf16.xpose.msra.mxu0 0
    %1454 = vmatpush.bf16.xpose.msra.mxu0 0
    %1455 = vmatpush.bf16.xpose.msra.mxu0 0
    %1456 = vmatpush.bf16.xpose.msra.mxu0 0
    %1457 = vmatpush.bf16.xpose.msra.mxu0 0
    %1458 = vmatpush.bf16.xpose.msra.mxu0 %v1449
    %1459 = vmatmul.bf16.gmra.mxu0 %v1446
    %v1460 = vpop.f32.mrf.mxu0
    %v1461 = vadd.f32 %v1075, %v1460
    %v1462 = vpop.f32.mrf.mxu0
    %1463 = vdwg.mxu0
    %1464 = vrot.lane.b32.xlu0 %v1219, 80
    %v1465 = vpop.permute.xlu0 %1464
    %1466 = vrot.lane.b32.xlu0 %v1167, 80
    %v1467 = vpop.permute.xlu0 %1466
    %v1469 = vsel %vm349, %v1465, 0
    %v1472 = vsel %vm349, %v1467, 0
    %1474 = vmatpush.bf16.xpose.msra.mxu0 0
    %1475 = vmatpush.bf16.xpose.msra.mxu0 0
    %1476 = vmatpush.bf16.xpose.msra.mxu0 0
    %1477 = vmatpush.bf16.xpose.msra.mxu0 0
    %1478 = vmatpush.bf16.xpose.msra.mxu0 0
    %1479 = vmatpush.bf16.xpose.msra.mxu0 0
    %1480 = vmatpush.bf16.xpose.msra.mxu0 0
    %1481 = vmatpush.bf16.xpose.msra.mxu0 %v1472
    %1482 = vmatmul.bf16.gmra.mxu0 %v1469
    %v1483 = vpop.f32.mrf.mxu0
    %v1484 = vadd.f32 %v1076, %v1483
    %v1485 = vpop.f32.mrf.mxu0
    %1486 = vdwg.mxu0
    %v1487 = vsel %vm393, %v1461, -inf
    %1488 = vmax.xlane.f32.xlu0 %v1487
    %v1489 = vpop.xlane.xlu0 %1488
    %v1490 = vsel %vm393, %v1484, -inf
    %1491 = vmax.xlane.f32.xlu0 %v1490
    %v1492 = vpop.xlane.xlu0 %1491
    %v1493 = vsub.f32 %v1461, %v1489
    %v1494 = vsub.f32 %v1484, %v1492
    %v1495 = vmul.f32 %v1493, 1.442695
    %v1496 = vpow.pop %v1495
    %v1497 = vmul.f32 %v1494, 1.442695
    %v1498 = vpow.pop %v1497
    %v1499 = vsel %vm393, %v1496, 0.0
    %1500 = vadd.xlane.f32.xlu0 %v1499
    %v1501 = vpop.xlane.xlu0 %1500
    %v1502 = vsel %vm393, %v1498, 0.0
    %1503 = vadd.xlane.f32.xlu0 %v1502
    %v1504 = vpop.xlane.xlu0 %1503
    %v1505 = vrcp.pop %v1501
    %v1506 = vrcp.pop %v1504
    %v1507 = vmul.f32 %v1496, %v1505
    %v1508 = vmul.f32 %v1498, %v1506
    %v1509 = vpack.c.bf16 %v1507, %v1507
    %v1510 = vpack.c.bf16 %v1508, %v1508
    %1511 = vrot.lane.b32.xlu0 %v1143, 16
    %v1512 = vpop.permute.xlu0 %1511
    %v1514 = vsel %vm393, %v1509, 0
    %v1517 = vsel %vm423, %v1512, 0
    %1519 = vmatpush.bf16.msra.mxu0 0
    %1520 = vmatpush.bf16.msra.mxu0 0
    %1521 = vmatpush.bf16.msra.mxu0 0
    %1522 = vmatpush.bf16.msra.mxu0 0
    %1523 = vmatpush.bf16.msra.mxu0 0
    %1524 = vmatpush.bf16.msra.mxu0 0
    %1525 = vmatpush.bf16.msra.mxu0 0
    %1526 = vmatpush.bf16.msra.mxu0 %v1517
    %1527 = vmatmul.bf16.gmra.mxu0 %v1514
    %v1528 = vpop.f32.mrf.mxu0
    %v1529 = vadd.f32 0.0, %v1528
    %v1530 = vpop.f32.mrf.mxu0
    %1531 = vdwg.mxu0
    %1532 = vrot.lane.b32.xlu0 %v1167, 16
    %v1533 = vpop.permute.xlu0 %1532
    %v1535 = vsel %vm393, %v1510, 0
    %v1538 = vsel %vm423, %v1533, 0
    %1540 = vmatpush.bf16.msra.mxu0 0
    %1541 = vmatpush.bf16.msra.mxu0 0
    %1542 = vmatpush.bf16.msra.mxu0 0
    %1543 = vmatpush.bf16.msra.mxu0 0
    %1544 = vmatpush.bf16.msra.mxu0 0
    %1545 = vmatpush.bf16.msra.mxu0 0
    %1546 = vmatpush.bf16.msra.mxu0 0
    %1547 = vmatpush.bf16.msra.mxu0 %v1538
    %1548 = vmatmul.bf16.gmra.mxu0 %v1535
    %v1549 = vpop.f32.mrf.mxu0
    %v1550 = vadd.f32 0.0, %v1549
    %v1551 = vpop.f32.mrf.mxu0
    %1552 = vdwg.mxu0
    %1555 = vrot.lane.b32.xlu0 %v1529, 48
    %v1556 = vpop.permute.xlu0 %1555
    %1557 = vrot.lane.b32.xlu0 %v1550, 48
    %v1558 = vpop.permute.xlu0 %1557
    %1561 = vst.msk [vmem:[#allocation2] sm:$0xff] %vm833, %v1556
    %1562 = vst.msk [vmem:[#allocation2 + $0x8] sm:$0xff] %vm833, %v1558
    %v1563 = vld [vmem:[#allocation2] sm:$0xff]
    %v1564 = vld [vmem:[#allocation2 + $0x8] sm:$0xff]
    %v1565 = vpack.c.bf16 %v1564, %v1563
    %v1566 = vld [vmem:[#allocation8] sm:$0xf]
    %v1567 = vld [vmem:[#allocation8 + $0x4] sm:$0xf]
    %v1568 = vld [vmem:[#allocation8 + $0x8] sm:$0xf]
    %v1569 = vld [vmem:[#allocation8 + $0xc] sm:$0xf]
    %v1570 = vld [vmem:[#allocation8 + $0x10] sm:$0xf]
    %v1571 = vld [vmem:[#allocation8 + $0x14] sm:$0xf]
    %v1572 = vld [vmem:[#allocation8 + $0x18] sm:$0xf]
    %v1573 = vld [vmem:[#allocation8 + $0x1c] sm:$0xf]
    %v1574 = vld [vmem:[#allocation10] sm:$0x1]
    %v1576 = vperm.slane %v1574, 0
    %v1586 = vunpack.c.l.b16 %v1566
    %v1587 = vunpack.c.l.b16 %v1567
    %v1588 = vunpack.c.l.b16 %v1568
    %v1589 = vunpack.c.l.b16 %v1569
    %v1590 = vunpack.c.l.b16 %v1570
    %v1591 = vunpack.c.l.b16 %v1571
    %v1592 = vunpack.c.l.b16 %v1572
    %v1593 = vunpack.c.l.b16 %v1573
    %v1594 = vpack.c.b16 %v1587, %v1586
    %v1595 = vpack.c.b16 %v1589, %v1588
    %v1596 = vpack.c.b16 %v1591, %v1590
    %v1597 = vpack.c.b16 %v1593, %v1592
    %v1603 = vsel %vm302, %v1565, 0
    %1605 = vmatpush.bf16.msra.mxu0 0
    %1606 = vmatpush.bf16.msra.mxu0 0
    %1607 = vmatpush.bf16.msra.mxu0 0
    %1608 = vmatpush.bf16.msra.mxu0 0
    %1609 = vmatpush.bf16.msra.mxu0 %v1597
    %1610 = vmatpush.bf16.msra.mxu0 %v1596
    %1611 = vmatpush.bf16.msra.mxu0 %v1595
    %1612 = vmatpush.bf16.msra.mxu0 %v1594
    %1613 = vmatmul.bf16.gmra.mxu0 %v1603
    %v1614 = vpop.f32.mrf.mxu0
    %v1615 = vadd.f32 %v1576, %v1614
    %v1616 = vpop.f32.mrf.mxu0
    %v1617 = vadd.f32 %v1576, %v1616
    %1618 = vdwg.mxu0
    %v1619 = vadd.f32 %v955, %v1615
    %v1620 = vadd.f32 %v956, %v1617
    %v1621 = vld [vmem:[#allocation11] sm:$0x1]
    %v1622 = vld [vmem:[#allocation13] sm:$0x1]
    %v1623 = vsel %vm302, %v1619, 0.0
    %1624 = vadd.xlane.f32.xlu0 %v1623
    %v1625 = vpop.xlane.xlu0 %1624
    %v1626 = vsel %vm302, %v1620, 0.0
    %1627 = vadd.xlane.f32.xlu0 %v1626
    %v1628 = vpop.xlane.xlu0 %1627
    %v1629 = vmul.f32 %v1625, %v908
    %v1630 = vmul.f32 %v1628, %v908
    %v1631 = vsub.f32 %v1619, %v1629
    %v1632 = vsub.f32 %v1620, %v1630
    %v1633 = vmul.f32 %v1631, %v1631
    %v1634 = vmul.f32 %v1632, %v1632
    %v1635 = vsel %vm302, %v1633, 0.0
    %1636 = vadd.xlane.f32.xlu0 %v1635
    %v1637 = vpop.xlane.xlu0 %1636
    %v1638 = vsel %vm302, %v1634, 0.0
    %1639 = vadd.xlane.f32.xlu0 %v1638
    %v1640 = vpop.xlane.xlu0 %1639
    %v1641 = vmul.f32 %v1637, %v908
    %v1642 = vmul.f32 %v1640, %v908
    %v1643 = vadd.f32 %v1641, 1e-05
    %v1644 = vadd.f32 %v1642, 1e-05
    %v1645 = vrsqrt.pop %v1643
    %v1646 = vmul.f32 %v1645, %v1643
    %v1647 = vmul.f32 %v1646, %v1645
    %v1648 = vmul.f32 0.5, %v1647
    %v1649 = vsub.f32 1.5, %v1648
    %v1650 = vmul.f32 %v1645, %v1649
    %vm1651 = vweird.f32 %v1643
    %vm1652 = vweird.f32 %v1645
    %vm1653 = vmor %vm1651, %vm1652
    %v1654 = vsel %vm1653, %v1645, %v1650
    %v1655 = vrsqrt.pop %v1644
    %v1656 = vmul.f32 %v1655, %v1644
    %v1657 = vmul.f32 %v1656, %v1655
    %v1658 = vmul.f32 0.5, %v1657
    %v1659 = vsub.f32 1.5, %v1658
    %v1660 = vmul.f32 %v1655, %v1659
    %vm1661 = vweird.f32 %v1644
    %vm1662 = vweird.f32 %v1655
    %vm1663 = vmor %vm1661, %vm1662
    %v1664 = vsel %vm1663, %v1655, %v1660
    %v1665 = vmul.f32 %v1631, %v1654
    %v1666 = vmul.f32 %v1632, %v1664
    %v1668 = vperm.slane %v1621, 0
    %v1670 = vmul.f32 %v1665, %v1668
    %v1671 = vmul.f32 %v1666, %v1668
    %v1673 = vperm.slane %v1622, 0
    %v1675 = vadd.f32 %v1670, %v1673
    %v1676 = vadd.f32 %v1671, %v1673
    %v1677 = vpack.c.bf16 %v1676, %v1675
    %v1678 = vld [vmem:[#allocation14] sm:$0xf]
    %v1679 = vld [vmem:[#allocation14 + $0x4] sm:$0xf]
    %v1680 = vld [vmem:[#allocation14 + $0x8] sm:$0xf]
    %v1681 = vld [vmem:[#allocation14 + $0xc] sm:$0xf]
    %v1682 = vld [vmem:[#allocation14 + $0x10] sm:$0xf]
    %v1683 = vld [vmem:[#allocation14 + $0x14] sm:$0xf]
    %v1684 = vld [vmem:[#allocation14 + $0x18] sm:$0xf]
    %v1685 = vld [vmem:[#allocation14 + $0x1c] sm:$0xf]
    %v1686 = vld [vmem:[#allocation16] sm:$0x1]
    %v1688 = vperm.slane %v1686, 0
    %v1698 = vunpack.c.l.b16 %v1678
    %v1699 = vunpack.c.l.b16 %v1679
    %v1700 = vunpack.c.l.b16 %v1680
    %v1701 = vunpack.c.l.b16 %v1681
    %v1702 = vunpack.c.l.b16 %v1682
    %v1703 = vunpack.c.l.b16 %v1683
    %v1704 = vunpack.c.l.b16 %v1684
    %v1705 = vunpack.c.l.b16 %v1685
    %v1706 = vpack.c.b16 %v1699, %v1698
    %v1707 = vpack.c.b16 %v1701, %v1700
    %v1708 = vpack.c.b16 %v1703, %v1702
    %v1709 = vpack.c.b16 %v1705, %v1704
    %v1715 = vsel %vm302, %v1677, 0
    %1717 = vmatpush.bf16.msra.mxu0 0
    %1718 = vmatpush.bf16.msra.mxu0 0
    %1719 = vmatpush.bf16.msra.mxu0 0
    %1720 = vmatpush.bf16.msra.mxu0 0
    %1721 = vmatpush.bf16.msra.mxu0 %v1709
    %1722 = vmatpush.bf16.msra.mxu0 %v1708
    %1723 = vmatpush.bf16.msra.mxu0 %v1707
    %1724 = vmatpush.bf16.msra.mxu0 %v1706
    %1725 = vmatmul.bf16.gmra.mxu0 %v1715
    %v1726 = vpop.f32.mrf.mxu0
    %v1727 = vadd.f32 %v1688, %v1726
    %v1728 = vpop.f32.mrf.mxu0
    %v1729 = vadd.f32 %v1688, %v1728
    %1730 = vdwg.mxu0
    %v1731 = vmax.f32 %v1727, 0.0
    %v1732 = vmax.f32 %v1729, 0.0
    %v1733 = vpack.c.bf16 %v1732, %v1731
    %v1734 = vld [vmem:[%s20] sm:$0xf]
    %v1735 = vld [vmem:[%s20 + $0x4] sm:$0xf]
    %v1736 = vld [vmem:[%s20 + $0x8] sm:$0xf]
    %v1737 = vld [vmem:[%s20 + $0xc] sm:$0xf]
    %v1738 = vld [vmem:[%s20 + $0x10] sm:$0xf]
    %v1739 = vld [vmem:[%s20 + $0x14] sm:$0xf]
    %v1740 = vld [vmem:[%s20 + $0x18] sm:$0xf]
    %v1741 = vld [vmem:[%s20 + $0x1c] sm:$0xf]
    %v1742 = vld [vmem:[%s20 + $0x20] sm:$0xf]
    %v1743 = vld [vmem:[%s20 + $0x24] sm:$0xf]
    %v1744 = vld [vmem:[%s20 + $0x28] sm:$0xf]
    %v1745 = vld [vmem:[%s20 + $0x2c] sm:$0xf]
    %v1746 = vld [vmem:[%s20 + $0x30] sm:$0xf]
    %v1747 = vld [vmem:[%s20 + $0x34] sm:$0xf]
    %v1748 = vld [vmem:[%s20 + $0x38] sm:$0xf]
    %v1749 = vld [vmem:[%s20 + $0x3c] sm:$0xf]
    %v1750 = vld [vmem:[#allocation17] sm:$0x1]
    %v1752 = vperm.slane %v1750, 0
    %v1770 = vunpack.c.l.b16 %v1734
    %v1771 = vunpack.c.l.b16 %v1735
    %v1772 = vunpack.c.l.b16 %v1736
    %v1773 = vunpack.c.l.b16 %v1737
    %v1774 = vunpack.c.l.b16 %v1738
    %v1775 = vunpack.c.l.b16 %v1739
    %v1776 = vunpack.c.l.b16 %v1740
    %v1777 = vunpack.c.l.b16 %v1741
    %v1778 = vunpack.c.l.b16 %v1742
    %v1779 = vunpack.c.l.b16 %v1743
    %v1780 = vunpack.c.l.b16 %v1744
    %v1781 = vunpack.c.l.b16 %v1745
    %v1782 = vunpack.c.l.b16 %v1746
    %v1783 = vunpack.c.l.b16 %v1747
    %v1784 = vunpack.c.l.b16 %v1748
    %v1785 = vunpack.c.l.b16 %v1749
    %v1786 = vpack.c.b16 %v1771, %v1770
    %v1787 = vpack.c.b16 %v1773, %v1772
    %v1788 = vpack.c.b16 %v1775, %v1774
    %v1789 = vpack.c.b16 %v1777, %v1776
    %v1790 = vpack.c.b16 %v1779, %v1778
    %v1791 = vpack.c.b16 %v1781, %v1780
    %v1792 = vpack.c.b16 %v1783, %v1782
    %v1793 = vpack.c.b16 %v1785, %v1784
    %1802 = vmatpush.bf16.msra.mxu0 %v1793
    %1803 = vmatpush.bf16.msra.mxu0 %v1792
    %1804 = vmatpush.bf16.msra.mxu0 %v1791
    %1805 = vmatpush.bf16.msra.mxu0 %v1790
    %1806 = vmatpush.bf16.msra.mxu0 %v1789
    %1807 = vmatpush.bf16.msra.mxu0 %v1788
    %1808 = vmatpush.bf16.msra.mxu0 %v1787
    %1809 = vmatpush.bf16.msra.mxu0 %v1786
    %1810 = vmatmul.bf16.gmra.mxu0 %v1733
    %v1811 = vpop.f32.mrf.mxu0
    %v1812 = vadd.f32 %v1752, %v1811
    %v1813 = vpop.f32.mrf.mxu0
    %v1814 = vadd.f32 %v1752, %v1813
    %1815 = vdwg.mxu0
    %v1816 = vadd.f32 %v1675, %v1812
    %v1817 = vadd.f32 %v1676, %v1814
    %v1818 = vld [vmem:[#allocation19] sm:$0x1]
    %v1819 = vld [vmem:[#allocation20] sm:$0x1]
    %v1820 = vsel %vm302, %v1816, 0.0
    %1821 = vadd.xlane.f32.xlu0 %v1820
    %v1822 = vpop.xlane.xlu0 %1821
    %v1823 = vsel %vm302, %v1817, 0.0
    %1824 = vadd.xlane.f32.xlu0 %v1823
    %v1825 = vpop.xlane.xlu0 %1824
    %v1826 = vmul.f32 %v1822, %v908
    %v1827 = vmul.f32 %v1825, %v908
    %v1828 = vsub.f32 %v1816, %v1826
    %v1829 = vsub.f32 %v1817, %v1827
    %v1830 = vmul.f32 %v1828, %v1828
    %v1831 = vmul.f32 %v1829, %v1829
    %v1832 = vsel %vm302, %v1830, 0.0
    %1833 = vadd.xlane.f32.xlu0 %v1832
    %v1834 = vpop.xlane.xlu0 %1833
    %v1835 = vsel %vm302, %v1831, 0.0
    %1836 = vadd.xlane.f32.xlu0 %v1835
    %v1837 = vpop.xlane.xlu0 %1836
    %v1838 = vmul.f32 %v1834, %v908
    %v1839 = vmul.f32 %v1837, %v908
    %v1840 = vadd.f32 %v1838, 1e-05
    %v1841 = vadd.f32 %v1839, 1e-05
    %v1842 = vrsqrt.pop %v1840
    %v1843 = vmul.f32 %v1842, %v1840
    %v1844 = vmul.f32 %v1843, %v1842
    %v1845 = vmul.f32 0.5, %v1844
    %v1846 = vsub.f32 1.5, %v1845
    %v1847 = vmul.f32 %v1842, %v1846
    %vm1848 = vweird.f32 %v1840
    %vm1849 = vweird.f32 %v1842
    %vm1850 = vmor %vm1848, %vm1849
    %v1851 = vsel %vm1850, %v1842, %v1847
    %v1852 = vrsqrt.pop %v1841
    %v1853 = vmul.f32 %v1852, %v1841
    %v1854 = vmul.f32 %v1853, %v1852
    %v1855 = vmul.f32 0.5, %v1854
    %v1856 = vsub.f32 1.5, %v1855
    %v1857 = vmul.f32 %v1852, %v1856
    %vm1858 = vweird.f32 %v1841
    %vm1859 = vweird.f32 %v1852
    %vm1860 = vmor %vm1858, %vm1859
    %v1861 = vsel %vm1860, %v1852, %v1857
    %v1862 = vmul.f32 %v1828, %v1851
    %v1863 = vmul.f32 %v1829, %v1861
    %v1865 = vperm.slane %v1818, 0
    %v1867 = vmul.f32 %v1862, %v1865
    %v1868 = vmul.f32 %v1863, %v1865
    %v1870 = vperm.slane %v1819, 0
    %v1872 = vadd.f32 %v1867, %v1870
    %v1873 = vadd.f32 %v1868, %v1870
    %1874 = vst.msk [vmem:[%s24] sm:$0xff] %vm302, %v1872
    %1875 = vst.msk [vmem:[%s24 + $0x8] sm:$0xff] %vm302, %v1873
    // Predicated region
    $region146: #{traj_transformer_forward.10} parent=1 // pred_check
      _
    $region147: #{traj_transformer_forward.10} parent=1 // pred_check_branch
      %1877 = sbr.rel (0) target = $region149
    $region148: #{traj_transformer_forward.10} parent=1 // pred_region
      _
    $region149: #{traj_transformer_forward.10} parent=1 // pred_fallthru
      _
    // Predicated region
    $region150: #{traj_transformer_forward.10} parent=1 // pred_check
      _
    $region151: #{traj_transformer_forward.10} parent=1 // pred_check_branch
      %1879 = sbr.rel (0) target = $region153
    $region152: #{traj_transformer_forward.10} parent=1 // pred_region
      _
    $region153: #{traj_transformer_forward.10} parent=1 // pred_fallthru
      _
    %1880 = vsyncpa [#allocation4], 1
    %1881 = vsyncpa [#allocation6], 1
    %1882 = vsyncpa [#allocation9], 1
    %1883 = vsyncpa [#allocation12], 1
    %1884 = vsyncpa [#allocation15], 1
    %1885 = vsyncpa [#allocation18], 1
    %1886 = vsyncpa [#allocation21], 1

// kernel: traj_transformer_forward.11
$region0: #{traj_transformer_forward.11}
  #allocation0 [shape = 'u32[]', space=smem, size = 0x4, offset = 0x4, fixed_abs, tag = 'smem constant byte address 0x4 - core index']
  #allocation1 [shape = 'u32[72,128]{1,0:T(1,128)}', space=vmem, size = 0x9000, scoped, tag = 'internal scratch']
  #allocation2 [shape = 'f32[16,64]{1,0:T(8,128)}', space=vmem, size = 0x2000, scoped, tag = 'scratch operand']
  %s0 = inlined_call_operand.vmem [shape: f32[2,8,64], index: 0, kind: input, shape index: {}]
  %s1 = inlined_call_operand.vmem [shape: f32[2,8,64], index: 1, kind: input, shape index: {}]
  %s2 = inlined_call_operand.vmem [shape: f32[2,1,8], index: 2, kind: input, shape index: {}]
  %s3 = inlined_call_operand.vmem [shape: f32[2,1,8], index: 3, kind: input, shape index: {}]
  %s4 = inlined_call_operand.vmem [shape: bf16[64,192], index: 4, kind: input, shape index: {}]
  %s5 = inlined_call_operand.vmem [shape: f32[1,192], index: 5, kind: input, shape index: {}]
  %s6 = inlined_call_operand.vmem [shape: bf16[64,64], index: 6, kind: input, shape index: {}]
  %s7 = inlined_call_operand.hbm [shape: f32[1,64], index: 7, kind: input, shape index: {}]
  %s8 = inlined_call_operand.hbm [shape: f32[1,64], index: 8, kind: input, shape index: {}]
  %s9 = inlined_call_operand.hbm [shape: f32[1,64], index: 9, kind: input, shape index: {}]
  %s10 = inlined_call_operand.vmem [shape: bf16[64,64], index: 10, kind: input, shape index: {}]
  %s11 = inlined_call_operand.hbm [shape: f32[1,64], index: 11, kind: input, shape index: {}]
  %s12 = inlined_call_operand.vmem [shape: bf16[64,128], index: 12, kind: input, shape index: {}]
  %s13 = inlined_call_operand.hbm [shape: f32[1,128], index: 13, kind: input, shape index: {}]
  %s14 = inlined_call_operand.vmem [shape: bf16[64,64], index: 14, kind: input, shape index: {}]
  %s15 = inlined_call_operand.hbm [shape: f32[1,64], index: 15, kind: input, shape index: {}]
  %s16 = inlined_call_operand.hbm [shape: f32[1,64], index: 16, kind: input, shape index: {}]
  %s17 = inlined_call_operand.hbm [shape: f32[1,64], index: 17, kind: input, shape index: {}]
  %s18 = inlined_call_operand.hbm [shape: bf16[64,128], index: 18, kind: input, shape index: {}]
  %s19 = inlined_call_operand.hbm [shape: f32[1,128], index: 19, kind: input, shape index: {}]
  %s20 = inlined_call_operand.vmem [shape: bf16[128,64], index: 20, kind: input, shape index: {}]
  %s21 = inlined_call_operand.hbm [shape: f32[1,64], index: 21, kind: input, shape index: {}]
  %s22 = inlined_call_operand.hbm [shape: f32[1,64], index: 22, kind: input, shape index: {}]
  %s23 = inlined_call_operand.hbm [shape: f32[1,64], index: 23, kind: input, shape index: {}]
  %s24 = inlined_call_operand.hbm [shape: f32[1,64], index: 24, kind: input, shape index: {}]
  %s25 = inlined_call_operand.hbm [shape: f32[1,64], index: 25, kind: input, shape index: {}]
  %s26 = inlined_call_operand.vmem [shape: bf16[64,128], index: 26, kind: input, shape index: {}]
  %s27 = inlined_call_operand.vmem [shape: f32[2,8,128], index: 27, kind: output, shape index: {}]
  %s28 = sld [smem:[#allocation0]]
  $region178: #{traj_transformer_forward.11} parent=0
    _
  %s30 = ssub.s32 1, %s28
  %s31 = scalar_select 0, %s30, %s28
  $region1: #{traj_transformer_forward.11} parent=0
    #allocation3 [shape = 'u8[512]{0}', space=vmem, size = 0x400, scoped, tag = 'input window, operand 7, single buffered']
    #allocation4 [shape = 's32[1]{0}', space=sflag, size = 0x4, scoped, tag = 'scoped memory for traj_transformer_forward.11']
    #allocation5 [shape = 'u8[512]{0}', space=vmem, size = 0x400, scoped, tag = 'input window, operand 8, single buffered']
    #allocation6 [shape = 's32[1]{0}', space=sflag, size = 0x4, scoped, tag = 'scoped memory for traj_transformer_forward.11']
    #allocation7 [shape = 'u8[512]{0}', space=vmem, size = 0x400, scoped, tag = 'input window, operand 9, single buffered']
    #allocation8 [shape = 'u8[512]{0}', space=vmem, size = 0x400, scoped, tag = 'input window, operand 11, single buffered']
    #allocation9 [shape = 's32[1]{0}', space=sflag, size = 0x4, scoped, tag = 'scoped memory for traj_transformer_forward.11']
    #allocation10 [shape = 'u8[512]{0}', space=vmem, size = 0x400, scoped, tag = 'input window, operand 13, single buffered']
    #allocation11 [shape = 'u8[512]{0}', space=vmem, size = 0x400, scoped, tag = 'input window, operand 15, single buffered']
    #allocation12 [shape = 's32[1]{0}', space=sflag, size = 0x4, scoped, tag = 'scoped memory for traj_transformer_forward.11']
    #allocation13 [shape = 'u8[512]{0}', space=vmem, size = 0x400, scoped, tag = 'input window, operand 16, single buffered']
    #allocation14 [shape = 'u8[512]{0}', space=vmem, size = 0x400, scoped, tag = 'input window, operand 17, single buffered']
    #allocation15 [shape = 's32[1]{0}', space=sflag, size = 0x4, scoped, tag = 'scoped memory for traj_transformer_forward.11']
    #allocation16 [shape = 'u8[16384]{0}', space=vmem, size = 0x4000, scoped, tag = 'input window, operand 18, single buffered']
    #allocation17 [shape = 'u8[512]{0}', space=vmem, size = 0x400, scoped, tag = 'input window, operand 19, single buffered']
    #allocation18 [shape = 's32[1]{0}', space=sflag, size = 0x4, scoped, tag = 'scoped memory for traj_transformer_forward.11']
    #allocation19 [shape = 'u8[512]{0}', space=vmem, size = 0x400, scoped, tag = 'input window, operand 21, single buffered']
    #allocation20 [shape = 'u8[512]{0}', space=vmem, size = 0x400, scoped, tag = 'input window, operand 22, single buffered']
    #allocation21 [shape = 's32[1]{0}', space=sflag, size = 0x4, scoped, tag = 'scoped memory for traj_transformer_forward.11']
    #allocation22 [shape = 'u8[512]{0}', space=vmem, size = 0x400, scoped, tag = 'input window, operand 23, single buffered']
    #allocation23 [shape = 'u8[512]{0}', space=vmem, size = 0x400, scoped, tag = 'input window, operand 24, single buffered']
    #allocation24 [shape = 's32[1]{0}', space=sflag, size = 0x4, scoped, tag = 'scoped memory for traj_transformer_forward.11']
    #allocation25 [shape = 'u8[512]{0}', space=vmem, size = 0x400, scoped, tag = 'input window, operand 25, single buffered']
    %32 = vsyncpa [#allocation4], 0
    %33 = vsyncpa [#allocation6], 0
    %34 = vsyncpa [#allocation9], 0
    %35 = vsyncpa [#allocation12], 0
    %36 = vsyncpa [#allocation15], 0
    %37 = vsyncpa [#allocation18], 0
    %38 = vsyncpa [#allocation21], 0
    %39 = vsyncpa [#allocation24], 0
    // Predicated region
    $region2: #{traj_transformer_forward.11} parent=1 // pred_check
      _
    $region3: #{traj_transformer_forward.11} parent=1 // pred_check_branch
      %41 = sbr.rel (0) target = $region5
    $region4: #{traj_transformer_forward.11} parent=1 // pred_region
      _
    $region5: #{traj_transformer_forward.11} parent=1 // pred_fallthru
      _
    // Predicated region
    $region6: #{traj_transformer_forward.11} parent=1 // pred_check
      _
    $region7: #{traj_transformer_forward.11} parent=1 // pred_check_branch
      %43 = sbr.rel (0) target = $region9
    $region8: #{traj_transformer_forward.11} parent=1 // pred_region
      _
    $region9: #{traj_transformer_forward.11} parent=1 // pred_fallthru
      _
    // Predicated region
    $region10: #{traj_transformer_forward.11} parent=1 // pred_check
      _
    $region11: #{traj_transformer_forward.11} parent=1 // pred_check_branch
      %45 = sbr.rel (0) target = $region13
    $region12: #{traj_transformer_forward.11} parent=1 // pred_region
      _
    $region13: #{traj_transformer_forward.11} parent=1 // pred_fallthru
      _
    // Predicated region
    $region14: #{traj_transformer_forward.11} parent=1 // pred_check
      _
    $region15: #{traj_transformer_forward.11} parent=1 // pred_check_branch
      %47 = sbr.rel (0) target = $region17
    $region16: #{traj_transformer_forward.11} parent=1 // pred_region
      _
    $region17: #{traj_transformer_forward.11} parent=1 // pred_fallthru
      _
    // Predicated region
    $region18: #{traj_transformer_forward.11} parent=1 // pred_check
      _
    $region19: #{traj_transformer_forward.11} parent=1 // pred_check_branch
      %49 = sbr.rel (0) target = $region21
    $region20: #{traj_transformer_forward.11} parent=1 // pred_region
      _
    $region21: #{traj_transformer_forward.11} parent=1 // pred_fallthru
      _
    // Predicated region
    $region22: #{traj_transformer_forward.11} parent=1 // pred_check
      _
    $region23: #{traj_transformer_forward.11} parent=1 // pred_check_branch
      %51 = sbr.rel (0) target = $region25
    $region24: #{traj_transformer_forward.11} parent=1 // pred_region
      _
    $region25: #{traj_transformer_forward.11} parent=1 // pred_fallthru
      _
    // Predicated region
    $region26: #{traj_transformer_forward.11} parent=1 // pred_check
      _
    $region27: #{traj_transformer_forward.11} parent=1 // pred_check_branch
      %53 = sbr.rel (0) target = $region29
    $region28: #{traj_transformer_forward.11} parent=1 // pred_region
      _
    $region29: #{traj_transformer_forward.11} parent=1 // pred_fallthru
      _
    // Predicated region
    $region30: #{traj_transformer_forward.11} parent=1 // pred_check
      _
    $region31: #{traj_transformer_forward.11} parent=1 // pred_check_branch
      %55 = sbr.rel (0) target = $region33
    $region32: #{traj_transformer_forward.11} parent=1 // pred_region
      %57 = vsyncadd [#allocation4], 0
      %s59 = sshll.u32 %s7, 4
      %s60 = int_to_ptr.hbm [resolvable:$true] %s59
      %s61 = sshll.u32 [#allocation3], 4
      %s62 = int_to_ptr.vmem [resolvable:$true] %s61
      %64 = dma.hbm_to_vmem [thread:$0]  %s60, 16, %s62, [#allocation4]
    $region33: #{traj_transformer_forward.11} parent=1 // pred_fallthru
      _
    // Predicated region
    $region34: #{traj_transformer_forward.11} parent=1 // pred_check
      _
    $region35: #{traj_transformer_forward.11} parent=1 // pred_check_branch
      %66 = sbr.rel (0) target = $region37
    $region36: #{traj_transformer_forward.11} parent=1 // pred_region
      %68 = vsyncadd [#allocation6], 0
      %s70 = sshll.u32 %s8, 4
      %s71 = int_to_ptr.hbm [resolvable:$true] %s70
      %s72 = sshll.u32 [#allocation5], 4
      %s73 = int_to_ptr.vmem [resolvable:$true] %s72
      %75 = dma.hbm_to_vmem [thread:$0]  %s71, 16, %s73, [#allocation6]
    $region37: #{traj_transformer_forward.11} parent=1 // pred_fallthru
      _
    // Predicated region
    $region38: #{traj_transformer_forward.11} parent=1 // pred_check
      _
    $region39: #{traj_transformer_forward.11} parent=1 // pred_check_branch
      %77 = sbr.rel (0) target = $region41
    $region40: #{traj_transformer_forward.11} parent=1 // pred_region
      %79 = vsyncadd [#allocation6], 0
      %s81 = sshll.u32 %s9, 4
      %s82 = int_to_ptr.hbm [resolvable:$true] %s81
      %s83 = sshll.u32 [#allocation7], 4
      %s84 = int_to_ptr.vmem [resolvable:$true] %s83
      %86 = dma.hbm_to_vmem [thread:$0]  %s82, 16, %s84, [#allocation6]
    $region41: #{traj_transformer_forward.11} parent=1 // pred_fallthru
      _
    // Predicated region
    $region42: #{traj_transformer_forward.11} parent=1 // pred_check
      _
    $region43: #{traj_transformer_forward.11} parent=1 // pred_check_branch
      %88 = sbr.rel (0) target = $region45
    $region44: #{traj_transformer_forward.11} parent=1 // pred_region
      _
    $region45: #{traj_transformer_forward.11} parent=1 // pred_fallthru
      _
    // Predicated region
    $region46: #{traj_transformer_forward.11} parent=1 // pred_check
      _
    $region47: #{traj_transformer_forward.11} parent=1 // pred_check_branch
      %90 = sbr.rel (0) target = $region49
    $region48: #{traj_transformer_forward.11} parent=1 // pred_region
      %92 = vsyncadd [#allocation9], 0
      %s94 = sshll.u32 %s11, 4
      %s95 = int_to_ptr.hbm [resolvable:$true] %s94
      %s96 = sshll.u32 [#allocation8], 4
      %s97 = int_to_ptr.vmem [resolvable:$true] %s96
      %99 = dma.hbm_to_vmem [thread:$0]  %s95, 16, %s97, [#allocation9]
    $region49: #{traj_transformer_forward.11} parent=1 // pred_fallthru
      _
    // Predicated region
    $region50: #{traj_transformer_forward.11} parent=1 // pred_check
      _
    $region51: #{traj_transformer_forward.11} parent=1 // pred_check_branch
      %101 = sbr.rel (0) target = $region53
    $region52: #{traj_transformer_forward.11} parent=1 // pred_region
      _
    $region53: #{traj_transformer_forward.11} parent=1 // pred_fallthru
      _
    // Predicated region
    $region54: #{traj_transformer_forward.11} parent=1 // pred_check
      _
    $region55: #{traj_transformer_forward.11} parent=1 // pred_check_branch
      %103 = sbr.rel (0) target = $region57
    $region56: #{traj_transformer_forward.11} parent=1 // pred_region
      %105 = vsyncadd [#allocation9], 0
      %s107 = sshll.u32 %s13, 4
      %s108 = int_to_ptr.hbm [resolvable:$true] %s107
      %s109 = sshll.u32 [#allocation10], 4
      %s110 = int_to_ptr.vmem [resolvable:$true] %s109
      %112 = dma.hbm_to_vmem [thread:$0]  %s108, 16, %s110, [#allocation9]
    $region57: #{traj_transformer_forward.11} parent=1 // pred_fallthru
      _
    // Predicated region
    $region58: #{traj_transformer_forward.11} parent=1 // pred_check
      _
    $region59: #{traj_transformer_forward.11} parent=1 // pred_check_branch
      %114 = sbr.rel (0) target = $region61
    $region60: #{traj_transformer_forward.11} parent=1 // pred_region
      _
    $region61: #{traj_transformer_forward.11} parent=1 // pred_fallthru
      _
    // Predicated region
    $region62: #{traj_transformer_forward.11} parent=1 // pred_check
      _
    $region63: #{traj_transformer_forward.11} parent=1 // pred_check_branch
      %116 = sbr.rel (0) target = $region65
    $region64: #{traj_transformer_forward.11} parent=1 // pred_region
      %118 = vsyncadd [#allocation12], 0
      %s120 = sshll.u32 %s15, 4
      %s121 = int_to_ptr.hbm [resolvable:$true] %s120
      %s122 = sshll.u32 [#allocation11], 4
      %s123 = int_to_ptr.vmem [resolvable:$true] %s122
      %125 = dma.hbm_to_vmem [thread:$0]  %s121, 16, %s123, [#allocation12]
    $region65: #{traj_transformer_forward.11} parent=1 // pred_fallthru
      _
    // Predicated region
    $region66: #{traj_transformer_forward.11} parent=1 // pred_check
      _
    $region67: #{traj_transformer_forward.11} parent=1 // pred_check_branch
      %127 = sbr.rel (0) target = $region69
    $region68: #{traj_transformer_forward.11} parent=1 // pred_region
      %129 = vsyncadd [#allocation12], 0
      %s131 = sshll.u32 %s16, 4
      %s132 = int_to_ptr.hbm [resolvable:$true] %s131
      %s133 = sshll.u32 [#allocation13], 4
      %s134 = int_to_ptr.vmem [resolvable:$true] %s133
      %136 = dma.hbm_to_vmem [thread:$0]  %s132, 16, %s134, [#allocation12]
    $region69: #{traj_transformer_forward.11} parent=1 // pred_fallthru
      _
    // Predicated region
    $region70: #{traj_transformer_forward.11} parent=1 // pred_check
      _
    $region71: #{traj_transformer_forward.11} parent=1 // pred_check_branch
      %138 = sbr.rel (0) target = $region73
    $region72: #{traj_transformer_forward.11} parent=1 // pred_region
      %140 = vsyncadd [#allocation15], 0
      %s142 = sshll.u32 %s17, 4
      %s143 = int_to_ptr.hbm [resolvable:$true] %s142
      %s144 = sshll.u32 [#allocation14], 4
      %s145 = int_to_ptr.vmem [resolvable:$true] %s144
      %147 = dma.hbm_to_vmem [thread:$0]  %s143, 16, %s145, [#allocation15]
    $region73: #{traj_transformer_forward.11} parent=1 // pred_fallthru
      _
    // Predicated region
    $region74: #{traj_transformer_forward.11} parent=1 // pred_check
      _
    $region75: #{traj_transformer_forward.11} parent=1 // pred_check_branch
      %149 = sbr.rel (0) target = $region77
    $region76: #{traj_transformer_forward.11} parent=1 // pred_region
      %151 = vsyncadd [#allocation15], 0
      %s152 = sshll.u32 %s18, 4
      %s153 = int_to_ptr.hbm [resolvable:$true] %s152
      %s154 = sshll.u32 [#allocation16], 4
      %s155 = int_to_ptr.vmem [resolvable:$true] %s154
      %160 = dma.hbm_to_vmem [thread:$0]  %s153, 512, %s155, [#allocation15], 64, 64, 4
    $region77: #{traj_transformer_forward.11} parent=1 // pred_fallthru
      _
    // Predicated region
    $region78: #{traj_transformer_forward.11} parent=1 // pred_check
      _
    $region79: #{traj_transformer_forward.11} parent=1 // pred_check_branch
      %162 = sbr.rel (0) target = $region81
    $region80: #{traj_transformer_forward.11} parent=1 // pred_region
      %164 = vsyncadd [#allocation18], 0
      %s166 = sshll.u32 %s19, 4
      %s167 = int_to_ptr.hbm [resolvable:$true] %s166
      %s168 = sshll.u32 [#allocation17], 4
      %s169 = int_to_ptr.vmem [resolvable:$true] %s168
      %171 = dma.hbm_to_vmem [thread:$0]  %s167, 16, %s169, [#allocation18]
    $region81: #{traj_transformer_forward.11} parent=1 // pred_fallthru
      _
    // Predicated region
    $region82: #{traj_transformer_forward.11} parent=1 // pred_check
      _
    $region83: #{traj_transformer_forward.11} parent=1 // pred_check_branch
      %173 = sbr.rel (0) target = $region85
    $region84: #{traj_transformer_forward.11} parent=1 // pred_region
      _
    $region85: #{traj_transformer_forward.11} parent=1 // pred_fallthru
      _
    // Predicated region
    $region86: #{traj_transformer_forward.11} parent=1 // pred_check
      _
    $region87: #{traj_transformer_forward.11} parent=1 // pred_check_branch
      %175 = sbr.rel (0) target = $region89
    $region88: #{traj_transformer_forward.11} parent=1 // pred_region
      %177 = vsyncadd [#allocation18], 0
      %s179 = sshll.u32 %s21, 4
      %s180 = int_to_ptr.hbm [resolvable:$true] %s179
      %s181 = sshll.u32 [#allocation19], 4
      %s182 = int_to_ptr.vmem [resolvable:$true] %s181
      %184 = dma.hbm_to_vmem [thread:$0]  %s180, 16, %s182, [#allocation18]
    $region89: #{traj_transformer_forward.11} parent=1 // pred_fallthru
      _
    // Predicated region
    $region90: #{traj_transformer_forward.11} parent=1 // pred_check
      _
    $region91: #{traj_transformer_forward.11} parent=1 // pred_check_branch
      %186 = sbr.rel (0) target = $region93
    $region92: #{traj_transformer_forward.11} parent=1 // pred_region
      %188 = vsyncadd [#allocation21], 0
      %s190 = sshll.u32 %s22, 4
      %s191 = int_to_ptr.hbm [resolvable:$true] %s190
      %s192 = sshll.u32 [#allocation20], 4
      %s193 = int_to_ptr.vmem [resolvable:$true] %s192
      %195 = dma.hbm_to_vmem [thread:$0]  %s191, 16, %s193, [#allocation21]
    $region93: #{traj_transformer_forward.11} parent=1 // pred_fallthru
      _
    // Predicated region
    $region94: #{traj_transformer_forward.11} parent=1 // pred_check
      _
    $region95: #{traj_transformer_forward.11} parent=1 // pred_check_branch
      %197 = sbr.rel (0) target = $region97
    $region96: #{traj_transformer_forward.11} parent=1 // pred_region
      %199 = vsyncadd [#allocation21], 0
      %s201 = sshll.u32 %s23, 4
      %s202 = int_to_ptr.hbm [resolvable:$true] %s201
      %s203 = sshll.u32 [#allocation22], 4
      %s204 = int_to_ptr.vmem [resolvable:$true] %s203
      %206 = dma.hbm_to_vmem [thread:$0]  %s202, 16, %s204, [#allocation21]
    $region97: #{traj_transformer_forward.11} parent=1 // pred_fallthru
      _
    // Predicated region
    $region98: #{traj_transformer_forward.11} parent=1 // pred_check
      _
    $region99: #{traj_transformer_forward.11} parent=1 // pred_check_branch
      %208 = sbr.rel (0) target = $region101
    $region100: #{traj_transformer_forward.11} parent=1 // pred_region
      %210 = vsyncadd [#allocation24], 0
      %s212 = sshll.u32 %s24, 4
      %s213 = int_to_ptr.hbm [resolvable:$true] %s212
      %s214 = sshll.u32 [#allocation23], 4
      %s215 = int_to_ptr.vmem [resolvable:$true] %s214
      %217 = dma.hbm_to_vmem [thread:$0]  %s213, 16, %s215, [#allocation24]
    $region101: #{traj_transformer_forward.11} parent=1 // pred_fallthru
      _
    // Predicated region
    $region102: #{traj_transformer_forward.11} parent=1 // pred_check
      _
    $region103: #{traj_transformer_forward.11} parent=1 // pred_check_branch
      %219 = sbr.rel (0) target = $region105
    $region104: #{traj_transformer_forward.11} parent=1 // pred_region
      %221 = vsyncadd [#allocation24], 0
      %s223 = sshll.u32 %s25, 4
      %s224 = int_to_ptr.hbm [resolvable:$true] %s223
      %s225 = sshll.u32 [#allocation25], 4
      %s226 = int_to_ptr.vmem [resolvable:$true] %s225
      %228 = dma.hbm_to_vmem [thread:$0]  %s224, 16, %s226, [#allocation24]
    $region105: #{traj_transformer_forward.11} parent=1 // pred_fallthru
      _
    // Predicated region
    $region106: #{traj_transformer_forward.11} parent=1 // pred_check
      _
    $region107: #{traj_transformer_forward.11} parent=1 // pred_check_branch
      %230 = sbr.rel (0) target = $region109
    $region108: #{traj_transformer_forward.11} parent=1 // pred_region
      _
    $region109: #{traj_transformer_forward.11} parent=1 // pred_fallthru
      _
    // Predicated region
    $region110: #{traj_transformer_forward.11} parent=1 // pred_check
      _
    $region111: #{traj_transformer_forward.11} parent=1 // pred_check_branch
      %232 = sbr.rel (0) target = $region113
    $region112: #{traj_transformer_forward.11} parent=1 // pred_region
      %234 = dma.done [#allocation4], 16
    $region113: #{traj_transformer_forward.11} parent=1 // pred_fallthru
      _
    // Predicated region
    $region114: #{traj_transformer_forward.11} parent=1 // pred_check
      _
    $region115: #{traj_transformer_forward.11} parent=1 // pred_check_branch
      %236 = sbr.rel (0) target = $region117
    $region116: #{traj_transformer_forward.11} parent=1 // pred_region
      %238 = dma.done [#allocation6], 16
    $region117: #{traj_transformer_forward.11} parent=1 // pred_fallthru
      _
    // Predicated region
    $region118: #{traj_transformer_forward.11} parent=1 // pred_check
      _
    $region119: #{traj_transformer_forward.11} parent=1 // pred_check_branch
      %240 = sbr.rel (0) target = $region121
    $region120: #{traj_transformer_forward.11} parent=1 // pred_region
      %242 = dma.done [#allocation6], 16
    $region121: #{traj_transformer_forward.11} parent=1 // pred_fallthru
      _
    // Predicated region
    $region122: #{traj_transformer_forward.11} parent=1 // pred_check
      _
    $region123: #{traj_transformer_forward.11} parent=1 // pred_check_branch
      %244 = sbr.rel (0) target = $region125
    $region124: #{traj_transformer_forward.11} parent=1 // pred_region
      %246 = dma.done [#allocation9], 16
    $region125: #{traj_transformer_forward.11} parent=1 // pred_fallthru
      _
    // Predicated region
    $region126: #{traj_transformer_forward.11} parent=1 // pred_check
      _
    $region127: #{traj_transformer_forward.11} parent=1 // pred_check_branch
      %248 = sbr.rel (0) target = $region129
    $region128: #{traj_transformer_forward.11} parent=1 // pred_region
      %250 = dma.done [#allocation9], 16
    $region129: #{traj_transformer_forward.11} parent=1 // pred_fallthru
      _
    // Predicated region
    $region130: #{traj_transformer_forward.11} parent=1 // pred_check
      _
    $region131: #{traj_transformer_forward.11} parent=1 // pred_check_branch
      %252 = sbr.rel (0) target = $region133
    $region132: #{traj_transformer_forward.11} parent=1 // pred_region
      %254 = dma.done [#allocation12], 16
    $region133: #{traj_transformer_forward.11} parent=1 // pred_fallthru
      _
    // Predicated region
    $region134: #{traj_transformer_forward.11} parent=1 // pred_check
      _
    $region135: #{traj_transformer_forward.11} parent=1 // pred_check_branch
      %256 = sbr.rel (0) target = $region137
    $region136: #{traj_transformer_forward.11} parent=1 // pred_region
      %258 = dma.done [#allocation12], 16
    $region137: #{traj_transformer_forward.11} parent=1 // pred_fallthru
      _
    // Predicated region
    $region138: #{traj_transformer_forward.11} parent=1 // pred_check
      _
    $region139: #{traj_transformer_forward.11} parent=1 // pred_check_branch
      %260 = sbr.rel (0) target = $region141
    $region140: #{traj_transformer_forward.11} parent=1 // pred_region
      %262 = dma.done [#allocation15], 16
    $region141: #{traj_transformer_forward.11} parent=1 // pred_fallthru
      _
    // Predicated region
    $region142: #{traj_transformer_forward.11} parent=1 // pred_check
      _
    $region143: #{traj_transformer_forward.11} parent=1 // pred_check_branch
      %264 = sbr.rel (0) target = $region145
    $region144: #{traj_transformer_forward.11} parent=1 // pred_region
      %266 = dma.done [#allocation15], 512
    $region145: #{traj_transformer_forward.11} parent=1 // pred_fallthru
      _
    // Predicated region
    $region146: #{traj_transformer_forward.11} parent=1 // pred_check
      _
    $region147: #{traj_transformer_forward.11} parent=1 // pred_check_branch
      %268 = sbr.rel (0) target = $region149
    $region148: #{traj_transformer_forward.11} parent=1 // pred_region
      %270 = dma.done [#allocation18], 16
    $region149: #{traj_transformer_forward.11} parent=1 // pred_fallthru
      _
    // Predicated region
    $region150: #{traj_transformer_forward.11} parent=1 // pred_check
      _
    $region151: #{traj_transformer_forward.11} parent=1 // pred_check_branch
      %272 = sbr.rel (0) target = $region153
    $region152: #{traj_transformer_forward.11} parent=1 // pred_region
      %274 = dma.done [#allocation18], 16
    $region153: #{traj_transformer_forward.11} parent=1 // pred_fallthru
      _
    // Predicated region
    $region154: #{traj_transformer_forward.11} parent=1 // pred_check
      _
    $region155: #{traj_transformer_forward.11} parent=1 // pred_check_branch
      %276 = sbr.rel (0) target = $region157
    $region156: #{traj_transformer_forward.11} parent=1 // pred_region
      %278 = dma.done [#allocation21], 16
    $region157: #{traj_transformer_forward.11} parent=1 // pred_fallthru
      _
    // Predicated region
    $region158: #{traj_transformer_forward.11} parent=1 // pred_check
      _
    $region159: #{traj_transformer_forward.11} parent=1 // pred_check_branch
      %280 = sbr.rel (0) target = $region161
    $region160: #{traj_transformer_forward.11} parent=1 // pred_region
      %282 = dma.done [#allocation21], 16
    $region161: #{traj_transformer_forward.11} parent=1 // pred_fallthru
      _
    // Predicated region
    $region162: #{traj_transformer_forward.11} parent=1 // pred_check
      _
    $region163: #{traj_transformer_forward.11} parent=1 // pred_check_branch
      %284 = sbr.rel (0) target = $region165
    $region164: #{traj_transformer_forward.11} parent=1 // pred_region
      %286 = dma.done [#allocation24], 16
    $region165: #{traj_transformer_forward.11} parent=1 // pred_fallthru
      _
    // Predicated region
    $region166: #{traj_transformer_forward.11} parent=1 // pred_check
      _
    $region167: #{traj_transformer_forward.11} parent=1 // pred_check_branch
      %288 = sbr.rel (0) target = $region169
    $region168: #{traj_transformer_forward.11} parent=1 // pred_region
      %290 = dma.done [#allocation24], 16
    $region169: #{traj_transformer_forward.11} parent=1 // pred_fallthru
      _
    %v292 = vld [vmem:[%s0] sm:$0xff]
    %v293 = vld [vmem:[%s0 + $0x8] sm:$0xff]
    %v294 = vpack.c.bf16 %v293, %v292
    %v295 = vld [vmem:[%s4] sm:$0xff]
    %v296 = vld [vmem:[%s4 + $0x8] sm:$0xff]
    %v297 = vld [vmem:[%s4 + $0x10] sm:$0xff]
    %v298 = vld [vmem:[%s4 + $0x18] sm:$0xff]
    %v299 = vld [vmem:[%s4 + $0x20] sm:$0xff]
    %v300 = vld [vmem:[%s4 + $0x28] sm:$0xff]
    %v301 = vld [vmem:[%s4 + $0x30] sm:$0xff]
    %v302 = vld [vmem:[%s4 + $0x38] sm:$0xff]
    %v303 = vld [vmem:[%s5] sm:$0x3]
    %v305 = vperm.slane %v303, 0
    %v306 = vperm.slane %v303, 1
    %v317 = vunpack.c.l.b16 %v295
    %v318 = vunpack.c.h.b16 %v295
    %v319 = vunpack.c.l.b16 %v296
    %v320 = vunpack.c.h.b16 %v296
    %v321 = vunpack.c.l.b16 %v297
    %v322 = vunpack.c.h.b16 %v297
    %v323 = vunpack.c.l.b16 %v298
    %v324 = vunpack.c.h.b16 %v298
    %v325 = vunpack.c.l.b16 %v299
    %v326 = vunpack.c.h.b16 %v299
    %v327 = vunpack.c.l.b16 %v300
    %v328 = vunpack.c.h.b16 %v300
    %v329 = vunpack.c.l.b16 %v301
    %v330 = vunpack.c.h.b16 %v301
    %v331 = vunpack.c.l.b16 %v302
    %v332 = vunpack.c.h.b16 %v302
    %v333 = vpack.c.b16 %v319, %v317
    %v334 = vpack.c.b16 %v320, %v318
    %v335 = vpack.c.b16 %v323, %v321
    %v336 = vpack.c.b16 %v324, %v322
    %v337 = vpack.c.b16 %v327, %v325
    %v338 = vpack.c.b16 %v328, %v326
    %v339 = vpack.c.b16 %v331, %v329
    %v340 = vpack.c.b16 %v332, %v330
    %vm349 = vcmask 523264
    %v351 = vsel %vm349, %v294, 0
    %353 = vmatpush.bf16.msra.mxu0 0
    %354 = vmatpush.bf16.msra.mxu0 0
    %355 = vmatpush.bf16.msra.mxu0 0
    %356 = vmatpush.bf16.msra.mxu0 0
    %357 = vmatpush.bf16.msra.mxu0 %v339
    %358 = vmatpush.bf16.msra.mxu0 %v337
    %359 = vmatpush.bf16.msra.mxu0 %v335
    %360 = vmatpush.bf16.msra.mxu0 %v333
    %361 = vmatmul.bf16.gmra.mxu0 %v351
    %v362 = vpop.f32.mrf.mxu0
    %v363 = vadd.f32 %v305, %v362
    %v364 = vpop.f32.mrf.mxu0
    %v365 = vadd.f32 %v305, %v364
    %366 = vdwg.mxu0
    %367 = vmatpush.bf16.msra.mxu0 0
    %368 = vmatpush.bf16.msra.mxu0 0
    %369 = vmatpush.bf16.msra.mxu0 0
    %370 = vmatpush.bf16.msra.mxu0 0
    %371 = vmatpush.bf16.msra.mxu0 %v340
    %372 = vmatpush.bf16.msra.mxu0 %v338
    %373 = vmatpush.bf16.msra.mxu0 %v336
    %374 = vmatpush.bf16.msra.mxu0 %v334
    %375 = vmatmul.bf16.gmra.mxu0 %v351
    %v376 = vpop.f32.mrf.mxu0
    %v377 = vadd.f32 %v306, %v376
    %v378 = vpop.f32.mrf.mxu0
    %v379 = vadd.f32 %v306, %v378
    %380 = vdwg.mxu0
    %v381 = vld [vmem:[%s2] sm:$0x1]
    %v382 = vld [vmem:[%s2 + $0x1] sm:$0x1]
    %v383 = vpack.c.bf16 %v363, %v363
    %v384 = vpack.c.bf16 %v365, %v365
    %v387 = vperm.slane %v381, 0
    %v388 = vperm.slane %v382, 0
    %v392 = vunpack.c.l.b16 %v383
    %v393 = vpack.c.b16 %v392, %v392
    %394 = vrot.lane.b32.xlu0 %v393, 64
    %v395 = vpop.permute.xlu0 %394
    %vm396 = vcmask 130048
    %v398 = vsel %vm396, %v383, 0
    %v401 = vsel %vm396, %v395, 0
    %403 = vmatpush.bf16.xpose.msra.mxu0 0
    %404 = vmatpush.bf16.xpose.msra.mxu0 0
    %405 = vmatpush.bf16.xpose.msra.mxu0 0
    %406 = vmatpush.bf16.xpose.msra.mxu0 0
    %407 = vmatpush.bf16.xpose.msra.mxu0 0
    %408 = vmatpush.bf16.xpose.msra.mxu0 0
    %409 = vmatpush.bf16.xpose.msra.mxu0 0
    %410 = vmatpush.bf16.xpose.msra.mxu0 %v401
    %411 = vmatmul.bf16.gmra.mxu0 %v398
    %v412 = vpop.f32.mrf.mxu0
    %v413 = vadd.f32 %v387, %v412
    %v414 = vpop.f32.mrf.mxu0
    %415 = vdwg.mxu0
    %v417 = vunpack.c.l.b16 %v384
    %v418 = vpack.c.b16 %v417, %v417
    %419 = vrot.lane.b32.xlu0 %v418, 64
    %v420 = vpop.permute.xlu0 %419
    %v422 = vsel %vm396, %v384, 0
    %v425 = vsel %vm396, %v420, 0
    %427 = vmatpush.bf16.xpose.msra.mxu0 0
    %428 = vmatpush.bf16.xpose.msra.mxu0 0
    %429 = vmatpush.bf16.xpose.msra.mxu0 0
    %430 = vmatpush.bf16.xpose.msra.mxu0 0
    %431 = vmatpush.bf16.xpose.msra.mxu0 0
    %432 = vmatpush.bf16.xpose.msra.mxu0 0
    %433 = vmatpush.bf16.xpose.msra.mxu0 0
    %434 = vmatpush.bf16.xpose.msra.mxu0 %v425
    %435 = vmatmul.bf16.gmra.mxu0 %v422
    %v436 = vpop.f32.mrf.mxu0
    %v437 = vadd.f32 %v388, %v436
    %v438 = vpop.f32.mrf.mxu0
    %439 = vdwg.mxu0
    %vm440 = vcmask 64512
    %v441 = vsel %vm440, %v413, -inf
    %442 = vmax.xlane.f32.xlu0 %v441
    %v443 = vpop.xlane.xlu0 %442
    %v444 = vsel %vm440, %v437, -inf
    %445 = vmax.xlane.f32.xlu0 %v444
    %v446 = vpop.xlane.xlu0 %445
    %v447 = vsub.f32 %v413, %v443
    %v448 = vsub.f32 %v437, %v446
    %v449 = vmul.f32 %v447, 1.442695
    %v450 = vpow.pop %v449
    %v451 = vmul.f32 %v448, 1.442695
    %v452 = vpow.pop %v451
    %v453 = vsel %vm440, %v450, 0.0
    %454 = vadd.xlane.f32.xlu0 %v453
    %v455 = vpop.xlane.xlu0 %454
    %v456 = vsel %vm440, %v452, 0.0
    %457 = vadd.xlane.f32.xlu0 %v456
    %v458 = vpop.xlane.xlu0 %457
    %v459 = vrcp.pop %v455
    %v460 = vrcp.pop %v458
    %v461 = vmul.f32 %v450, %v459
    %v462 = vmul.f32 %v452, %v460
    %v463 = vpack.c.bf16 %v461, %v461
    %v464 = vpack.c.bf16 %v462, %v462
    %v465 = vpack.c.bf16 %v377, %v377
    %v466 = vpack.c.bf16 %v379, %v379
    %v468 = vsel %vm440, %v463, 0
    %vm470 = vcmask 1043456
    %v472 = vsel %vm470, %v465, 0
    %474 = vmatpush.bf16.msra.mxu0 0
    %475 = vmatpush.bf16.msra.mxu0 0
    %476 = vmatpush.bf16.msra.mxu0 0
    %477 = vmatpush.bf16.msra.mxu0 0
    %478 = vmatpush.bf16.msra.mxu0 0
    %479 = vmatpush.bf16.msra.mxu0 0
    %480 = vmatpush.bf16.msra.mxu0 0
    %481 = vmatpush.bf16.msra.mxu0 %v472
    %482 = vmatmul.bf16.gmra.mxu0 %v468
    %v483 = vpop.f32.mrf.mxu0
    %v484 = vadd.f32 0.0, %v483
    %v485 = vpop.f32.mrf.mxu0
    %486 = vdwg.mxu0
    %v488 = vsel %vm440, %v464, 0
    %v491 = vsel %vm470, %v466, 0
    %493 = vmatpush.bf16.msra.mxu0 0
    %494 = vmatpush.bf16.msra.mxu0 0
    %495 = vmatpush.bf16.msra.mxu0 0
    %496 = vmatpush.bf16.msra.mxu0 0
    %497 = vmatpush.bf16.msra.mxu0 0
    %498 = vmatpush.bf16.msra.mxu0 0
    %499 = vmatpush.bf16.msra.mxu0 0
    %500 = vmatpush.bf16.msra.mxu0 %v491
    %501 = vmatmul.bf16.gmra.mxu0 %v488
    %v502 = vpop.f32.mrf.mxu0
    %v503 = vadd.f32 0.0, %v502
    %v504 = vpop.f32.mrf.mxu0
    %505 = vdwg.mxu0
    %506 = vst.msk [vmem:[#allocation2] sm:$0xff] %vm396, %v484
    %507 = vst.msk [vmem:[#allocation2 + $0x8] sm:$0xff] %vm396, %v503
    %508 = vrot.lane.b32.xlu0 %v393, 112
    %v509 = vpop.permute.xlu0 %508
    %510 = vrot.lane.b32.xlu0 %v393, 48
    %v511 = vpop.permute.xlu0 %510
    %v513 = vsel %vm396, %v509, 0
    %v516 = vsel %vm396, %v511, 0
    %518 = vmatpush.bf16.xpose.msra.mxu0 0
    %519 = vmatpush.bf16.xpose.msra.mxu0 0
    %520 = vmatpush.bf16.xpose.msra.mxu0 0
    %521 = vmatpush.bf16.xpose.msra.mxu0 0
    %522 = vmatpush.bf16.xpose.msra.mxu0 0
    %523 = vmatpush.bf16.xpose.msra.mxu0 0
    %524 = vmatpush.bf16.xpose.msra.mxu0 0
    %525 = vmatpush.bf16.xpose.msra.mxu0 %v516
    %526 = vmatmul.bf16.gmra.mxu0 %v513
    %v527 = vpop.f32.mrf.mxu0
    %v528 = vadd.f32 %v387, %v527
    %v529 = vpop.f32.mrf.mxu0
    %530 = vdwg.mxu0
    %531 = vrot.lane.b32.xlu0 %v418, 112
    %v532 = vpop.permute.xlu0 %531
    %533 = vrot.lane.b32.xlu0 %v418, 48
    %v534 = vpop.permute.xlu0 %533
    %v536 = vsel %vm396, %v532, 0
    %v539 = vsel %vm396, %v534, 0
    %541 = vmatpush.bf16.xpose.msra.mxu0 0
    %542 = vmatpush.bf16.xpose.msra.mxu0 0
    %543 = vmatpush.bf16.xpose.msra.mxu0 0
    %544 = vmatpush.bf16.xpose.msra.mxu0 0
    %545 = vmatpush.bf16.xpose.msra.mxu0 0
    %546 = vmatpush.bf16.xpose.msra.mxu0 0
    %547 = vmatpush.bf16.xpose.msra.mxu0 0
    %548 = vmatpush.bf16.xpose.msra.mxu0 %v539
    %549 = vmatmul.bf16.gmra.mxu0 %v536
    %v550 = vpop.f32.mrf.mxu0
    %v551 = vadd.f32 %v388, %v550
    %v552 = vpop.f32.mrf.mxu0
    %553 = vdwg.mxu0
    %v554 = vsel %vm440, %v528, -inf
    %555 = vmax.xlane.f32.xlu0 %v554
    %v556 = vpop.xlane.xlu0 %555
    %v557 = vsel %vm440, %v551, -inf
    %558 = vmax.xlane.f32.xlu0 %v557
    %v559 = vpop.xlane.xlu0 %558
    %v560 = vsub.f32 %v528, %v556
    %v561 = vsub.f32 %v551, %v559
    %v562 = vmul.f32 %v560, 1.442695
    %v563 = vpow.pop %v562
    %v564 = vmul.f32 %v561, 1.442695
    %v565 = vpow.pop %v564
    %v566 = vsel %vm440, %v563, 0.0
    %567 = vadd.xlane.f32.xlu0 %v566
    %v568 = vpop.xlane.xlu0 %567
    %v569 = vsel %vm440, %v565, 0.0
    %570 = vadd.xlane.f32.xlu0 %v569
    %v571 = vpop.xlane.xlu0 %570
    %v572 = vrcp.pop %v568
    %v573 = vrcp.pop %v571
    %v574 = vmul.f32 %v563, %v572
    %v575 = vmul.f32 %v565, %v573
    %v576 = vpack.c.bf16 %v574, %v574
    %v577 = vpack.c.bf16 %v575, %v575
    %v579 = vunpack.c.l.b16 %v465
    %v580 = vpack.c.b16 %v579, %v579
    %581 = vrot.lane.b32.xlu0 %v580, 112
    %v582 = vpop.permute.xlu0 %581
    %v584 = vsel %vm440, %v576, 0
    %v587 = vsel %vm470, %v582, 0
    %589 = vmatpush.bf16.msra.mxu0 0
    %590 = vmatpush.bf16.msra.mxu0 0
    %591 = vmatpush.bf16.msra.mxu0 0
    %592 = vmatpush.bf16.msra.mxu0 0
    %593 = vmatpush.bf16.msra.mxu0 0
    %594 = vmatpush.bf16.msra.mxu0 0
    %595 = vmatpush.bf16.msra.mxu0 0
    %596 = vmatpush.bf16.msra.mxu0 %v587
    %597 = vmatmul.bf16.gmra.mxu0 %v584
    %v598 = vpop.f32.mrf.mxu0
    %v599 = vadd.f32 0.0, %v598
    %v600 = vpop.f32.mrf.mxu0
    %601 = vdwg.mxu0
    %v603 = vunpack.c.l.b16 %v466
    %v604 = vpack.c.b16 %v603, %v603
    %605 = vrot.lane.b32.xlu0 %v604, 112
    %v606 = vpop.permute.xlu0 %605
    %v608 = vsel %vm440, %v577, 0
    %v611 = vsel %vm470, %v606, 0
    %613 = vmatpush.bf16.msra.mxu0 0
    %614 = vmatpush.bf16.msra.mxu0 0
    %615 = vmatpush.bf16.msra.mxu0 0
    %616 = vmatpush.bf16.msra.mxu0 0
    %617 = vmatpush.bf16.msra.mxu0 0
    %618 = vmatpush.bf16.msra.mxu0 0
    %619 = vmatpush.bf16.msra.mxu0 0
    %620 = vmatpush.bf16.msra.mxu0 %v611
    %621 = vmatmul.bf16.gmra.mxu0 %v608
    %v622 = vpop.f32.mrf.mxu0
    %v623 = vadd.f32 0.0, %v622
    %v624 = vpop.f32.mrf.mxu0
    %625 = vdwg.mxu0
    %628 = vrot.lane.b32.xlu0 %v599, 16
    %v629 = vpop.permute.xlu0 %628
    %630 = vrot.lane.b32.xlu0 %v623, 16
    %v631 = vpop.permute.xlu0 %630
    %vm634 = vcmask 261248
    %635 = vst.msk [vmem:[#allocation2] sm:$0xff] %vm634, %v629
    %636 = vst.msk [vmem:[#allocation2 + $0x8] sm:$0xff] %vm634, %v631
    %637 = vrot.lane.b32.xlu0 %v393, 96
    %v638 = vpop.permute.xlu0 %637
    %639 = vrot.lane.b32.xlu0 %v393, 32
    %v640 = vpop.permute.xlu0 %639
    %v642 = vsel %vm396, %v638, 0
    %v645 = vsel %vm396, %v640, 0
    %647 = vmatpush.bf16.xpose.msra.mxu0 0
    %648 = vmatpush.bf16.xpose.msra.mxu0 0
    %649 = vmatpush.bf16.xpose.msra.mxu0 0
    %650 = vmatpush.bf16.xpose.msra.mxu0 0
    %651 = vmatpush.bf16.xpose.msra.mxu0 0
    %652 = vmatpush.bf16.xpose.msra.mxu0 0
    %653 = vmatpush.bf16.xpose.msra.mxu0 0
    %654 = vmatpush.bf16.xpose.msra.mxu0 %v645
    %655 = vmatmul.bf16.gmra.mxu0 %v642
    %v656 = vpop.f32.mrf.mxu0
    %v657 = vadd.f32 %v387, %v656
    %v658 = vpop.f32.mrf.mxu0
    %659 = vdwg.mxu0
    %660 = vrot.lane.b32.xlu0 %v418, 96
    %v661 = vpop.permute.xlu0 %660
    %662 = vrot.lane.b32.xlu0 %v418, 32
    %v663 = vpop.permute.xlu0 %662
    %v665 = vsel %vm396, %v661, 0
    %v668 = vsel %vm396, %v663, 0
    %670 = vmatpush.bf16.xpose.msra.mxu0 0
    %671 = vmatpush.bf16.xpose.msra.mxu0 0
    %672 = vmatpush.bf16.xpose.msra.mxu0 0
    %673 = vmatpush.bf16.xpose.msra.mxu0 0
    %674 = vmatpush.bf16.xpose.msra.mxu0 0
    %675 = vmatpush.bf16.xpose.msra.mxu0 0
    %676 = vmatpush.bf16.xpose.msra.mxu0 0
    %677 = vmatpush.bf16.xpose.msra.mxu0 %v668
    %678 = vmatmul.bf16.gmra.mxu0 %v665
    %v679 = vpop.f32.mrf.mxu0
    %v680 = vadd.f32 %v388, %v679
    %v681 = vpop.f32.mrf.mxu0
    %682 = vdwg.mxu0
    %v683 = vsel %vm440, %v657, -inf
    %684 = vmax.xlane.f32.xlu0 %v683
    %v685 = vpop.xlane.xlu0 %684
    %v686 = vsel %vm440, %v680, -inf
    %687 = vmax.xlane.f32.xlu0 %v686
    %v688 = vpop.xlane.xlu0 %687
    %v689 = vsub.f32 %v657, %v685
    %v690 = vsub.f32 %v680, %v688
    %v691 = vmul.f32 %v689, 1.442695
    %v692 = vpow.pop %v691
    %v693 = vmul.f32 %v690, 1.442695
    %v694 = vpow.pop %v693
    %v695 = vsel %vm440, %v692, 0.0
    %696 = vadd.xlane.f32.xlu0 %v695
    %v697 = vpop.xlane.xlu0 %696
    %v698 = vsel %vm440, %v694, 0.0
    %699 = vadd.xlane.f32.xlu0 %v698
    %v700 = vpop.xlane.xlu0 %699
    %v701 = vrcp.pop %v697
    %v702 = vrcp.pop %v700
    %v703 = vmul.f32 %v692, %v701
    %v704 = vmul.f32 %v694, %v702
    %v705 = vpack.c.bf16 %v703, %v703
    %v706 = vpack.c.bf16 %v704, %v704
    %707 = vrot.lane.b32.xlu0 %v580, 96
    %v708 = vpop.permute.xlu0 %707
    %v710 = vsel %vm440, %v705, 0
    %v713 = vsel %vm470, %v708, 0
    %715 = vmatpush.bf16.msra.mxu0 0
    %716 = vmatpush.bf16.msra.mxu0 0
    %717 = vmatpush.bf16.msra.mxu0 0
    %718 = vmatpush.bf16.msra.mxu0 0
    %719 = vmatpush.bf16.msra.mxu0 0
    %720 = vmatpush.bf16.msra.mxu0 0
    %721 = vmatpush.bf16.msra.mxu0 0
    %722 = vmatpush.bf16.msra.mxu0 %v713
    %723 = vmatmul.bf16.gmra.mxu0 %v710
    %v724 = vpop.f32.mrf.mxu0
    %v725 = vadd.f32 0.0, %v724
    %v726 = vpop.f32.mrf.mxu0
    %727 = vdwg.mxu0
    %728 = vrot.lane.b32.xlu0 %v604, 96
    %v729 = vpop.permute.xlu0 %728
    %v731 = vsel %vm440, %v706, 0
    %v734 = vsel %vm470, %v729, 0
    %736 = vmatpush.bf16.msra.mxu0 0
    %737 = vmatpush.bf16.msra.mxu0 0
    %738 = vmatpush.bf16.msra.mxu0 0
    %739 = vmatpush.bf16.msra.mxu0 0
    %740 = vmatpush.bf16.msra.mxu0 0
    %741 = vmatpush.bf16.msra.mxu0 0
    %742 = vmatpush.bf16.msra.mxu0 0
    %743 = vmatpush.bf16.msra.mxu0 %v734
    %744 = vmatmul.bf16.gmra.mxu0 %v731
    %v745 = vpop.f32.mrf.mxu0
    %v746 = vadd.f32 0.0, %v745
    %v747 = vpop.f32.mrf.mxu0
    %748 = vdwg.mxu0
    %751 = vrot.lane.b32.xlu0 %v725, 32
    %v752 = vpop.permute.xlu0 %751
    %753 = vrot.lane.b32.xlu0 %v746, 32
    %v754 = vpop.permute.xlu0 %753
    %vm757 = vcmask 392448
    %758 = vst.msk [vmem:[#allocation2] sm:$0xff] %vm757, %v752
    %759 = vst.msk [vmem:[#allocation2 + $0x8] sm:$0xff] %vm757, %v754
    %760 = vrot.lane.b32.xlu0 %v393, 80
    %v761 = vpop.permute.xlu0 %760
    %762 = vrot.lane.b32.xlu0 %v393, 16
    %v763 = vpop.permute.xlu0 %762
    %v765 = vsel %vm396, %v761, 0
    %v768 = vsel %vm396, %v763, 0
    %770 = vmatpush.bf16.xpose.msra.mxu0 0
    %771 = vmatpush.bf16.xpose.msra.mxu0 0
    %772 = vmatpush.bf16.xpose.msra.mxu0 0
    %773 = vmatpush.bf16.xpose.msra.mxu0 0
    %774 = vmatpush.bf16.xpose.msra.mxu0 0
    %775 = vmatpush.bf16.xpose.msra.mxu0 0
    %776 = vmatpush.bf16.xpose.msra.mxu0 0
    %777 = vmatpush.bf16.xpose.msra.mxu0 %v768
    %778 = vmatmul.bf16.gmra.mxu0 %v765
    %v779 = vpop.f32.mrf.mxu0
    %v780 = vadd.f32 %v387, %v779
    %v781 = vpop.f32.mrf.mxu0
    %782 = vdwg.mxu0
    %783 = vrot.lane.b32.xlu0 %v418, 80
    %v784 = vpop.permute.xlu0 %783
    %785 = vrot.lane.b32.xlu0 %v418, 16
    %v786 = vpop.permute.xlu0 %785
    %v788 = vsel %vm396, %v784, 0
    %v791 = vsel %vm396, %v786, 0
    %793 = vmatpush.bf16.xpose.msra.mxu0 0
    %794 = vmatpush.bf16.xpose.msra.mxu0 0
    %795 = vmatpush.bf16.xpose.msra.mxu0 0
    %796 = vmatpush.bf16.xpose.msra.mxu0 0
    %797 = vmatpush.bf16.xpose.msra.mxu0 0
    %798 = vmatpush.bf16.xpose.msra.mxu0 0
    %799 = vmatpush.bf16.xpose.msra.mxu0 0
    %800 = vmatpush.bf16.xpose.msra.mxu0 %v791
    %801 = vmatmul.bf16.gmra.mxu0 %v788
    %v802 = vpop.f32.mrf.mxu0
    %v803 = vadd.f32 %v388, %v802
    %v804 = vpop.f32.mrf.mxu0
    %805 = vdwg.mxu0
    %v806 = vsel %vm440, %v780, -inf
    %807 = vmax.xlane.f32.xlu0 %v806
    %v808 = vpop.xlane.xlu0 %807
    %v809 = vsel %vm440, %v803, -inf
    %810 = vmax.xlane.f32.xlu0 %v809
    %v811 = vpop.xlane.xlu0 %810
    %v812 = vsub.f32 %v780, %v808
    %v813 = vsub.f32 %v803, %v811
    %v814 = vmul.f32 %v812, 1.442695
    %v815 = vpow.pop %v814
    %v816 = vmul.f32 %v813, 1.442695
    %v817 = vpow.pop %v816
    %v818 = vsel %vm440, %v815, 0.0
    %819 = vadd.xlane.f32.xlu0 %v818
    %v820 = vpop.xlane.xlu0 %819
    %v821 = vsel %vm440, %v817, 0.0
    %822 = vadd.xlane.f32.xlu0 %v821
    %v823 = vpop.xlane.xlu0 %822
    %v824 = vrcp.pop %v820
    %v825 = vrcp.pop %v823
    %v826 = vmul.f32 %v815, %v824
    %v827 = vmul.f32 %v817, %v825
    %v828 = vpack.c.bf16 %v826, %v826
    %v829 = vpack.c.bf16 %v827, %v827
    %830 = vrot.lane.b32.xlu0 %v580, 80
    %v831 = vpop.permute.xlu0 %830
    %v833 = vsel %vm440, %v828, 0
    %v836 = vsel %vm470, %v831, 0
    %838 = vmatpush.bf16.msra.mxu0 0
    %839 = vmatpush.bf16.msra.mxu0 0
    %840 = vmatpush.bf16.msra.mxu0 0
    %841 = vmatpush.bf16.msra.mxu0 0
    %842 = vmatpush.bf16.msra.mxu0 0
    %843 = vmatpush.bf16.msra.mxu0 0
    %844 = vmatpush.bf16.msra.mxu0 0
    %845 = vmatpush.bf16.msra.mxu0 %v836
    %846 = vmatmul.bf16.gmra.mxu0 %v833
    %v847 = vpop.f32.mrf.mxu0
    %v848 = vadd.f32 0.0, %v847
    %v849 = vpop.f32.mrf.mxu0
    %850 = vdwg.mxu0
    %851 = vrot.lane.b32.xlu0 %v604, 80
    %v852 = vpop.permute.xlu0 %851
    %v854 = vsel %vm440, %v829, 0
    %v857 = vsel %vm470, %v852, 0
    %859 = vmatpush.bf16.msra.mxu0 0
    %860 = vmatpush.bf16.msra.mxu0 0
    %861 = vmatpush.bf16.msra.mxu0 0
    %862 = vmatpush.bf16.msra.mxu0 0
    %863 = vmatpush.bf16.msra.mxu0 0
    %864 = vmatpush.bf16.msra.mxu0 0
    %865 = vmatpush.bf16.msra.mxu0 0
    %866 = vmatpush.bf16.msra.mxu0 %v857
    %867 = vmatmul.bf16.gmra.mxu0 %v854
    %v868 = vpop.f32.mrf.mxu0
    %v869 = vadd.f32 0.0, %v868
    %v870 = vpop.f32.mrf.mxu0
    %871 = vdwg.mxu0
    %874 = vrot.lane.b32.xlu0 %v848, 48
    %v875 = vpop.permute.xlu0 %874
    %876 = vrot.lane.b32.xlu0 %v869, 48
    %v877 = vpop.permute.xlu0 %876
    %vm880 = vcmask 523648
    %881 = vst.msk [vmem:[#allocation2] sm:$0xff] %vm880, %v875
    %882 = vst.msk [vmem:[#allocation2 + $0x8] sm:$0xff] %vm880, %v877
    %v883 = vld [vmem:[#allocation2] sm:$0xff]
    %v884 = vld [vmem:[#allocation2 + $0x8] sm:$0xff]
    %v885 = vpack.c.bf16 %v884, %v883
    %v886 = vld [vmem:[%s6] sm:$0xf]
    %v887 = vld [vmem:[%s6 + $0x4] sm:$0xf]
    %v888 = vld [vmem:[%s6 + $0x8] sm:$0xf]
    %v889 = vld [vmem:[%s6 + $0xc] sm:$0xf]
    %v890 = vld [vmem:[%s6 + $0x10] sm:$0xf]
    %v891 = vld [vmem:[%s6 + $0x14] sm:$0xf]
    %v892 = vld [vmem:[%s6 + $0x18] sm:$0xf]
    %v893 = vld [vmem:[%s6 + $0x1c] sm:$0xf]
    %v894 = vld [vmem:[#allocation3] sm:$0x1]
    %v896 = vperm.slane %v894, 0
    %v906 = vunpack.c.l.b16 %v886
    %v907 = vunpack.c.l.b16 %v887
    %v908 = vunpack.c.l.b16 %v888
    %v909 = vunpack.c.l.b16 %v889
    %v910 = vunpack.c.l.b16 %v890
    %v911 = vunpack.c.l.b16 %v891
    %v912 = vunpack.c.l.b16 %v892
    %v913 = vunpack.c.l.b16 %v893
    %v914 = vpack.c.b16 %v907, %v906
    %v915 = vpack.c.b16 %v909, %v908
    %v916 = vpack.c.b16 %v911, %v910
    %v917 = vpack.c.b16 %v913, %v912
    %v923 = vsel %vm349, %v885, 0
    %925 = vmatpush.bf16.msra.mxu0 0
    %926 = vmatpush.bf16.msra.mxu0 0
    %927 = vmatpush.bf16.msra.mxu0 0
    %928 = vmatpush.bf16.msra.mxu0 0
    %929 = vmatpush.bf16.msra.mxu0 %v917
    %930 = vmatpush.bf16.msra.mxu0 %v916
    %931 = vmatpush.bf16.msra.mxu0 %v915
    %932 = vmatpush.bf16.msra.mxu0 %v914
    %933 = vmatmul.bf16.gmra.mxu0 %v923
    %v934 = vpop.f32.mrf.mxu0
    %v935 = vadd.f32 %v896, %v934
    %v936 = vpop.f32.mrf.mxu0
    %v937 = vadd.f32 %v896, %v936
    %938 = vdwg.mxu0
    %v939 = vadd.f32 %v292, %v935
    %v940 = vadd.f32 %v293, %v937
    %v941 = vld [vmem:[#allocation5] sm:$0x1]
    %v942 = vld [vmem:[#allocation7] sm:$0x1]
    %v943 = vsel %vm349, %v939, 0.0
    %944 = vadd.xlane.f32.xlu0 %v943
    %v945 = vpop.xlane.xlu0 %944
    %v946 = vsel %vm349, %v940, 0.0
    %947 = vadd.xlane.f32.xlu0 %v946
    %v948 = vpop.xlane.xlu0 %947
    %v949 = vrcp.pop 64.0
    %v950 = vmul.f32 64.0, %v949
    %v951 = vsub.f32 1.0, %v950
    %v952 = vmul.f32 %v949, %v951
    %v953 = vadd.f32 %v949, %v952
    %vm954 = vweird.f32 %v949
    %v955 = vsel %vm954, %v949, %v953
    %v956 = vmul.f32 %v945, %v955
    %v957 = vmul.f32 %v948, %v955
    %v958 = vsub.f32 %v939, %v956
    %v959 = vsub.f32 %v940, %v957
    %v960 = vmul.f32 %v958, %v958
    %v961 = vmul.f32 %v959, %v959
    %v962 = vsel %vm349, %v960, 0.0
    %963 = vadd.xlane.f32.xlu0 %v962
    %v964 = vpop.xlane.xlu0 %963
    %v965 = vsel %vm349, %v961, 0.0
    %966 = vadd.xlane.f32.xlu0 %v965
    %v967 = vpop.xlane.xlu0 %966
    %v968 = vmul.f32 %v964, %v955
    %v969 = vmul.f32 %v967, %v955
    %v970 = vadd.f32 %v968, 1e-05
    %v971 = vadd.f32 %v969, 1e-05
    %v972 = vrsqrt.pop %v970
    %v973 = vmul.f32 %v972, %v970
    %v974 = vmul.f32 %v973, %v972
    %v975 = vmul.f32 0.5, %v974
    %v976 = vsub.f32 1.5, %v975
    %v977 = vmul.f32 %v972, %v976
    %vm978 = vweird.f32 %v970
    %vm979 = vweird.f32 %v972
    %vm980 = vmor %vm978, %vm979
    %v981 = vsel %vm980, %v972, %v977
    %v982 = vrsqrt.pop %v971
    %v983 = vmul.f32 %v982, %v971
    %v984 = vmul.f32 %v983, %v982
    %v985 = vmul.f32 0.5, %v984
    %v986 = vsub.f32 1.5, %v985
    %v987 = vmul.f32 %v982, %v986
    %vm988 = vweird.f32 %v971
    %vm989 = vweird.f32 %v982
    %vm990 = vmor %vm988, %vm989
    %v991 = vsel %vm990, %v982, %v987
    %v992 = vmul.f32 %v958, %v981
    %v993 = vmul.f32 %v959, %v991
    %v995 = vperm.slane %v941, 0
    %v997 = vmul.f32 %v992, %v995
    %v998 = vmul.f32 %v993, %v995
    %v1000 = vperm.slane %v942, 0
    %v1002 = vadd.f32 %v997, %v1000
    %v1003 = vadd.f32 %v998, %v1000
    %v1004 = vpack.c.bf16 %v1003, %v1002
    %v1005 = vld [vmem:[%s10] sm:$0xf]
    %v1006 = vld [vmem:[%s10 + $0x4] sm:$0xf]
    %v1007 = vld [vmem:[%s10 + $0x8] sm:$0xf]
    %v1008 = vld [vmem:[%s10 + $0xc] sm:$0xf]
    %v1009 = vld [vmem:[%s10 + $0x10] sm:$0xf]
    %v1010 = vld [vmem:[%s10 + $0x14] sm:$0xf]
    %v1011 = vld [vmem:[%s10 + $0x18] sm:$0xf]
    %v1012 = vld [vmem:[%s10 + $0x1c] sm:$0xf]
    %v1013 = vld [vmem:[#allocation8] sm:$0x1]
    %v1015 = vperm.slane %v1013, 0
    %v1025 = vunpack.c.l.b16 %v1005
    %v1026 = vunpack.c.l.b16 %v1006
    %v1027 = vunpack.c.l.b16 %v1007
    %v1028 = vunpack.c.l.b16 %v1008
    %v1029 = vunpack.c.l.b16 %v1009
    %v1030 = vunpack.c.l.b16 %v1010
    %v1031 = vunpack.c.l.b16 %v1011
    %v1032 = vunpack.c.l.b16 %v1012
    %v1033 = vpack.c.b16 %v1026, %v1025
    %v1034 = vpack.c.b16 %v1028, %v1027
    %v1035 = vpack.c.b16 %v1030, %v1029
    %v1036 = vpack.c.b16 %v1032, %v1031
    %v1042 = vsel %vm349, %v1004, 0
    %1044 = vmatpush.bf16.msra.mxu0 0
    %1045 = vmatpush.bf16.msra.mxu0 0
    %1046 = vmatpush.bf16.msra.mxu0 0
    %1047 = vmatpush.bf16.msra.mxu0 0
    %1048 = vmatpush.bf16.msra.mxu0 %v1036
    %1049 = vmatpush.bf16.msra.mxu0 %v1035
    %1050 = vmatpush.bf16.msra.mxu0 %v1034
    %1051 = vmatpush.bf16.msra.mxu0 %v1033
    %1052 = vmatmul.bf16.gmra.mxu0 %v1042
    %v1053 = vpop.f32.mrf.mxu0
    %v1054 = vadd.f32 %v1015, %v1053
    %v1055 = vpop.f32.mrf.mxu0
    %v1056 = vadd.f32 %v1015, %v1055
    %1057 = vdwg.mxu0
    %v1058 = vld [vmem:[%s1] sm:$0xff]
    %v1059 = vld [vmem:[%s1 + $0x8] sm:$0xff]
    %v1060 = vpack.c.bf16 %v1059, %v1058
    %v1061 = vld [vmem:[%s12] sm:$0xf]
    %v1062 = vld [vmem:[%s12 + $0x4] sm:$0xf]
    %v1063 = vld [vmem:[%s12 + $0x8] sm:$0xf]
    %v1064 = vld [vmem:[%s12 + $0xc] sm:$0xf]
    %v1065 = vld [vmem:[%s12 + $0x10] sm:$0xf]
    %v1066 = vld [vmem:[%s12 + $0x14] sm:$0xf]
    %v1067 = vld [vmem:[%s12 + $0x18] sm:$0xf]
    %v1068 = vld [vmem:[%s12 + $0x1c] sm:$0xf]
    %v1069 = vld [vmem:[#allocation10] sm:$0x1]
    %v1071 = vperm.slane %v1069, 0
    %v1081 = vunpack.c.l.b16 %v1061
    %v1082 = vunpack.c.l.b16 %v1062
    %v1083 = vunpack.c.l.b16 %v1063
    %v1084 = vunpack.c.l.b16 %v1064
    %v1085 = vunpack.c.l.b16 %v1065
    %v1086 = vunpack.c.l.b16 %v1066
    %v1087 = vunpack.c.l.b16 %v1067
    %v1088 = vunpack.c.l.b16 %v1068
    %v1089 = vpack.c.b16 %v1082, %v1081
    %v1090 = vpack.c.b16 %v1084, %v1083
    %v1091 = vpack.c.b16 %v1086, %v1085
    %v1092 = vpack.c.b16 %v1088, %v1087
    %v1098 = vsel %vm349, %v1060, 0
    %1100 = vmatpush.bf16.msra.mxu0 0
    %1101 = vmatpush.bf16.msra.mxu0 0
    %1102 = vmatpush.bf16.msra.mxu0 0
    %1103 = vmatpush.bf16.msra.mxu0 0
    %1104 = vmatpush.bf16.msra.mxu0 %v1092
    %1105 = vmatpush.bf16.msra.mxu0 %v1091
    %1106 = vmatpush.bf16.msra.mxu0 %v1090
    %1107 = vmatpush.bf16.msra.mxu0 %v1089
    %1108 = vmatmul.bf16.gmra.mxu0 %v1098
    %v1109 = vpop.f32.mrf.mxu0
    %v1110 = vadd.f32 %v1071, %v1109
    %v1111 = vpop.f32.mrf.mxu0
    %v1112 = vadd.f32 %v1071, %v1111
    %1113 = vdwg.mxu0
    %v1114 = vld [vmem:[%s3] sm:$0x1]
    %v1115 = vld [vmem:[%s3 + $0x1] sm:$0x1]
    %v1116 = vpack.c.bf16 %v1054, %v1054
    %v1117 = vpack.c.bf16 %v1056, %v1056
    %v1118 = vpack.c.bf16 %v1110, %v1110
    %v1119 = vpack.c.bf16 %v1112, %v1112
    %v1122 = vperm.slane %v1114, 0
    %v1123 = vperm.slane %v1115, 0
    %v1127 = vsel %vm396, %v1116, 0
    %v1130 = vsel %vm396, %v1118, 0
    %1132 = vmatpush.bf16.xpose.msra.mxu0 0
    %1133 = vmatpush.bf16.xpose.msra.mxu0 0
    %1134 = vmatpush.bf16.xpose.msra.mxu0 0
    %1135 = vmatpush.bf16.xpose.msra.mxu0 0
    %1136 = vmatpush.bf16.xpose.msra.mxu0 0
    %1137 = vmatpush.bf16.xpose.msra.mxu0 0
    %1138 = vmatpush.bf16.xpose.msra.mxu0 0
    %1139 = vmatpush.bf16.xpose.msra.mxu0 %v1130
    %1140 = vmatmul.bf16.gmra.mxu0 %v1127
    %v1141 = vpop.f32.mrf.mxu0
    %v1142 = vadd.f32 %v1122, %v1141
    %v1143 = vpop.f32.mrf.mxu0
    %1144 = vdwg.mxu0
    %v1146 = vsel %vm396, %v1117, 0
    %v1149 = vsel %vm396, %v1119, 0
    %1151 = vmatpush.bf16.xpose.msra.mxu0 0
    %1152 = vmatpush.bf16.xpose.msra.mxu0 0
    %1153 = vmatpush.bf16.xpose.msra.mxu0 0
    %1154 = vmatpush.bf16.xpose.msra.mxu0 0
    %1155 = vmatpush.bf16.xpose.msra.mxu0 0
    %1156 = vmatpush.bf16.xpose.msra.mxu0 0
    %1157 = vmatpush.bf16.xpose.msra.mxu0 0
    %1158 = vmatpush.bf16.xpose.msra.mxu0 %v1149
    %1159 = vmatmul.bf16.gmra.mxu0 %v1146
    %v1160 = vpop.f32.mrf.mxu0
    %v1161 = vadd.f32 %v1123, %v1160
    %v1162 = vpop.f32.mrf.mxu0
    %1163 = vdwg.mxu0
    %v1164 = vsel %vm440, %v1142, -inf
    %1165 = vmax.xlane.f32.xlu0 %v1164
    %v1166 = vpop.xlane.xlu0 %1165
    %v1167 = vsel %vm440, %v1161, -inf
    %1168 = vmax.xlane.f32.xlu0 %v1167
    %v1169 = vpop.xlane.xlu0 %1168
    %v1170 = vsub.f32 %v1142, %v1166
    %v1171 = vsub.f32 %v1161, %v1169
    %v1172 = vmul.f32 %v1170, 1.442695
    %v1173 = vpow.pop %v1172
    %v1174 = vmul.f32 %v1171, 1.442695
    %v1175 = vpow.pop %v1174
    %v1176 = vsel %vm440, %v1173, 0.0
    %1177 = vadd.xlane.f32.xlu0 %v1176
    %v1178 = vpop.xlane.xlu0 %1177
    %v1179 = vsel %vm440, %v1175, 0.0
    %1180 = vadd.xlane.f32.xlu0 %v1179
    %v1181 = vpop.xlane.xlu0 %1180
    %v1182 = vrcp.pop %v1178
    %v1183 = vrcp.pop %v1181
    %v1184 = vmul.f32 %v1173, %v1182
    %v1185 = vmul.f32 %v1175, %v1183
    %v1186 = vpack.c.bf16 %v1184, %v1184
    %v1187 = vpack.c.bf16 %v1185, %v1185
    %v1189 = vunpack.c.l.b16 %v1118
    %v1190 = vpack.c.b16 %v1189, %v1189
    %1191 = vrot.lane.b32.xlu0 %v1190, 64
    %v1192 = vpop.permute.xlu0 %1191
    %v1194 = vsel %vm440, %v1186, 0
    %v1197 = vsel %vm470, %v1192, 0
    %1199 = vmatpush.bf16.msra.mxu0 0
    %1200 = vmatpush.bf16.msra.mxu0 0
    %1201 = vmatpush.bf16.msra.mxu0 0
    %1202 = vmatpush.bf16.msra.mxu0 0
    %1203 = vmatpush.bf16.msra.mxu0 0
    %1204 = vmatpush.bf16.msra.mxu0 0
    %1205 = vmatpush.bf16.msra.mxu0 0
    %1206 = vmatpush.bf16.msra.mxu0 %v1197
    %1207 = vmatmul.bf16.gmra.mxu0 %v1194
    %v1208 = vpop.f32.mrf.mxu0
    %v1209 = vadd.f32 0.0, %v1208
    %v1210 = vpop.f32.mrf.mxu0
    %1211 = vdwg.mxu0
    %v1213 = vunpack.c.l.b16 %v1119
    %v1214 = vpack.c.b16 %v1213, %v1213
    %1215 = vrot.lane.b32.xlu0 %v1214, 64
    %v1216 = vpop.permute.xlu0 %1215
    %v1218 = vsel %vm440, %v1187, 0
    %v1221 = vsel %vm470, %v1216, 0
    %1223 = vmatpush.bf16.msra.mxu0 0
    %1224 = vmatpush.bf16.msra.mxu0 0
    %1225 = vmatpush.bf16.msra.mxu0 0
    %1226 = vmatpush.bf16.msra.mxu0 0
    %1227 = vmatpush.bf16.msra.mxu0 0
    %1228 = vmatpush.bf16.msra.mxu0 0
    %1229 = vmatpush.bf16.msra.mxu0 0
    %1230 = vmatpush.bf16.msra.mxu0 %v1221
    %1231 = vmatmul.bf16.gmra.mxu0 %v1218
    %v1232 = vpop.f32.mrf.mxu0
    %v1233 = vadd.f32 0.0, %v1232
    %v1234 = vpop.f32.mrf.mxu0
    %1235 = vdwg.mxu0
    %1236 = vst.msk [vmem:[#allocation2] sm:$0xff] %vm396, %v1209
    %1237 = vst.msk [vmem:[#allocation2 + $0x8] sm:$0xff] %vm396, %v1233
    %v1239 = vunpack.c.l.b16 %v1116
    %v1240 = vpack.c.b16 %v1239, %v1239
    %1241 = vrot.lane.b32.xlu0 %v1240, 112
    %v1242 = vpop.permute.xlu0 %1241
    %1243 = vrot.lane.b32.xlu0 %v1190, 112
    %v1244 = vpop.permute.xlu0 %1243
    %v1246 = vsel %vm396, %v1242, 0
    %v1249 = vsel %vm396, %v1244, 0
    %1251 = vmatpush.bf16.xpose.msra.mxu0 0
    %1252 = vmatpush.bf16.xpose.msra.mxu0 0
    %1253 = vmatpush.bf16.xpose.msra.mxu0 0
    %1254 = vmatpush.bf16.xpose.msra.mxu0 0
    %1255 = vmatpush.bf16.xpose.msra.mxu0 0
    %1256 = vmatpush.bf16.xpose.msra.mxu0 0
    %1257 = vmatpush.bf16.xpose.msra.mxu0 0
    %1258 = vmatpush.bf16.xpose.msra.mxu0 %v1249
    %1259 = vmatmul.bf16.gmra.mxu0 %v1246
    %v1260 = vpop.f32.mrf.mxu0
    %v1261 = vadd.f32 %v1122, %v1260
    %v1262 = vpop.f32.mrf.mxu0
    %1263 = vdwg.mxu0
    %v1265 = vunpack.c.l.b16 %v1117
    %v1266 = vpack.c.b16 %v1265, %v1265
    %1267 = vrot.lane.b32.xlu0 %v1266, 112
    %v1268 = vpop.permute.xlu0 %1267
    %1269 = vrot.lane.b32.xlu0 %v1214, 112
    %v1270 = vpop.permute.xlu0 %1269
    %v1272 = vsel %vm396, %v1268, 0
    %v1275 = vsel %vm396, %v1270, 0
    %1277 = vmatpush.bf16.xpose.msra.mxu0 0
    %1278 = vmatpush.bf16.xpose.msra.mxu0 0
    %1279 = vmatpush.bf16.xpose.msra.mxu0 0
    %1280 = vmatpush.bf16.xpose.msra.mxu0 0
    %1281 = vmatpush.bf16.xpose.msra.mxu0 0
    %1282 = vmatpush.bf16.xpose.msra.mxu0 0
    %1283 = vmatpush.bf16.xpose.msra.mxu0 0
    %1284 = vmatpush.bf16.xpose.msra.mxu0 %v1275
    %1285 = vmatmul.bf16.gmra.mxu0 %v1272
    %v1286 = vpop.f32.mrf.mxu0
    %v1287 = vadd.f32 %v1123, %v1286
    %v1288 = vpop.f32.mrf.mxu0
    %1289 = vdwg.mxu0
    %v1290 = vsel %vm440, %v1261, -inf
    %1291 = vmax.xlane.f32.xlu0 %v1290
    %v1292 = vpop.xlane.xlu0 %1291
    %v1293 = vsel %vm440, %v1287, -inf
    %1294 = vmax.xlane.f32.xlu0 %v1293
    %v1295 = vpop.xlane.xlu0 %1294
    %v1296 = vsub.f32 %v1261, %v1292
    %v1297 = vsub.f32 %v1287, %v1295
    %v1298 = vmul.f32 %v1296, 1.442695
    %v1299 = vpow.pop %v1298
    %v1300 = vmul.f32 %v1297, 1.442695
    %v1301 = vpow.pop %v1300
    %v1302 = vsel %vm440, %v1299, 0.0
    %1303 = vadd.xlane.f32.xlu0 %v1302
    %v1304 = vpop.xlane.xlu0 %1303
    %v1305 = vsel %vm440, %v1301, 0.0
    %1306 = vadd.xlane.f32.xlu0 %v1305
    %v1307 = vpop.xlane.xlu0 %1306
    %v1308 = vrcp.pop %v1304
    %v1309 = vrcp.pop %v1307
    %v1310 = vmul.f32 %v1299, %v1308
    %v1311 = vmul.f32 %v1301, %v1309
    %v1312 = vpack.c.bf16 %v1310, %v1310
    %v1313 = vpack.c.bf16 %v1311, %v1311
    %1314 = vrot.lane.b32.xlu0 %v1190, 48
    %v1315 = vpop.permute.xlu0 %1314
    %v1317 = vsel %vm440, %v1312, 0
    %v1320 = vsel %vm470, %v1315, 0
    %1322 = vmatpush.bf16.msra.mxu0 0
    %1323 = vmatpush.bf16.msra.mxu0 0
    %1324 = vmatpush.bf16.msra.mxu0 0
    %1325 = vmatpush.bf16.msra.mxu0 0
    %1326 = vmatpush.bf16.msra.mxu0 0
    %1327 = vmatpush.bf16.msra.mxu0 0
    %1328 = vmatpush.bf16.msra.mxu0 0
    %1329 = vmatpush.bf16.msra.mxu0 %v1320
    %1330 = vmatmul.bf16.gmra.mxu0 %v1317
    %v1331 = vpop.f32.mrf.mxu0
    %v1332 = vadd.f32 0.0, %v1331
    %v1333 = vpop.f32.mrf.mxu0
    %1334 = vdwg.mxu0
    %1335 = vrot.lane.b32.xlu0 %v1214, 48
    %v1336 = vpop.permute.xlu0 %1335
    %v1338 = vsel %vm440, %v1313, 0
    %v1341 = vsel %vm470, %v1336, 0
    %1343 = vmatpush.bf16.msra.mxu0 0
    %1344 = vmatpush.bf16.msra.mxu0 0
    %1345 = vmatpush.bf16.msra.mxu0 0
    %1346 = vmatpush.bf16.msra.mxu0 0
    %1347 = vmatpush.bf16.msra.mxu0 0
    %1348 = vmatpush.bf16.msra.mxu0 0
    %1349 = vmatpush.bf16.msra.mxu0 0
    %1350 = vmatpush.bf16.msra.mxu0 %v1341
    %1351 = vmatmul.bf16.gmra.mxu0 %v1338
    %v1352 = vpop.f32.mrf.mxu0
    %v1353 = vadd.f32 0.0, %v1352
    %v1354 = vpop.f32.mrf.mxu0
    %1355 = vdwg.mxu0
    %1358 = vrot.lane.b32.xlu0 %v1332, 16
    %v1359 = vpop.permute.xlu0 %1358
    %1360 = vrot.lane.b32.xlu0 %v1353, 16
    %v1361 = vpop.permute.xlu0 %1360
    %1364 = vst.msk [vmem:[#allocation2] sm:$0xff] %vm634, %v1359
    %1365 = vst.msk [vmem:[#allocation2 + $0x8] sm:$0xff] %vm634, %v1361
    %1366 = vrot.lane.b32.xlu0 %v1240, 96
    %v1367 = vpop.permute.xlu0 %1366
    %1368 = vrot.lane.b32.xlu0 %v1190, 96
    %v1369 = vpop.permute.xlu0 %1368
    %v1371 = vsel %vm396, %v1367, 0
    %v1374 = vsel %vm396, %v1369, 0
    %1376 = vmatpush.bf16.xpose.msra.mxu0 0
    %1377 = vmatpush.bf16.xpose.msra.mxu0 0
    %1378 = vmatpush.bf16.xpose.msra.mxu0 0
    %1379 = vmatpush.bf16.xpose.msra.mxu0 0
    %1380 = vmatpush.bf16.xpose.msra.mxu0 0
    %1381 = vmatpush.bf16.xpose.msra.mxu0 0
    %1382 = vmatpush.bf16.xpose.msra.mxu0 0
    %1383 = vmatpush.bf16.xpose.msra.mxu0 %v1374
    %1384 = vmatmul.bf16.gmra.mxu0 %v1371
    %v1385 = vpop.f32.mrf.mxu0
    %v1386 = vadd.f32 %v1122, %v1385
    %v1387 = vpop.f32.mrf.mxu0
    %1388 = vdwg.mxu0
    %1389 = vrot.lane.b32.xlu0 %v1266, 96
    %v1390 = vpop.permute.xlu0 %1389
    %1391 = vrot.lane.b32.xlu0 %v1214, 96
    %v1392 = vpop.permute.xlu0 %1391
    %v1394 = vsel %vm396, %v1390, 0
    %v1397 = vsel %vm396, %v1392, 0
    %1399 = vmatpush.bf16.xpose.msra.mxu0 0
    %1400 = vmatpush.bf16.xpose.msra.mxu0 0
    %1401 = vmatpush.bf16.xpose.msra.mxu0 0
    %1402 = vmatpush.bf16.xpose.msra.mxu0 0
    %1403 = vmatpush.bf16.xpose.msra.mxu0 0
    %1404 = vmatpush.bf16.xpose.msra.mxu0 0
    %1405 = vmatpush.bf16.xpose.msra.mxu0 0
    %1406 = vmatpush.bf16.xpose.msra.mxu0 %v1397
    %1407 = vmatmul.bf16.gmra.mxu0 %v1394
    %v1408 = vpop.f32.mrf.mxu0
    %v1409 = vadd.f32 %v1123, %v1408
    %v1410 = vpop.f32.mrf.mxu0
    %1411 = vdwg.mxu0
    %v1412 = vsel %vm440, %v1386, -inf
    %1413 = vmax.xlane.f32.xlu0 %v1412
    %v1414 = vpop.xlane.xlu0 %1413
    %v1415 = vsel %vm440, %v1409, -inf
    %1416 = vmax.xlane.f32.xlu0 %v1415
    %v1417 = vpop.xlane.xlu0 %1416
    %v1418 = vsub.f32 %v1386, %v1414
    %v1419 = vsub.f32 %v1409, %v1417
    %v1420 = vmul.f32 %v1418, 1.442695
    %v1421 = vpow.pop %v1420
    %v1422 = vmul.f32 %v1419, 1.442695
    %v1423 = vpow.pop %v1422
    %v1424 = vsel %vm440, %v1421, 0.0
    %1425 = vadd.xlane.f32.xlu0 %v1424
    %v1426 = vpop.xlane.xlu0 %1425
    %v1427 = vsel %vm440, %v1423, 0.0
    %1428 = vadd.xlane.f32.xlu0 %v1427
    %v1429 = vpop.xlane.xlu0 %1428
    %v1430 = vrcp.pop %v1426
    %v1431 = vrcp.pop %v1429
    %v1432 = vmul.f32 %v1421, %v1430
    %v1433 = vmul.f32 %v1423, %v1431
    %v1434 = vpack.c.bf16 %v1432, %v1432
    %v1435 = vpack.c.bf16 %v1433, %v1433
    %1436 = vrot.lane.b32.xlu0 %v1190, 32
    %v1437 = vpop.permute.xlu0 %1436
    %v1439 = vsel %vm440, %v1434, 0
    %v1442 = vsel %vm470, %v1437, 0
    %1444 = vmatpush.bf16.msra.mxu0 0
    %1445 = vmatpush.bf16.msra.mxu0 0
    %1446 = vmatpush.bf16.msra.mxu0 0
    %1447 = vmatpush.bf16.msra.mxu0 0
    %1448 = vmatpush.bf16.msra.mxu0 0
    %1449 = vmatpush.bf16.msra.mxu0 0
    %1450 = vmatpush.bf16.msra.mxu0 0
    %1451 = vmatpush.bf16.msra.mxu0 %v1442
    %1452 = vmatmul.bf16.gmra.mxu0 %v1439
    %v1453 = vpop.f32.mrf.mxu0
    %v1454 = vadd.f32 0.0, %v1453
    %v1455 = vpop.f32.mrf.mxu0
    %1456 = vdwg.mxu0
    %1457 = vrot.lane.b32.xlu0 %v1214, 32
    %v1458 = vpop.permute.xlu0 %1457
    %v1460 = vsel %vm440, %v1435, 0
    %v1463 = vsel %vm470, %v1458, 0
    %1465 = vmatpush.bf16.msra.mxu0 0
    %1466 = vmatpush.bf16.msra.mxu0 0
    %1467 = vmatpush.bf16.msra.mxu0 0
    %1468 = vmatpush.bf16.msra.mxu0 0
    %1469 = vmatpush.bf16.msra.mxu0 0
    %1470 = vmatpush.bf16.msra.mxu0 0
    %1471 = vmatpush.bf16.msra.mxu0 0
    %1472 = vmatpush.bf16.msra.mxu0 %v1463
    %1473 = vmatmul.bf16.gmra.mxu0 %v1460
    %v1474 = vpop.f32.mrf.mxu0
    %v1475 = vadd.f32 0.0, %v1474
    %v1476 = vpop.f32.mrf.mxu0
    %1477 = vdwg.mxu0
    %1480 = vrot.lane.b32.xlu0 %v1454, 32
    %v1481 = vpop.permute.xlu0 %1480
    %1482 = vrot.lane.b32.xlu0 %v1475, 32
    %v1483 = vpop.permute.xlu0 %1482
    %1486 = vst.msk [vmem:[#allocation2] sm:$0xff] %vm757, %v1481
    %1487 = vst.msk [vmem:[#allocation2 + $0x8] sm:$0xff] %vm757, %v1483
    %1488 = vrot.lane.b32.xlu0 %v1240, 80
    %v1489 = vpop.permute.xlu0 %1488
    %1490 = vrot.lane.b32.xlu0 %v1190, 80
    %v1491 = vpop.permute.xlu0 %1490
    %v1493 = vsel %vm396, %v1489, 0
    %v1496 = vsel %vm396, %v1491, 0
    %1498 = vmatpush.bf16.xpose.msra.mxu0 0
    %1499 = vmatpush.bf16.xpose.msra.mxu0 0
    %1500 = vmatpush.bf16.xpose.msra.mxu0 0
    %1501 = vmatpush.bf16.xpose.msra.mxu0 0
    %1502 = vmatpush.bf16.xpose.msra.mxu0 0
    %1503 = vmatpush.bf16.xpose.msra.mxu0 0
    %1504 = vmatpush.bf16.xpose.msra.mxu0 0
    %1505 = vmatpush.bf16.xpose.msra.mxu0 %v1496
    %1506 = vmatmul.bf16.gmra.mxu0 %v1493
    %v1507 = vpop.f32.mrf.mxu0
    %v1508 = vadd.f32 %v1122, %v1507
    %v1509 = vpop.f32.mrf.mxu0
    %1510 = vdwg.mxu0
    %1511 = vrot.lane.b32.xlu0 %v1266, 80
    %v1512 = vpop.permute.xlu0 %1511
    %1513 = vrot.lane.b32.xlu0 %v1214, 80
    %v1514 = vpop.permute.xlu0 %1513
    %v1516 = vsel %vm396, %v1512, 0
    %v1519 = vsel %vm396, %v1514, 0
    %1521 = vmatpush.bf16.xpose.msra.mxu0 0
    %1522 = vmatpush.bf16.xpose.msra.mxu0 0
    %1523 = vmatpush.bf16.xpose.msra.mxu0 0
    %1524 = vmatpush.bf16.xpose.msra.mxu0 0
    %1525 = vmatpush.bf16.xpose.msra.mxu0 0
    %1526 = vmatpush.bf16.xpose.msra.mxu0 0
    %1527 = vmatpush.bf16.xpose.msra.mxu0 0
    %1528 = vmatpush.bf16.xpose.msra.mxu0 %v1519
    %1529 = vmatmul.bf16.gmra.mxu0 %v1516
    %v1530 = vpop.f32.mrf.mxu0
    %v1531 = vadd.f32 %v1123, %v1530
    %v1532 = vpop.f32.mrf.mxu0
    %1533 = vdwg.mxu0
    %v1534 = vsel %vm440, %v1508, -inf
    %1535 = vmax.xlane.f32.xlu0 %v1534
    %v1536 = vpop.xlane.xlu0 %1535
    %v1537 = vsel %vm440, %v1531, -inf
    %1538 = vmax.xlane.f32.xlu0 %v1537
    %v1539 = vpop.xlane.xlu0 %1538
    %v1540 = vsub.f32 %v1508, %v1536
    %v1541 = vsub.f32 %v1531, %v1539
    %v1542 = vmul.f32 %v1540, 1.442695
    %v1543 = vpow.pop %v1542
    %v1544 = vmul.f32 %v1541, 1.442695
    %v1545 = vpow.pop %v1544
    %v1546 = vsel %vm440, %v1543, 0.0
    %1547 = vadd.xlane.f32.xlu0 %v1546
    %v1548 = vpop.xlane.xlu0 %1547
    %v1549 = vsel %vm440, %v1545, 0.0
    %1550 = vadd.xlane.f32.xlu0 %v1549
    %v1551 = vpop.xlane.xlu0 %1550
    %v1552 = vrcp.pop %v1548
    %v1553 = vrcp.pop %v1551
    %v1554 = vmul.f32 %v1543, %v1552
    %v1555 = vmul.f32 %v1545, %v1553
    %v1556 = vpack.c.bf16 %v1554, %v1554
    %v1557 = vpack.c.bf16 %v1555, %v1555
    %1558 = vrot.lane.b32.xlu0 %v1190, 16
    %v1559 = vpop.permute.xlu0 %1558
    %v1561 = vsel %vm440, %v1556, 0
    %v1564 = vsel %vm470, %v1559, 0
    %1566 = vmatpush.bf16.msra.mxu0 0
    %1567 = vmatpush.bf16.msra.mxu0 0
    %1568 = vmatpush.bf16.msra.mxu0 0
    %1569 = vmatpush.bf16.msra.mxu0 0
    %1570 = vmatpush.bf16.msra.mxu0 0
    %1571 = vmatpush.bf16.msra.mxu0 0
    %1572 = vmatpush.bf16.msra.mxu0 0
    %1573 = vmatpush.bf16.msra.mxu0 %v1564
    %1574 = vmatmul.bf16.gmra.mxu0 %v1561
    %v1575 = vpop.f32.mrf.mxu0
    %v1576 = vadd.f32 0.0, %v1575
    %v1577 = vpop.f32.mrf.mxu0
    %1578 = vdwg.mxu0
    %1579 = vrot.lane.b32.xlu0 %v1214, 16
    %v1580 = vpop.permute.xlu0 %1579
    %v1582 = vsel %vm440, %v1557, 0
    %v1585 = vsel %vm470, %v1580, 0
    %1587 = vmatpush.bf16.msra.mxu0 0
    %1588 = vmatpush.bf16.msra.mxu0 0
    %1589 = vmatpush.bf16.msra.mxu0 0
    %1590 = vmatpush.bf16.msra.mxu0 0
    %1591 = vmatpush.bf16.msra.mxu0 0
    %1592 = vmatpush.bf16.msra.mxu0 0
    %1593 = vmatpush.bf16.msra.mxu0 0
    %1594 = vmatpush.bf16.msra.mxu0 %v1585
    %1595 = vmatmul.bf16.gmra.mxu0 %v1582
    %v1596 = vpop.f32.mrf.mxu0
    %v1597 = vadd.f32 0.0, %v1596
    %v1598 = vpop.f32.mrf.mxu0
    %1599 = vdwg.mxu0
    %1602 = vrot.lane.b32.xlu0 %v1576, 48
    %v1603 = vpop.permute.xlu0 %1602
    %1604 = vrot.lane.b32.xlu0 %v1597, 48
    %v1605 = vpop.permute.xlu0 %1604
    %1608 = vst.msk [vmem:[#allocation2] sm:$0xff] %vm880, %v1603
    %1609 = vst.msk [vmem:[#allocation2 + $0x8] sm:$0xff] %vm880, %v1605
    %v1610 = vld [vmem:[#allocation2] sm:$0xff]
    %v1611 = vld [vmem:[#allocation2 + $0x8] sm:$0xff]
    %v1612 = vpack.c.bf16 %v1611, %v1610
    %v1613 = vld [vmem:[%s14] sm:$0xf]
    %v1614 = vld [vmem:[%s14 + $0x4] sm:$0xf]
    %v1615 = vld [vmem:[%s14 + $0x8] sm:$0xf]
    %v1616 = vld [vmem:[%s14 + $0xc] sm:$0xf]
    %v1617 = vld [vmem:[%s14 + $0x10] sm:$0xf]
    %v1618 = vld [vmem:[%s14 + $0x14] sm:$0xf]
    %v1619 = vld [vmem:[%s14 + $0x18] sm:$0xf]
    %v1620 = vld [vmem:[%s14 + $0x1c] sm:$0xf]
    %v1621 = vld [vmem:[#allocation11] sm:$0x1]
    %v1623 = vperm.slane %v1621, 0
    %v1633 = vunpack.c.l.b16 %v1613
    %v1634 = vunpack.c.l.b16 %v1614
    %v1635 = vunpack.c.l.b16 %v1615
    %v1636 = vunpack.c.l.b16 %v1616
    %v1637 = vunpack.c.l.b16 %v1617
    %v1638 = vunpack.c.l.b16 %v1618
    %v1639 = vunpack.c.l.b16 %v1619
    %v1640 = vunpack.c.l.b16 %v1620
    %v1641 = vpack.c.b16 %v1634, %v1633
    %v1642 = vpack.c.b16 %v1636, %v1635
    %v1643 = vpack.c.b16 %v1638, %v1637
    %v1644 = vpack.c.b16 %v1640, %v1639
    %v1650 = vsel %vm349, %v1612, 0
    %1652 = vmatpush.bf16.msra.mxu0 0
    %1653 = vmatpush.bf16.msra.mxu0 0
    %1654 = vmatpush.bf16.msra.mxu0 0
    %1655 = vmatpush.bf16.msra.mxu0 0
    %1656 = vmatpush.bf16.msra.mxu0 %v1644
    %1657 = vmatpush.bf16.msra.mxu0 %v1643
    %1658 = vmatpush.bf16.msra.mxu0 %v1642
    %1659 = vmatpush.bf16.msra.mxu0 %v1641
    %1660 = vmatmul.bf16.gmra.mxu0 %v1650
    %v1661 = vpop.f32.mrf.mxu0
    %v1662 = vadd.f32 %v1623, %v1661
    %v1663 = vpop.f32.mrf.mxu0
    %v1664 = vadd.f32 %v1623, %v1663
    %1665 = vdwg.mxu0
    %v1666 = vadd.f32 %v1002, %v1662
    %v1667 = vadd.f32 %v1003, %v1664
    %v1668 = vld [vmem:[#allocation13] sm:$0x1]
    %v1669 = vld [vmem:[#allocation14] sm:$0x1]
    %v1670 = vsel %vm349, %v1666, 0.0
    %1671 = vadd.xlane.f32.xlu0 %v1670
    %v1672 = vpop.xlane.xlu0 %1671
    %v1673 = vsel %vm349, %v1667, 0.0
    %1674 = vadd.xlane.f32.xlu0 %v1673
    %v1675 = vpop.xlane.xlu0 %1674
    %v1676 = vmul.f32 %v1672, %v955
    %v1677 = vmul.f32 %v1675, %v955
    %v1678 = vsub.f32 %v1666, %v1676
    %v1679 = vsub.f32 %v1667, %v1677
    %v1680 = vmul.f32 %v1678, %v1678
    %v1681 = vmul.f32 %v1679, %v1679
    %v1682 = vsel %vm349, %v1680, 0.0
    %1683 = vadd.xlane.f32.xlu0 %v1682
    %v1684 = vpop.xlane.xlu0 %1683
    %v1685 = vsel %vm349, %v1681, 0.0
    %1686 = vadd.xlane.f32.xlu0 %v1685
    %v1687 = vpop.xlane.xlu0 %1686
    %v1688 = vmul.f32 %v1684, %v955
    %v1689 = vmul.f32 %v1687, %v955
    %v1690 = vadd.f32 %v1688, 1e-05
    %v1691 = vadd.f32 %v1689, 1e-05
    %v1692 = vrsqrt.pop %v1690
    %v1693 = vmul.f32 %v1692, %v1690
    %v1694 = vmul.f32 %v1693, %v1692
    %v1695 = vmul.f32 0.5, %v1694
    %v1696 = vsub.f32 1.5, %v1695
    %v1697 = vmul.f32 %v1692, %v1696
    %vm1698 = vweird.f32 %v1690
    %vm1699 = vweird.f32 %v1692
    %vm1700 = vmor %vm1698, %vm1699
    %v1701 = vsel %vm1700, %v1692, %v1697
    %v1702 = vrsqrt.pop %v1691
    %v1703 = vmul.f32 %v1702, %v1691
    %v1704 = vmul.f32 %v1703, %v1702
    %v1705 = vmul.f32 0.5, %v1704
    %v1706 = vsub.f32 1.5, %v1705
    %v1707 = vmul.f32 %v1702, %v1706
    %vm1708 = vweird.f32 %v1691
    %vm1709 = vweird.f32 %v1702
    %vm1710 = vmor %vm1708, %vm1709
    %v1711 = vsel %vm1710, %v1702, %v1707
    %v1712 = vmul.f32 %v1678, %v1701
    %v1713 = vmul.f32 %v1679, %v1711
    %v1715 = vperm.slane %v1668, 0
    %v1717 = vmul.f32 %v1712, %v1715
    %v1718 = vmul.f32 %v1713, %v1715
    %v1720 = vperm.slane %v1669, 0
    %v1722 = vadd.f32 %v1717, %v1720
    %v1723 = vadd.f32 %v1718, %v1720
    %v1724 = vpack.c.bf16 %v1723, %v1722
    %v1725 = vld [vmem:[#allocation16] sm:$0xf]
    %v1726 = vld [vmem:[#allocation16 + $0x4] sm:$0xf]
    %v1727 = vld [vmem:[#allocation16 + $0x8] sm:$0xf]
    %v1728 = vld [vmem:[#allocation16 + $0xc] sm:$0xf]
    %v1729 = vld [vmem:[#allocation16 + $0x10] sm:$0xf]
    %v1730 = vld [vmem:[#allocation16 + $0x14] sm:$0xf]
    %v1731 = vld [vmem:[#allocation16 + $0x18] sm:$0xf]
    %v1732 = vld [vmem:[#allocation16 + $0x1c] sm:$0xf]
    %v1733 = vld [vmem:[#allocation17] sm:$0x1]
    %v1735 = vperm.slane %v1733, 0
    %v1745 = vunpack.c.l.b16 %v1725
    %v1746 = vunpack.c.l.b16 %v1726
    %v1747 = vunpack.c.l.b16 %v1727
    %v1748 = vunpack.c.l.b16 %v1728
    %v1749 = vunpack.c.l.b16 %v1729
    %v1750 = vunpack.c.l.b16 %v1730
    %v1751 = vunpack.c.l.b16 %v1731
    %v1752 = vunpack.c.l.b16 %v1732
    %v1753 = vpack.c.b16 %v1746, %v1745
    %v1754 = vpack.c.b16 %v1748, %v1747
    %v1755 = vpack.c.b16 %v1750, %v1749
    %v1756 = vpack.c.b16 %v1752, %v1751
    %v1762 = vsel %vm349, %v1724, 0
    %1764 = vmatpush.bf16.msra.mxu0 0
    %1765 = vmatpush.bf16.msra.mxu0 0
    %1766 = vmatpush.bf16.msra.mxu0 0
    %1767 = vmatpush.bf16.msra.mxu0 0
    %1768 = vmatpush.bf16.msra.mxu0 %v1756
    %1769 = vmatpush.bf16.msra.mxu0 %v1755
    %1770 = vmatpush.bf16.msra.mxu0 %v1754
    %1771 = vmatpush.bf16.msra.mxu0 %v1753
    %1772 = vmatmul.bf16.gmra.mxu0 %v1762
    %v1773 = vpop.f32.mrf.mxu0
    %v1774 = vadd.f32 %v1735, %v1773
    %v1775 = vpop.f32.mrf.mxu0
    %v1776 = vadd.f32 %v1735, %v1775
    %1777 = vdwg.mxu0
    %v1778 = vmax.f32 %v1774, 0.0
    %v1779 = vmax.f32 %v1776, 0.0
    %v1780 = vpack.c.bf16 %v1779, %v1778
    %v1781 = vld [vmem:[%s20] sm:$0xf]
    %v1782 = vld [vmem:[%s20 + $0x4] sm:$0xf]
    %v1783 = vld [vmem:[%s20 + $0x8] sm:$0xf]
    %v1784 = vld [vmem:[%s20 + $0xc] sm:$0xf]
    %v1785 = vld [vmem:[%s20 + $0x10] sm:$0xf]
    %v1786 = vld [vmem:[%s20 + $0x14] sm:$0xf]
    %v1787 = vld [vmem:[%s20 + $0x18] sm:$0xf]
    %v1788 = vld [vmem:[%s20 + $0x1c] sm:$0xf]
    %v1789 = vld [vmem:[%s20 + $0x20] sm:$0xf]
    %v1790 = vld [vmem:[%s20 + $0x24] sm:$0xf]
    %v1791 = vld [vmem:[%s20 + $0x28] sm:$0xf]
    %v1792 = vld [vmem:[%s20 + $0x2c] sm:$0xf]
    %v1793 = vld [vmem:[%s20 + $0x30] sm:$0xf]
    %v1794 = vld [vmem:[%s20 + $0x34] sm:$0xf]
    %v1795 = vld [vmem:[%s20 + $0x38] sm:$0xf]
    %v1796 = vld [vmem:[%s20 + $0x3c] sm:$0xf]
    %v1797 = vld [vmem:[#allocation19] sm:$0x1]
    %v1799 = vperm.slane %v1797, 0
    %v1817 = vunpack.c.l.b16 %v1781
    %v1818 = vunpack.c.l.b16 %v1782
    %v1819 = vunpack.c.l.b16 %v1783
    %v1820 = vunpack.c.l.b16 %v1784
    %v1821 = vunpack.c.l.b16 %v1785
    %v1822 = vunpack.c.l.b16 %v1786
    %v1823 = vunpack.c.l.b16 %v1787
    %v1824 = vunpack.c.l.b16 %v1788
    %v1825 = vunpack.c.l.b16 %v1789
    %v1826 = vunpack.c.l.b16 %v1790
    %v1827 = vunpack.c.l.b16 %v1791
    %v1828 = vunpack.c.l.b16 %v1792
    %v1829 = vunpack.c.l.b16 %v1793
    %v1830 = vunpack.c.l.b16 %v1794
    %v1831 = vunpack.c.l.b16 %v1795
    %v1832 = vunpack.c.l.b16 %v1796
    %v1833 = vpack.c.b16 %v1818, %v1817
    %v1834 = vpack.c.b16 %v1820, %v1819
    %v1835 = vpack.c.b16 %v1822, %v1821
    %v1836 = vpack.c.b16 %v1824, %v1823
    %v1837 = vpack.c.b16 %v1826, %v1825
    %v1838 = vpack.c.b16 %v1828, %v1827
    %v1839 = vpack.c.b16 %v1830, %v1829
    %v1840 = vpack.c.b16 %v1832, %v1831
    %1849 = vmatpush.bf16.msra.mxu0 %v1840
    %1850 = vmatpush.bf16.msra.mxu0 %v1839
    %1851 = vmatpush.bf16.msra.mxu0 %v1838
    %1852 = vmatpush.bf16.msra.mxu0 %v1837
    %1853 = vmatpush.bf16.msra.mxu0 %v1836
    %1854 = vmatpush.bf16.msra.mxu0 %v1835
    %1855 = vmatpush.bf16.msra.mxu0 %v1834
    %1856 = vmatpush.bf16.msra.mxu0 %v1833
    %1857 = vmatmul.bf16.gmra.mxu0 %v1780
    %v1858 = vpop.f32.mrf.mxu0
    %v1859 = vadd.f32 %v1799, %v1858
    %v1860 = vpop.f32.mrf.mxu0
    %v1861 = vadd.f32 %v1799, %v1860
    %1862 = vdwg.mxu0
    %v1863 = vadd.f32 %v1722, %v1859
    %v1864 = vadd.f32 %v1723, %v1861
    %v1865 = vld [vmem:[#allocation20] sm:$0x1]
    %v1866 = vld [vmem:[#allocation22] sm:$0x1]
    %v1867 = vsel %vm349, %v1863, 0.0
    %1868 = vadd.xlane.f32.xlu0 %v1867
    %v1869 = vpop.xlane.xlu0 %1868
    %v1870 = vsel %vm349, %v1864, 0.0
    %1871 = vadd.xlane.f32.xlu0 %v1870
    %v1872 = vpop.xlane.xlu0 %1871
    %v1873 = vmul.f32 %v1869, %v955
    %v1874 = vmul.f32 %v1872, %v955
    %v1875 = vsub.f32 %v1863, %v1873
    %v1876 = vsub.f32 %v1864, %v1874
    %v1877 = vmul.f32 %v1875, %v1875
    %v1878 = vmul.f32 %v1876, %v1876
    %v1879 = vsel %vm349, %v1877, 0.0
    %1880 = vadd.xlane.f32.xlu0 %v1879
    %v1881 = vpop.xlane.xlu0 %1880
    %v1882 = vsel %vm349, %v1878, 0.0
    %1883 = vadd.xlane.f32.xlu0 %v1882
    %v1884 = vpop.xlane.xlu0 %1883
    %v1885 = vmul.f32 %v1881, %v955
    %v1886 = vmul.f32 %v1884, %v955
    %v1887 = vadd.f32 %v1885, 1e-05
    %v1888 = vadd.f32 %v1886, 1e-05
    %v1889 = vrsqrt.pop %v1887
    %v1890 = vmul.f32 %v1889, %v1887
    %v1891 = vmul.f32 %v1890, %v1889
    %v1892 = vmul.f32 0.5, %v1891
    %v1893 = vsub.f32 1.5, %v1892
    %v1894 = vmul.f32 %v1889, %v1893
    %vm1895 = vweird.f32 %v1887
    %vm1896 = vweird.f32 %v1889
    %vm1897 = vmor %vm1895, %vm1896
    %v1898 = vsel %vm1897, %v1889, %v1894
    %v1899 = vrsqrt.pop %v1888
    %v1900 = vmul.f32 %v1899, %v1888
    %v1901 = vmul.f32 %v1900, %v1899
    %v1902 = vmul.f32 0.5, %v1901
    %v1903 = vsub.f32 1.5, %v1902
    %v1904 = vmul.f32 %v1899, %v1903
    %vm1905 = vweird.f32 %v1888
    %vm1906 = vweird.f32 %v1899
    %vm1907 = vmor %vm1905, %vm1906
    %v1908 = vsel %vm1907, %v1899, %v1904
    %v1909 = vmul.f32 %v1875, %v1898
    %v1910 = vmul.f32 %v1876, %v1908
    %v1912 = vperm.slane %v1865, 0
    %v1914 = vmul.f32 %v1909, %v1912
    %v1915 = vmul.f32 %v1910, %v1912
    %v1917 = vperm.slane %v1866, 0
    %v1919 = vadd.f32 %v1914, %v1917
    %v1920 = vadd.f32 %v1915, %v1917
    %v1921 = vld [vmem:[#allocation23] sm:$0x1]
    %v1922 = vld [vmem:[#allocation25] sm:$0x1]
    %v1923 = vsel %vm349, %v1919, 0.0
    %1924 = vadd.xlane.f32.xlu0 %v1923
    %v1925 = vpop.xlane.xlu0 %1924
    %v1926 = vsel %vm349, %v1920, 0.0
    %1927 = vadd.xlane.f32.xlu0 %v1926
    %v1928 = vpop.xlane.xlu0 %1927
    %v1929 = vmul.f32 %v1925, %v955
    %v1930 = vmul.f32 %v1928, %v955
    %v1931 = vsub.f32 %v1919, %v1929
    %v1932 = vsub.f32 %v1920, %v1930
    %v1933 = vmul.f32 %v1931, %v1931
    %v1934 = vmul.f32 %v1932, %v1932
    %v1935 = vsel %vm349, %v1933, 0.0
    %1936 = vadd.xlane.f32.xlu0 %v1935
    %v1937 = vpop.xlane.xlu0 %1936
    %v1938 = vsel %vm349, %v1934, 0.0
    %1939 = vadd.xlane.f32.xlu0 %v1938
    %v1940 = vpop.xlane.xlu0 %1939
    %v1941 = vmul.f32 %v1937, %v955
    %v1942 = vmul.f32 %v1940, %v955
    %v1943 = vadd.f32 %v1941, 1e-05
    %v1944 = vadd.f32 %v1942, 1e-05
    %v1945 = vrsqrt.pop %v1943
    %v1946 = vmul.f32 %v1945, %v1943
    %v1947 = vmul.f32 %v1946, %v1945
    %v1948 = vmul.f32 0.5, %v1947
    %v1949 = vsub.f32 1.5, %v1948
    %v1950 = vmul.f32 %v1945, %v1949
    %vm1951 = vweird.f32 %v1943
    %vm1952 = vweird.f32 %v1945
    %vm1953 = vmor %vm1951, %vm1952
    %v1954 = vsel %vm1953, %v1945, %v1950
    %v1955 = vrsqrt.pop %v1944
    %v1956 = vmul.f32 %v1955, %v1944
    %v1957 = vmul.f32 %v1956, %v1955
    %v1958 = vmul.f32 0.5, %v1957
    %v1959 = vsub.f32 1.5, %v1958
    %v1960 = vmul.f32 %v1955, %v1959
    %vm1961 = vweird.f32 %v1944
    %vm1962 = vweird.f32 %v1955
    %vm1963 = vmor %vm1961, %vm1962
    %v1964 = vsel %vm1963, %v1955, %v1960
    %v1965 = vmul.f32 %v1931, %v1954
    %v1966 = vmul.f32 %v1932, %v1964
    %v1968 = vperm.slane %v1921, 0
    %v1970 = vmul.f32 %v1965, %v1968
    %v1971 = vmul.f32 %v1966, %v1968
    %v1973 = vperm.slane %v1922, 0
    %v1975 = vadd.f32 %v1970, %v1973
    %v1976 = vadd.f32 %v1971, %v1973
    %v1977 = vpack.c.bf16 %v1976, %v1975
    %v1978 = vld [vmem:[%s26] sm:$0xf]
    %v1979 = vld [vmem:[%s26 + $0x4] sm:$0xf]
    %v1980 = vld [vmem:[%s26 + $0x8] sm:$0xf]
    %v1981 = vld [vmem:[%s26 + $0xc] sm:$0xf]
    %v1982 = vld [vmem:[%s26 + $0x10] sm:$0xf]
    %v1983 = vld [vmem:[%s26 + $0x14] sm:$0xf]
    %v1984 = vld [vmem:[%s26 + $0x18] sm:$0xf]
    %v1985 = vld [vmem:[%s26 + $0x1c] sm:$0xf]
    %v1994 = vunpack.c.l.b16 %v1978
    %v1995 = vunpack.c.l.b16 %v1979
    %v1996 = vunpack.c.l.b16 %v1980
    %v1997 = vunpack.c.l.b16 %v1981
    %v1998 = vunpack.c.l.b16 %v1982
    %v1999 = vunpack.c.l.b16 %v1983
    %v2000 = vunpack.c.l.b16 %v1984
    %v2001 = vunpack.c.l.b16 %v1985
    %v2002 = vpack.c.b16 %v1995, %v1994
    %v2003 = vpack.c.b16 %v1997, %v1996
    %v2004 = vpack.c.b16 %v1999, %v1998
    %v2005 = vpack.c.b16 %v2001, %v2000
    %v2011 = vsel %vm349, %v1977, 0
    %2013 = vmatpush.bf16.msra.mxu0 0
    %2014 = vmatpush.bf16.msra.mxu0 0
    %2015 = vmatpush.bf16.msra.mxu0 0
    %2016 = vmatpush.bf16.msra.mxu0 0
    %2017 = vmatpush.bf16.msra.mxu0 %v2005
    %2018 = vmatpush.bf16.msra.mxu0 %v2004
    %2019 = vmatpush.bf16.msra.mxu0 %v2003
    %2020 = vmatpush.bf16.msra.mxu0 %v2002
    %2021 = vmatmul.bf16.gmra.mxu0 %v2011
    %v2022 = vpop.f32.mrf.mxu0
    %v2023 = vadd.f32 0.0, %v2022
    %v2024 = vpop.f32.mrf.mxu0
    %v2025 = vadd.f32 0.0, %v2024
    %2026 = vdwg.mxu0
    %2027 = vst [vmem:[%s27] sm:$0xff] %v2023
    %2028 = vst [vmem:[%s27 + $0x8] sm:$0xff] %v2025
    // Predicated region
    $region170: #{traj_transformer_forward.11} parent=1 // pred_check
      _
    $region171: #{traj_transformer_forward.11} parent=1 // pred_check_branch
      %2030 = sbr.rel (0) target = $region173
    $region172: #{traj_transformer_forward.11} parent=1 // pred_region
      _
    $region173: #{traj_transformer_forward.11} parent=1 // pred_fallthru
      _
    // Predicated region
    $region174: #{traj_transformer_forward.11} parent=1 // pred_check
      _
    $region175: #{traj_transformer_forward.11} parent=1 // pred_check_branch
      %2032 = sbr.rel (0) target = $region177
    $region176: #{traj_transformer_forward.11} parent=1 // pred_region
      _
    $region177: #{traj_transformer_forward.11} parent=1 // pred_fallthru
      _
    %2033 = vsyncpa [#allocation4], 1
    %2034 = vsyncpa [#allocation6], 1
    %2035 = vsyncpa [#allocation9], 1
    %2036 = vsyncpa [#allocation12], 1
    %2037 = vsyncpa [#allocation15], 1
    %2038 = vsyncpa [#allocation18], 1
    %2039 = vsyncpa [#allocation21], 1
    %2040 = vsyncpa [#allocation24], 1

</llo_original>
